<compile_context>
chip_gen: v6e
topology: v6e:2x2x1
jax: 0.10.0
libtpu: 0.0.40
codegen_flags: <defaults>
</compile_context>

<pallas_src>
import functools
import math

import jax
import jax.numpy as jnp
import numpy as np
from jax.experimental import pallas as pl
from jax.experimental.pallas import tpu as pltpu

# ----- physical constants (from ResonanceConstants) -------------------------
EPSILON_0 = 8.854187817e-12
H_BAR = 1.054571817e-34
C_LIGHT = 299792458.0
LN_EPS = 1e-5                      # torch.nn.LayerNorm default eps
_INV_SQRT2 = 1.0 / math.sqrt(2.0)
_WL_SCALE = H_BAR * C_LIGHT

# ----- model dimensions (fixed, matching the PyTorch defaults) ---------------
FIELD_DIM = 64
GEOM_DIM = 32
LOOP_DIM = 32
N_RESONATORS = 8
N_LEVELS = 4
N_ITERATIONS = 8


# ----- in-kernel helpers ------------------------------------------------------
def _gelu(y):
    # exact (erf-based) GELU, matching torch.nn.GELU() default
    return 0.5 * y * (1.0 + jax.lax.erf(y * jnp.float32(_INV_SQRT2)))


def _ln(y, g, beta):
    # LayerNorm over full last dim (biased variance, matching torch)
    mean = jnp.mean(y, axis=-1, keepdims=True)
    var = jnp.mean((y - mean) ** 2, axis=-1, keepdims=True)
    return (y - mean) * jax.lax.rsqrt(var + jnp.float32(LN_EPS)) * g + beta


def _ln_group(y, g, beta, m_red, m_bc):
    # Per-group LayerNorm via FACTORED group-stat matmuls (no dense block-diag
    # matrix, no lane-crossing reshapes):
    #   mean_full = (y @ M_reduce) @ M_bcast
    mean = jnp.dot(jnp.dot(y, m_red, preferred_element_type=jnp.float32),
                   m_bc, preferred_element_type=jnp.float32)
    d = y - mean
    var = jnp.dot(jnp.dot(d * d, m_red, preferred_element_type=jnp.float32),
                  m_bc, preferred_element_type=jnp.float32)
    return d * jax.lax.rsqrt(var + jnp.float32(LN_EPS)) * g + beta


# ----- the single fused forward kernel ---------------------------------------
def _fused_forward_kernel(
        x_ref,
        mred64_ref, mbc64_ref, mred32_ref, mbc32_ref,    # factored group-stat mats
        wr_ref, br_ref, gr_ref, betar_ref,               # resonators (stacked)
        wm_ref, bm_ref, gm_ref, betam_ref,               # modulators (block-diag, scale folded)
        wf_ref, bf_ref, gf_ref, betaf_ref,               # field integrator
        wg0_ref, wgp_ref, bgp_ref, ggp_ref, betagp_ref,  # geometry processors
        wgm_ref, bgm_ref, ggm_ref, betagm_ref,           # wavelength modulators
        wl_ref, bl_ref, gl_ref, betal_ref,               # loop processors (stacked)
        wli_ref, bli_ref, gli_ref, betali_ref,           # loop integrator
        wu_ref, bu_ref, gu_ref, betau_ref,               # unified integrator
        o_ref, *, invert_loop):
    f32 = jnp.float32
    x = x_ref[...]

    mred64 = mred64_ref[...]   # (512, 8)
    mbc64 = mbc64_ref[...]     # (8, 512)
    mred32 = mred32_ref[...]   # (256, 8)
    mbc32 = mbc32_ref[...]     # (8, 256)

    # ---- MorphogeneticField: 8 resonators as one (B, 512) matmul ----
    h = jnp.dot(x, wr_ref[...], preferred_element_type=f32) + br_ref[...]
    field = _gelu(_ln_group(h, gr_ref[...], betar_ref[...], mred64, mbc64))

    # 8 epsilon modulators as one block-diagonal (512, 512) matmul; the
    # resonance scale (epsilon_0 / omega*pi / 1/(pi*eps0)) is folded into the
    # weights host-side, so this equals modulator(field * scale).
    h = jnp.dot(field, wm_ref[...], preferred_element_type=f32) + bm_ref[...]
    modulated = jnp.tanh(_ln_group(h, gm_ref[...], betam_ref[...], mred64, mbc64))

    # field integrator: the (B, 512) slab is already the concatenated layout.
    h = jnp.dot(modulated, wf_ref[...], preferred_element_type=f32) + bf_ref[...]
    integrated_field = _gelu(_ln(h, gf_ref[...], betaf_ref[...]))

    # ---- QuantumGeometryTuner: 4 sequential levels, all in VMEM ----
    current = integrated_field
    for i in range(N_LEVELS):
        w_proc = wg0_ref[...] if i == 0 else wgp_ref[i - 1]
        h = jnp.dot(current, w_proc, preferred_element_type=f32) + bgp_ref[i]
        geometry = _gelu(_ln(h, ggp_ref[i], betagp_ref[i]))
        h = jnp.dot(geometry, wgm_ref[i], preferred_element_type=f32) + bgm_ref[i]
        wavelength = jnp.tanh(_ln(h, ggm_ref[i], betagm_ref[i]))
        current = wavelength * f32(_WL_SCALE)
    final_geometry = current

    # ---- StrangeLoopController: 8 processors as one (B, 256) matmul ----
    h = jnp.dot(final_geometry, wl_ref[...], preferred_element_type=f32) + bl_ref[...]
    loop = _gelu(_ln_group(h, gl_ref[...], betal_ref[...], mred32, mbc32)) * f32(EPSILON_0)
    if invert_loop:
        # NOTE: matches the PyTorch model exactly (can produce inf when the
        # GELU output is exactly 0); semantics preserved on purpose.
        loop = 1.0 / loop
    h = jnp.dot(loop, wli_ref[...], preferred_element_type=f32) + bli_ref[...]
    integrated_loop = _gelu(_ln(h, gli_ref[...], betali_ref[...]))

    # ---- unified integration: split matmul instead of a lane concat ----
    wu = wu_ref[...]
    h = (jnp.dot(integrated_field, wu[:FIELD_DIM, :],
                 preferred_element_type=f32)
         + jnp.dot(final_geometry, wu[FIELD_DIM:FIELD_DIM + GEOM_DIM, :],
                   preferred_element_type=f32)
         + jnp.dot(integrated_loop, wu[FIELD_DIM + GEOM_DIM:, :],
                   preferred_element_type=f32)
         + bu_ref[...])
    o_ref[...] = _gelu(_ln(h, gu_ref[...], betau_ref[...]))


# ----- deterministic parameter initialization ---------------------------------
def _init_block(key, fan_in, fan_out):
    """Linear (PyTorch-style uniform init) + LayerNorm(gamma=1, beta=0)."""
    kw, kb = jax.random.split(key)
    bound = 1.0 / math.sqrt(fan_in)
    W = jax.random.uniform(kw, (fan_in, fan_out), jnp.float32, -bound, bound)
    b = jax.random.uniform(kb, (fan_out,), jnp.float32, -bound, bound)
    return {"W": W, "b": b,
            "g": jnp.ones((fan_out,), jnp.float32),
            "beta": jnp.zeros((fan_out,), jnp.float32)}


def init_params(key, input_dim, field_dim=FIELD_DIM, geometry_dim=GEOM_DIM,
                loop_dim=LOOP_DIM, n_resonators=N_RESONATORS,
                n_levels=N_LEVELS, n_iterations=N_ITERATIONS):
    n_keys = n_resonators * 2 + 1 + n_levels * 2 + n_iterations + 1 + 1
    keys = iter(jax.random.split(key, n_keys))
    p = {}
    p["resonators"] = [_init_block(next(keys), input_dim, field_dim)
                       for _ in range(n_resonators)]
    p["modulators"] = [_init_block(next(keys), field_dim, field_dim)
                       for _ in range(n_resonators)]
    p["field_integrator"] = _init_block(next(keys), field_dim * n_resonators,
                                        field_dim)
    p["geom_proc"] = [_init_block(next(keys),
                                  field_dim if i == 0 else geometry_dim,
                                  geometry_dim)
                      for i in range(n_levels)]
    p["geom_mod"] = [_init_block(next(keys), geometry_dim, geometry_dim)
                     for _ in range(n_levels)]
    p["loop_proc"] = [_init_block(next(keys), geometry_dim, loop_dim)
                      for _ in range(n_iterations)]
    p["loop_integrator"] = _init_block(next(keys), loop_dim * n_iterations,
                                       loop_dim)
    p["unified_integrator"] = _init_block(
        next(keys), field_dim + geometry_dim + loop_dim, input_dim)
    return p


# ----- one-time host-side packing into kernel-ready tensors -------------------
def _group_stat_mats(n, group):
    # M_reduce: (n, n/group) with 1/group on group membership
    # M_bcast : (n/group, n) group-membership indicator (ones)
    grp = np.arange(n) // group
    onehot = (grp[:, None] == np.arange(n // group)[None, :]).astype(np.float32)
    return jnp.asarray(onehot / group), jnp.asarray(onehot.T)


def pack_params(p, resonance_type="EPSILON_ZERO"):
    """Pack model params ONCE (outside the jitted forward) into stacked,
    kernel-ready tensors.  The resonance scale is folded into the modulator
    weights here, so the packed tuple is specific to `resonance_type`."""
    if resonance_type == "EPSILON_ZERO":
        rscale = EPSILON_0
    elif resonance_type == "OMEGA_PI":
        rscale = (2.0 * math.pi) * math.pi
    else:  # INVERSE_LOOP
        rscale = 1.0 / (math.pi * EPSILON_0)

    def cat1(key, blocks):
        return jnp.concatenate([b[key] for b in blocks])[None, :]

    mred64, mbc64 = _group_stat_mats(N_RESONATORS * FIELD_DIM, FIELD_DIM)
    mred32, mbc32 = _group_stat_mats(N_ITERATIONS * LOOP_DIM, LOOP_DIM)

    res = p["resonators"]
    wr = jnp.concatenate([b["W"] for b in res], axis=1)           # (in, 512)
    br, gr, betar = cat1("b", res), cat1("g", res), cat1("beta", res)

    mods = p["modulators"]
    F = FIELD_DIM
    wm = jnp.zeros((N_RESONATORS * F, N_RESONATORS * F), jnp.float32)
    for r, blk in enumerate(mods):                                # block-diag
        wm = wm.at[r * F:(r + 1) * F, r * F:(r + 1) * F].set(
            jnp.float32(rscale) * blk["W"])                       # fold scale
    bm, gmm, betam = cat1("b", mods), cat1("g", mods), cat1("beta", mods)

    fi = p["field_integrator"]
    wf, bf, gf, betaf = (fi["W"], fi["b"][None, :],
                         fi["g"][None, :], fi["beta"][None, :])

    gp = p["geom_proc"]
    wg0 = gp[0]["W"]                                              # (64, 32)
    wgp = jnp.stack([gp[i]["W"] for i in range(1, N_LEVELS)])     # (3, 32, 32)
    bgp = jnp.stack([b["b"][None, :] for b in gp])                # (4, 1, 32)
    ggp = jnp.stack([b["g"][None, :] for b in gp])
    betagp = jnp.stack([b["beta"][None, :] for b in gp])

    gmod = p["geom_mod"]
    wgm = jnp.stack([b["W"] for b in gmod])                       # (4, 32, 32)
    bgm = jnp.stack([b["b"][None, :] for b in gmod])
    ggm = jnp.stack([b["g"][None, :] for b in gmod])
    betagm = jnp.stack([b["beta"][None, :] for b in gmod])

    lp = p["loop_proc"]
    wl = jnp.concatenate([b["W"] for b in lp], axis=1)            # (32, 256)
    bl, gl, betal = cat1("b", lp), cat1("g", lp), cat1("beta", lp)

    li = p["loop_integrator"]
    wli, bli, gli, betali = (li["W"], li["b"][None, :],
                             li["g"][None, :], li["beta"][None, :])

    u = p["unified_integrator"]
    wu, bu, gu, betau = (u["W"], u["b"][None, :],
                         u["g"][None, :], u["beta"][None, :])

    packed = (mred64, mbc64, mred32, mbc32,
              wr, br, gr, betar,
              wm, bm, gmm, betam,
              wf, bf, gf, betaf,
              wg0, wgp, bgp, ggp, betagp,
              wgm, bgm, ggm, betagm,
              wl, bl, gl, betal,
              wli, bli, gli, betali,
              wu, bu, gu, betau)
    # materialize now so no packing work is left for the per-call path
    return jax.tree.map(jnp.asarray, packed)


# ----- full forward pass (one pallas_call) ------------------------------------
@functools.partial(jax.jit, static_argnames=("invert_loop",))
def unified_resonance_forward(packed, x, invert_loop=False):
    B, input_dim = x.shape

    # Tile the batch for large B; weights stay resident (constant index_map)
    # and the batch axis is "parallel" so v7x's two TensorCores split it.
    block_b = B
    if B > 256 and B % 256 == 0:
        block_b = 256
    nb = B // block_b

    kernel = functools.partial(_fused_forward_kernel,
                               invert_loop=bool(invert_loop))

    def _const_map(ndim):
        return lambda i, _n=ndim: (0,) * _n

    in_specs = ([pl.BlockSpec((block_b, input_dim), lambda i: (i, 0))]
                + [pl.BlockSpec(a.shape, _const_map(a.ndim)) for a in packed])

    out = pl.pallas_call(
        kernel,
        out_shape=jax.ShapeDtypeStruct((B, input_dim), jnp.float32),
        grid=(nb,),
        in_specs=in_specs,
        out_specs=pl.BlockSpec((block_b, input_dim), lambda i: (i, 0)),
        compiler_params=pltpu.CompilerParams(
            dimension_semantics=("parallel",)),
        cost_estimate=pl.CostEstimate(
            flops=12_500_000 * nb,
            transcendentals=30_000 * nb,
            bytes_accessed=1_400_000 + 2 * B * input_dim * 4),
    )(x, *packed)
    return {"output": out}


if __name__ == "__main__":
    key = jax.random.PRNGKey(0)
    k_params, k_x = jax.random.split(key)

    input_dim = 32
    batch = 16

    params = init_params(k_params, input_dim)
    # pack ONCE (outside the jitted per-call path) and reuse for every forward
    packed = pack_params(params, resonance_type="EPSILON_ZERO")

    x = jax.random.normal(k_x, (batch, input_dim), jnp.float32)

    out = unified_resonance_forward(packed, x)
    jax.block_until_ready(out["output"])
    assert out["output"].shape == (batch, input_dim)
    print("KERNEL_OK")
</pallas_src>

<mosaic_0001>
module attributes {stable_mosaic.version = 11 : i64} {
  func.func @_fused_forward_kernel(%arg0: i32, %arg1: memref<16x32xf32, #tpu.memory_space<vmem>>, %arg2: memref<512x8xf32, #tpu.memory_space<vmem>>, %arg3: memref<8x512xf32, #tpu.memory_space<vmem>>, %arg4: memref<256x8xf32, #tpu.memory_space<vmem>>, %arg5: memref<8x256xf32, #tpu.memory_space<vmem>>, %arg6: memref<32x512xf32, #tpu.memory_space<vmem>>, %arg7: memref<1x512xf32, #tpu.memory_space<vmem>>, %arg8: memref<1x512xf32, #tpu.memory_space<vmem>>, %arg9: memref<1x512xf32, #tpu.memory_space<vmem>>, %arg10: memref<512x512xf32, #tpu.memory_space<vmem>>, %arg11: memref<1x512xf32, #tpu.memory_space<vmem>>, %arg12: memref<1x512xf32, #tpu.memory_space<vmem>>, %arg13: memref<1x512xf32, #tpu.memory_space<vmem>>, %arg14: memref<512x64xf32, #tpu.memory_space<vmem>>, %arg15: memref<1x64xf32, #tpu.memory_space<vmem>>, %arg16: memref<1x64xf32, #tpu.memory_space<vmem>>, %arg17: memref<1x64xf32, #tpu.memory_space<vmem>>, %arg18: memref<64x32xf32, #tpu.memory_space<vmem>>, %arg19: memref<3x32x32xf32, #tpu.memory_space<vmem>>, %arg20: memref<4x1x32xf32, #tpu.memory_space<vmem>>, %arg21: memref<4x1x32xf32, #tpu.memory_space<vmem>>, %arg22: memref<4x1x32xf32, #tpu.memory_space<vmem>>, %arg23: memref<4x32x32xf32, #tpu.memory_space<vmem>>, %arg24: memref<4x1x32xf32, #tpu.memory_space<vmem>>, %arg25: memref<4x1x32xf32, #tpu.memory_space<vmem>>, %arg26: memref<4x1x32xf32, #tpu.memory_space<vmem>>, %arg27: memref<32x256xf32, #tpu.memory_space<vmem>>, %arg28: memref<1x256xf32, #tpu.memory_space<vmem>>, %arg29: memref<1x256xf32, #tpu.memory_space<vmem>>, %arg30: memref<1x256xf32, #tpu.memory_space<vmem>>, %arg31: memref<256x32xf32, #tpu.memory_space<vmem>>, %arg32: memref<1x32xf32, #tpu.memory_space<vmem>>, %arg33: memref<1x32xf32, #tpu.memory_space<vmem>>, %arg34: memref<1x32xf32, #tpu.memory_space<vmem>>, %arg35: memref<128x32xf32, #tpu.memory_space<vmem>>, %arg36: memref<1x32xf32, #tpu.memory_space<vmem>>, %arg37: memref<1x32xf32, #tpu.memory_space<vmem>>, %arg38: memref<1x32xf32, #tpu.memory_space<vmem>>, %arg39: memref<16x32xf32, #tpu.memory_space<vmem>>) attributes {dimension_semantics = [#tpu.dimension_semantics<parallel>], iteration_bounds = array<i64: 1>, scalar_prefetch = 0 : i64, scratch_operands = 0 : i64, tpu.core_type = #tpu.core_type<tc>, window_params = [{transform_indices = @transform_0, window_bounds = array<i64: 16, 32>}, {pipeline_mode = #tpu.pipeline_mode<synchronous>, transform_indices = @transform_1, window_bounds = array<i64: 512, 8>}, {pipeline_mode = #tpu.pipeline_mode<synchronous>, transform_indices = @transform_2, window_bounds = array<i64: 8, 512>}, {pipeline_mode = #tpu.pipeline_mode<synchronous>, transform_indices = @transform_3, window_bounds = array<i64: 256, 8>}, {pipeline_mode = #tpu.pipeline_mode<synchronous>, transform_indices = @transform_4, window_bounds = array<i64: 8, 256>}, {pipeline_mode = #tpu.pipeline_mode<synchronous>, transform_indices = @transform_5, window_bounds = array<i64: 32, 512>}, {pipeline_mode = #tpu.pipeline_mode<synchronous>, transform_indices = @transform_6, window_bounds = array<i64: 1, 512>}, {pipeline_mode = #tpu.pipeline_mode<synchronous>, transform_indices = @transform_7, window_bounds = array<i64: 1, 512>}, {pipeline_mode = #tpu.pipeline_mode<synchronous>, transform_indices = @transform_8, window_bounds = array<i64: 1, 512>}, {pipeline_mode = #tpu.pipeline_mode<synchronous>, transform_indices = @transform_9, window_bounds = array<i64: 512, 512>}, {pipeline_mode = #tpu.pipeline_mode<synchronous>, transform_indices = @transform_10, window_bounds = array<i64: 1, 512>}, {pipeline_mode = #tpu.pipeline_mode<synchronous>, transform_indices = @transform_11, window_bounds = array<i64: 1, 512>}, {pipeline_mode = #tpu.pipeline_mode<synchronous>, transform_indices = @transform_12, window_bounds = array<i64: 1, 512>}, {pipeline_mode = #tpu.pipeline_mode<synchronous>, transform_indices = @transform_13, window_bounds = array<i64: 512, 64>}, {pipeline_mode = #tpu.pipeline_mode<synchronous>, transform_indices = @transform_14, window_bounds = array<i64: 1, 64>}, {pipeline_mode = #tpu.pipeline_mode<synchronous>, transform_indices = @transform_15, window_bounds = array<i64: 1, 64>}, {pipeline_mode = #tpu.pipeline_mode<synchronous>, transform_indices = @transform_16, window_bounds = array<i64: 1, 64>}, {pipeline_mode = #tpu.pipeline_mode<synchronous>, transform_indices = @transform_17, window_bounds = array<i64: 64, 32>}, {pipeline_mode = #tpu.pipeline_mode<synchronous>, transform_indices = @transform_18, window_bounds = array<i64: 3, 32, 32>}, {pipeline_mode = #tpu.pipeline_mode<synchronous>, transform_indices = @transform_19, window_bounds = array<i64: 4, 1, 32>}, {pipeline_mode = #tpu.pipeline_mode<synchronous>, transform_indices = @transform_20, window_bounds = array<i64: 4, 1, 32>}, {pipeline_mode = #tpu.pipeline_mode<synchronous>, transform_indices = @transform_21, window_bounds = array<i64: 4, 1, 32>}, {pipeline_mode = #tpu.pipeline_mode<synchronous>, transform_indices = @transform_22, window_bounds = array<i64: 4, 32, 32>}, {pipeline_mode = #tpu.pipeline_mode<synchronous>, transform_indices = @transform_23, window_bounds = array<i64: 4, 1, 32>}, {pipeline_mode = #tpu.pipeline_mode<synchronous>, transform_indices = @transform_24, window_bounds = array<i64: 4, 1, 32>}, {pipeline_mode = #tpu.pipeline_mode<synchronous>, transform_indices = @transform_25, window_bounds = array<i64: 4, 1, 32>}, {pipeline_mode = #tpu.pipeline_mode<synchronous>, transform_indices = @transform_26, window_bounds = array<i64: 32, 256>}, {pipeline_mode = #tpu.pipeline_mode<synchronous>, transform_indices = @transform_27, window_bounds = array<i64: 1, 256>}, {pipeline_mode = #tpu.pipeline_mode<synchronous>, transform_indices = @transform_28, window_bounds = array<i64: 1, 256>}, {pipeline_mode = #tpu.pipeline_mode<synchronous>, transform_indices = @transform_29, window_bounds = array<i64: 1, 256>}, {pipeline_mode = #tpu.pipeline_mode<synchronous>, transform_indices = @transform_30, window_bounds = array<i64: 256, 32>}, {pipeline_mode = #tpu.pipeline_mode<synchronous>, transform_indices = @transform_31, window_bounds = array<i64: 1, 32>}, {pipeline_mode = #tpu.pipeline_mode<synchronous>, transform_indices = @transform_32, window_bounds = array<i64: 1, 32>}, {pipeline_mode = #tpu.pipeline_mode<synchronous>, transform_indices = @transform_33, window_bounds = array<i64: 1, 32>}, {pipeline_mode = #tpu.pipeline_mode<synchronous>, transform_indices = @transform_34, window_bounds = array<i64: 128, 32>}, {pipeline_mode = #tpu.pipeline_mode<synchronous>, transform_indices = @transform_35, window_bounds = array<i64: 1, 32>}, {pipeline_mode = #tpu.pipeline_mode<synchronous>, transform_indices = @transform_36, window_bounds = array<i64: 1, 32>}, {pipeline_mode = #tpu.pipeline_mode<synchronous>, transform_indices = @transform_37, window_bounds = array<i64: 1, 32>}, {transform_indices = @transform_38, window_bounds = array<i64: 16, 32>}]} {
    %c0 = arith.constant 0 : index
    %c0_0 = arith.constant 0 : index
    %0 = vector.load %arg1[%c0, %c0_0] : memref<16x32xf32, #tpu.memory_space<vmem>>, vector<16x32xf32>
    %c0_1 = arith.constant 0 : index
    %c0_2 = arith.constant 0 : index
    %1 = vector.load %arg2[%c0_1, %c0_2] : memref<512x8xf32, #tpu.memory_space<vmem>>, vector<512x8xf32>
    %c0_3 = arith.constant 0 : index
    %c0_4 = arith.constant 0 : index
    %2 = vector.load %arg3[%c0_3, %c0_4] : memref<8x512xf32, #tpu.memory_space<vmem>>, vector<8x512xf32>
    %c0_5 = arith.constant 0 : index
    %c0_6 = arith.constant 0 : index
    %3 = vector.load %arg4[%c0_5, %c0_6] : memref<256x8xf32, #tpu.memory_space<vmem>>, vector<256x8xf32>
    %c0_7 = arith.constant 0 : index
    %c0_8 = arith.constant 0 : index
    %4 = vector.load %arg5[%c0_7, %c0_8] : memref<8x256xf32, #tpu.memory_space<vmem>>, vector<8x256xf32>
    %c0_9 = arith.constant 0 : index
    %c0_10 = arith.constant 0 : index
    %5 = vector.load %arg6[%c0_9, %c0_10] : memref<32x512xf32, #tpu.memory_space<vmem>>, vector<32x512xf32>
    %cst = arith.constant dense<0.000000e+00> : vector<16x512xf32>
    %6 = tpu.matmul %0, %5, %cst {dimension_numbers = #tpu.dot_dimension_numbers<[1], [0], [0], [1], [0, 0, 1, 1], [], []>} : vector<16x32xf32>, vector<32x512xf32>, vector<16x512xf32> -> vector<16x512xf32>
    %c0_11 = arith.constant 0 : index
    %c0_12 = arith.constant 0 : index
    %7 = vector.load %arg7[%c0_11, %c0_12] : memref<1x512xf32, #tpu.memory_space<vmem>>, vector<1x512xf32>
    %8 = vector.broadcast %7 : vector<1x512xf32> to vector<16x512xf32>
    %9 = arith.addf %6, %8 : vector<16x512xf32>
    %c0_13 = arith.constant 0 : index
    %c0_14 = arith.constant 0 : index
    %10 = vector.load %arg8[%c0_13, %c0_14] : memref<1x512xf32, #tpu.memory_space<vmem>>, vector<1x512xf32>
    %c0_15 = arith.constant 0 : index
    %c0_16 = arith.constant 0 : index
    %11 = vector.load %arg9[%c0_15, %c0_16] : memref<1x512xf32, #tpu.memory_space<vmem>>, vector<1x512xf32>
    %cst_17 = arith.constant dense<0.000000e+00> : vector<16x8xf32>
    %12 = tpu.matmul %9, %1, %cst_17 {dimension_numbers = #tpu.dot_dimension_numbers<[1], [0], [0], [1], [0, 0, 1, 1], [], []>} : vector<16x512xf32>, vector<512x8xf32>, vector<16x8xf32> -> vector<16x8xf32>
    %cst_18 = arith.constant dense<0.000000e+00> : vector<16x512xf32>
    %13 = tpu.matmul %12, %2, %cst_18 {dimension_numbers = #tpu.dot_dimension_numbers<[1], [0], [0], [1], [0, 0, 1, 1], [], []>} : vector<16x8xf32>, vector<8x512xf32>, vector<16x512xf32> -> vector<16x512xf32>
    %14 = arith.subf %9, %13 : vector<16x512xf32>
    %15 = arith.mulf %14, %14 : vector<16x512xf32>
    %cst_19 = arith.constant dense<0.000000e+00> : vector<16x8xf32>
    %16 = tpu.matmul %15, %1, %cst_19 {dimension_numbers = #tpu.dot_dimension_numbers<[1], [0], [0], [1], [0, 0, 1, 1], [], []>} : vector<16x512xf32>, vector<512x8xf32>, vector<16x8xf32> -> vector<16x8xf32>
    %cst_20 = arith.constant dense<0.000000e+00> : vector<16x512xf32>
    %17 = tpu.matmul %16, %2, %cst_20 {dimension_numbers = #tpu.dot_dimension_numbers<[1], [0], [0], [1], [0, 0, 1, 1], [], []>} : vector<16x8xf32>, vector<8x512xf32>, vector<16x512xf32> -> vector<16x512xf32>
    %cst_21 = arith.constant 9.99999974E-6 : f32
    %18 = vector.broadcast %cst_21 : f32 to vector<16x512xf32>
    %19 = arith.addf %17, %18 : vector<16x512xf32>
    %20 = math.rsqrt %19 : vector<16x512xf32>
    %21 = arith.mulf %14, %20 : vector<16x512xf32>
    %22 = vector.broadcast %10 : vector<1x512xf32> to vector<16x512xf32>
    %23 = arith.mulf %21, %22 : vector<16x512xf32>
    %24 = vector.broadcast %11 : vector<1x512xf32> to vector<16x512xf32>
    %25 = arith.addf %23, %24 : vector<16x512xf32>
    %cst_22 = arith.constant 5.000000e-01 : f32
    %26 = vector.broadcast %cst_22 : f32 to vector<16x512xf32>
    %27 = arith.mulf %26, %25 : vector<16x512xf32>
    %cst_23 = arith.constant 0.707106769 : f32
    %28 = vector.broadcast %cst_23 : f32 to vector<16x512xf32>
    %29 = arith.mulf %25, %28 : vector<16x512xf32>
    %30 = math.erf %29 : vector<16x512xf32>
    %cst_24 = arith.constant 1.000000e+00 : f32
    %31 = vector.broadcast %cst_24 : f32 to vector<16x512xf32>
    %32 = arith.addf %31, %30 : vector<16x512xf32>
    %33 = arith.mulf %27, %32 : vector<16x512xf32>
    %c0_25 = arith.constant 0 : index
    %c0_26 = arith.constant 0 : index
    %34 = vector.load %arg10[%c0_25, %c0_26] : memref<512x512xf32, #tpu.memory_space<vmem>>, vector<512x512xf32>
    %cst_27 = arith.constant dense<0.000000e+00> : vector<16x512xf32>
    %35 = tpu.matmul %33, %34, %cst_27 {dimension_numbers = #tpu.dot_dimension_numbers<[1], [0], [0], [1], [0, 0, 1, 1], [], []>} : vector<16x512xf32>, vector<512x512xf32>, vector<16x512xf32> -> vector<16x512xf32>
    %c0_28 = arith.constant 0 : index
    %c0_29 = arith.constant 0 : index
    %36 = vector.load %arg11[%c0_28, %c0_29] : memref<1x512xf32, #tpu.memory_space<vmem>>, vector<1x512xf32>
    %37 = vector.broadcast %36 : vector<1x512xf32> to vector<16x512xf32>
    %38 = arith.addf %35, %37 : vector<16x512xf32>
    %c0_30 = arith.constant 0 : index
    %c0_31 = arith.constant 0 : index
    %39 = vector.load %arg12[%c0_30, %c0_31] : memref<1x512xf32, #tpu.memory_space<vmem>>, vector<1x512xf32>
    %c0_32 = arith.constant 0 : index
    %c0_33 = arith.constant 0 : index
    %40 = vector.load %arg13[%c0_32, %c0_33] : memref<1x512xf32, #tpu.memory_space<vmem>>, vector<1x512xf32>
    %cst_34 = arith.constant dense<0.000000e+00> : vector<16x8xf32>
    %41 = tpu.matmul %38, %1, %cst_34 {dimension_numbers = #tpu.dot_dimension_numbers<[1], [0], [0], [1], [0, 0, 1, 1], [], []>} : vector<16x512xf32>, vector<512x8xf32>, vector<16x8xf32> -> vector<16x8xf32>
    %cst_35 = arith.constant dense<0.000000e+00> : vector<16x512xf32>
    %42 = tpu.matmul %41, %2, %cst_35 {dimension_numbers = #tpu.dot_dimension_numbers<[1], [0], [0], [1], [0, 0, 1, 1], [], []>} : vector<16x8xf32>, vector<8x512xf32>, vector<16x512xf32> -> vector<16x512xf32>
    %43 = arith.subf %38, %42 : vector<16x512xf32>
    %44 = arith.mulf %43, %43 : vector<16x512xf32>
    %cst_36 = arith.constant dense<0.000000e+00> : vector<16x8xf32>
    %45 = tpu.matmul %44, %1, %cst_36 {dimension_numbers = #tpu.dot_dimension_numbers<[1], [0], [0], [1], [0, 0, 1, 1], [], []>} : vector<16x512xf32>, vector<512x8xf32>, vector<16x8xf32> -> vector<16x8xf32>
    %cst_37 = arith.constant dense<0.000000e+00> : vector<16x512xf32>
    %46 = tpu.matmul %45, %2, %cst_37 {dimension_numbers = #tpu.dot_dimension_numbers<[1], [0], [0], [1], [0, 0, 1, 1], [], []>} : vector<16x8xf32>, vector<8x512xf32>, vector<16x512xf32> -> vector<16x512xf32>
    %cst_38 = arith.constant 9.99999974E-6 : f32
    %47 = vector.broadcast %cst_38 : f32 to vector<16x512xf32>
    %48 = arith.addf %46, %47 : vector<16x512xf32>
    %49 = math.rsqrt %48 : vector<16x512xf32>
    %50 = arith.mulf %43, %49 : vector<16x512xf32>
    %51 = vector.broadcast %39 : vector<1x512xf32> to vector<16x512xf32>
    %52 = arith.mulf %50, %51 : vector<16x512xf32>
    %53 = vector.broadcast %40 : vector<1x512xf32> to vector<16x512xf32>
    %54 = arith.addf %52, %53 : vector<16x512xf32>
    %55 = math.tanh %54 : vector<16x512xf32>
    %c0_39 = arith.constant 0 : index
    %c0_40 = arith.constant 0 : index
    %56 = vector.load %arg14[%c0_39, %c0_40] : memref<512x64xf32, #tpu.memory_space<vmem>>, vector<512x64xf32>
    %cst_41 = arith.constant dense<0.000000e+00> : vector<16x64xf32>
    %57 = tpu.matmul %55, %56, %cst_41 {dimension_numbers = #tpu.dot_dimension_numbers<[1], [0], [0], [1], [0, 0, 1, 1], [], []>} : vector<16x512xf32>, vector<512x64xf32>, vector<16x64xf32> -> vector<16x64xf32>
    %c0_42 = arith.constant 0 : index
    %c0_43 = arith.constant 0 : index
    %58 = vector.load %arg15[%c0_42, %c0_43] : memref<1x64xf32, #tpu.memory_space<vmem>>, vector<1x64xf32>
    %59 = vector.broadcast %58 : vector<1x64xf32> to vector<16x64xf32>
    %60 = arith.addf %57, %59 : vector<16x64xf32>
    %c0_44 = arith.constant 0 : index
    %c0_45 = arith.constant 0 : index
    %61 = vector.load %arg16[%c0_44, %c0_45] : memref<1x64xf32, #tpu.memory_space<vmem>>, vector<1x64xf32>
    %c0_46 = arith.constant 0 : index
    %c0_47 = arith.constant 0 : index
    %62 = vector.load %arg17[%c0_46, %c0_47] : memref<1x64xf32, #tpu.memory_space<vmem>>, vector<1x64xf32>
    %cst_48 = arith.constant dense<0.000000e+00> : vector<16xf32>
    %63 = vector.multi_reduction <add>, %60, %cst_48 [1] : vector<16x64xf32> to vector<16xf32>
    %64 = vector.shape_cast %63 : vector<16xf32> to vector<16x1xf32>
    %cst_49 = arith.constant 6.400000e+01 : f32
    %65 = vector.broadcast %cst_49 : f32 to vector<16x1xf32>
    %66 = arith.divf %64, %65 : vector<16x1xf32>
    %67 = vector.broadcast %66 : vector<16x1xf32> to vector<16x64xf32>
    %68 = arith.subf %60, %67 : vector<16x64xf32>
    %69 = arith.mulf %68, %68 : vector<16x64xf32>
    %cst_50 = arith.constant dense<0.000000e+00> : vector<16xf32>
    %70 = vector.multi_reduction <add>, %69, %cst_50 [1] : vector<16x64xf32> to vector<16xf32>
    %71 = vector.shape_cast %70 : vector<16xf32> to vector<16x1xf32>
    %cst_51 = arith.constant 6.400000e+01 : f32
    %72 = vector.broadcast %cst_51 : f32 to vector<16x1xf32>
    %73 = arith.divf %71, %72 : vector<16x1xf32>
    %74 = vector.broadcast %66 : vector<16x1xf32> to vector<16x64xf32>
    %75 = arith.subf %60, %74 : vector<16x64xf32>
    %cst_52 = arith.constant 9.99999974E-6 : f32
    %76 = vector.broadcast %cst_52 : f32 to vector<16x1xf32>
    %77 = arith.addf %73, %76 : vector<16x1xf32>
    %78 = math.rsqrt %77 : vector<16x1xf32>
    %79 = vector.broadcast %78 : vector<16x1xf32> to vector<16x64xf32>
    %80 = arith.mulf %75, %79 : vector<16x64xf32>
    %81 = vector.broadcast %61 : vector<1x64xf32> to vector<16x64xf32>
    %82 = arith.mulf %80, %81 : vector<16x64xf32>
    %83 = vector.broadcast %62 : vector<1x64xf32> to vector<16x64xf32>
    %84 = arith.addf %82, %83 : vector<16x64xf32>
    %cst_53 = arith.constant 5.000000e-01 : f32
    %85 = vector.broadcast %cst_53 : f32 to vector<16x64xf32>
    %86 = arith.mulf %85, %84 : vector<16x64xf32>
    %cst_54 = arith.constant 0.707106769 : f32
    %87 = vector.broadcast %cst_54 : f32 to vector<16x64xf32>
    %88 = arith.mulf %84, %87 : vector<16x64xf32>
    %89 = math.erf %88 : vector<16x64xf32>
    %cst_55 = arith.constant 1.000000e+00 : f32
    %90 = vector.broadcast %cst_55 : f32 to vector<16x64xf32>
    %91 = arith.addf %90, %89 : vector<16x64xf32>
    %92 = arith.mulf %86, %91 : vector<16x64xf32>
    %c0_56 = arith.constant 0 : index
    %c0_57 = arith.constant 0 : index
    %93 = vector.load %arg18[%c0_56, %c0_57] : memref<64x32xf32, #tpu.memory_space<vmem>>, vector<64x32xf32>
    %cst_58 = arith.constant dense<0.000000e+00> : vector<16x32xf32>
    %94 = tpu.matmul %92, %93, %cst_58 {dimension_numbers = #tpu.dot_dimension_numbers<[1], [0], [0], [1], [0, 0, 1, 1], [], []>} : vector<16x64xf32>, vector<64x32xf32>, vector<16x32xf32> -> vector<16x32xf32>
    %c0_59 = arith.constant 0 : index
    %c0_60 = arith.constant 0 : index
    %c0_61 = arith.constant 0 : index
    %95 = vector.load %arg20[%c0_59, %c0_60, %c0_61] : memref<4x1x32xf32, #tpu.memory_space<vmem>>, vector<1x1x32xf32>
    %96 = vector.shape_cast %95 : vector<1x1x32xf32> to vector<1x32xf32>
    %97 = vector.broadcast %96 : vector<1x32xf32> to vector<16x32xf32>
    %98 = arith.addf %94, %97 : vector<16x32xf32>
    %c0_62 = arith.constant 0 : index
    %c0_63 = arith.constant 0 : index
    %c0_64 = arith.constant 0 : index
    %99 = vector.load %arg21[%c0_62, %c0_63, %c0_64] : memref<4x1x32xf32, #tpu.memory_space<vmem>>, vector<1x1x32xf32>
    %100 = vector.shape_cast %99 : vector<1x1x32xf32> to vector<1x32xf32>
    %c0_65 = arith.constant 0 : index
    %c0_66 = arith.constant 0 : index
    %c0_67 = arith.constant 0 : index
    %101 = vector.load %arg22[%c0_65, %c0_66, %c0_67] : memref<4x1x32xf32, #tpu.memory_space<vmem>>, vector<1x1x32xf32>
    %102 = vector.shape_cast %101 : vector<1x1x32xf32> to vector<1x32xf32>
    %cst_68 = arith.constant dense<0.000000e+00> : vector<16xf32>
    %103 = vector.multi_reduction <add>, %98, %cst_68 [1] : vector<16x32xf32> to vector<16xf32>
    %104 = vector.shape_cast %103 : vector<16xf32> to vector<16x1xf32>
    %cst_69 = arith.constant 3.200000e+01 : f32
    %105 = vector.broadcast %cst_69 : f32 to vector<16x1xf32>
    %106 = arith.divf %104, %105 : vector<16x1xf32>
    %107 = vector.broadcast %106 : vector<16x1xf32> to vector<16x32xf32>
    %108 = arith.subf %98, %107 : vector<16x32xf32>
    %109 = arith.mulf %108, %108 : vector<16x32xf32>
    %cst_70 = arith.constant dense<0.000000e+00> : vector<16xf32>
    %110 = vector.multi_reduction <add>, %109, %cst_70 [1] : vector<16x32xf32> to vector<16xf32>
    %111 = vector.shape_cast %110 : vector<16xf32> to vector<16x1xf32>
    %cst_71 = arith.constant 3.200000e+01 : f32
    %112 = vector.broadcast %cst_71 : f32 to vector<16x1xf32>
    %113 = arith.divf %111, %112 : vector<16x1xf32>
    %114 = vector.broadcast %106 : vector<16x1xf32> to vector<16x32xf32>
    %115 = arith.subf %98, %114 : vector<16x32xf32>
    %cst_72 = arith.constant 9.99999974E-6 : f32
    %116 = vector.broadcast %cst_72 : f32 to vector<16x1xf32>
    %117 = arith.addf %113, %116 : vector<16x1xf32>
    %118 = math.rsqrt %117 : vector<16x1xf32>
    %119 = vector.broadcast %118 : vector<16x1xf32> to vector<16x32xf32>
    %120 = arith.mulf %115, %119 : vector<16x32xf32>
    %121 = vector.broadcast %100 : vector<1x32xf32> to vector<16x32xf32>
    %122 = arith.mulf %120, %121 : vector<16x32xf32>
    %123 = vector.broadcast %102 : vector<1x32xf32> to vector<16x32xf32>
    %124 = arith.addf %122, %123 : vector<16x32xf32>
    %cst_73 = arith.constant 5.000000e-01 : f32
    %125 = vector.broadcast %cst_73 : f32 to vector<16x32xf32>
    %126 = arith.mulf %125, %124 : vector<16x32xf32>
    %cst_74 = arith.constant 0.707106769 : f32
    %127 = vector.broadcast %cst_74 : f32 to vector<16x32xf32>
    %128 = arith.mulf %124, %127 : vector<16x32xf32>
    %129 = math.erf %128 : vector<16x32xf32>
    %cst_75 = arith.constant 1.000000e+00 : f32
    %130 = vector.broadcast %cst_75 : f32 to vector<16x32xf32>
    %131 = arith.addf %130, %129 : vector<16x32xf32>
    %132 = arith.mulf %126, %131 : vector<16x32xf32>
    %c0_76 = arith.constant 0 : index
    %c0_77 = arith.constant 0 : index
    %c0_78 = arith.constant 0 : index
    %133 = vector.load %arg23[%c0_76, %c0_77, %c0_78] : memref<4x32x32xf32, #tpu.memory_space<vmem>>, vector<1x32x32xf32>
    %134 = vector.shape_cast %133 : vector<1x32x32xf32> to vector<32x32xf32>
    %cst_79 = arith.constant dense<0.000000e+00> : vector<16x32xf32>
    %135 = tpu.matmul %132, %134, %cst_79 {dimension_numbers = #tpu.dot_dimension_numbers<[1], [0], [0], [1], [0, 0, 1, 1], [], []>} : vector<16x32xf32>, vector<32x32xf32>, vector<16x32xf32> -> vector<16x32xf32>
    %c0_80 = arith.constant 0 : index
    %c0_81 = arith.constant 0 : index
    %c0_82 = arith.constant 0 : index
    %136 = vector.load %arg24[%c0_80, %c0_81, %c0_82] : memref<4x1x32xf32, #tpu.memory_space<vmem>>, vector<1x1x32xf32>
    %137 = vector.shape_cast %136 : vector<1x1x32xf32> to vector<1x32xf32>
    %138 = vector.broadcast %137 : vector<1x32xf32> to vector<16x32xf32>
    %139 = arith.addf %135, %138 : vector<16x32xf32>
    %c0_83 = arith.constant 0 : index
    %c0_84 = arith.constant 0 : index
    %c0_85 = arith.constant 0 : index
    %140 = vector.load %arg25[%c0_83, %c0_84, %c0_85] : memref<4x1x32xf32, #tpu.memory_space<vmem>>, vector<1x1x32xf32>
    %141 = vector.shape_cast %140 : vector<1x1x32xf32> to vector<1x32xf32>
    %c0_86 = arith.constant 0 : index
    %c0_87 = arith.constant 0 : index
    %c0_88 = arith.constant 0 : index
    %142 = vector.load %arg26[%c0_86, %c0_87, %c0_88] : memref<4x1x32xf32, #tpu.memory_space<vmem>>, vector<1x1x32xf32>
    %143 = vector.shape_cast %142 : vector<1x1x32xf32> to vector<1x32xf32>
    %cst_89 = arith.constant dense<0.000000e+00> : vector<16xf32>
    %144 = vector.multi_reduction <add>, %139, %cst_89 [1] : vector<16x32xf32> to vector<16xf32>
    %145 = vector.shape_cast %144 : vector<16xf32> to vector<16x1xf32>
    %cst_90 = arith.constant 3.200000e+01 : f32
    %146 = vector.broadcast %cst_90 : f32 to vector<16x1xf32>
    %147 = arith.divf %145, %146 : vector<16x1xf32>
    %148 = vector.broadcast %147 : vector<16x1xf32> to vector<16x32xf32>
    %149 = arith.subf %139, %148 : vector<16x32xf32>
    %150 = arith.mulf %149, %149 : vector<16x32xf32>
    %cst_91 = arith.constant dense<0.000000e+00> : vector<16xf32>
    %151 = vector.multi_reduction <add>, %150, %cst_91 [1] : vector<16x32xf32> to vector<16xf32>
    %152 = vector.shape_cast %151 : vector<16xf32> to vector<16x1xf32>
    %cst_92 = arith.constant 3.200000e+01 : f32
    %153 = vector.broadcast %cst_92 : f32 to vector<16x1xf32>
    %154 = arith.divf %152, %153 : vector<16x1xf32>
    %155 = vector.broadcast %147 : vector<16x1xf32> to vector<16x32xf32>
    %156 = arith.subf %139, %155 : vector<16x32xf32>
    %cst_93 = arith.constant 9.99999974E-6 : f32
    %157 = vector.broadcast %cst_93 : f32 to vector<16x1xf32>
    %158 = arith.addf %154, %157 : vector<16x1xf32>
    %159 = math.rsqrt %158 : vector<16x1xf32>
    %160 = vector.broadcast %159 : vector<16x1xf32> to vector<16x32xf32>
    %161 = arith.mulf %156, %160 : vector<16x32xf32>
    %162 = vector.broadcast %141 : vector<1x32xf32> to vector<16x32xf32>
    %163 = arith.mulf %161, %162 : vector<16x32xf32>
    %164 = vector.broadcast %143 : vector<1x32xf32> to vector<16x32xf32>
    %165 = arith.addf %163, %164 : vector<16x32xf32>
    %166 = math.tanh %165 : vector<16x32xf32>
    %cst_94 = arith.constant 3.16152679E-26 : f32
    %167 = vector.broadcast %cst_94 : f32 to vector<16x32xf32>
    %168 = arith.mulf %166, %167 : vector<16x32xf32>
    %c0_95 = arith.constant 0 : index
    %c0_96 = arith.constant 0 : index
    %c0_97 = arith.constant 0 : index
    %169 = vector.load %arg19[%c0_95, %c0_96, %c0_97] : memref<3x32x32xf32, #tpu.memory_space<vmem>>, vector<1x32x32xf32>
    %170 = vector.shape_cast %169 : vector<1x32x32xf32> to vector<32x32xf32>
    %cst_98 = arith.constant dense<0.000000e+00> : vector<16x32xf32>
    %171 = tpu.matmul %168, %170, %cst_98 {dimension_numbers = #tpu.dot_dimension_numbers<[1], [0], [0], [1], [0, 0, 1, 1], [], []>} : vector<16x32xf32>, vector<32x32xf32>, vector<16x32xf32> -> vector<16x32xf32>
    %c1 = arith.constant 1 : index
    %c0_99 = arith.constant 0 : index
    %c0_100 = arith.constant 0 : index
    %172 = vector.load %arg20[%c1, %c0_99, %c0_100] : memref<4x1x32xf32, #tpu.memory_space<vmem>>, vector<1x1x32xf32>
    %173 = vector.shape_cast %172 : vector<1x1x32xf32> to vector<1x32xf32>
    %174 = vector.broadcast %173 : vector<1x32xf32> to vector<16x32xf32>
    %175 = arith.addf %171, %174 : vector<16x32xf32>
    %c1_101 = arith.constant 1 : index
    %c0_102 = arith.constant 0 : index
    %c0_103 = arith.constant 0 : index
    %176 = vector.load %arg21[%c1_101, %c0_102, %c0_103] : memref<4x1x32xf32, #tpu.memory_space<vmem>>, vector<1x1x32xf32>
    %177 = vector.shape_cast %176 : vector<1x1x32xf32> to vector<1x32xf32>
    %c1_104 = arith.constant 1 : index
    %c0_105 = arith.constant 0 : index
    %c0_106 = arith.constant 0 : index
    %178 = vector.load %arg22[%c1_104, %c0_105, %c0_106] : memref<4x1x32xf32, #tpu.memory_space<vmem>>, vector<1x1x32xf32>
    %179 = vector.shape_cast %178 : vector<1x1x32xf32> to vector<1x32xf32>
    %cst_107 = arith.constant dense<0.000000e+00> : vector<16xf32>
    %180 = vector.multi_reduction <add>, %175, %cst_107 [1] : vector<16x32xf32> to vector<16xf32>
    %181 = vector.shape_cast %180 : vector<16xf32> to vector<16x1xf32>
    %cst_108 = arith.constant 3.200000e+01 : f32
    %182 = vector.broadcast %cst_108 : f32 to vector<16x1xf32>
    %183 = arith.divf %181, %182 : vector<16x1xf32>
    %184 = vector.broadcast %183 : vector<16x1xf32> to vector<16x32xf32>
    %185 = arith.subf %175, %184 : vector<16x32xf32>
    %186 = arith.mulf %185, %185 : vector<16x32xf32>
    %cst_109 = arith.constant dense<0.000000e+00> : vector<16xf32>
    %187 = vector.multi_reduction <add>, %186, %cst_109 [1] : vector<16x32xf32> to vector<16xf32>
    %188 = vector.shape_cast %187 : vector<16xf32> to vector<16x1xf32>
    %cst_110 = arith.constant 3.200000e+01 : f32
    %189 = vector.broadcast %cst_110 : f32 to vector<16x1xf32>
    %190 = arith.divf %188, %189 : vector<16x1xf32>
    %191 = vector.broadcast %183 : vector<16x1xf32> to vector<16x32xf32>
    %192 = arith.subf %175, %191 : vector<16x32xf32>
    %cst_111 = arith.constant 9.99999974E-6 : f32
    %193 = vector.broadcast %cst_111 : f32 to vector<16x1xf32>
    %194 = arith.addf %190, %193 : vector<16x1xf32>
    %195 = math.rsqrt %194 : vector<16x1xf32>
    %196 = vector.broadcast %195 : vector<16x1xf32> to vector<16x32xf32>
    %197 = arith.mulf %192, %196 : vector<16x32xf32>
    %198 = vector.broadcast %177 : vector<1x32xf32> to vector<16x32xf32>
    %199 = arith.mulf %197, %198 : vector<16x32xf32>
    %200 = vector.broadcast %179 : vector<1x32xf32> to vector<16x32xf32>
    %201 = arith.addf %199, %200 : vector<16x32xf32>
    %cst_112 = arith.constant 5.000000e-01 : f32
    %202 = vector.broadcast %cst_112 : f32 to vector<16x32xf32>
    %203 = arith.mulf %202, %201 : vector<16x32xf32>
    %cst_113 = arith.constant 0.707106769 : f32
    %204 = vector.broadcast %cst_113 : f32 to vector<16x32xf32>
    %205 = arith.mulf %201, %204 : vector<16x32xf32>
    %206 = math.erf %205 : vector<16x32xf32>
    %cst_114 = arith.constant 1.000000e+00 : f32
    %207 = vector.broadcast %cst_114 : f32 to vector<16x32xf32>
    %208 = arith.addf %207, %206 : vector<16x32xf32>
    %209 = arith.mulf %203, %208 : vector<16x32xf32>
    %c1_115 = arith.constant 1 : index
    %c0_116 = arith.constant 0 : index
    %c0_117 = arith.constant 0 : index
    %210 = vector.load %arg23[%c1_115, %c0_116, %c0_117] : memref<4x32x32xf32, #tpu.memory_space<vmem>>, vector<1x32x32xf32>
    %211 = vector.shape_cast %210 : vector<1x32x32xf32> to vector<32x32xf32>
    %cst_118 = arith.constant dense<0.000000e+00> : vector<16x32xf32>
    %212 = tpu.matmul %209, %211, %cst_118 {dimension_numbers = #tpu.dot_dimension_numbers<[1], [0], [0], [1], [0, 0, 1, 1], [], []>} : vector<16x32xf32>, vector<32x32xf32>, vector<16x32xf32> -> vector<16x32xf32>
    %c1_119 = arith.constant 1 : index
    %c0_120 = arith.constant 0 : index
    %c0_121 = arith.constant 0 : index
    %213 = vector.load %arg24[%c1_119, %c0_120, %c0_121] : memref<4x1x32xf32, #tpu.memory_space<vmem>>, vector<1x1x32xf32>
    %214 = vector.shape_cast %213 : vector<1x1x32xf32> to vector<1x32xf32>
    %215 = vector.broadcast %214 : vector<1x32xf32> to vector<16x32xf32>
    %216 = arith.addf %212, %215 : vector<16x32xf32>
    %c1_122 = arith.constant 1 : index
    %c0_123 = arith.constant 0 : index
    %c0_124 = arith.constant 0 : index
    %217 = vector.load %arg25[%c1_122, %c0_123, %c0_124] : memref<4x1x32xf32, #tpu.memory_space<vmem>>, vector<1x1x32xf32>
    %218 = vector.shape_cast %217 : vector<1x1x32xf32> to vector<1x32xf32>
    %c1_125 = arith.constant 1 : index
    %c0_126 = arith.constant 0 : index
    %c0_127 = arith.constant 0 : index
    %219 = vector.load %arg26[%c1_125, %c0_126, %c0_127] : memref<4x1x32xf32, #tpu.memory_space<vmem>>, vector<1x1x32xf32>
    %220 = vector.shape_cast %219 : vector<1x1x32xf32> to vector<1x32xf32>
    %cst_128 = arith.constant dense<0.000000e+00> : vector<16xf32>
    %221 = vector.multi_reduction <add>, %216, %cst_128 [1] : vector<16x32xf32> to vector<16xf32>
    %222 = vector.shape_cast %221 : vector<16xf32> to vector<16x1xf32>
    %cst_129 = arith.constant 3.200000e+01 : f32
    %223 = vector.broadcast %cst_129 : f32 to vector<16x1xf32>
    %224 = arith.divf %222, %223 : vector<16x1xf32>
    %225 = vector.broadcast %224 : vector<16x1xf32> to vector<16x32xf32>
    %226 = arith.subf %216, %225 : vector<16x32xf32>
    %227 = arith.mulf %226, %226 : vector<16x32xf32>
    %cst_130 = arith.constant dense<0.000000e+00> : vector<16xf32>
    %228 = vector.multi_reduction <add>, %227, %cst_130 [1] : vector<16x32xf32> to vector<16xf32>
    %229 = vector.shape_cast %228 : vector<16xf32> to vector<16x1xf32>
    %cst_131 = arith.constant 3.200000e+01 : f32
    %230 = vector.broadcast %cst_131 : f32 to vector<16x1xf32>
    %231 = arith.divf %229, %230 : vector<16x1xf32>
    %232 = vector.broadcast %224 : vector<16x1xf32> to vector<16x32xf32>
    %233 = arith.subf %216, %232 : vector<16x32xf32>
    %cst_132 = arith.constant 9.99999974E-6 : f32
    %234 = vector.broadcast %cst_132 : f32 to vector<16x1xf32>
    %235 = arith.addf %231, %234 : vector<16x1xf32>
    %236 = math.rsqrt %235 : vector<16x1xf32>
    %237 = vector.broadcast %236 : vector<16x1xf32> to vector<16x32xf32>
    %238 = arith.mulf %233, %237 : vector<16x32xf32>
    %239 = vector.broadcast %218 : vector<1x32xf32> to vector<16x32xf32>
    %240 = arith.mulf %238, %239 : vector<16x32xf32>
    %241 = vector.broadcast %220 : vector<1x32xf32> to vector<16x32xf32>
    %242 = arith.addf %240, %241 : vector<16x32xf32>
    %243 = math.tanh %242 : vector<16x32xf32>
    %cst_133 = arith.constant 3.16152679E-26 : f32
    %244 = vector.broadcast %cst_133 : f32 to vector<16x32xf32>
    %245 = arith.mulf %243, %244 : vector<16x32xf32>
    %c1_134 = arith.constant 1 : index
    %c0_135 = arith.constant 0 : index
    %c0_136 = arith.constant 0 : index
    %246 = vector.load %arg19[%c1_134, %c0_135, %c0_136] : memref<3x32x32xf32, #tpu.memory_space<vmem>>, vector<1x32x32xf32>
    %247 = vector.shape_cast %246 : vector<1x32x32xf32> to vector<32x32xf32>
    %cst_137 = arith.constant dense<0.000000e+00> : vector<16x32xf32>
    %248 = tpu.matmul %245, %247, %cst_137 {dimension_numbers = #tpu.dot_dimension_numbers<[1], [0], [0], [1], [0, 0, 1, 1], [], []>} : vector<16x32xf32>, vector<32x32xf32>, vector<16x32xf32> -> vector<16x32xf32>
    %c2 = arith.constant 2 : index
    %c0_138 = arith.constant 0 : index
    %c0_139 = arith.constant 0 : index
    %249 = vector.load %arg20[%c2, %c0_138, %c0_139] : memref<4x1x32xf32, #tpu.memory_space<vmem>>, vector<1x1x32xf32>
    %250 = vector.shape_cast %249 : vector<1x1x32xf32> to vector<1x32xf32>
    %251 = vector.broadcast %250 : vector<1x32xf32> to vector<16x32xf32>
    %252 = arith.addf %248, %251 : vector<16x32xf32>
    %c2_140 = arith.constant 2 : index
    %c0_141 = arith.constant 0 : index
    %c0_142 = arith.constant 0 : index
    %253 = vector.load %arg21[%c2_140, %c0_141, %c0_142] : memref<4x1x32xf32, #tpu.memory_space<vmem>>, vector<1x1x32xf32>
    %254 = vector.shape_cast %253 : vector<1x1x32xf32> to vector<1x32xf32>
    %c2_143 = arith.constant 2 : index
    %c0_144 = arith.constant 0 : index
    %c0_145 = arith.constant 0 : index
    %255 = vector.load %arg22[%c2_143, %c0_144, %c0_145] : memref<4x1x32xf32, #tpu.memory_space<vmem>>, vector<1x1x32xf32>
    %256 = vector.shape_cast %255 : vector<1x1x32xf32> to vector<1x32xf32>
    %cst_146 = arith.constant dense<0.000000e+00> : vector<16xf32>
    %257 = vector.multi_reduction <add>, %252, %cst_146 [1] : vector<16x32xf32> to vector<16xf32>
    %258 = vector.shape_cast %257 : vector<16xf32> to vector<16x1xf32>
    %cst_147 = arith.constant 3.200000e+01 : f32
    %259 = vector.broadcast %cst_147 : f32 to vector<16x1xf32>
    %260 = arith.divf %258, %259 : vector<16x1xf32>
    %261 = vector.broadcast %260 : vector<16x1xf32> to vector<16x32xf32>
    %262 = arith.subf %252, %261 : vector<16x32xf32>
    %263 = arith.mulf %262, %262 : vector<16x32xf32>
    %cst_148 = arith.constant dense<0.000000e+00> : vector<16xf32>
    %264 = vector.multi_reduction <add>, %263, %cst_148 [1] : vector<16x32xf32> to vector<16xf32>
    %265 = vector.shape_cast %264 : vector<16xf32> to vector<16x1xf32>
    %cst_149 = arith.constant 3.200000e+01 : f32
    %266 = vector.broadcast %cst_149 : f32 to vector<16x1xf32>
    %267 = arith.divf %265, %266 : vector<16x1xf32>
    %268 = vector.broadcast %260 : vector<16x1xf32> to vector<16x32xf32>
    %269 = arith.subf %252, %268 : vector<16x32xf32>
    %cst_150 = arith.constant 9.99999974E-6 : f32
    %270 = vector.broadcast %cst_150 : f32 to vector<16x1xf32>
    %271 = arith.addf %267, %270 : vector<16x1xf32>
    %272 = math.rsqrt %271 : vector<16x1xf32>
    %273 = vector.broadcast %272 : vector<16x1xf32> to vector<16x32xf32>
    %274 = arith.mulf %269, %273 : vector<16x32xf32>
    %275 = vector.broadcast %254 : vector<1x32xf32> to vector<16x32xf32>
    %276 = arith.mulf %274, %275 : vector<16x32xf32>
    %277 = vector.broadcast %256 : vector<1x32xf32> to vector<16x32xf32>
    %278 = arith.addf %276, %277 : vector<16x32xf32>
    %cst_151 = arith.constant 5.000000e-01 : f32
    %279 = vector.broadcast %cst_151 : f32 to vector<16x32xf32>
    %280 = arith.mulf %279, %278 : vector<16x32xf32>
    %cst_152 = arith.constant 0.707106769 : f32
    %281 = vector.broadcast %cst_152 : f32 to vector<16x32xf32>
    %282 = arith.mulf %278, %281 : vector<16x32xf32>
    %283 = math.erf %282 : vector<16x32xf32>
    %cst_153 = arith.constant 1.000000e+00 : f32
    %284 = vector.broadcast %cst_153 : f32 to vector<16x32xf32>
    %285 = arith.addf %284, %283 : vector<16x32xf32>
    %286 = arith.mulf %280, %285 : vector<16x32xf32>
    %c2_154 = arith.constant 2 : index
    %c0_155 = arith.constant 0 : index
    %c0_156 = arith.constant 0 : index
    %287 = vector.load %arg23[%c2_154, %c0_155, %c0_156] : memref<4x32x32xf32, #tpu.memory_space<vmem>>, vector<1x32x32xf32>
    %288 = vector.shape_cast %287 : vector<1x32x32xf32> to vector<32x32xf32>
    %cst_157 = arith.constant dense<0.000000e+00> : vector<16x32xf32>
    %289 = tpu.matmul %286, %288, %cst_157 {dimension_numbers = #tpu.dot_dimension_numbers<[1], [0], [0], [1], [0, 0, 1, 1], [], []>} : vector<16x32xf32>, vector<32x32xf32>, vector<16x32xf32> -> vector<16x32xf32>
    %c2_158 = arith.constant 2 : index
    %c0_159 = arith.constant 0 : index
    %c0_160 = arith.constant 0 : index
    %290 = vector.load %arg24[%c2_158, %c0_159, %c0_160] : memref<4x1x32xf32, #tpu.memory_space<vmem>>, vector<1x1x32xf32>
    %291 = vector.shape_cast %290 : vector<1x1x32xf32> to vector<1x32xf32>
    %292 = vector.broadcast %291 : vector<1x32xf32> to vector<16x32xf32>
    %293 = arith.addf %289, %292 : vector<16x32xf32>
    %c2_161 = arith.constant 2 : index
    %c0_162 = arith.constant 0 : index
    %c0_163 = arith.constant 0 : index
    %294 = vector.load %arg25[%c2_161, %c0_162, %c0_163] : memref<4x1x32xf32, #tpu.memory_space<vmem>>, vector<1x1x32xf32>
    %295 = vector.shape_cast %294 : vector<1x1x32xf32> to vector<1x32xf32>
    %c2_164 = arith.constant 2 : index
    %c0_165 = arith.constant 0 : index
    %c0_166 = arith.constant 0 : index
    %296 = vector.load %arg26[%c2_164, %c0_165, %c0_166] : memref<4x1x32xf32, #tpu.memory_space<vmem>>, vector<1x1x32xf32>
    %297 = vector.shape_cast %296 : vector<1x1x32xf32> to vector<1x32xf32>
    %cst_167 = arith.constant dense<0.000000e+00> : vector<16xf32>
    %298 = vector.multi_reduction <add>, %293, %cst_167 [1] : vector<16x32xf32> to vector<16xf32>
    %299 = vector.shape_cast %298 : vector<16xf32> to vector<16x1xf32>
    %cst_168 = arith.constant 3.200000e+01 : f32
    %300 = vector.broadcast %cst_168 : f32 to vector<16x1xf32>
    %301 = arith.divf %299, %300 : vector<16x1xf32>
    %302 = vector.broadcast %301 : vector<16x1xf32> to vector<16x32xf32>
    %303 = arith.subf %293, %302 : vector<16x32xf32>
    %304 = arith.mulf %303, %303 : vector<16x32xf32>
    %cst_169 = arith.constant dense<0.000000e+00> : vector<16xf32>
    %305 = vector.multi_reduction <add>, %304, %cst_169 [1] : vector<16x32xf32> to vector<16xf32>
    %306 = vector.shape_cast %305 : vector<16xf32> to vector<16x1xf32>
    %cst_170 = arith.constant 3.200000e+01 : f32
    %307 = vector.broadcast %cst_170 : f32 to vector<16x1xf32>
    %308 = arith.divf %306, %307 : vector<16x1xf32>
    %309 = vector.broadcast %301 : vector<16x1xf32> to vector<16x32xf32>
    %310 = arith.subf %293, %309 : vector<16x32xf32>
    %cst_171 = arith.constant 9.99999974E-6 : f32
    %311 = vector.broadcast %cst_171 : f32 to vector<16x1xf32>
    %312 = arith.addf %308, %311 : vector<16x1xf32>
    %313 = math.rsqrt %312 : vector<16x1xf32>
    %314 = vector.broadcast %313 : vector<16x1xf32> to vector<16x32xf32>
    %315 = arith.mulf %310, %314 : vector<16x32xf32>
    %316 = vector.broadcast %295 : vector<1x32xf32> to vector<16x32xf32>
    %317 = arith.mulf %315, %316 : vector<16x32xf32>
    %318 = vector.broadcast %297 : vector<1x32xf32> to vector<16x32xf32>
    %319 = arith.addf %317, %318 : vector<16x32xf32>
    %320 = math.tanh %319 : vector<16x32xf32>
    %cst_172 = arith.constant 3.16152679E-26 : f32
    %321 = vector.broadcast %cst_172 : f32 to vector<16x32xf32>
    %322 = arith.mulf %320, %321 : vector<16x32xf32>
    %c2_173 = arith.constant 2 : index
    %c0_174 = arith.constant 0 : index
    %c0_175 = arith.constant 0 : index
    %323 = vector.load %arg19[%c2_173, %c0_174, %c0_175] : memref<3x32x32xf32, #tpu.memory_space<vmem>>, vector<1x32x32xf32>
    %324 = vector.shape_cast %323 : vector<1x32x32xf32> to vector<32x32xf32>
    %cst_176 = arith.constant dense<0.000000e+00> : vector<16x32xf32>
    %325 = tpu.matmul %322, %324, %cst_176 {dimension_numbers = #tpu.dot_dimension_numbers<[1], [0], [0], [1], [0, 0, 1, 1], [], []>} : vector<16x32xf32>, vector<32x32xf32>, vector<16x32xf32> -> vector<16x32xf32>
    %c3 = arith.constant 3 : index
    %c0_177 = arith.constant 0 : index
    %c0_178 = arith.constant 0 : index
    %326 = vector.load %arg20[%c3, %c0_177, %c0_178] : memref<4x1x32xf32, #tpu.memory_space<vmem>>, vector<1x1x32xf32>
    %327 = vector.shape_cast %326 : vector<1x1x32xf32> to vector<1x32xf32>
    %328 = vector.broadcast %327 : vector<1x32xf32> to vector<16x32xf32>
    %329 = arith.addf %325, %328 : vector<16x32xf32>
    %c3_179 = arith.constant 3 : index
    %c0_180 = arith.constant 0 : index
    %c0_181 = arith.constant 0 : index
    %330 = vector.load %arg21[%c3_179, %c0_180, %c0_181] : memref<4x1x32xf32, #tpu.memory_space<vmem>>, vector<1x1x32xf32>
    %331 = vector.shape_cast %330 : vector<1x1x32xf32> to vector<1x32xf32>
    %c3_182 = arith.constant 3 : index
    %c0_183 = arith.constant 0 : index
    %c0_184 = arith.constant 0 : index
    %332 = vector.load %arg22[%c3_182, %c0_183, %c0_184] : memref<4x1x32xf32, #tpu.memory_space<vmem>>, vector<1x1x32xf32>
    %333 = vector.shape_cast %332 : vector<1x1x32xf32> to vector<1x32xf32>
    %cst_185 = arith.constant dense<0.000000e+00> : vector<16xf32>
    %334 = vector.multi_reduction <add>, %329, %cst_185 [1] : vector<16x32xf32> to vector<16xf32>
    %335 = vector.shape_cast %334 : vector<16xf32> to vector<16x1xf32>
    %cst_186 = arith.constant 3.200000e+01 : f32
    %336 = vector.broadcast %cst_186 : f32 to vector<16x1xf32>
    %337 = arith.divf %335, %336 : vector<16x1xf32>
    %338 = vector.broadcast %337 : vector<16x1xf32> to vector<16x32xf32>
    %339 = arith.subf %329, %338 : vector<16x32xf32>
    %340 = arith.mulf %339, %339 : vector<16x32xf32>
    %cst_187 = arith.constant dense<0.000000e+00> : vector<16xf32>
    %341 = vector.multi_reduction <add>, %340, %cst_187 [1] : vector<16x32xf32> to vector<16xf32>
    %342 = vector.shape_cast %341 : vector<16xf32> to vector<16x1xf32>
    %cst_188 = arith.constant 3.200000e+01 : f32
    %343 = vector.broadcast %cst_188 : f32 to vector<16x1xf32>
    %344 = arith.divf %342, %343 : vector<16x1xf32>
    %345 = vector.broadcast %337 : vector<16x1xf32> to vector<16x32xf32>
    %346 = arith.subf %329, %345 : vector<16x32xf32>
    %cst_189 = arith.constant 9.99999974E-6 : f32
    %347 = vector.broadcast %cst_189 : f32 to vector<16x1xf32>
    %348 = arith.addf %344, %347 : vector<16x1xf32>
    %349 = math.rsqrt %348 : vector<16x1xf32>
    %350 = vector.broadcast %349 : vector<16x1xf32> to vector<16x32xf32>
    %351 = arith.mulf %346, %350 : vector<16x32xf32>
    %352 = vector.broadcast %331 : vector<1x32xf32> to vector<16x32xf32>
    %353 = arith.mulf %351, %352 : vector<16x32xf32>
    %354 = vector.broadcast %333 : vector<1x32xf32> to vector<16x32xf32>
    %355 = arith.addf %353, %354 : vector<16x32xf32>
    %cst_190 = arith.constant 5.000000e-01 : f32
    %356 = vector.broadcast %cst_190 : f32 to vector<16x32xf32>
    %357 = arith.mulf %356, %355 : vector<16x32xf32>
    %cst_191 = arith.constant 0.707106769 : f32
    %358 = vector.broadcast %cst_191 : f32 to vector<16x32xf32>
    %359 = arith.mulf %355, %358 : vector<16x32xf32>
    %360 = math.erf %359 : vector<16x32xf32>
    %cst_192 = arith.constant 1.000000e+00 : f32
    %361 = vector.broadcast %cst_192 : f32 to vector<16x32xf32>
    %362 = arith.addf %361, %360 : vector<16x32xf32>
    %363 = arith.mulf %357, %362 : vector<16x32xf32>
    %c3_193 = arith.constant 3 : index
    %c0_194 = arith.constant 0 : index
    %c0_195 = arith.constant 0 : index
    %364 = vector.load %arg23[%c3_193, %c0_194, %c0_195] : memref<4x32x32xf32, #tpu.memory_space<vmem>>, vector<1x32x32xf32>
    %365 = vector.shape_cast %364 : vector<1x32x32xf32> to vector<32x32xf32>
    %cst_196 = arith.constant dense<0.000000e+00> : vector<16x32xf32>
    %366 = tpu.matmul %363, %365, %cst_196 {dimension_numbers = #tpu.dot_dimension_numbers<[1], [0], [0], [1], [0, 0, 1, 1], [], []>} : vector<16x32xf32>, vector<32x32xf32>, vector<16x32xf32> -> vector<16x32xf32>
    %c3_197 = arith.constant 3 : index
    %c0_198 = arith.constant 0 : index
    %c0_199 = arith.constant 0 : index
    %367 = vector.load %arg24[%c3_197, %c0_198, %c0_199] : memref<4x1x32xf32, #tpu.memory_space<vmem>>, vector<1x1x32xf32>
    %368 = vector.shape_cast %367 : vector<1x1x32xf32> to vector<1x32xf32>
    %369 = vector.broadcast %368 : vector<1x32xf32> to vector<16x32xf32>
    %370 = arith.addf %366, %369 : vector<16x32xf32>
    %c3_200 = arith.constant 3 : index
    %c0_201 = arith.constant 0 : index
    %c0_202 = arith.constant 0 : index
    %371 = vector.load %arg25[%c3_200, %c0_201, %c0_202] : memref<4x1x32xf32, #tpu.memory_space<vmem>>, vector<1x1x32xf32>
    %372 = vector.shape_cast %371 : vector<1x1x32xf32> to vector<1x32xf32>
    %c3_203 = arith.constant 3 : index
    %c0_204 = arith.constant 0 : index
    %c0_205 = arith.constant 0 : index
    %373 = vector.load %arg26[%c3_203, %c0_204, %c0_205] : memref<4x1x32xf32, #tpu.memory_space<vmem>>, vector<1x1x32xf32>
    %374 = vector.shape_cast %373 : vector<1x1x32xf32> to vector<1x32xf32>
    %cst_206 = arith.constant dense<0.000000e+00> : vector<16xf32>
    %375 = vector.multi_reduction <add>, %370, %cst_206 [1] : vector<16x32xf32> to vector<16xf32>
    %376 = vector.shape_cast %375 : vector<16xf32> to vector<16x1xf32>
    %cst_207 = arith.constant 3.200000e+01 : f32
    %377 = vector.broadcast %cst_207 : f32 to vector<16x1xf32>
    %378 = arith.divf %376, %377 : vector<16x1xf32>
    %379 = vector.broadcast %378 : vector<16x1xf32> to vector<16x32xf32>
    %380 = arith.subf %370, %379 : vector<16x32xf32>
    %381 = arith.mulf %380, %380 : vector<16x32xf32>
    %cst_208 = arith.constant dense<0.000000e+00> : vector<16xf32>
    %382 = vector.multi_reduction <add>, %381, %cst_208 [1] : vector<16x32xf32> to vector<16xf32>
    %383 = vector.shape_cast %382 : vector<16xf32> to vector<16x1xf32>
    %cst_209 = arith.constant 3.200000e+01 : f32
    %384 = vector.broadcast %cst_209 : f32 to vector<16x1xf32>
    %385 = arith.divf %383, %384 : vector<16x1xf32>
    %386 = vector.broadcast %378 : vector<16x1xf32> to vector<16x32xf32>
    %387 = arith.subf %370, %386 : vector<16x32xf32>
    %cst_210 = arith.constant 9.99999974E-6 : f32
    %388 = vector.broadcast %cst_210 : f32 to vector<16x1xf32>
    %389 = arith.addf %385, %388 : vector<16x1xf32>
    %390 = math.rsqrt %389 : vector<16x1xf32>
    %391 = vector.broadcast %390 : vector<16x1xf32> to vector<16x32xf32>
    %392 = arith.mulf %387, %391 : vector<16x32xf32>
    %393 = vector.broadcast %372 : vector<1x32xf32> to vector<16x32xf32>
    %394 = arith.mulf %392, %393 : vector<16x32xf32>
    %395 = vector.broadcast %374 : vector<1x32xf32> to vector<16x32xf32>
    %396 = arith.addf %394, %395 : vector<16x32xf32>
    %397 = math.tanh %396 : vector<16x32xf32>
    %cst_211 = arith.constant 3.16152679E-26 : f32
    %398 = vector.broadcast %cst_211 : f32 to vector<16x32xf32>
    %399 = arith.mulf %397, %398 : vector<16x32xf32>
    %c0_212 = arith.constant 0 : index
    %c0_213 = arith.constant 0 : index
    %400 = vector.load %arg27[%c0_212, %c0_213] : memref<32x256xf32, #tpu.memory_space<vmem>>, vector<32x256xf32>
    %cst_214 = arith.constant dense<0.000000e+00> : vector<16x256xf32>
    %401 = tpu.matmul %399, %400, %cst_214 {dimension_numbers = #tpu.dot_dimension_numbers<[1], [0], [0], [1], [0, 0, 1, 1], [], []>} : vector<16x32xf32>, vector<32x256xf32>, vector<16x256xf32> -> vector<16x256xf32>
    %c0_215 = arith.constant 0 : index
    %c0_216 = arith.constant 0 : index
    %402 = vector.load %arg28[%c0_215, %c0_216] : memref<1x256xf32, #tpu.memory_space<vmem>>, vector<1x256xf32>
    %403 = vector.broadcast %402 : vector<1x256xf32> to vector<16x256xf32>
    %404 = arith.addf %401, %403 : vector<16x256xf32>
    %c0_217 = arith.constant 0 : index
    %c0_218 = arith.constant 0 : index
    %405 = vector.load %arg29[%c0_217, %c0_218] : memref<1x256xf32, #tpu.memory_space<vmem>>, vector<1x256xf32>
    %c0_219 = arith.constant 0 : index
    %c0_220 = arith.constant 0 : index
    %406 = vector.load %arg30[%c0_219, %c0_220] : memref<1x256xf32, #tpu.memory_space<vmem>>, vector<1x256xf32>
    %cst_221 = arith.constant dense<0.000000e+00> : vector<16x8xf32>
    %407 = tpu.matmul %404, %3, %cst_221 {dimension_numbers = #tpu.dot_dimension_numbers<[1], [0], [0], [1], [0, 0, 1, 1], [], []>} : vector<16x256xf32>, vector<256x8xf32>, vector<16x8xf32> -> vector<16x8xf32>
    %cst_222 = arith.constant dense<0.000000e+00> : vector<16x256xf32>
    %408 = tpu.matmul %407, %4, %cst_222 {dimension_numbers = #tpu.dot_dimension_numbers<[1], [0], [0], [1], [0, 0, 1, 1], [], []>} : vector<16x8xf32>, vector<8x256xf32>, vector<16x256xf32> -> vector<16x256xf32>
    %409 = arith.subf %404, %408 : vector<16x256xf32>
    %410 = arith.mulf %409, %409 : vector<16x256xf32>
    %cst_223 = arith.constant dense<0.000000e+00> : vector<16x8xf32>
    %411 = tpu.matmul %410, %3, %cst_223 {dimension_numbers = #tpu.dot_dimension_numbers<[1], [0], [0], [1], [0, 0, 1, 1], [], []>} : vector<16x256xf32>, vector<256x8xf32>, vector<16x8xf32> -> vector<16x8xf32>
    %cst_224 = arith.constant dense<0.000000e+00> : vector<16x256xf32>
    %412 = tpu.matmul %411, %4, %cst_224 {dimension_numbers = #tpu.dot_dimension_numbers<[1], [0], [0], [1], [0, 0, 1, 1], [], []>} : vector<16x8xf32>, vector<8x256xf32>, vector<16x256xf32> -> vector<16x256xf32>
    %cst_225 = arith.constant 9.99999974E-6 : f32
    %413 = vector.broadcast %cst_225 : f32 to vector<16x256xf32>
    %414 = arith.addf %412, %413 : vector<16x256xf32>
    %415 = math.rsqrt %414 : vector<16x256xf32>
    %416 = arith.mulf %409, %415 : vector<16x256xf32>
    %417 = vector.broadcast %405 : vector<1x256xf32> to vector<16x256xf32>
    %418 = arith.mulf %416, %417 : vector<16x256xf32>
    %419 = vector.broadcast %406 : vector<1x256xf32> to vector<16x256xf32>
    %420 = arith.addf %418, %419 : vector<16x256xf32>
    %cst_226 = arith.constant 5.000000e-01 : f32
    %421 = vector.broadcast %cst_226 : f32 to vector<16x256xf32>
    %422 = arith.mulf %421, %420 : vector<16x256xf32>
    %cst_227 = arith.constant 0.707106769 : f32
    %423 = vector.broadcast %cst_227 : f32 to vector<16x256xf32>
    %424 = arith.mulf %420, %423 : vector<16x256xf32>
    %425 = math.erf %424 : vector<16x256xf32>
    %cst_228 = arith.constant 1.000000e+00 : f32
    %426 = vector.broadcast %cst_228 : f32 to vector<16x256xf32>
    %427 = arith.addf %426, %425 : vector<16x256xf32>
    %428 = arith.mulf %422, %427 : vector<16x256xf32>
    %cst_229 = arith.constant 8.85418821E-12 : f32
    %429 = vector.broadcast %cst_229 : f32 to vector<16x256xf32>
    %430 = arith.mulf %428, %429 : vector<16x256xf32>
    %c0_230 = arith.constant 0 : index
    %c0_231 = arith.constant 0 : index
    %431 = vector.load %arg31[%c0_230, %c0_231] : memref<256x32xf32, #tpu.memory_space<vmem>>, vector<256x32xf32>
    %cst_232 = arith.constant dense<0.000000e+00> : vector<16x32xf32>
    %432 = tpu.matmul %430, %431, %cst_232 {dimension_numbers = #tpu.dot_dimension_numbers<[1], [0], [0], [1], [0, 0, 1, 1], [], []>} : vector<16x256xf32>, vector<256x32xf32>, vector<16x32xf32> -> vector<16x32xf32>
    %c0_233 = arith.constant 0 : index
    %c0_234 = arith.constant 0 : index
    %433 = vector.load %arg32[%c0_233, %c0_234] : memref<1x32xf32, #tpu.memory_space<vmem>>, vector<1x32xf32>
    %434 = vector.broadcast %433 : vector<1x32xf32> to vector<16x32xf32>
    %435 = arith.addf %432, %434 : vector<16x32xf32>
    %c0_235 = arith.constant 0 : index
    %c0_236 = arith.constant 0 : index
    %436 = vector.load %arg33[%c0_235, %c0_236] : memref<1x32xf32, #tpu.memory_space<vmem>>, vector<1x32xf32>
    %c0_237 = arith.constant 0 : index
    %c0_238 = arith.constant 0 : index
    %437 = vector.load %arg34[%c0_237, %c0_238] : memref<1x32xf32, #tpu.memory_space<vmem>>, vector<1x32xf32>
    %cst_239 = arith.constant dense<0.000000e+00> : vector<16xf32>
    %438 = vector.multi_reduction <add>, %435, %cst_239 [1] : vector<16x32xf32> to vector<16xf32>
    %439 = vector.shape_cast %438 : vector<16xf32> to vector<16x1xf32>
    %cst_240 = arith.constant 3.200000e+01 : f32
    %440 = vector.broadcast %cst_240 : f32 to vector<16x1xf32>
    %441 = arith.divf %439, %440 : vector<16x1xf32>
    %442 = vector.broadcast %441 : vector<16x1xf32> to vector<16x32xf32>
    %443 = arith.subf %435, %442 : vector<16x32xf32>
    %444 = arith.mulf %443, %443 : vector<16x32xf32>
    %cst_241 = arith.constant dense<0.000000e+00> : vector<16xf32>
    %445 = vector.multi_reduction <add>, %444, %cst_241 [1] : vector<16x32xf32> to vector<16xf32>
    %446 = vector.shape_cast %445 : vector<16xf32> to vector<16x1xf32>
    %cst_242 = arith.constant 3.200000e+01 : f32
    %447 = vector.broadcast %cst_242 : f32 to vector<16x1xf32>
    %448 = arith.divf %446, %447 : vector<16x1xf32>
    %449 = vector.broadcast %441 : vector<16x1xf32> to vector<16x32xf32>
    %450 = arith.subf %435, %449 : vector<16x32xf32>
    %cst_243 = arith.constant 9.99999974E-6 : f32
    %451 = vector.broadcast %cst_243 : f32 to vector<16x1xf32>
    %452 = arith.addf %448, %451 : vector<16x1xf32>
    %453 = math.rsqrt %452 : vector<16x1xf32>
    %454 = vector.broadcast %453 : vector<16x1xf32> to vector<16x32xf32>
    %455 = arith.mulf %450, %454 : vector<16x32xf32>
    %456 = vector.broadcast %436 : vector<1x32xf32> to vector<16x32xf32>
    %457 = arith.mulf %455, %456 : vector<16x32xf32>
    %458 = vector.broadcast %437 : vector<1x32xf32> to vector<16x32xf32>
    %459 = arith.addf %457, %458 : vector<16x32xf32>
    %cst_244 = arith.constant 5.000000e-01 : f32
    %460 = vector.broadcast %cst_244 : f32 to vector<16x32xf32>
    %461 = arith.mulf %460, %459 : vector<16x32xf32>
    %cst_245 = arith.constant 0.707106769 : f32
    %462 = vector.broadcast %cst_245 : f32 to vector<16x32xf32>
    %463 = arith.mulf %459, %462 : vector<16x32xf32>
    %464 = math.erf %463 : vector<16x32xf32>
    %cst_246 = arith.constant 1.000000e+00 : f32
    %465 = vector.broadcast %cst_246 : f32 to vector<16x32xf32>
    %466 = arith.addf %465, %464 : vector<16x32xf32>
    %467 = arith.mulf %461, %466 : vector<16x32xf32>
    %c0_247 = arith.constant 0 : index
    %c0_248 = arith.constant 0 : index
    %468 = vector.load %arg35[%c0_247, %c0_248] : memref<128x32xf32, #tpu.memory_space<vmem>>, vector<128x32xf32>
    %469 = vector.extract_strided_slice %468 {offsets = [0, 0], sizes = [64, 32], strides = [1, 1]} : vector<128x32xf32> to vector<64x32xf32>
    %cst_249 = arith.constant dense<0.000000e+00> : vector<16x32xf32>
    %470 = tpu.matmul %92, %469, %cst_249 {dimension_numbers = #tpu.dot_dimension_numbers<[1], [0], [0], [1], [0, 0, 1, 1], [], []>} : vector<16x64xf32>, vector<64x32xf32>, vector<16x32xf32> -> vector<16x32xf32>
    %471 = vector.extract_strided_slice %468 {offsets = [64, 0], sizes = [32, 32], strides = [1, 1]} : vector<128x32xf32> to vector<32x32xf32>
    %cst_250 = arith.constant dense<0.000000e+00> : vector<16x32xf32>
    %472 = tpu.matmul %399, %471, %cst_250 {dimension_numbers = #tpu.dot_dimension_numbers<[1], [0], [0], [1], [0, 0, 1, 1], [], []>} : vector<16x32xf32>, vector<32x32xf32>, vector<16x32xf32> -> vector<16x32xf32>
    %473 = arith.addf %470, %472 : vector<16x32xf32>
    %474 = vector.extract_strided_slice %468 {offsets = [96, 0], sizes = [32, 32], strides = [1, 1]} : vector<128x32xf32> to vector<32x32xf32>
    %cst_251 = arith.constant dense<0.000000e+00> : vector<16x32xf32>
    %475 = tpu.matmul %467, %474, %cst_251 {dimension_numbers = #tpu.dot_dimension_numbers<[1], [0], [0], [1], [0, 0, 1, 1], [], []>} : vector<16x32xf32>, vector<32x32xf32>, vector<16x32xf32> -> vector<16x32xf32>
    %476 = arith.addf %473, %475 : vector<16x32xf32>
    %c0_252 = arith.constant 0 : index
    %c0_253 = arith.constant 0 : index
    %477 = vector.load %arg36[%c0_252, %c0_253] : memref<1x32xf32, #tpu.memory_space<vmem>>, vector<1x32xf32>
    %478 = vector.broadcast %477 : vector<1x32xf32> to vector<16x32xf32>
    %479 = arith.addf %476, %478 : vector<16x32xf32>
    %c0_254 = arith.constant 0 : index
    %c0_255 = arith.constant 0 : index
    %480 = vector.load %arg37[%c0_254, %c0_255] : memref<1x32xf32, #tpu.memory_space<vmem>>, vector<1x32xf32>
    %c0_256 = arith.constant 0 : index
    %c0_257 = arith.constant 0 : index
    %481 = vector.load %arg38[%c0_256, %c0_257] : memref<1x32xf32, #tpu.memory_space<vmem>>, vector<1x32xf32>
    %cst_258 = arith.constant dense<0.000000e+00> : vector<16xf32>
    %482 = vector.multi_reduction <add>, %479, %cst_258 [1] : vector<16x32xf32> to vector<16xf32>
    %483 = vector.shape_cast %482 : vector<16xf32> to vector<16x1xf32>
    %cst_259 = arith.constant 3.200000e+01 : f32
    %484 = vector.broadcast %cst_259 : f32 to vector<16x1xf32>
    %485 = arith.divf %483, %484 : vector<16x1xf32>
    %486 = vector.broadcast %485 : vector<16x1xf32> to vector<16x32xf32>
    %487 = arith.subf %479, %486 : vector<16x32xf32>
    %488 = arith.mulf %487, %487 : vector<16x32xf32>
    %cst_260 = arith.constant dense<0.000000e+00> : vector<16xf32>
    %489 = vector.multi_reduction <add>, %488, %cst_260 [1] : vector<16x32xf32> to vector<16xf32>
    %490 = vector.shape_cast %489 : vector<16xf32> to vector<16x1xf32>
    %cst_261 = arith.constant 3.200000e+01 : f32
    %491 = vector.broadcast %cst_261 : f32 to vector<16x1xf32>
    %492 = arith.divf %490, %491 : vector<16x1xf32>
    %493 = vector.broadcast %485 : vector<16x1xf32> to vector<16x32xf32>
    %494 = arith.subf %479, %493 : vector<16x32xf32>
    %cst_262 = arith.constant 9.99999974E-6 : f32
    %495 = vector.broadcast %cst_262 : f32 to vector<16x1xf32>
    %496 = arith.addf %492, %495 : vector<16x1xf32>
    %497 = math.rsqrt %496 : vector<16x1xf32>
    %498 = vector.broadcast %497 : vector<16x1xf32> to vector<16x32xf32>
    %499 = arith.mulf %494, %498 : vector<16x32xf32>
    %500 = vector.broadcast %480 : vector<1x32xf32> to vector<16x32xf32>
    %501 = arith.mulf %499, %500 : vector<16x32xf32>
    %502 = vector.broadcast %481 : vector<1x32xf32> to vector<16x32xf32>
    %503 = arith.addf %501, %502 : vector<16x32xf32>
    %cst_263 = arith.constant 5.000000e-01 : f32
    %504 = vector.broadcast %cst_263 : f32 to vector<16x32xf32>
    %505 = arith.mulf %504, %503 : vector<16x32xf32>
    %cst_264 = arith.constant 0.707106769 : f32
    %506 = vector.broadcast %cst_264 : f32 to vector<16x32xf32>
    %507 = arith.mulf %503, %506 : vector<16x32xf32>
    %508 = math.erf %507 : vector<16x32xf32>
    %cst_265 = arith.constant 1.000000e+00 : f32
    %509 = vector.broadcast %cst_265 : f32 to vector<16x32xf32>
    %510 = arith.addf %509, %508 : vector<16x32xf32>
    %511 = arith.mulf %505, %510 : vector<16x32xf32>
    %c0_266 = arith.constant 0 : index
    %c0_267 = arith.constant 0 : index
    %512 = vector.load %arg39[%c0_266, %c0_267] : memref<16x32xf32, #tpu.memory_space<vmem>>, vector<16x32xf32>
    tpu.vector_store %arg39[%c0_266, %c0_267], %511 {strides = array<i32>} : memref<16x32xf32, #tpu.memory_space<vmem>>, vector<16x32xf32>,
    return
  }
  func.func @transform_0(%arg0: i32) -> (i32, i32) {
    %c0_i32 = arith.constant 0 : i32
    %c0_i32_0 = arith.constant 0 : i32
    return %arg0, %c0_i32 : i32, i32
  }
  func.func @transform_1(%arg0: i32) -> (i32, i32) {
    %c0_i32 = arith.constant 0 : i32
    %c0_i32_0 = arith.constant 0 : i32
    %c0_i32_1 = arith.constant 0 : i32
    return %c0_i32, %c0_i32_0 : i32, i32
  }
  func.func @transform_2(%arg0: i32) -> (i32, i32) {
    %c0_i32 = arith.constant 0 : i32
    %c0_i32_0 = arith.constant 0 : i32
    %c0_i32_1 = arith.constant 0 : i32
    return %c0_i32, %c0_i32_0 : i32, i32
  }
  func.func @transform_3(%arg0: i32) -> (i32, i32) {
    %c0_i32 = arith.constant 0 : i32
    %c0_i32_0 = arith.constant 0 : i32
    %c0_i32_1 = arith.constant 0 : i32
    return %c0_i32, %c0_i32_0 : i32, i32
  }
  func.func @transform_4(%arg0: i32) -> (i32, i32) {
    %c0_i32 = arith.constant 0 : i32
    %c0_i32_0 = arith.constant 0 : i32
    %c0_i32_1 = arith.constant 0 : i32
    return %c0_i32, %c0_i32_0 : i32, i32
  }
  func.func @transform_5(%arg0: i32) -> (i32, i32) {
    %c0_i32 = arith.constant 0 : i32
    %c0_i32_0 = arith.constant 0 : i32
    %c0_i32_1 = arith.constant 0 : i32
    return %c0_i32, %c0_i32_0 : i32, i32
  }
  func.func @transform_6(%arg0: i32) -> (i32, i32) {
    %c0_i32 = arith.constant 0 : i32
    %c0_i32_0 = arith.constant 0 : i32
    %c0_i32_1 = arith.constant 0 : i32
    return %c0_i32, %c0_i32_0 : i32, i32
  }
  func.func @transform_7(%arg0: i32) -> (i32, i32) {
    %c0_i32 = arith.constant 0 : i32
    %c0_i32_0 = arith.constant 0 : i32
    %c0_i32_1 = arith.constant 0 : i32
    return %c0_i32, %c0_i32_0 : i32, i32
  }
  func.func @transform_8(%arg0: i32) -> (i32, i32) {
    %c0_i32 = arith.constant 0 : i32
    %c0_i32_0 = arith.constant 0 : i32
    %c0_i32_1 = arith.constant 0 : i32
    return %c0_i32, %c0_i32_0 : i32, i32
  }
  func.func @transform_9(%arg0: i32) -> (i32, i32) {
    %c0_i32 = arith.constant 0 : i32
    %c0_i32_0 = arith.constant 0 : i32
    %c0_i32_1 = arith.constant 0 : i32
    return %c0_i32, %c0_i32_0 : i32, i32
  }
  func.func @transform_10(%arg0: i32) -> (i32, i32) {
    %c0_i32 = arith.constant 0 : i32
    %c0_i32_0 = arith.constant 0 : i32
    %c0_i32_1 = arith.constant 0 : i32
    return %c0_i32, %c0_i32_0 : i32, i32
  }
  func.func @transform_11(%arg0: i32) -> (i32, i32) {
    %c0_i32 = arith.constant 0 : i32
    %c0_i32_0 = arith.constant 0 : i32
    %c0_i32_1 = arith.constant 0 : i32
    return %c0_i32, %c0_i32_0 : i32, i32
  }
  func.func @transform_12(%arg0: i32) -> (i32, i32) {
    %c0_i32 = arith.constant 0 : i32
    %c0_i32_0 = arith.constant 0 : i32
    %c0_i32_1 = arith.constant 0 : i32
    return %c0_i32, %c0_i32_0 : i32, i32
  }
  func.func @transform_13(%arg0: i32) -> (i32, i32) {
    %c0_i32 = arith.constant 0 : i32
    %c0_i32_0 = arith.constant 0 : i32
    %c0_i32_1 = arith.constant 0 : i32
    return %c0_i32, %c0_i32_0 : i32, i32
  }
  func.func @transform_14(%arg0: i32) -> (i32, i32) {
    %c0_i32 = arith.constant 0 : i32
    %c0_i32_0 = arith.constant 0 : i32
    %c0_i32_1 = arith.constant 0 : i32
    return %c0_i32, %c0_i32_0 : i32, i32
  }
  func.func @transform_15(%arg0: i32) -> (i32, i32) {
    %c0_i32 = arith.constant 0 : i32
    %c0_i32_0 = arith.constant 0 : i32
    %c0_i32_1 = arith.constant 0 : i32
    return %c0_i32, %c0_i32_0 : i32, i32
  }
  func.func @transform_16(%arg0: i32) -> (i32, i32) {
    %c0_i32 = arith.constant 0 : i32
    %c0_i32_0 = arith.constant 0 : i32
    %c0_i32_1 = arith.constant 0 : i32
    return %c0_i32, %c0_i32_0 : i32, i32
  }
  func.func @transform_17(%arg0: i32) -> (i32, i32) {
    %c0_i32 = arith.constant 0 : i32
    %c0_i32_0 = arith.constant 0 : i32
    %c0_i32_1 = arith.constant 0 : i32
    return %c0_i32, %c0_i32_0 : i32, i32
  }
  func.func @transform_18(%arg0: i32) -> (i32, i32, i32) {
    %c0_i32 = arith.constant 0 : i32
    %c0_i32_0 = arith.constant 0 : i32
    %c0_i32_1 = arith.constant 0 : i32
    %c0_i32_2 = arith.constant 0 : i32
    return %c0_i32, %c0_i32_0, %c0_i32_1 : i32, i32, i32
  }
  func.func @transform_19(%arg0: i32) -> (i32, i32, i32) {
    %c0_i32 = arith.constant 0 : i32
    %c0_i32_0 = arith.constant 0 : i32
    %c0_i32_1 = arith.constant 0 : i32
    %c0_i32_2 = arith.constant 0 : i32
    return %c0_i32, %c0_i32_0, %c0_i32_1 : i32, i32, i32
  }
  func.func @transform_20(%arg0: i32) -> (i32, i32, i32) {
    %c0_i32 = arith.constant 0 : i32
    %c0_i32_0 = arith.constant 0 : i32
    %c0_i32_1 = arith.constant 0 : i32
    %c0_i32_2 = arith.constant 0 : i32
    return %c0_i32, %c0_i32_0, %c0_i32_1 : i32, i32, i32
  }
  func.func @transform_21(%arg0: i32) -> (i32, i32, i32) {
    %c0_i32 = arith.constant 0 : i32
    %c0_i32_0 = arith.constant 0 : i32
    %c0_i32_1 = arith.constant 0 : i32
    %c0_i32_2 = arith.constant 0 : i32
    return %c0_i32, %c0_i32_0, %c0_i32_1 : i32, i32, i32
  }
  func.func @transform_22(%arg0: i32) -> (i32, i32, i32) {
    %c0_i32 = arith.constant 0 : i32
    %c0_i32_0 = arith.constant 0 : i32
    %c0_i32_1 = arith.constant 0 : i32
    %c0_i32_2 = arith.constant 0 : i32
    return %c0_i32, %c0_i32_0, %c0_i32_1 : i32, i32, i32
  }
  func.func @transform_23(%arg0: i32) -> (i32, i32, i32) {
    %c0_i32 = arith.constant 0 : i32
    %c0_i32_0 = arith.constant 0 : i32
    %c0_i32_1 = arith.constant 0 : i32
    %c0_i32_2 = arith.constant 0 : i32
    return %c0_i32, %c0_i32_0, %c0_i32_1 : i32, i32, i32
  }
  func.func @transform_24(%arg0: i32) -> (i32, i32, i32) {
    %c0_i32 = arith.constant 0 : i32
    %c0_i32_0 = arith.constant 0 : i32
    %c0_i32_1 = arith.constant 0 : i32
    %c0_i32_2 = arith.constant 0 : i32
    return %c0_i32, %c0_i32_0, %c0_i32_1 : i32, i32, i32
  }
  func.func @transform_25(%arg0: i32) -> (i32, i32, i32) {
    %c0_i32 = arith.constant 0 : i32
    %c0_i32_0 = arith.constant 0 : i32
    %c0_i32_1 = arith.constant 0 : i32
    %c0_i32_2 = arith.constant 0 : i32
    return %c0_i32, %c0_i32_0, %c0_i32_1 : i32, i32, i32
  }
  func.func @transform_26(%arg0: i32) -> (i32, i32) {
    %c0_i32 = arith.constant 0 : i32
    %c0_i32_0 = arith.constant 0 : i32
    %c0_i32_1 = arith.constant 0 : i32
    return %c0_i32, %c0_i32_0 : i32, i32
  }
  func.func @transform_27(%arg0: i32) -> (i32, i32) {
    %c0_i32 = arith.constant 0 : i32
    %c0_i32_0 = arith.constant 0 : i32
    %c0_i32_1 = arith.constant 0 : i32
    return %c0_i32, %c0_i32_0 : i32, i32
  }
  func.func @transform_28(%arg0: i32) -> (i32, i32) {
    %c0_i32 = arith.constant 0 : i32
    %c0_i32_0 = arith.constant 0 : i32
    %c0_i32_1 = arith.constant 0 : i32
    return %c0_i32, %c0_i32_0 : i32, i32
  }
  func.func @transform_29(%arg0: i32) -> (i32, i32) {
    %c0_i32 = arith.constant 0 : i32
    %c0_i32_0 = arith.constant 0 : i32
    %c0_i32_1 = arith.constant 0 : i32
    return %c0_i32, %c0_i32_0 : i32, i32
  }
  func.func @transform_30(%arg0: i32) -> (i32, i32) {
    %c0_i32 = arith.constant 0 : i32
    %c0_i32_0 = arith.constant 0 : i32
    %c0_i32_1 = arith.constant 0 : i32
    return %c0_i32, %c0_i32_0 : i32, i32
  }
  func.func @transform_31(%arg0: i32) -> (i32, i32) {
    %c0_i32 = arith.constant 0 : i32
    %c0_i32_0 = arith.constant 0 : i32
    %c0_i32_1 = arith.constant 0 : i32
    return %c0_i32, %c0_i32_0 : i32, i32
  }
  func.func @transform_32(%arg0: i32) -> (i32, i32) {
    %c0_i32 = arith.constant 0 : i32
    %c0_i32_0 = arith.constant 0 : i32
    %c0_i32_1 = arith.constant 0 : i32
    return %c0_i32, %c0_i32_0 : i32, i32
  }
  func.func @transform_33(%arg0: i32) -> (i32, i32) {
    %c0_i32 = arith.constant 0 : i32
    %c0_i32_0 = arith.constant 0 : i32
    %c0_i32_1 = arith.constant 0 : i32
    return %c0_i32, %c0_i32_0 : i32, i32
  }
  func.func @transform_34(%arg0: i32) -> (i32, i32) {
    %c0_i32 = arith.constant 0 : i32
    %c0_i32_0 = arith.constant 0 : i32
    %c0_i32_1 = arith.constant 0 : i32
    return %c0_i32, %c0_i32_0 : i32, i32
  }
  func.func @transform_35(%arg0: i32) -> (i32, i32) {
    %c0_i32 = arith.constant 0 : i32
    %c0_i32_0 = arith.constant 0 : i32
    %c0_i32_1 = arith.constant 0 : i32
    return %c0_i32, %c0_i32_0 : i32, i32
  }
  func.func @transform_36(%arg0: i32) -> (i32, i32) {
    %c0_i32 = arith.constant 0 : i32
    %c0_i32_0 = arith.constant 0 : i32
    %c0_i32_1 = arith.constant 0 : i32
    return %c0_i32, %c0_i32_0 : i32, i32
  }
  func.func @transform_37(%arg0: i32) -> (i32, i32) {
    %c0_i32 = arith.constant 0 : i32
    %c0_i32_0 = arith.constant 0 : i32
    %c0_i32_1 = arith.constant 0 : i32
    return %c0_i32, %c0_i32_0 : i32, i32
  }
  func.func @transform_38(%arg0: i32) -> (i32, i32) {
    %c0_i32 = arith.constant 0 : i32
    %c0_i32_0 = arith.constant 0 : i32
    return %arg0, %c0_i32 : i32, i32
  }
}

</mosaic_0001>

<llo_original>
// kernel: unified_resonance_forward.1
$region0: #{unified_resonance_forward.1}
  #allocation0 [shape = 'u32[]', space=smem, size = 0x4, offset = 0x4, fixed_abs, tag = 'smem constant byte address 0x4 - core index']
  #allocation1 [shape = 'u32[144,128]{1,0:T(1,128)}', space=vmem, size = 0x12000, scoped, tag = 'internal scratch']
  %s0 = inlined_call_operand.smem [shape: u32[39], index: -1, kind: input, shape index: {}]
  %s1 = sld [smem:[%s0]]
  %s2 = scalar_lea.smem %s0, 1
  %s3 = sld [smem:[%s2]]
  %s4 = scalar_lea.smem %s0, 2
  %s5 = sld [smem:[%s4]]
  %s6 = scalar_lea.smem %s0, 3
  %s7 = sld [smem:[%s6]]
  %s8 = scalar_lea.smem %s0, 4
  %s9 = sld [smem:[%s8]]
  %s10 = scalar_lea.smem %s0, 5
  %s11 = sld [smem:[%s10]]
  %s12 = scalar_lea.smem %s0, 6
  %s13 = sld [smem:[%s12]]
  %s14 = scalar_lea.smem %s0, 7
  %s15 = sld [smem:[%s14]]
  %s16 = scalar_lea.smem %s0, 8
  %s17 = sld [smem:[%s16]]
  %s18 = scalar_lea.smem %s0, 9
  %s19 = sld [smem:[%s18]]
  %s20 = scalar_lea.smem %s0, 10
  %s21 = sld [smem:[%s20]]
  %s22 = scalar_lea.smem %s0, 11
  %s23 = sld [smem:[%s22]]
  %s24 = scalar_lea.smem %s0, 12
  %s25 = sld [smem:[%s24]]
  %s26 = scalar_lea.smem %s0, 13
  %s27 = sld [smem:[%s26]]
  %s28 = scalar_lea.smem %s0, 14
  %s29 = sld [smem:[%s28]]
  %s30 = scalar_lea.smem %s0, 15
  %s31 = sld [smem:[%s30]]
  %s32 = scalar_lea.smem %s0, 16
  %s33 = sld [smem:[%s32]]
  %s34 = scalar_lea.smem %s0, 17
  %s35 = sld [smem:[%s34]]
  %s36 = scalar_lea.smem %s0, 18
  %s37 = sld [smem:[%s36]]
  %s38 = scalar_lea.smem %s0, 19
  %s39 = sld [smem:[%s38]]
  %s40 = scalar_lea.smem %s0, 20
  %s41 = sld [smem:[%s40]]
  %s42 = scalar_lea.smem %s0, 21
  %s43 = sld [smem:[%s42]]
  %s44 = scalar_lea.smem %s0, 22
  %s45 = sld [smem:[%s44]]
  %s46 = scalar_lea.smem %s0, 23
  %s47 = sld [smem:[%s46]]
  %s48 = scalar_lea.smem %s0, 24
  %s49 = sld [smem:[%s48]]
  %s50 = scalar_lea.smem %s0, 25
  %s51 = sld [smem:[%s50]]
  %s52 = scalar_lea.smem %s0, 26
  %s53 = sld [smem:[%s52]]
  %s54 = scalar_lea.smem %s0, 27
  %s55 = sld [smem:[%s54]]
  %s56 = scalar_lea.smem %s0, 28
  %s57 = sld [smem:[%s56]]
  %s58 = scalar_lea.smem %s0, 29
  %s59 = sld [smem:[%s58]]
  %s60 = scalar_lea.smem %s0, 30
  %s61 = sld [smem:[%s60]]
  %s62 = scalar_lea.smem %s0, 31
  %s63 = sld [smem:[%s62]]
  %s64 = scalar_lea.smem %s0, 32
  %s65 = sld [smem:[%s64]]
  %s66 = scalar_lea.smem %s0, 33
  %s67 = sld [smem:[%s66]]
  %s68 = scalar_lea.smem %s0, 34
  %s69 = sld [smem:[%s68]]
  %s70 = scalar_lea.smem %s0, 35
  %s71 = sld [smem:[%s70]]
  %s72 = scalar_lea.smem %s0, 36
  %s73 = sld [smem:[%s72]]
  %s74 = scalar_lea.smem %s0, 37
  %s75 = sld [smem:[%s74]]
  %s76 = scalar_lea.smem %s0, 38
  %s77 = sld [smem:[%s76]]
  %s78 = sld [smem:[#allocation0]]
  $region278: #{unified_resonance_forward.1} parent=0
    _
  %s80 = ssub.s32 1, %s78
  %s81 = scalar_select 0, %s80, %s78
  $region1: #{unified_resonance_forward.1} parent=0
    #allocation2 [shape = 'u8[8192]{0}', space=vmem, size = 0x2000, scoped, tag = 'input window, operand 0, single buffered']
    #allocation3 [shape = 's32[1]{0}', space=sflag, size = 0x4, scoped, tag = 'scoped memory for unified_resonance_forward.1']
    #allocation4 [shape = 's32[1]{0}', space=sflag, size = 0x4, scoped, tag = 'scoped memory for unified_resonance_forward.1']
    #allocation5 [shape = 'u8[16384]{0}', space=vmem, size = 0x4000, scoped, tag = 'input window, operand 2, single buffered']
    #allocation6 [shape = 's32[1]{0}', space=sflag, size = 0x4, scoped, tag = 'scoped memory for unified_resonance_forward.1']
    #allocation7 [shape = 'u8[8192]{0}', space=vmem, size = 0x2000, scoped, tag = 'input window, operand 4, single buffered']
    #allocation8 [shape = 'u8[65536]{0}', space=vmem, size = 0x10000, scoped, tag = 'input window, operand 5, single buffered']
    #allocation9 [shape = 's32[1]{0}', space=sflag, size = 0x4, scoped, tag = 'scoped memory for unified_resonance_forward.1']
    #allocation10 [shape = 'u8[2048]{0}', space=vmem, size = 0x800, scoped, tag = 'input window, operand 6, single buffered']
    #allocation11 [shape = 'u8[2048]{0}', space=vmem, size = 0x800, scoped, tag = 'input window, operand 7, single buffered']
    #allocation12 [shape = 's32[1]{0}', space=sflag, size = 0x4, scoped, tag = 'scoped memory for unified_resonance_forward.1']
    #allocation13 [shape = 'u8[2048]{0}', space=vmem, size = 0x800, scoped, tag = 'input window, operand 8, single buffered']
    #allocation14 [shape = 'u8[2048]{0}', space=vmem, size = 0x800, scoped, tag = 'input window, operand 10, single buffered']
    #allocation15 [shape = 's32[1]{0}', space=sflag, size = 0x4, scoped, tag = 'scoped memory for unified_resonance_forward.1']
    #allocation16 [shape = 'u8[2048]{0}', space=vmem, size = 0x800, scoped, tag = 'input window, operand 11, single buffered']
    #allocation17 [shape = 'u8[2048]{0}', space=vmem, size = 0x800, scoped, tag = 'input window, operand 12, single buffered']
    #allocation18 [shape = 's32[1]{0}', space=sflag, size = 0x4, scoped, tag = 'scoped memory for unified_resonance_forward.1']
    #allocation19 [shape = 'u8[512]{0}', space=vmem, size = 0x400, scoped, tag = 'input window, operand 15, single buffered']
    #allocation20 [shape = 'u8[512]{0}', space=vmem, size = 0x400, scoped, tag = 'input window, operand 16, single buffered']
    #allocation21 [shape = 's32[1]{0}', space=sflag, size = 0x4, scoped, tag = 'scoped memory for unified_resonance_forward.1']
    #allocation22 [shape = 'u8[49152]{0}', space=vmem, size = 0xc000, scoped, tag = 'input window, operand 18, single buffered']
    #allocation23 [shape = 'u8[2048]{0}', space=vmem, size = 0x800, scoped, tag = 'input window, operand 19, single buffered']
    #allocation24 [shape = 's32[1]{0}', space=sflag, size = 0x4, scoped, tag = 'scoped memory for unified_resonance_forward.1']
    #allocation25 [shape = 'u8[2048]{0}', space=vmem, size = 0x800, scoped, tag = 'input window, operand 20, single buffered']
    #allocation26 [shape = 'u8[2048]{0}', space=vmem, size = 0x800, scoped, tag = 'input window, operand 21, single buffered']
    #allocation27 [shape = 's32[1]{0}', space=sflag, size = 0x4, scoped, tag = 'scoped memory for unified_resonance_forward.1']
    #allocation28 [shape = 'u8[2048]{0}', space=vmem, size = 0x800, scoped, tag = 'input window, operand 23, single buffered']
    #allocation29 [shape = 'u8[2048]{0}', space=vmem, size = 0x800, scoped, tag = 'input window, operand 24, single buffered']
    #allocation30 [shape = 's32[1]{0}', space=sflag, size = 0x4, scoped, tag = 'scoped memory for unified_resonance_forward.1']
    #allocation31 [shape = 'u8[2048]{0}', space=vmem, size = 0x800, scoped, tag = 'input window, operand 25, single buffered']
    #allocation32 [shape = 'u8[32768]{0}', space=vmem, size = 0x8000, scoped, tag = 'input window, operand 26, single buffered']
    #allocation33 [shape = 's32[1]{0}', space=sflag, size = 0x4, scoped, tag = 'scoped memory for unified_resonance_forward.1']
    #allocation34 [shape = 'u8[1024]{0}', space=vmem, size = 0x400, scoped, tag = 'input window, operand 27, single buffered']
    #allocation35 [shape = 'u8[1024]{0}', space=vmem, size = 0x400, scoped, tag = 'input window, operand 28, single buffered']
    #allocation36 [shape = 's32[1]{0}', space=sflag, size = 0x4, scoped, tag = 'scoped memory for unified_resonance_forward.1']
    #allocation37 [shape = 'u8[1024]{0}', space=vmem, size = 0x400, scoped, tag = 'input window, operand 29, single buffered']
    #allocation38 [shape = 'u8[512]{0}', space=vmem, size = 0x400, scoped, tag = 'input window, operand 31, single buffered']
    #allocation39 [shape = 's32[1]{0}', space=sflag, size = 0x4, scoped, tag = 'scoped memory for unified_resonance_forward.1']
    #allocation40 [shape = 'u8[512]{0}', space=vmem, size = 0x400, scoped, tag = 'input window, operand 32, single buffered']
    #allocation41 [shape = 'u8[512]{0}', space=vmem, size = 0x400, scoped, tag = 'input window, operand 33, single buffered']
    #allocation42 [shape = 's32[1]{0}', space=sflag, size = 0x4, scoped, tag = 'scoped memory for unified_resonance_forward.1']
    #allocation43 [shape = 'u8[512]{0}', space=vmem, size = 0x400, scoped, tag = 'input window, operand 35, single buffered']
    #allocation44 [shape = 'u8[512]{0}', space=vmem, size = 0x400, scoped, tag = 'input window, operand 36, single buffered']
    #allocation45 [shape = 's32[1]{0}', space=sflag, size = 0x4, scoped, tag = 'scoped memory for unified_resonance_forward.1']
    #allocation46 [shape = 'u8[512]{0}', space=vmem, size = 0x400, scoped, tag = 'input window, operand 37, single buffered']
    #allocation47 [shape = 'u8[8192]{0}', space=vmem, size = 0x2000, scoped, tag = 'output window, operand 0, single buffered']
    %82 = vsyncpa [#allocation3], 0
    %83 = vsyncpa [#allocation6], 0
    %84 = vsyncpa [#allocation9], 0
    %85 = vsyncpa [#allocation12], 0
    %86 = vsyncpa [#allocation15], 0
    %87 = vsyncpa [#allocation18], 0
    %88 = vsyncpa [#allocation21], 0
    %89 = vsyncpa [#allocation24], 0
    %90 = vsyncpa [#allocation27], 0
    %91 = vsyncpa [#allocation30], 0
    %92 = vsyncpa [#allocation33], 0
    %93 = vsyncpa [#allocation36], 0
    %94 = vsyncpa [#allocation39], 0
    %95 = vsyncpa [#allocation42], 0
    %96 = vsyncpa [#allocation45], 0
    %97 = vsyncpa [#allocation4], 0
    // Predicated region
    $region2: #{unified_resonance_forward.1} parent=1 // pred_check
      _
    $region3: #{unified_resonance_forward.1} parent=1 // pred_check_branch
      %99 = sbr.rel (0) target = $region5
    $region4: #{unified_resonance_forward.1} parent=1 // pred_region
      %s101 = ssub.s32 256, 256
      %102 = vsyncadd [#allocation3], %s101
      %s103 = sshll.u32 [#allocation2], 4
      %s104 = int_to_ptr.vmem [resolvable:$true] %s103
      %109 = dma.hbm_to_vmem [thread:$0]  %s1, 256, %s104, [#allocation3], 128, 128, 8
    $region5: #{unified_resonance_forward.1} parent=1 // pred_fallthru
      _
    // Predicated region
    $region6: #{unified_resonance_forward.1} parent=1 // pred_check
      _
    $region7: #{unified_resonance_forward.1} parent=1 // pred_check_branch
      %111 = sbr.rel (0) target = $region9
    $region8: #{unified_resonance_forward.1} parent=1 // pred_region
      _
    $region9: #{unified_resonance_forward.1} parent=1 // pred_fallthru
      _
    // Predicated region
    $region10: #{unified_resonance_forward.1} parent=1 // pred_check
      _
    $region11: #{unified_resonance_forward.1} parent=1 // pred_check_branch
      %113 = sbr.rel (0) target = $region13
    $region12: #{unified_resonance_forward.1} parent=1 // pred_region
      %s115 = ssub.s32 512, 512
      %116 = vsyncadd [#allocation6], %s115
      %s118 = sshll.u32 [#allocation5], 4
      %s119 = int_to_ptr.vmem [resolvable:$true] %s118
      %121 = dma.hbm_to_vmem [thread:$0]  %s5, 512, %s119, [#allocation6]
    $region13: #{unified_resonance_forward.1} parent=1 // pred_fallthru
      _
    // Predicated region
    $region14: #{unified_resonance_forward.1} parent=1 // pred_check
      _
    $region15: #{unified_resonance_forward.1} parent=1 // pred_check_branch
      %123 = sbr.rel (0) target = $region17
    $region16: #{unified_resonance_forward.1} parent=1 // pred_region
      _
    $region17: #{unified_resonance_forward.1} parent=1 // pred_fallthru
      _
    // Predicated region
    $region18: #{unified_resonance_forward.1} parent=1 // pred_check
      _
    $region19: #{unified_resonance_forward.1} parent=1 // pred_check_branch
      %125 = sbr.rel (0) target = $region21
    $region20: #{unified_resonance_forward.1} parent=1 // pred_region
      %s127 = ssub.s32 256, 256
      %128 = vsyncadd [#allocation6], %s127
      %s130 = sshll.u32 [#allocation7], 4
      %s131 = int_to_ptr.vmem [resolvable:$true] %s130
      %133 = dma.hbm_to_vmem [thread:$0]  %s9, 256, %s131, [#allocation6]
    $region21: #{unified_resonance_forward.1} parent=1 // pred_fallthru
      _
    // Predicated region
    $region22: #{unified_resonance_forward.1} parent=1 // pred_check
      _
    $region23: #{unified_resonance_forward.1} parent=1 // pred_check_branch
      %135 = sbr.rel (0) target = $region25
    $region24: #{unified_resonance_forward.1} parent=1 // pred_region
      %s137 = ssub.s32 2048, 2048
      %138 = vsyncadd [#allocation9], %s137
      %s139 = sshll.u32 [#allocation8], 4
      %s140 = int_to_ptr.vmem [resolvable:$true] %s139
      %145 = dma.hbm_to_vmem [thread:$0]  %s11, 2048, %s140, [#allocation9], 512, 512, 32
    $region25: #{unified_resonance_forward.1} parent=1 // pred_fallthru
      _
    // Predicated region
    $region26: #{unified_resonance_forward.1} parent=1 // pred_check
      _
    $region27: #{unified_resonance_forward.1} parent=1 // pred_check_branch
      %147 = sbr.rel (0) target = $region29
    $region28: #{unified_resonance_forward.1} parent=1 // pred_region
      %s149 = ssub.s32 64, 64
      %150 = vsyncadd [#allocation9], %s149
      %s152 = sshll.u32 [#allocation10], 4
      %s153 = int_to_ptr.vmem [resolvable:$true] %s152
      %155 = dma.hbm_to_vmem [thread:$0]  %s13, 64, %s153, [#allocation9]
    $region29: #{unified_resonance_forward.1} parent=1 // pred_fallthru
      _
    // Predicated region
    $region30: #{unified_resonance_forward.1} parent=1 // pred_check
      _
    $region31: #{unified_resonance_forward.1} parent=1 // pred_check_branch
      %157 = sbr.rel (0) target = $region33
    $region32: #{unified_resonance_forward.1} parent=1 // pred_region
      %s159 = ssub.s32 64, 64
      %160 = vsyncadd [#allocation12], %s159
      %s162 = sshll.u32 [#allocation11], 4
      %s163 = int_to_ptr.vmem [resolvable:$true] %s162
      %165 = dma.hbm_to_vmem [thread:$0]  %s15, 64, %s163, [#allocation12]
    $region33: #{unified_resonance_forward.1} parent=1 // pred_fallthru
      _
    // Predicated region
    $region34: #{unified_resonance_forward.1} parent=1 // pred_check
      _
    $region35: #{unified_resonance_forward.1} parent=1 // pred_check_branch
      %167 = sbr.rel (0) target = $region37
    $region36: #{unified_resonance_forward.1} parent=1 // pred_region
      %s169 = ssub.s32 64, 64
      %170 = vsyncadd [#allocation12], %s169
      %s172 = sshll.u32 [#allocation13], 4
      %s173 = int_to_ptr.vmem [resolvable:$true] %s172
      %175 = dma.hbm_to_vmem [thread:$0]  %s17, 64, %s173, [#allocation12]
    $region37: #{unified_resonance_forward.1} parent=1 // pred_fallthru
      _
    // Predicated region
    $region38: #{unified_resonance_forward.1} parent=1 // pred_check
      _
    $region39: #{unified_resonance_forward.1} parent=1 // pred_check_branch
      %177 = sbr.rel (0) target = $region41
    $region40: #{unified_resonance_forward.1} parent=1 // pred_region
      _
    $region41: #{unified_resonance_forward.1} parent=1 // pred_fallthru
      _
    // Predicated region
    $region42: #{unified_resonance_forward.1} parent=1 // pred_check
      _
    $region43: #{unified_resonance_forward.1} parent=1 // pred_check_branch
      %179 = sbr.rel (0) target = $region45
    $region44: #{unified_resonance_forward.1} parent=1 // pred_region
      %s181 = ssub.s32 64, 64
      %182 = vsyncadd [#allocation15], %s181
      %s184 = sshll.u32 [#allocation14], 4
      %s185 = int_to_ptr.vmem [resolvable:$true] %s184
      %187 = dma.hbm_to_vmem [thread:$0]  %s21, 64, %s185, [#allocation15]
    $region45: #{unified_resonance_forward.1} parent=1 // pred_fallthru
      _
    // Predicated region
    $region46: #{unified_resonance_forward.1} parent=1 // pred_check
      _
    $region47: #{unified_resonance_forward.1} parent=1 // pred_check_branch
      %189 = sbr.rel (0) target = $region49
    $region48: #{unified_resonance_forward.1} parent=1 // pred_region
      %s191 = ssub.s32 64, 64
      %192 = vsyncadd [#allocation15], %s191
      %s194 = sshll.u32 [#allocation16], 4
      %s195 = int_to_ptr.vmem [resolvable:$true] %s194
      %197 = dma.hbm_to_vmem [thread:$0]  %s23, 64, %s195, [#allocation15]
    $region49: #{unified_resonance_forward.1} parent=1 // pred_fallthru
      _
    // Predicated region
    $region50: #{unified_resonance_forward.1} parent=1 // pred_check
      _
    $region51: #{unified_resonance_forward.1} parent=1 // pred_check_branch
      %199 = sbr.rel (0) target = $region53
    $region52: #{unified_resonance_forward.1} parent=1 // pred_region
      %s201 = ssub.s32 64, 64
      %202 = vsyncadd [#allocation18], %s201
      %s204 = sshll.u32 [#allocation17], 4
      %s205 = int_to_ptr.vmem [resolvable:$true] %s204
      %207 = dma.hbm_to_vmem [thread:$0]  %s25, 64, %s205, [#allocation18]
    $region53: #{unified_resonance_forward.1} parent=1 // pred_fallthru
      _
    // Predicated region
    $region54: #{unified_resonance_forward.1} parent=1 // pred_check
      _
    $region55: #{unified_resonance_forward.1} parent=1 // pred_check_branch
      %209 = sbr.rel (0) target = $region57
    $region56: #{unified_resonance_forward.1} parent=1 // pred_region
      _
    $region57: #{unified_resonance_forward.1} parent=1 // pred_fallthru
      _
    // Predicated region
    $region58: #{unified_resonance_forward.1} parent=1 // pred_check
      _
    $region59: #{unified_resonance_forward.1} parent=1 // pred_check_branch
      %211 = sbr.rel (0) target = $region61
    $region60: #{unified_resonance_forward.1} parent=1 // pred_region
      _
    $region61: #{unified_resonance_forward.1} parent=1 // pred_fallthru
      _
    // Predicated region
    $region62: #{unified_resonance_forward.1} parent=1 // pred_check
      _
    $region63: #{unified_resonance_forward.1} parent=1 // pred_check_branch
      %213 = sbr.rel (0) target = $region65
    $region64: #{unified_resonance_forward.1} parent=1 // pred_region
      %s215 = ssub.s32 16, 16
      %216 = vsyncadd [#allocation18], %s215
      %s218 = sshll.u32 [#allocation19], 4
      %s219 = int_to_ptr.vmem [resolvable:$true] %s218
      %221 = dma.hbm_to_vmem [thread:$0]  %s31, 16, %s219, [#allocation18]
    $region65: #{unified_resonance_forward.1} parent=1 // pred_fallthru
      _
    // Predicated region
    $region66: #{unified_resonance_forward.1} parent=1 // pred_check
      _
    $region67: #{unified_resonance_forward.1} parent=1 // pred_check_branch
      %223 = sbr.rel (0) target = $region69
    $region68: #{unified_resonance_forward.1} parent=1 // pred_region
      %s225 = ssub.s32 16, 16
      %226 = vsyncadd [#allocation21], %s225
      %s228 = sshll.u32 [#allocation20], 4
      %s229 = int_to_ptr.vmem [resolvable:$true] %s228
      %231 = dma.hbm_to_vmem [thread:$0]  %s33, 16, %s229, [#allocation21]
    $region69: #{unified_resonance_forward.1} parent=1 // pred_fallthru
      _
    // Predicated region
    $region70: #{unified_resonance_forward.1} parent=1 // pred_check
      _
    $region71: #{unified_resonance_forward.1} parent=1 // pred_check_branch
      %233 = sbr.rel (0) target = $region73
    $region72: #{unified_resonance_forward.1} parent=1 // pred_region
      _
    $region73: #{unified_resonance_forward.1} parent=1 // pred_fallthru
      _
    // Predicated region
    $region74: #{unified_resonance_forward.1} parent=1 // pred_check
      _
    $region75: #{unified_resonance_forward.1} parent=1 // pred_check_branch
      %235 = sbr.rel (0) target = $region77
    $region76: #{unified_resonance_forward.1} parent=1 // pred_region
      %s237 = ssub.s32 1536, 1536
      %238 = vsyncadd [#allocation21], %s237
      %s239 = sshll.u32 [#allocation22], 4
      %s240 = int_to_ptr.vmem [resolvable:$true] %s239
      %245 = dma.hbm_to_vmem [thread:$0]  %s37, 1536, %s240, [#allocation21], 128, 128, 8
    $region77: #{unified_resonance_forward.1} parent=1 // pred_fallthru
      _
    // Predicated region
    $region78: #{unified_resonance_forward.1} parent=1 // pred_check
      _
    $region79: #{unified_resonance_forward.1} parent=1 // pred_check_branch
      %247 = sbr.rel (0) target = $region81
    $region80: #{unified_resonance_forward.1} parent=1 // pred_region
      %s249 = ssub.s32 64, 64
      %250 = vsyncadd [#allocation24], %s249
      %s251 = sshll.u32 [#allocation23], 4
      %s252 = int_to_ptr.vmem [resolvable:$true] %s251
      %257 = dma.hbm_to_vmem [thread:$0]  %s39, 64, %s252, [#allocation24], 16, 16, 1
    $region81: #{unified_resonance_forward.1} parent=1 // pred_fallthru
      _
    // Predicated region
    $region82: #{unified_resonance_forward.1} parent=1 // pred_check
      _
    $region83: #{unified_resonance_forward.1} parent=1 // pred_check_branch
      %259 = sbr.rel (0) target = $region85
    $region84: #{unified_resonance_forward.1} parent=1 // pred_region
      %s261 = ssub.s32 64, 64
      %262 = vsyncadd [#allocation24], %s261
      %s263 = sshll.u32 [#allocation25], 4
      %s264 = int_to_ptr.vmem [resolvable:$true] %s263
      %269 = dma.hbm_to_vmem [thread:$0]  %s41, 64, %s264, [#allocation24], 16, 16, 1
    $region85: #{unified_resonance_forward.1} parent=1 // pred_fallthru
      _
    // Predicated region
    $region86: #{unified_resonance_forward.1} parent=1 // pred_check
      _
    $region87: #{unified_resonance_forward.1} parent=1 // pred_check_branch
      %271 = sbr.rel (0) target = $region89
    $region88: #{unified_resonance_forward.1} parent=1 // pred_region
      %s273 = ssub.s32 64, 64
      %274 = vsyncadd [#allocation27], %s273
      %s275 = sshll.u32 [#allocation26], 4
      %s276 = int_to_ptr.vmem [resolvable:$true] %s275
      %281 = dma.hbm_to_vmem [thread:$0]  %s43, 64, %s276, [#allocation27], 16, 16, 1
    $region89: #{unified_resonance_forward.1} parent=1 // pred_fallthru
      _
    // Predicated region
    $region90: #{unified_resonance_forward.1} parent=1 // pred_check
      _
    $region91: #{unified_resonance_forward.1} parent=1 // pred_check_branch
      %283 = sbr.rel (0) target = $region93
    $region92: #{unified_resonance_forward.1} parent=1 // pred_region
      _
    $region93: #{unified_resonance_forward.1} parent=1 // pred_fallthru
      _
    // Predicated region
    $region94: #{unified_resonance_forward.1} parent=1 // pred_check
      _
    $region95: #{unified_resonance_forward.1} parent=1 // pred_check_branch
      %285 = sbr.rel (0) target = $region97
    $region96: #{unified_resonance_forward.1} parent=1 // pred_region
      %s287 = ssub.s32 64, 64
      %288 = vsyncadd [#allocation27], %s287
      %s289 = sshll.u32 [#allocation28], 4
      %s290 = int_to_ptr.vmem [resolvable:$true] %s289
      %295 = dma.hbm_to_vmem [thread:$0]  %s47, 64, %s290, [#allocation27], 16, 16, 1
    $region97: #{unified_resonance_forward.1} parent=1 // pred_fallthru
      _
    // Predicated region
    $region98: #{unified_resonance_forward.1} parent=1 // pred_check
      _
    $region99: #{unified_resonance_forward.1} parent=1 // pred_check_branch
      %297 = sbr.rel (0) target = $region101
    $region100: #{unified_resonance_forward.1} parent=1 // pred_region
      %s299 = ssub.s32 64, 64
      %300 = vsyncadd [#allocation30], %s299
      %s301 = sshll.u32 [#allocation29], 4
      %s302 = int_to_ptr.vmem [resolvable:$true] %s301
      %307 = dma.hbm_to_vmem [thread:$0]  %s49, 64, %s302, [#allocation30], 16, 16, 1
    $region101: #{unified_resonance_forward.1} parent=1 // pred_fallthru
      _
    // Predicated region
    $region102: #{unified_resonance_forward.1} parent=1 // pred_check
      _
    $region103: #{unified_resonance_forward.1} parent=1 // pred_check_branch
      %309 = sbr.rel (0) target = $region105
    $region104: #{unified_resonance_forward.1} parent=1 // pred_region
      %s311 = ssub.s32 64, 64
      %312 = vsyncadd [#allocation30], %s311
      %s313 = sshll.u32 [#allocation31], 4
      %s314 = int_to_ptr.vmem [resolvable:$true] %s313
      %319 = dma.hbm_to_vmem [thread:$0]  %s51, 64, %s314, [#allocation30], 16, 16, 1
    $region105: #{unified_resonance_forward.1} parent=1 // pred_fallthru
      _
    // Predicated region
    $region106: #{unified_resonance_forward.1} parent=1 // pred_check
      _
    $region107: #{unified_resonance_forward.1} parent=1 // pred_check_branch
      %321 = sbr.rel (0) target = $region109
    $region108: #{unified_resonance_forward.1} parent=1 // pred_region
      %s323 = ssub.s32 1024, 1024
      %324 = vsyncadd [#allocation33], %s323
      %s325 = sshll.u32 [#allocation32], 4
      %s326 = int_to_ptr.vmem [resolvable:$true] %s325
      %331 = dma.hbm_to_vmem [thread:$0]  %s53, 1024, %s326, [#allocation33], 256, 256, 16
    $region109: #{unified_resonance_forward.1} parent=1 // pred_fallthru
      _
    // Predicated region
    $region110: #{unified_resonance_forward.1} parent=1 // pred_check
      _
    $region111: #{unified_resonance_forward.1} parent=1 // pred_check_branch
      %333 = sbr.rel (0) target = $region113
    $region112: #{unified_resonance_forward.1} parent=1 // pred_region
      %s335 = ssub.s32 32, 32
      %336 = vsyncadd [#allocation33], %s335
      %s338 = sshll.u32 [#allocation34], 4
      %s339 = int_to_ptr.vmem [resolvable:$true] %s338
      %341 = dma.hbm_to_vmem [thread:$0]  %s55, 32, %s339, [#allocation33]
    $region113: #{unified_resonance_forward.1} parent=1 // pred_fallthru
      _
    // Predicated region
    $region114: #{unified_resonance_forward.1} parent=1 // pred_check
      _
    $region115: #{unified_resonance_forward.1} parent=1 // pred_check_branch
      %343 = sbr.rel (0) target = $region117
    $region116: #{unified_resonance_forward.1} parent=1 // pred_region
      %s345 = ssub.s32 32, 32
      %346 = vsyncadd [#allocation36], %s345
      %s348 = sshll.u32 [#allocation35], 4
      %s349 = int_to_ptr.vmem [resolvable:$true] %s348
      %351 = dma.hbm_to_vmem [thread:$0]  %s57, 32, %s349, [#allocation36]
    $region117: #{unified_resonance_forward.1} parent=1 // pred_fallthru
      _
    // Predicated region
    $region118: #{unified_resonance_forward.1} parent=1 // pred_check
      _
    $region119: #{unified_resonance_forward.1} parent=1 // pred_check_branch
      %353 = sbr.rel (0) target = $region121
    $region120: #{unified_resonance_forward.1} parent=1 // pred_region
      %s355 = ssub.s32 32, 32
      %356 = vsyncadd [#allocation36], %s355
      %s358 = sshll.u32 [#allocation37], 4
      %s359 = int_to_ptr.vmem [resolvable:$true] %s358
      %361 = dma.hbm_to_vmem [thread:$0]  %s59, 32, %s359, [#allocation36]
    $region121: #{unified_resonance_forward.1} parent=1 // pred_fallthru
      _
    // Predicated region
    $region122: #{unified_resonance_forward.1} parent=1 // pred_check
      _
    $region123: #{unified_resonance_forward.1} parent=1 // pred_check_branch
      %363 = sbr.rel (0) target = $region125
    $region124: #{unified_resonance_forward.1} parent=1 // pred_region
      _
    $region125: #{unified_resonance_forward.1} parent=1 // pred_fallthru
      _
    // Predicated region
    $region126: #{unified_resonance_forward.1} parent=1 // pred_check
      _
    $region127: #{unified_resonance_forward.1} parent=1 // pred_check_branch
      %365 = sbr.rel (0) target = $region129
    $region128: #{unified_resonance_forward.1} parent=1 // pred_region
      %s367 = ssub.s32 16, 16
      %368 = vsyncadd [#allocation39], %s367
      %s370 = sshll.u32 [#allocation38], 4
      %s371 = int_to_ptr.vmem [resolvable:$true] %s370
      %373 = dma.hbm_to_vmem [thread:$0]  %s63, 16, %s371, [#allocation39]
    $region129: #{unified_resonance_forward.1} parent=1 // pred_fallthru
      _
    // Predicated region
    $region130: #{unified_resonance_forward.1} parent=1 // pred_check
      _
    $region131: #{unified_resonance_forward.1} parent=1 // pred_check_branch
      %375 = sbr.rel (0) target = $region133
    $region132: #{unified_resonance_forward.1} parent=1 // pred_region
      %s377 = ssub.s32 16, 16
      %378 = vsyncadd [#allocation39], %s377
      %s380 = sshll.u32 [#allocation40], 4
      %s381 = int_to_ptr.vmem [resolvable:$true] %s380
      %383 = dma.hbm_to_vmem [thread:$0]  %s65, 16, %s381, [#allocation39]
    $region133: #{unified_resonance_forward.1} parent=1 // pred_fallthru
      _
    // Predicated region
    $region134: #{unified_resonance_forward.1} parent=1 // pred_check
      _
    $region135: #{unified_resonance_forward.1} parent=1 // pred_check_branch
      %385 = sbr.rel (0) target = $region137
    $region136: #{unified_resonance_forward.1} parent=1 // pred_region
      %s387 = ssub.s32 16, 16
      %388 = vsyncadd [#allocation42], %s387
      %s390 = sshll.u32 [#allocation41], 4
      %s391 = int_to_ptr.vmem [resolvable:$true] %s390
      %393 = dma.hbm_to_vmem [thread:$0]  %s67, 16, %s391, [#allocation42]
    $region137: #{unified_resonance_forward.1} parent=1 // pred_fallthru
      _
    // Predicated region
    $region138: #{unified_resonance_forward.1} parent=1 // pred_check
      _
    $region139: #{unified_resonance_forward.1} parent=1 // pred_check_branch
      %395 = sbr.rel (0) target = $region141
    $region140: #{unified_resonance_forward.1} parent=1 // pred_region
      _
    $region141: #{unified_resonance_forward.1} parent=1 // pred_fallthru
      _
    // Predicated region
    $region142: #{unified_resonance_forward.1} parent=1 // pred_check
      _
    $region143: #{unified_resonance_forward.1} parent=1 // pred_check_branch
      %397 = sbr.rel (0) target = $region145
    $region144: #{unified_resonance_forward.1} parent=1 // pred_region
      %s399 = ssub.s32 16, 16
      %400 = vsyncadd [#allocation42], %s399
      %s402 = sshll.u32 [#allocation43], 4
      %s403 = int_to_ptr.vmem [resolvable:$true] %s402
      %405 = dma.hbm_to_vmem [thread:$0]  %s71, 16, %s403, [#allocation42]
    $region145: #{unified_resonance_forward.1} parent=1 // pred_fallthru
      _
    // Predicated region
    $region146: #{unified_resonance_forward.1} parent=1 // pred_check
      _
    $region147: #{unified_resonance_forward.1} parent=1 // pred_check_branch
      %407 = sbr.rel (0) target = $region149
    $region148: #{unified_resonance_forward.1} parent=1 // pred_region
      %s409 = ssub.s32 16, 16
      %410 = vsyncadd [#allocation45], %s409
      %s412 = sshll.u32 [#allocation44], 4
      %s413 = int_to_ptr.vmem [resolvable:$true] %s412
      %415 = dma.hbm_to_vmem [thread:$0]  %s73, 16, %s413, [#allocation45]
    $region149: #{unified_resonance_forward.1} parent=1 // pred_fallthru
      _
    // Predicated region
    $region150: #{unified_resonance_forward.1} parent=1 // pred_check
      _
    $region151: #{unified_resonance_forward.1} parent=1 // pred_check_branch
      %417 = sbr.rel (0) target = $region153
    $region152: #{unified_resonance_forward.1} parent=1 // pred_region
      %s419 = ssub.s32 16, 16
      %420 = vsyncadd [#allocation45], %s419
      %s422 = sshll.u32 [#allocation46], 4
      %s423 = int_to_ptr.vmem [resolvable:$true] %s422
      %425 = dma.hbm_to_vmem [thread:$0]  %s75, 16, %s423, [#allocation45]
    $region153: #{unified_resonance_forward.1} parent=1 // pred_fallthru
      _
    // Predicated region
    $region154: #{unified_resonance_forward.1} parent=1 // pred_check
      _
    $region155: #{unified_resonance_forward.1} parent=1 // pred_check_branch
      %427 = sbr.rel (0) target = $region157
    $region156: #{unified_resonance_forward.1} parent=1 // pred_region
      %428 = dma.done [#allocation3], 256
    $region157: #{unified_resonance_forward.1} parent=1 // pred_fallthru
      _
    // Predicated region
    $region158: #{unified_resonance_forward.1} parent=1 // pred_check
      _
    $region159: #{unified_resonance_forward.1} parent=1 // pred_check_branch
      %430 = sbr.rel (0) target = $region161
    $region160: #{unified_resonance_forward.1} parent=1 // pred_region
      %431 = dma.done [#allocation6], 512
    $region161: #{unified_resonance_forward.1} parent=1 // pred_fallthru
      _
    // Predicated region
    $region162: #{unified_resonance_forward.1} parent=1 // pred_check
      _
    $region163: #{unified_resonance_forward.1} parent=1 // pred_check_branch
      %433 = sbr.rel (0) target = $region165
    $region164: #{unified_resonance_forward.1} parent=1 // pred_region
      %434 = dma.done [#allocation6], 256
    $region165: #{unified_resonance_forward.1} parent=1 // pred_fallthru
      _
    // Predicated region
    $region166: #{unified_resonance_forward.1} parent=1 // pred_check
      _
    $region167: #{unified_resonance_forward.1} parent=1 // pred_check_branch
      %436 = sbr.rel (0) target = $region169
    $region168: #{unified_resonance_forward.1} parent=1 // pred_region
      %437 = dma.done [#allocation9], 2048
    $region169: #{unified_resonance_forward.1} parent=1 // pred_fallthru
      _
    // Predicated region
    $region170: #{unified_resonance_forward.1} parent=1 // pred_check
      _
    $region171: #{unified_resonance_forward.1} parent=1 // pred_check_branch
      %439 = sbr.rel (0) target = $region173
    $region172: #{unified_resonance_forward.1} parent=1 // pred_region
      %440 = dma.done [#allocation9], 64
    $region173: #{unified_resonance_forward.1} parent=1 // pred_fallthru
      _
    // Predicated region
    $region174: #{unified_resonance_forward.1} parent=1 // pred_check
      _
    $region175: #{unified_resonance_forward.1} parent=1 // pred_check_branch
      %442 = sbr.rel (0) target = $region177
    $region176: #{unified_resonance_forward.1} parent=1 // pred_region
      %443 = dma.done [#allocation12], 64
    $region177: #{unified_resonance_forward.1} parent=1 // pred_fallthru
      _
    // Predicated region
    $region178: #{unified_resonance_forward.1} parent=1 // pred_check
      _
    $region179: #{unified_resonance_forward.1} parent=1 // pred_check_branch
      %445 = sbr.rel (0) target = $region181
    $region180: #{unified_resonance_forward.1} parent=1 // pred_region
      %446 = dma.done [#allocation12], 64
    $region181: #{unified_resonance_forward.1} parent=1 // pred_fallthru
      _
    // Predicated region
    $region182: #{unified_resonance_forward.1} parent=1 // pred_check
      _
    $region183: #{unified_resonance_forward.1} parent=1 // pred_check_branch
      %448 = sbr.rel (0) target = $region185
    $region184: #{unified_resonance_forward.1} parent=1 // pred_region
      %449 = dma.done [#allocation15], 64
    $region185: #{unified_resonance_forward.1} parent=1 // pred_fallthru
      _
    // Predicated region
    $region186: #{unified_resonance_forward.1} parent=1 // pred_check
      _
    $region187: #{unified_resonance_forward.1} parent=1 // pred_check_branch
      %451 = sbr.rel (0) target = $region189
    $region188: #{unified_resonance_forward.1} parent=1 // pred_region
      %452 = dma.done [#allocation15], 64
    $region189: #{unified_resonance_forward.1} parent=1 // pred_fallthru
      _
    // Predicated region
    $region190: #{unified_resonance_forward.1} parent=1 // pred_check
      _
    $region191: #{unified_resonance_forward.1} parent=1 // pred_check_branch
      %454 = sbr.rel (0) target = $region193
    $region192: #{unified_resonance_forward.1} parent=1 // pred_region
      %455 = dma.done [#allocation18], 64
    $region193: #{unified_resonance_forward.1} parent=1 // pred_fallthru
      _
    // Predicated region
    $region194: #{unified_resonance_forward.1} parent=1 // pred_check
      _
    $region195: #{unified_resonance_forward.1} parent=1 // pred_check_branch
      %457 = sbr.rel (0) target = $region197
    $region196: #{unified_resonance_forward.1} parent=1 // pred_region
      %458 = dma.done [#allocation18], 16
    $region197: #{unified_resonance_forward.1} parent=1 // pred_fallthru
      _
    // Predicated region
    $region198: #{unified_resonance_forward.1} parent=1 // pred_check
      _
    $region199: #{unified_resonance_forward.1} parent=1 // pred_check_branch
      %460 = sbr.rel (0) target = $region201
    $region200: #{unified_resonance_forward.1} parent=1 // pred_region
      %461 = dma.done [#allocation21], 16
    $region201: #{unified_resonance_forward.1} parent=1 // pred_fallthru
      _
    // Predicated region
    $region202: #{unified_resonance_forward.1} parent=1 // pred_check
      _
    $region203: #{unified_resonance_forward.1} parent=1 // pred_check_branch
      %463 = sbr.rel (0) target = $region205
    $region204: #{unified_resonance_forward.1} parent=1 // pred_region
      %464 = dma.done [#allocation21], 1536
    $region205: #{unified_resonance_forward.1} parent=1 // pred_fallthru
      _
    // Predicated region
    $region206: #{unified_resonance_forward.1} parent=1 // pred_check
      _
    $region207: #{unified_resonance_forward.1} parent=1 // pred_check_branch
      %466 = sbr.rel (0) target = $region209
    $region208: #{unified_resonance_forward.1} parent=1 // pred_region
      %467 = dma.done [#allocation24], 64
    $region209: #{unified_resonance_forward.1} parent=1 // pred_fallthru
      _
    // Predicated region
    $region210: #{unified_resonance_forward.1} parent=1 // pred_check
      _
    $region211: #{unified_resonance_forward.1} parent=1 // pred_check_branch
      %469 = sbr.rel (0) target = $region213
    $region212: #{unified_resonance_forward.1} parent=1 // pred_region
      %470 = dma.done [#allocation24], 64
    $region213: #{unified_resonance_forward.1} parent=1 // pred_fallthru
      _
    // Predicated region
    $region214: #{unified_resonance_forward.1} parent=1 // pred_check
      _
    $region215: #{unified_resonance_forward.1} parent=1 // pred_check_branch
      %472 = sbr.rel (0) target = $region217
    $region216: #{unified_resonance_forward.1} parent=1 // pred_region
      %473 = dma.done [#allocation27], 64
    $region217: #{unified_resonance_forward.1} parent=1 // pred_fallthru
      _
    // Predicated region
    $region218: #{unified_resonance_forward.1} parent=1 // pred_check
      _
    $region219: #{unified_resonance_forward.1} parent=1 // pred_check_branch
      %475 = sbr.rel (0) target = $region221
    $region220: #{unified_resonance_forward.1} parent=1 // pred_region
      %476 = dma.done [#allocation27], 64
    $region221: #{unified_resonance_forward.1} parent=1 // pred_fallthru
      _
    // Predicated region
    $region222: #{unified_resonance_forward.1} parent=1 // pred_check
      _
    $region223: #{unified_resonance_forward.1} parent=1 // pred_check_branch
      %478 = sbr.rel (0) target = $region225
    $region224: #{unified_resonance_forward.1} parent=1 // pred_region
      %479 = dma.done [#allocation30], 64
    $region225: #{unified_resonance_forward.1} parent=1 // pred_fallthru
      _
    // Predicated region
    $region226: #{unified_resonance_forward.1} parent=1 // pred_check
      _
    $region227: #{unified_resonance_forward.1} parent=1 // pred_check_branch
      %481 = sbr.rel (0) target = $region229
    $region228: #{unified_resonance_forward.1} parent=1 // pred_region
      %482 = dma.done [#allocation30], 64
    $region229: #{unified_resonance_forward.1} parent=1 // pred_fallthru
      _
    // Predicated region
    $region230: #{unified_resonance_forward.1} parent=1 // pred_check
      _
    $region231: #{unified_resonance_forward.1} parent=1 // pred_check_branch
      %484 = sbr.rel (0) target = $region233
    $region232: #{unified_resonance_forward.1} parent=1 // pred_region
      %485 = dma.done [#allocation33], 1024
    $region233: #{unified_resonance_forward.1} parent=1 // pred_fallthru
      _
    // Predicated region
    $region234: #{unified_resonance_forward.1} parent=1 // pred_check
      _
    $region235: #{unified_resonance_forward.1} parent=1 // pred_check_branch
      %487 = sbr.rel (0) target = $region237
    $region236: #{unified_resonance_forward.1} parent=1 // pred_region
      %488 = dma.done [#allocation33], 32
    $region237: #{unified_resonance_forward.1} parent=1 // pred_fallthru
      _
    // Predicated region
    $region238: #{unified_resonance_forward.1} parent=1 // pred_check
      _
    $region239: #{unified_resonance_forward.1} parent=1 // pred_check_branch
      %490 = sbr.rel (0) target = $region241
    $region240: #{unified_resonance_forward.1} parent=1 // pred_region
      %491 = dma.done [#allocation36], 32
    $region241: #{unified_resonance_forward.1} parent=1 // pred_fallthru
      _
    // Predicated region
    $region242: #{unified_resonance_forward.1} parent=1 // pred_check
      _
    $region243: #{unified_resonance_forward.1} parent=1 // pred_check_branch
      %493 = sbr.rel (0) target = $region245
    $region244: #{unified_resonance_forward.1} parent=1 // pred_region
      %494 = dma.done [#allocation36], 32
    $region245: #{unified_resonance_forward.1} parent=1 // pred_fallthru
      _
    // Predicated region
    $region246: #{unified_resonance_forward.1} parent=1 // pred_check
      _
    $region247: #{unified_resonance_forward.1} parent=1 // pred_check_branch
      %496 = sbr.rel (0) target = $region249
    $region248: #{unified_resonance_forward.1} parent=1 // pred_region
      %497 = dma.done [#allocation39], 16
    $region249: #{unified_resonance_forward.1} parent=1 // pred_fallthru
      _
    // Predicated region
    $region250: #{unified_resonance_forward.1} parent=1 // pred_check
      _
    $region251: #{unified_resonance_forward.1} parent=1 // pred_check_branch
      %499 = sbr.rel (0) target = $region253
    $region252: #{unified_resonance_forward.1} parent=1 // pred_region
      %500 = dma.done [#allocation39], 16
    $region253: #{unified_resonance_forward.1} parent=1 // pred_fallthru
      _
    // Predicated region
    $region254: #{unified_resonance_forward.1} parent=1 // pred_check
      _
    $region255: #{unified_resonance_forward.1} parent=1 // pred_check_branch
      %502 = sbr.rel (0) target = $region257
    $region256: #{unified_resonance_forward.1} parent=1 // pred_region
      %503 = dma.done [#allocation42], 16
    $region257: #{unified_resonance_forward.1} parent=1 // pred_fallthru
      _
    // Predicated region
    $region258: #{unified_resonance_forward.1} parent=1 // pred_check
      _
    $region259: #{unified_resonance_forward.1} parent=1 // pred_check_branch
      %505 = sbr.rel (0) target = $region261
    $region260: #{unified_resonance_forward.1} parent=1 // pred_region
      %506 = dma.done [#allocation42], 16
    $region261: #{unified_resonance_forward.1} parent=1 // pred_fallthru
      _
    // Predicated region
    $region262: #{unified_resonance_forward.1} parent=1 // pred_check
      _
    $region263: #{unified_resonance_forward.1} parent=1 // pred_check_branch
      %508 = sbr.rel (0) target = $region265
    $region264: #{unified_resonance_forward.1} parent=1 // pred_region
      %509 = dma.done [#allocation45], 16
    $region265: #{unified_resonance_forward.1} parent=1 // pred_fallthru
      _
    // Predicated region
    $region266: #{unified_resonance_forward.1} parent=1 // pred_check
      _
    $region267: #{unified_resonance_forward.1} parent=1 // pred_check_branch
      %511 = sbr.rel (0) target = $region269
    $region268: #{unified_resonance_forward.1} parent=1 // pred_region
      %512 = dma.done [#allocation45], 16
    $region269: #{unified_resonance_forward.1} parent=1 // pred_fallthru
      _
    %v513 = vld [vmem:[#allocation2] sm:$0xff]
    %v514 = vld [vmem:[#allocation2 + $0x8] sm:$0xff]
    %v515 = vld [vmem:[%s3] sm:$0xff]
    %v516 = vld [vmem:[%s3 + $0x8] sm:$0xff]
    %v517 = vld [vmem:[%s3 + $0x10] sm:$0xff]
    %v518 = vld [vmem:[%s3 + $0x18] sm:$0xff]
    %v519 = vld [vmem:[%s3 + $0x20] sm:$0xff]
    %v520 = vld [vmem:[%s3 + $0x28] sm:$0xff]
    %v521 = vld [vmem:[%s3 + $0x30] sm:$0xff]
    %v522 = vld [vmem:[%s3 + $0x38] sm:$0xff]
    %v523 = vld [vmem:[%s3 + $0x40] sm:$0xff]
    %v524 = vld [vmem:[%s3 + $0x48] sm:$0xff]
    %v525 = vld [vmem:[%s3 + $0x50] sm:$0xff]
    %v526 = vld [vmem:[%s3 + $0x58] sm:$0xff]
    %v527 = vld [vmem:[%s3 + $0x60] sm:$0xff]
    %v528 = vld [vmem:[%s3 + $0x68] sm:$0xff]
    %v529 = vld [vmem:[%s3 + $0x70] sm:$0xff]
    %v530 = vld [vmem:[%s3 + $0x78] sm:$0xff]
    %v531 = vld [vmem:[%s3 + $0x80] sm:$0xff]
    %v532 = vld [vmem:[%s3 + $0x88] sm:$0xff]
    %v533 = vld [vmem:[%s3 + $0x90] sm:$0xff]
    %v534 = vld [vmem:[%s3 + $0x98] sm:$0xff]
    %v535 = vld [vmem:[%s3 + $0xa0] sm:$0xff]
    %v536 = vld [vmem:[%s3 + $0xa8] sm:$0xff]
    %v537 = vld [vmem:[%s3 + $0xb0] sm:$0xff]
    %v538 = vld [vmem:[%s3 + $0xb8] sm:$0xff]
    %v539 = vld [vmem:[%s3 + $0xc0] sm:$0xff]
    %v540 = vld [vmem:[%s3 + $0xc8] sm:$0xff]
    %v541 = vld [vmem:[%s3 + $0xd0] sm:$0xff]
    %v542 = vld [vmem:[%s3 + $0xd8] sm:$0xff]
    %v543 = vld [vmem:[%s3 + $0xe0] sm:$0xff]
    %v544 = vld [vmem:[%s3 + $0xe8] sm:$0xff]
    %v545 = vld [vmem:[%s3 + $0xf0] sm:$0xff]
    %v546 = vld [vmem:[%s3 + $0xf8] sm:$0xff]
    %v547 = vld [vmem:[%s3 + $0x100] sm:$0xff]
    %v548 = vld [vmem:[%s3 + $0x108] sm:$0xff]
    %v549 = vld [vmem:[%s3 + $0x110] sm:$0xff]
    %v550 = vld [vmem:[%s3 + $0x118] sm:$0xff]
    %v551 = vld [vmem:[%s3 + $0x120] sm:$0xff]
    %v552 = vld [vmem:[%s3 + $0x128] sm:$0xff]
    %v553 = vld [vmem:[%s3 + $0x130] sm:$0xff]
    %v554 = vld [vmem:[%s3 + $0x138] sm:$0xff]
    %v555 = vld [vmem:[%s3 + $0x140] sm:$0xff]
    %v556 = vld [vmem:[%s3 + $0x148] sm:$0xff]
    %v557 = vld [vmem:[%s3 + $0x150] sm:$0xff]
    %v558 = vld [vmem:[%s3 + $0x158] sm:$0xff]
    %v559 = vld [vmem:[%s3 + $0x160] sm:$0xff]
    %v560 = vld [vmem:[%s3 + $0x168] sm:$0xff]
    %v561 = vld [vmem:[%s3 + $0x170] sm:$0xff]
    %v562 = vld [vmem:[%s3 + $0x178] sm:$0xff]
    %v563 = vld [vmem:[%s3 + $0x180] sm:$0xff]
    %v564 = vld [vmem:[%s3 + $0x188] sm:$0xff]
    %v565 = vld [vmem:[%s3 + $0x190] sm:$0xff]
    %v566 = vld [vmem:[%s3 + $0x198] sm:$0xff]
    %v567 = vld [vmem:[%s3 + $0x1a0] sm:$0xff]
    %v568 = vld [vmem:[%s3 + $0x1a8] sm:$0xff]
    %v569 = vld [vmem:[%s3 + $0x1b0] sm:$0xff]
    %v570 = vld [vmem:[%s3 + $0x1b8] sm:$0xff]
    %v571 = vld [vmem:[%s3 + $0x1c0] sm:$0xff]
    %v572 = vld [vmem:[%s3 + $0x1c8] sm:$0xff]
    %v573 = vld [vmem:[%s3 + $0x1d0] sm:$0xff]
    %v574 = vld [vmem:[%s3 + $0x1d8] sm:$0xff]
    %v575 = vld [vmem:[%s3 + $0x1e0] sm:$0xff]
    %v576 = vld [vmem:[%s3 + $0x1e8] sm:$0xff]
    %v577 = vld [vmem:[%s3 + $0x1f0] sm:$0xff]
    %v578 = vld [vmem:[%s3 + $0x1f8] sm:$0xff]
    %v579 = vld [vmem:[#allocation5] sm:$0xff]
    %v580 = vld [vmem:[#allocation5 + $0x8] sm:$0xff]
    %v581 = vld [vmem:[#allocation5 + $0x10] sm:$0xff]
    %v582 = vld [vmem:[#allocation5 + $0x18] sm:$0xff]
    %v583 = vld [vmem:[%s7] sm:$0xff]
    %v584 = vld [vmem:[%s7 + $0x8] sm:$0xff]
    %v585 = vld [vmem:[%s7 + $0x10] sm:$0xff]
    %v586 = vld [vmem:[%s7 + $0x18] sm:$0xff]
    %v587 = vld [vmem:[%s7 + $0x20] sm:$0xff]
    %v588 = vld [vmem:[%s7 + $0x28] sm:$0xff]
    %v589 = vld [vmem:[%s7 + $0x30] sm:$0xff]
    %v590 = vld [vmem:[%s7 + $0x38] sm:$0xff]
    %v591 = vld [vmem:[%s7 + $0x40] sm:$0xff]
    %v592 = vld [vmem:[%s7 + $0x48] sm:$0xff]
    %v593 = vld [vmem:[%s7 + $0x50] sm:$0xff]
    %v594 = vld [vmem:[%s7 + $0x58] sm:$0xff]
    %v595 = vld [vmem:[%s7 + $0x60] sm:$0xff]
    %v596 = vld [vmem:[%s7 + $0x68] sm:$0xff]
    %v597 = vld [vmem:[%s7 + $0x70] sm:$0xff]
    %v598 = vld [vmem:[%s7 + $0x78] sm:$0xff]
    %v599 = vld [vmem:[%s7 + $0x80] sm:$0xff]
    %v600 = vld [vmem:[%s7 + $0x88] sm:$0xff]
    %v601 = vld [vmem:[%s7 + $0x90] sm:$0xff]
    %v602 = vld [vmem:[%s7 + $0x98] sm:$0xff]
    %v603 = vld [vmem:[%s7 + $0xa0] sm:$0xff]
    %v604 = vld [vmem:[%s7 + $0xa8] sm:$0xff]
    %v605 = vld [vmem:[%s7 + $0xb0] sm:$0xff]
    %v606 = vld [vmem:[%s7 + $0xb8] sm:$0xff]
    %v607 = vld [vmem:[%s7 + $0xc0] sm:$0xff]
    %v608 = vld [vmem:[%s7 + $0xc8] sm:$0xff]
    %v609 = vld [vmem:[%s7 + $0xd0] sm:$0xff]
    %v610 = vld [vmem:[%s7 + $0xd8] sm:$0xff]
    %v611 = vld [vmem:[%s7 + $0xe0] sm:$0xff]
    %v612 = vld [vmem:[%s7 + $0xe8] sm:$0xff]
    %v613 = vld [vmem:[%s7 + $0xf0] sm:$0xff]
    %v614 = vld [vmem:[%s7 + $0xf8] sm:$0xff]
    %v615 = vld [vmem:[#allocation7] sm:$0xff]
    %v616 = vld [vmem:[#allocation7 + $0x8] sm:$0xff]
    %v617 = vld [vmem:[#allocation8] sm:$0xff]
    %v618 = vld [vmem:[#allocation8 + $0x8] sm:$0xff]
    %v619 = vld [vmem:[#allocation8 + $0x10] sm:$0xff]
    %v620 = vld [vmem:[#allocation8 + $0x18] sm:$0xff]
    %v621 = vld [vmem:[#allocation8 + $0x20] sm:$0xff]
    %v622 = vld [vmem:[#allocation8 + $0x28] sm:$0xff]
    %v623 = vld [vmem:[#allocation8 + $0x30] sm:$0xff]
    %v624 = vld [vmem:[#allocation8 + $0x38] sm:$0xff]
    %v625 = vld [vmem:[#allocation8 + $0x40] sm:$0xff]
    %v626 = vld [vmem:[#allocation8 + $0x48] sm:$0xff]
    %v627 = vld [vmem:[#allocation8 + $0x50] sm:$0xff]
    %v628 = vld [vmem:[#allocation8 + $0x58] sm:$0xff]
    %v629 = vld [vmem:[#allocation8 + $0x60] sm:$0xff]
    %v630 = vld [vmem:[#allocation8 + $0x68] sm:$0xff]
    %v631 = vld [vmem:[#allocation8 + $0x70] sm:$0xff]
    %v632 = vld [vmem:[#allocation8 + $0x78] sm:$0xff]
    %v633 = vld [vmem:[#allocation10] sm:$0xf]
    %v635 = vlaneseq
    %v636 = vshrl.u32 %v635, 7
    %v637 = vsub.s32 0, %v636
    %v638 = vrot.slane %v633, %v637
    %v639 = vlaneseq
    %v640 = vshrl.u32 %v639, 7
    %v641 = vsub.s32 1, %v640
    %v642 = vrot.slane %v633, %v641
    %v643 = vlaneseq
    %v644 = vshrl.u32 %v643, 7
    %v645 = vsub.s32 2, %v644
    %v646 = vrot.slane %v633, %v645
    %v647 = vlaneseq
    %v648 = vshrl.u32 %v647, 7
    %v649 = vsub.s32 3, %v648
    %v650 = vrot.slane %v633, %v649
    %vm655 = vcmask 261120
    %v657 = vsel %vm655, %v513, 0
    %v660 = vsel %vm655, %v514, 0
    %662 = vmatprep.subr.mxu0 0.0
    %663 = vmatpush1.msra.mxu0 0.0
    %664 = vmatprep.subr.mxu0 0.0
    %665 = vmatpush1.msra.mxu0 0.0
    %666 = vmatprep.subr.mxu0 0.0
    %667 = vmatpush1.msra.mxu0 0.0
    %668 = vmatprep.subr.mxu0 0.0
    %669 = vmatpush1.msra.mxu0 0.0
    %670 = vmatprep.subr.mxu0 0.0
    %671 = vmatpush1.msra.mxu0 0.0
    %672 = vmatprep.subr.mxu0 0.0
    %673 = vmatpush1.msra.mxu0 0.0
    %674 = vmatprep.subr.mxu0 0.0
    %675 = vmatpush1.msra.mxu0 0.0
    %676 = vmatprep.subr.mxu0 0.0
    %677 = vmatpush1.msra.mxu0 0.0
    %678 = vmatprep.subr.mxu0 0.0
    %679 = vmatpush1.msra.mxu0 0.0
    %680 = vmatprep.subr.mxu0 0.0
    %681 = vmatpush1.msra.mxu0 0.0
    %682 = vmatprep.subr.mxu0 0.0
    %683 = vmatpush1.msra.mxu0 0.0
    %684 = vmatprep.subr.mxu0 0.0
    %685 = vmatpush1.msra.mxu0 0.0
    %686 = vmatprep.subr.mxu0 %v630
    %687 = vmatpush1.msra.mxu0 %v629
    %688 = vmatprep.subr.mxu0 %v626
    %689 = vmatpush1.msra.mxu0 %v625
    %690 = vmatprep.subr.mxu0 %v622
    %691 = vmatpush1.msra.mxu0 %v621
    %692 = vmatprep.subr.mxu0 %v618
    %693 = vmatpush1.msra.mxu0 %v617
    %694 = vmatprep.subr.mxu0 0.0
    %695 = vmatpush2.msra.mxu0 0.0
    %696 = vmatprep.subr.mxu0 0.0
    %697 = vmatpush2.msra.mxu0 0.0
    %698 = vmatprep.subr.mxu0 0.0
    %699 = vmatpush2.msra.mxu0 0.0
    %700 = vmatprep.subr.mxu0 0.0
    %701 = vmatpush2.msra.mxu0 0.0
    %702 = vmatprep.subr.mxu0 0.0
    %703 = vmatpush2.msra.mxu0 0.0
    %704 = vmatprep.subr.mxu0 0.0
    %705 = vmatpush2.msra.mxu0 0.0
    %706 = vmatprep.subr.mxu0 0.0
    %707 = vmatpush2.msra.mxu0 0.0
    %708 = vmatprep.subr.mxu0 0.0
    %709 = vmatpush2.msra.mxu0 0.0
    %710 = vmatprep.subr.mxu0 0.0
    %711 = vmatpush2.msra.mxu0 0.0
    %712 = vmatprep.subr.mxu0 0.0
    %713 = vmatpush2.msra.mxu0 0.0
    %714 = vmatprep.subr.mxu0 0.0
    %715 = vmatpush2.msra.mxu0 0.0
    %716 = vmatprep.subr.mxu0 0.0
    %717 = vmatpush2.msra.mxu0 0.0
    %718 = vmatprep.subr.mxu0 0.0
    %719 = vmatpush2.msra.mxu0 0.0
    %720 = vmatprep.subr.mxu0 0.0
    %721 = vmatpush2.msra.mxu0 0.0
    %722 = vmatprep.subr.mxu0 0.0
    %723 = vmatpush2.msra.mxu0 0.0
    %724 = vmatprep.subr.mxu0 0.0
    %725 = vmatpush2.msra.mxu0 0.0
    %726 = vmatprep.mubr.f32.mxu0 0.0
    %727 = vmatmul.mubr.f32.gmra.mxu0 %v657
    %v728 = vpop.f32.mrf.mxu0
    %v729 = vadd.f32 %v638, %v728
    %v730 = vpop.f32.mrf.mxu0
    %v731 = vadd.f32 %v642, %v730
    %732 = vmatprep.mubr.f32.mxu0 0.0
    %733 = vmatmul.mubr.f32.gmra.mxu0 %v660
    %v734 = vpop.f32.mrf.mxu0
    %v735 = vadd.f32 %v638, %v734
    %v736 = vpop.f32.mrf.mxu0
    %v737 = vadd.f32 %v642, %v736
    %738 = vdwg.mxu0
    %739 = vmatprep.subr.mxu0 0.0
    %740 = vmatpush1.msra.mxu0 0.0
    %741 = vmatprep.subr.mxu0 0.0
    %742 = vmatpush1.msra.mxu0 0.0
    %743 = vmatprep.subr.mxu0 0.0
    %744 = vmatpush1.msra.mxu0 0.0
    %745 = vmatprep.subr.mxu0 0.0
    %746 = vmatpush1.msra.mxu0 0.0
    %747 = vmatprep.subr.mxu0 0.0
    %748 = vmatpush1.msra.mxu0 0.0
    %749 = vmatprep.subr.mxu0 0.0
    %750 = vmatpush1.msra.mxu0 0.0
    %751 = vmatprep.subr.mxu0 0.0
    %752 = vmatpush1.msra.mxu0 0.0
    %753 = vmatprep.subr.mxu0 0.0
    %754 = vmatpush1.msra.mxu0 0.0
    %755 = vmatprep.subr.mxu0 0.0
    %756 = vmatpush1.msra.mxu0 0.0
    %757 = vmatprep.subr.mxu0 0.0
    %758 = vmatpush1.msra.mxu0 0.0
    %759 = vmatprep.subr.mxu0 0.0
    %760 = vmatpush1.msra.mxu0 0.0
    %761 = vmatprep.subr.mxu0 0.0
    %762 = vmatpush1.msra.mxu0 0.0
    %763 = vmatprep.subr.mxu0 %v632
    %764 = vmatpush1.msra.mxu0 %v631
    %765 = vmatprep.subr.mxu0 %v628
    %766 = vmatpush1.msra.mxu0 %v627
    %767 = vmatprep.subr.mxu0 %v624
    %768 = vmatpush1.msra.mxu0 %v623
    %769 = vmatprep.subr.mxu0 %v620
    %770 = vmatpush1.msra.mxu0 %v619
    %771 = vmatprep.subr.mxu0 0.0
    %772 = vmatpush2.msra.mxu0 0.0
    %773 = vmatprep.subr.mxu0 0.0
    %774 = vmatpush2.msra.mxu0 0.0
    %775 = vmatprep.subr.mxu0 0.0
    %776 = vmatpush2.msra.mxu0 0.0
    %777 = vmatprep.subr.mxu0 0.0
    %778 = vmatpush2.msra.mxu0 0.0
    %779 = vmatprep.subr.mxu0 0.0
    %780 = vmatpush2.msra.mxu0 0.0
    %781 = vmatprep.subr.mxu0 0.0
    %782 = vmatpush2.msra.mxu0 0.0
    %783 = vmatprep.subr.mxu0 0.0
    %784 = vmatpush2.msra.mxu0 0.0
    %785 = vmatprep.subr.mxu0 0.0
    %786 = vmatpush2.msra.mxu0 0.0
    %787 = vmatprep.subr.mxu0 0.0
    %788 = vmatpush2.msra.mxu0 0.0
    %789 = vmatprep.subr.mxu0 0.0
    %790 = vmatpush2.msra.mxu0 0.0
    %791 = vmatprep.subr.mxu0 0.0
    %792 = vmatpush2.msra.mxu0 0.0
    %793 = vmatprep.subr.mxu0 0.0
    %794 = vmatpush2.msra.mxu0 0.0
    %795 = vmatprep.subr.mxu0 0.0
    %796 = vmatpush2.msra.mxu0 0.0
    %797 = vmatprep.subr.mxu0 0.0
    %798 = vmatpush2.msra.mxu0 0.0
    %799 = vmatprep.subr.mxu0 0.0
    %800 = vmatpush2.msra.mxu0 0.0
    %801 = vmatprep.subr.mxu0 0.0
    %802 = vmatpush2.msra.mxu0 0.0
    %803 = vmatprep.mubr.f32.mxu0 0.0
    %804 = vmatmul.mubr.f32.gmra.mxu0 %v657
    %v805 = vpop.f32.mrf.mxu0
    %v806 = vadd.f32 %v646, %v805
    %v807 = vpop.f32.mrf.mxu0
    %v808 = vadd.f32 %v650, %v807
    %809 = vmatprep.mubr.f32.mxu0 0.0
    %810 = vmatmul.mubr.f32.gmra.mxu0 %v660
    %v811 = vpop.f32.mrf.mxu0
    %v812 = vadd.f32 %v646, %v811
    %v813 = vpop.f32.mrf.mxu0
    %v814 = vadd.f32 %v650, %v813
    %815 = vdwg.mxu0
    %v816 = vld [vmem:[#allocation11] sm:$0xf]
    %v817 = vld [vmem:[#allocation13] sm:$0xf]
    %818 = vmatprep.subr.mxu0 0.0
    %819 = vmatpush1.msra.mxu0 %v530
    %820 = vmatprep.subr.mxu0 0.0
    %821 = vmatpush1.msra.mxu0 %v529
    %822 = vmatprep.subr.mxu0 0.0
    %823 = vmatpush1.msra.mxu0 %v528
    %824 = vmatprep.subr.mxu0 0.0
    %825 = vmatpush1.msra.mxu0 %v527
    %826 = vmatprep.subr.mxu0 0.0
    %827 = vmatpush1.msra.mxu0 %v526
    %828 = vmatprep.subr.mxu0 0.0
    %829 = vmatpush1.msra.mxu0 %v525
    %830 = vmatprep.subr.mxu0 0.0
    %831 = vmatpush1.msra.mxu0 %v524
    %832 = vmatprep.subr.mxu0 0.0
    %833 = vmatpush1.msra.mxu0 %v523
    %834 = vmatprep.subr.mxu0 0.0
    %835 = vmatpush1.msra.mxu0 %v522
    %836 = vmatprep.subr.mxu0 0.0
    %837 = vmatpush1.msra.mxu0 %v521
    %838 = vmatprep.subr.mxu0 0.0
    %839 = vmatpush1.msra.mxu0 %v520
    %840 = vmatprep.subr.mxu0 0.0
    %841 = vmatpush1.msra.mxu0 %v519
    %842 = vmatprep.subr.mxu0 0.0
    %843 = vmatpush1.msra.mxu0 %v518
    %844 = vmatprep.subr.mxu0 0.0
    %845 = vmatpush1.msra.mxu0 %v517
    %846 = vmatprep.subr.mxu0 0.0
    %847 = vmatpush1.msra.mxu0 %v516
    %848 = vmatprep.subr.mxu0 0.0
    %849 = vmatpush1.msra.mxu0 %v515
    %850 = vmatprep.subr.mxu0 0.0
    %851 = vmatpush2.msra.mxu0 %v546
    %852 = vmatprep.subr.mxu0 0.0
    %853 = vmatpush2.msra.mxu0 %v545
    %854 = vmatprep.subr.mxu0 0.0
    %855 = vmatpush2.msra.mxu0 %v544
    %856 = vmatprep.subr.mxu0 0.0
    %857 = vmatpush2.msra.mxu0 %v543
    %858 = vmatprep.subr.mxu0 0.0
    %859 = vmatpush2.msra.mxu0 %v542
    %860 = vmatprep.subr.mxu0 0.0
    %861 = vmatpush2.msra.mxu0 %v541
    %862 = vmatprep.subr.mxu0 0.0
    %863 = vmatpush2.msra.mxu0 %v540
    %864 = vmatprep.subr.mxu0 0.0
    %865 = vmatpush2.msra.mxu0 %v539
    %866 = vmatprep.subr.mxu0 0.0
    %867 = vmatpush2.msra.mxu0 %v538
    %868 = vmatprep.subr.mxu0 0.0
    %869 = vmatpush2.msra.mxu0 %v537
    %870 = vmatprep.subr.mxu0 0.0
    %871 = vmatpush2.msra.mxu0 %v536
    %872 = vmatprep.subr.mxu0 0.0
    %873 = vmatpush2.msra.mxu0 %v535
    %874 = vmatprep.subr.mxu0 0.0
    %875 = vmatpush2.msra.mxu0 %v534
    %876 = vmatprep.subr.mxu0 0.0
    %877 = vmatpush2.msra.mxu0 %v533
    %878 = vmatprep.subr.mxu0 0.0
    %879 = vmatpush2.msra.mxu0 %v532
    %880 = vmatprep.subr.mxu0 0.0
    %881 = vmatpush2.msra.mxu0 %v531
    %882 = vmatprep.mubr.f32.mxu0 %v731
    %883 = vmatmul.mubr.f32.gmra.mxu0 %v729
    %v884 = vpop.f32.mrf.mxu0
    %v885 = vadd.f32 0.0, %v884
    %v886 = vpop.f32.mrf.mxu0
    %887 = vmatprep.mubr.f32.mxu0 %v737
    %888 = vmatmul.mubr.f32.gmra.mxu0 %v735
    %v889 = vpop.f32.mrf.mxu0
    %v890 = vadd.f32 0.0, %v889
    %v891 = vpop.f32.mrf.mxu0
    %892 = vdwg.mxu0
    %893 = vmatprep.subr.mxu0 0.0
    %894 = vmatpush1.msra.mxu0 %v562
    %895 = vmatprep.subr.mxu0 0.0
    %896 = vmatpush1.msra.mxu0 %v561
    %897 = vmatprep.subr.mxu0 0.0
    %898 = vmatpush1.msra.mxu0 %v560
    %899 = vmatprep.subr.mxu0 0.0
    %900 = vmatpush1.msra.mxu0 %v559
    %901 = vmatprep.subr.mxu0 0.0
    %902 = vmatpush1.msra.mxu0 %v558
    %903 = vmatprep.subr.mxu0 0.0
    %904 = vmatpush1.msra.mxu0 %v557
    %905 = vmatprep.subr.mxu0 0.0
    %906 = vmatpush1.msra.mxu0 %v556
    %907 = vmatprep.subr.mxu0 0.0
    %908 = vmatpush1.msra.mxu0 %v555
    %909 = vmatprep.subr.mxu0 0.0
    %910 = vmatpush1.msra.mxu0 %v554
    %911 = vmatprep.subr.mxu0 0.0
    %912 = vmatpush1.msra.mxu0 %v553
    %913 = vmatprep.subr.mxu0 0.0
    %914 = vmatpush1.msra.mxu0 %v552
    %915 = vmatprep.subr.mxu0 0.0
    %916 = vmatpush1.msra.mxu0 %v551
    %917 = vmatprep.subr.mxu0 0.0
    %918 = vmatpush1.msra.mxu0 %v550
    %919 = vmatprep.subr.mxu0 0.0
    %920 = vmatpush1.msra.mxu0 %v549
    %921 = vmatprep.subr.mxu0 0.0
    %922 = vmatpush1.msra.mxu0 %v548
    %923 = vmatprep.subr.mxu0 0.0
    %924 = vmatpush1.msra.mxu0 %v547
    %925 = vmatprep.subr.mxu0 0.0
    %926 = vmatpush2.msra.mxu0 %v578
    %927 = vmatprep.subr.mxu0 0.0
    %928 = vmatpush2.msra.mxu0 %v577
    %929 = vmatprep.subr.mxu0 0.0
    %930 = vmatpush2.msra.mxu0 %v576
    %931 = vmatprep.subr.mxu0 0.0
    %932 = vmatpush2.msra.mxu0 %v575
    %933 = vmatprep.subr.mxu0 0.0
    %934 = vmatpush2.msra.mxu0 %v574
    %935 = vmatprep.subr.mxu0 0.0
    %936 = vmatpush2.msra.mxu0 %v573
    %937 = vmatprep.subr.mxu0 0.0
    %938 = vmatpush2.msra.mxu0 %v572
    %939 = vmatprep.subr.mxu0 0.0
    %940 = vmatpush2.msra.mxu0 %v571
    %941 = vmatprep.subr.mxu0 0.0
    %942 = vmatpush2.msra.mxu0 %v570
    %943 = vmatprep.subr.mxu0 0.0
    %944 = vmatpush2.msra.mxu0 %v569
    %945 = vmatprep.subr.mxu0 0.0
    %946 = vmatpush2.msra.mxu0 %v568
    %947 = vmatprep.subr.mxu0 0.0
    %948 = vmatpush2.msra.mxu0 %v567
    %949 = vmatprep.subr.mxu0 0.0
    %950 = vmatpush2.msra.mxu0 %v566
    %951 = vmatprep.subr.mxu0 0.0
    %952 = vmatpush2.msra.mxu0 %v565
    %953 = vmatprep.subr.mxu0 0.0
    %954 = vmatpush2.msra.mxu0 %v564
    %955 = vmatprep.subr.mxu0 0.0
    %956 = vmatpush2.msra.mxu0 %v563
    %957 = vmatprep.mubr.f32.mxu0 %v808
    %958 = vmatmul.mubr.f32.gmra.mxu0 %v806
    %v959 = vpop.f32.mrf.mxu0
    %v960 = vadd.f32 %v885, %v959
    %v961 = vpop.f32.mrf.mxu0
    %962 = vmatprep.mubr.f32.mxu0 %v814
    %963 = vmatmul.mubr.f32.gmra.mxu0 %v812
    %v964 = vpop.f32.mrf.mxu0
    %v965 = vadd.f32 %v890, %v964
    %v966 = vpop.f32.mrf.mxu0
    %967 = vdwg.mxu0
    %vm968 = vcmask 64512
    %v970 = vsel %vm968, %v960, 0
    %v973 = vsel %vm968, %v965, 0
    %975 = vmatprep.subr.mxu0 0.0
    %976 = vmatpush1.msra.mxu0 0.0
    %977 = vmatprep.subr.mxu0 0.0
    %978 = vmatpush1.msra.mxu0 0.0
    %979 = vmatprep.subr.mxu0 0.0
    %980 = vmatpush1.msra.mxu0 0.0
    %981 = vmatprep.subr.mxu0 0.0
    %982 = vmatpush1.msra.mxu0 0.0
    %983 = vmatprep.subr.mxu0 0.0
    %984 = vmatpush1.msra.mxu0 0.0
    %985 = vmatprep.subr.mxu0 0.0
    %986 = vmatpush1.msra.mxu0 0.0
    %987 = vmatprep.subr.mxu0 0.0
    %988 = vmatpush1.msra.mxu0 0.0
    %989 = vmatprep.subr.mxu0 0.0
    %990 = vmatpush1.msra.mxu0 0.0
    %991 = vmatprep.subr.mxu0 0.0
    %992 = vmatpush1.msra.mxu0 0.0
    %993 = vmatprep.subr.mxu0 0.0
    %994 = vmatpush1.msra.mxu0 0.0
    %995 = vmatprep.subr.mxu0 0.0
    %996 = vmatpush1.msra.mxu0 0.0
    %997 = vmatprep.subr.mxu0 0.0
    %998 = vmatpush1.msra.mxu0 0.0
    %999 = vmatprep.subr.mxu0 0.0
    %1000 = vmatpush1.msra.mxu0 0.0
    %1001 = vmatprep.subr.mxu0 0.0
    %1002 = vmatpush1.msra.mxu0 0.0
    %1003 = vmatprep.subr.mxu0 0.0
    %1004 = vmatpush1.msra.mxu0 0.0
    %1005 = vmatprep.subr.mxu0 %v580
    %1006 = vmatpush1.msra.mxu0 %v579
    %1007 = vmatprep.subr.mxu0 0.0
    %1008 = vmatpush2.msra.mxu0 0.0
    %1009 = vmatprep.subr.mxu0 0.0
    %1010 = vmatpush2.msra.mxu0 0.0
    %1011 = vmatprep.subr.mxu0 0.0
    %1012 = vmatpush2.msra.mxu0 0.0
    %1013 = vmatprep.subr.mxu0 0.0
    %1014 = vmatpush2.msra.mxu0 0.0
    %1015 = vmatprep.subr.mxu0 0.0
    %1016 = vmatpush2.msra.mxu0 0.0
    %1017 = vmatprep.subr.mxu0 0.0
    %1018 = vmatpush2.msra.mxu0 0.0
    %1019 = vmatprep.subr.mxu0 0.0
    %1020 = vmatpush2.msra.mxu0 0.0
    %1021 = vmatprep.subr.mxu0 0.0
    %1022 = vmatpush2.msra.mxu0 0.0
    %1023 = vmatprep.subr.mxu0 0.0
    %1024 = vmatpush2.msra.mxu0 0.0
    %1025 = vmatprep.subr.mxu0 0.0
    %1026 = vmatpush2.msra.mxu0 0.0
    %1027 = vmatprep.subr.mxu0 0.0
    %1028 = vmatpush2.msra.mxu0 0.0
    %1029 = vmatprep.subr.mxu0 0.0
    %1030 = vmatpush2.msra.mxu0 0.0
    %1031 = vmatprep.subr.mxu0 0.0
    %1032 = vmatpush2.msra.mxu0 0.0
    %1033 = vmatprep.subr.mxu0 0.0
    %1034 = vmatpush2.msra.mxu0 0.0
    %1035 = vmatprep.subr.mxu0 0.0
    %1036 = vmatpush2.msra.mxu0 0.0
    %1037 = vmatprep.subr.mxu0 0.0
    %1038 = vmatpush2.msra.mxu0 0.0
    %1039 = vmatprep.mubr.f32.mxu0 0.0
    %1040 = vmatmul.mubr.f32.gmra.mxu0 %v970
    %v1041 = vpop.f32.mrf.mxu0
    %v1042 = vadd.f32 0.0, %v1041
    %v1043 = vpop.f32.mrf.mxu0
    %v1044 = vadd.f32 0.0, %v1043
    %1045 = vmatprep.mubr.f32.mxu0 0.0
    %1046 = vmatmul.mubr.f32.gmra.mxu0 %v973
    %v1047 = vpop.f32.mrf.mxu0
    %v1048 = vadd.f32 0.0, %v1047
    %v1049 = vpop.f32.mrf.mxu0
    %v1050 = vadd.f32 0.0, %v1049
    %1051 = vdwg.mxu0
    %1052 = vmatprep.subr.mxu0 0.0
    %1053 = vmatpush1.msra.mxu0 0.0
    %1054 = vmatprep.subr.mxu0 0.0
    %1055 = vmatpush1.msra.mxu0 0.0
    %1056 = vmatprep.subr.mxu0 0.0
    %1057 = vmatpush1.msra.mxu0 0.0
    %1058 = vmatprep.subr.mxu0 0.0
    %1059 = vmatpush1.msra.mxu0 0.0
    %1060 = vmatprep.subr.mxu0 0.0
    %1061 = vmatpush1.msra.mxu0 0.0
    %1062 = vmatprep.subr.mxu0 0.0
    %1063 = vmatpush1.msra.mxu0 0.0
    %1064 = vmatprep.subr.mxu0 0.0
    %1065 = vmatpush1.msra.mxu0 0.0
    %1066 = vmatprep.subr.mxu0 0.0
    %1067 = vmatpush1.msra.mxu0 0.0
    %1068 = vmatprep.subr.mxu0 0.0
    %1069 = vmatpush1.msra.mxu0 0.0
    %1070 = vmatprep.subr.mxu0 0.0
    %1071 = vmatpush1.msra.mxu0 0.0
    %1072 = vmatprep.subr.mxu0 0.0
    %1073 = vmatpush1.msra.mxu0 0.0
    %1074 = vmatprep.subr.mxu0 0.0
    %1075 = vmatpush1.msra.mxu0 0.0
    %1076 = vmatprep.subr.mxu0 0.0
    %1077 = vmatpush1.msra.mxu0 0.0
    %1078 = vmatprep.subr.mxu0 0.0
    %1079 = vmatpush1.msra.mxu0 0.0
    %1080 = vmatprep.subr.mxu0 0.0
    %1081 = vmatpush1.msra.mxu0 0.0
    %1082 = vmatprep.subr.mxu0 %v582
    %1083 = vmatpush1.msra.mxu0 %v581
    %1084 = vmatprep.subr.mxu0 0.0
    %1085 = vmatpush2.msra.mxu0 0.0
    %1086 = vmatprep.subr.mxu0 0.0
    %1087 = vmatpush2.msra.mxu0 0.0
    %1088 = vmatprep.subr.mxu0 0.0
    %1089 = vmatpush2.msra.mxu0 0.0
    %1090 = vmatprep.subr.mxu0 0.0
    %1091 = vmatpush2.msra.mxu0 0.0
    %1092 = vmatprep.subr.mxu0 0.0
    %1093 = vmatpush2.msra.mxu0 0.0
    %1094 = vmatprep.subr.mxu0 0.0
    %1095 = vmatpush2.msra.mxu0 0.0
    %1096 = vmatprep.subr.mxu0 0.0
    %1097 = vmatpush2.msra.mxu0 0.0
    %1098 = vmatprep.subr.mxu0 0.0
    %1099 = vmatpush2.msra.mxu0 0.0
    %1100 = vmatprep.subr.mxu0 0.0
    %1101 = vmatpush2.msra.mxu0 0.0
    %1102 = vmatprep.subr.mxu0 0.0
    %1103 = vmatpush2.msra.mxu0 0.0
    %1104 = vmatprep.subr.mxu0 0.0
    %1105 = vmatpush2.msra.mxu0 0.0
    %1106 = vmatprep.subr.mxu0 0.0
    %1107 = vmatpush2.msra.mxu0 0.0
    %1108 = vmatprep.subr.mxu0 0.0
    %1109 = vmatpush2.msra.mxu0 0.0
    %1110 = vmatprep.subr.mxu0 0.0
    %1111 = vmatpush2.msra.mxu0 0.0
    %1112 = vmatprep.subr.mxu0 0.0
    %1113 = vmatpush2.msra.mxu0 0.0
    %1114 = vmatprep.subr.mxu0 0.0
    %1115 = vmatpush2.msra.mxu0 0.0
    %1116 = vmatprep.mubr.f32.mxu0 0.0
    %1117 = vmatmul.mubr.f32.gmra.mxu0 %v970
    %v1118 = vpop.f32.mrf.mxu0
    %v1119 = vadd.f32 0.0, %v1118
    %v1120 = vpop.f32.mrf.mxu0
    %v1121 = vadd.f32 0.0, %v1120
    %1122 = vmatprep.mubr.f32.mxu0 0.0
    %1123 = vmatmul.mubr.f32.gmra.mxu0 %v973
    %v1124 = vpop.f32.mrf.mxu0
    %v1125 = vadd.f32 0.0, %v1124
    %v1126 = vpop.f32.mrf.mxu0
    %v1127 = vadd.f32 0.0, %v1126
    %1128 = vdwg.mxu0
    %v1129 = vsub.f32 %v729, %v1042
    %v1130 = vsub.f32 %v731, %v1044
    %v1131 = vsub.f32 %v806, %v1119
    %v1132 = vsub.f32 %v808, %v1121
    %v1133 = vsub.f32 %v735, %v1048
    %v1134 = vsub.f32 %v737, %v1050
    %v1135 = vsub.f32 %v812, %v1125
    %v1136 = vsub.f32 %v814, %v1127
    %v1137 = vmul.f32 %v1129, %v1129
    %v1138 = vmul.f32 %v1130, %v1130
    %v1139 = vmul.f32 %v1131, %v1131
    %v1140 = vmul.f32 %v1132, %v1132
    %v1141 = vmul.f32 %v1133, %v1133
    %v1142 = vmul.f32 %v1134, %v1134
    %v1143 = vmul.f32 %v1135, %v1135
    %v1144 = vmul.f32 %v1136, %v1136
    %1145 = vmatprep.subr.mxu0 0.0
    %1146 = vmatpush1.msra.mxu0 %v530
    %1147 = vmatprep.subr.mxu0 0.0
    %1148 = vmatpush1.msra.mxu0 %v529
    %1149 = vmatprep.subr.mxu0 0.0
    %1150 = vmatpush1.msra.mxu0 %v528
    %1151 = vmatprep.subr.mxu0 0.0
    %1152 = vmatpush1.msra.mxu0 %v527
    %1153 = vmatprep.subr.mxu0 0.0
    %1154 = vmatpush1.msra.mxu0 %v526
    %1155 = vmatprep.subr.mxu0 0.0
    %1156 = vmatpush1.msra.mxu0 %v525
    %1157 = vmatprep.subr.mxu0 0.0
    %1158 = vmatpush1.msra.mxu0 %v524
    %1159 = vmatprep.subr.mxu0 0.0
    %1160 = vmatpush1.msra.mxu0 %v523
    %1161 = vmatprep.subr.mxu0 0.0
    %1162 = vmatpush1.msra.mxu0 %v522
    %1163 = vmatprep.subr.mxu0 0.0
    %1164 = vmatpush1.msra.mxu0 %v521
    %1165 = vmatprep.subr.mxu0 0.0
    %1166 = vmatpush1.msra.mxu0 %v520
    %1167 = vmatprep.subr.mxu0 0.0
    %1168 = vmatpush1.msra.mxu0 %v519
    %1169 = vmatprep.subr.mxu0 0.0
    %1170 = vmatpush1.msra.mxu0 %v518
    %1171 = vmatprep.subr.mxu0 0.0
    %1172 = vmatpush1.msra.mxu0 %v517
    %1173 = vmatprep.subr.mxu0 0.0
    %1174 = vmatpush1.msra.mxu0 %v516
    %1175 = vmatprep.subr.mxu0 0.0
    %1176 = vmatpush1.msra.mxu0 %v515
    %1177 = vmatprep.subr.mxu0 0.0
    %1178 = vmatpush2.msra.mxu0 %v546
    %1179 = vmatprep.subr.mxu0 0.0
    %1180 = vmatpush2.msra.mxu0 %v545
    %1181 = vmatprep.subr.mxu0 0.0
    %1182 = vmatpush2.msra.mxu0 %v544
    %1183 = vmatprep.subr.mxu0 0.0
    %1184 = vmatpush2.msra.mxu0 %v543
    %1185 = vmatprep.subr.mxu0 0.0
    %1186 = vmatpush2.msra.mxu0 %v542
    %1187 = vmatprep.subr.mxu0 0.0
    %1188 = vmatpush2.msra.mxu0 %v541
    %1189 = vmatprep.subr.mxu0 0.0
    %1190 = vmatpush2.msra.mxu0 %v540
    %1191 = vmatprep.subr.mxu0 0.0
    %1192 = vmatpush2.msra.mxu0 %v539
    %1193 = vmatprep.subr.mxu0 0.0
    %1194 = vmatpush2.msra.mxu0 %v538
    %1195 = vmatprep.subr.mxu0 0.0
    %1196 = vmatpush2.msra.mxu0 %v537
    %1197 = vmatprep.subr.mxu0 0.0
    %1198 = vmatpush2.msra.mxu0 %v536
    %1199 = vmatprep.subr.mxu0 0.0
    %1200 = vmatpush2.msra.mxu0 %v535
    %1201 = vmatprep.subr.mxu0 0.0
    %1202 = vmatpush2.msra.mxu0 %v534
    %1203 = vmatprep.subr.mxu0 0.0
    %1204 = vmatpush2.msra.mxu0 %v533
    %1205 = vmatprep.subr.mxu0 0.0
    %1206 = vmatpush2.msra.mxu0 %v532
    %1207 = vmatprep.subr.mxu0 0.0
    %1208 = vmatpush2.msra.mxu0 %v531
    %1209 = vmatprep.mubr.f32.mxu0 %v1138
    %1210 = vmatmul.mubr.f32.gmra.mxu0 %v1137
    %v1211 = vpop.f32.mrf.mxu0
    %v1212 = vadd.f32 0.0, %v1211
    %v1213 = vpop.f32.mrf.mxu0
    %1214 = vmatprep.mubr.f32.mxu0 %v1142
    %1215 = vmatmul.mubr.f32.gmra.mxu0 %v1141
    %v1216 = vpop.f32.mrf.mxu0
    %v1217 = vadd.f32 0.0, %v1216
    %v1218 = vpop.f32.mrf.mxu0
    %1219 = vdwg.mxu0
    %1220 = vmatprep.subr.mxu0 0.0
    %1221 = vmatpush1.msra.mxu0 %v562
    %1222 = vmatprep.subr.mxu0 0.0
    %1223 = vmatpush1.msra.mxu0 %v561
    %1224 = vmatprep.subr.mxu0 0.0
    %1225 = vmatpush1.msra.mxu0 %v560
    %1226 = vmatprep.subr.mxu0 0.0
    %1227 = vmatpush1.msra.mxu0 %v559
    %1228 = vmatprep.subr.mxu0 0.0
    %1229 = vmatpush1.msra.mxu0 %v558
    %1230 = vmatprep.subr.mxu0 0.0
    %1231 = vmatpush1.msra.mxu0 %v557
    %1232 = vmatprep.subr.mxu0 0.0
    %1233 = vmatpush1.msra.mxu0 %v556
    %1234 = vmatprep.subr.mxu0 0.0
    %1235 = vmatpush1.msra.mxu0 %v555
    %1236 = vmatprep.subr.mxu0 0.0
    %1237 = vmatpush1.msra.mxu0 %v554
    %1238 = vmatprep.subr.mxu0 0.0
    %1239 = vmatpush1.msra.mxu0 %v553
    %1240 = vmatprep.subr.mxu0 0.0
    %1241 = vmatpush1.msra.mxu0 %v552
    %1242 = vmatprep.subr.mxu0 0.0
    %1243 = vmatpush1.msra.mxu0 %v551
    %1244 = vmatprep.subr.mxu0 0.0
    %1245 = vmatpush1.msra.mxu0 %v550
    %1246 = vmatprep.subr.mxu0 0.0
    %1247 = vmatpush1.msra.mxu0 %v549
    %1248 = vmatprep.subr.mxu0 0.0
    %1249 = vmatpush1.msra.mxu0 %v548
    %1250 = vmatprep.subr.mxu0 0.0
    %1251 = vmatpush1.msra.mxu0 %v547
    %1252 = vmatprep.subr.mxu0 0.0
    %1253 = vmatpush2.msra.mxu0 %v578
    %1254 = vmatprep.subr.mxu0 0.0
    %1255 = vmatpush2.msra.mxu0 %v577
    %1256 = vmatprep.subr.mxu0 0.0
    %1257 = vmatpush2.msra.mxu0 %v576
    %1258 = vmatprep.subr.mxu0 0.0
    %1259 = vmatpush2.msra.mxu0 %v575
    %1260 = vmatprep.subr.mxu0 0.0
    %1261 = vmatpush2.msra.mxu0 %v574
    %1262 = vmatprep.subr.mxu0 0.0
    %1263 = vmatpush2.msra.mxu0 %v573
    %1264 = vmatprep.subr.mxu0 0.0
    %1265 = vmatpush2.msra.mxu0 %v572
    %1266 = vmatprep.subr.mxu0 0.0
    %1267 = vmatpush2.msra.mxu0 %v571
    %1268 = vmatprep.subr.mxu0 0.0
    %1269 = vmatpush2.msra.mxu0 %v570
    %1270 = vmatprep.subr.mxu0 0.0
    %1271 = vmatpush2.msra.mxu0 %v569
    %1272 = vmatprep.subr.mxu0 0.0
    %1273 = vmatpush2.msra.mxu0 %v568
    %1274 = vmatprep.subr.mxu0 0.0
    %1275 = vmatpush2.msra.mxu0 %v567
    %1276 = vmatprep.subr.mxu0 0.0
    %1277 = vmatpush2.msra.mxu0 %v566
    %1278 = vmatprep.subr.mxu0 0.0
    %1279 = vmatpush2.msra.mxu0 %v565
    %1280 = vmatprep.subr.mxu0 0.0
    %1281 = vmatpush2.msra.mxu0 %v564
    %1282 = vmatprep.subr.mxu0 0.0
    %1283 = vmatpush2.msra.mxu0 %v563
    %1284 = vmatprep.mubr.f32.mxu0 %v1140
    %1285 = vmatmul.mubr.f32.gmra.mxu0 %v1139
    %v1286 = vpop.f32.mrf.mxu0
    %v1287 = vadd.f32 %v1212, %v1286
    %v1288 = vpop.f32.mrf.mxu0
    %1289 = vmatprep.mubr.f32.mxu0 %v1144
    %1290 = vmatmul.mubr.f32.gmra.mxu0 %v1143
    %v1291 = vpop.f32.mrf.mxu0
    %v1292 = vadd.f32 %v1217, %v1291
    %v1293 = vpop.f32.mrf.mxu0
    %1294 = vdwg.mxu0
    %v1296 = vsel %vm968, %v1287, 0
    %v1299 = vsel %vm968, %v1292, 0
    %1301 = vmatprep.subr.mxu0 0.0
    %1302 = vmatpush1.msra.mxu0 0.0
    %1303 = vmatprep.subr.mxu0 0.0
    %1304 = vmatpush1.msra.mxu0 0.0
    %1305 = vmatprep.subr.mxu0 0.0
    %1306 = vmatpush1.msra.mxu0 0.0
    %1307 = vmatprep.subr.mxu0 0.0
    %1308 = vmatpush1.msra.mxu0 0.0
    %1309 = vmatprep.subr.mxu0 0.0
    %1310 = vmatpush1.msra.mxu0 0.0
    %1311 = vmatprep.subr.mxu0 0.0
    %1312 = vmatpush1.msra.mxu0 0.0
    %1313 = vmatprep.subr.mxu0 0.0
    %1314 = vmatpush1.msra.mxu0 0.0
    %1315 = vmatprep.subr.mxu0 0.0
    %1316 = vmatpush1.msra.mxu0 0.0
    %1317 = vmatprep.subr.mxu0 0.0
    %1318 = vmatpush1.msra.mxu0 0.0
    %1319 = vmatprep.subr.mxu0 0.0
    %1320 = vmatpush1.msra.mxu0 0.0
    %1321 = vmatprep.subr.mxu0 0.0
    %1322 = vmatpush1.msra.mxu0 0.0
    %1323 = vmatprep.subr.mxu0 0.0
    %1324 = vmatpush1.msra.mxu0 0.0
    %1325 = vmatprep.subr.mxu0 0.0
    %1326 = vmatpush1.msra.mxu0 0.0
    %1327 = vmatprep.subr.mxu0 0.0
    %1328 = vmatpush1.msra.mxu0 0.0
    %1329 = vmatprep.subr.mxu0 0.0
    %1330 = vmatpush1.msra.mxu0 0.0
    %1331 = vmatprep.subr.mxu0 %v580
    %1332 = vmatpush1.msra.mxu0 %v579
    %1333 = vmatprep.subr.mxu0 0.0
    %1334 = vmatpush2.msra.mxu0 0.0
    %1335 = vmatprep.subr.mxu0 0.0
    %1336 = vmatpush2.msra.mxu0 0.0
    %1337 = vmatprep.subr.mxu0 0.0
    %1338 = vmatpush2.msra.mxu0 0.0
    %1339 = vmatprep.subr.mxu0 0.0
    %1340 = vmatpush2.msra.mxu0 0.0
    %1341 = vmatprep.subr.mxu0 0.0
    %1342 = vmatpush2.msra.mxu0 0.0
    %1343 = vmatprep.subr.mxu0 0.0
    %1344 = vmatpush2.msra.mxu0 0.0
    %1345 = vmatprep.subr.mxu0 0.0
    %1346 = vmatpush2.msra.mxu0 0.0
    %1347 = vmatprep.subr.mxu0 0.0
    %1348 = vmatpush2.msra.mxu0 0.0
    %1349 = vmatprep.subr.mxu0 0.0
    %1350 = vmatpush2.msra.mxu0 0.0
    %1351 = vmatprep.subr.mxu0 0.0
    %1352 = vmatpush2.msra.mxu0 0.0
    %1353 = vmatprep.subr.mxu0 0.0
    %1354 = vmatpush2.msra.mxu0 0.0
    %1355 = vmatprep.subr.mxu0 0.0
    %1356 = vmatpush2.msra.mxu0 0.0
    %1357 = vmatprep.subr.mxu0 0.0
    %1358 = vmatpush2.msra.mxu0 0.0
    %1359 = vmatprep.subr.mxu0 0.0
    %1360 = vmatpush2.msra.mxu0 0.0
    %1361 = vmatprep.subr.mxu0 0.0
    %1362 = vmatpush2.msra.mxu0 0.0
    %1363 = vmatprep.subr.mxu0 0.0
    %1364 = vmatpush2.msra.mxu0 0.0
    %1365 = vmatprep.mubr.f32.mxu0 0.0
    %1366 = vmatmul.mubr.f32.gmra.mxu0 %v1296
    %v1367 = vpop.f32.mrf.mxu0
    %v1368 = vadd.f32 1e-05, %v1367
    %v1369 = vpop.f32.mrf.mxu0
    %v1370 = vadd.f32 1e-05, %v1369
    %1371 = vmatprep.mubr.f32.mxu0 0.0
    %1372 = vmatmul.mubr.f32.gmra.mxu0 %v1299
    %v1373 = vpop.f32.mrf.mxu0
    %v1374 = vadd.f32 1e-05, %v1373
    %v1375 = vpop.f32.mrf.mxu0
    %v1376 = vadd.f32 1e-05, %v1375
    %1377 = vdwg.mxu0
    %1378 = vmatprep.subr.mxu0 0.0
    %1379 = vmatpush1.msra.mxu0 0.0
    %1380 = vmatprep.subr.mxu0 0.0
    %1381 = vmatpush1.msra.mxu0 0.0
    %1382 = vmatprep.subr.mxu0 0.0
    %1383 = vmatpush1.msra.mxu0 0.0
    %1384 = vmatprep.subr.mxu0 0.0
    %1385 = vmatpush1.msra.mxu0 0.0
    %1386 = vmatprep.subr.mxu0 0.0
    %1387 = vmatpush1.msra.mxu0 0.0
    %1388 = vmatprep.subr.mxu0 0.0
    %1389 = vmatpush1.msra.mxu0 0.0
    %1390 = vmatprep.subr.mxu0 0.0
    %1391 = vmatpush1.msra.mxu0 0.0
    %1392 = vmatprep.subr.mxu0 0.0
    %1393 = vmatpush1.msra.mxu0 0.0
    %1394 = vmatprep.subr.mxu0 0.0
    %1395 = vmatpush1.msra.mxu0 0.0
    %1396 = vmatprep.subr.mxu0 0.0
    %1397 = vmatpush1.msra.mxu0 0.0
    %1398 = vmatprep.subr.mxu0 0.0
    %1399 = vmatpush1.msra.mxu0 0.0
    %1400 = vmatprep.subr.mxu0 0.0
    %1401 = vmatpush1.msra.mxu0 0.0
    %1402 = vmatprep.subr.mxu0 0.0
    %1403 = vmatpush1.msra.mxu0 0.0
    %1404 = vmatprep.subr.mxu0 0.0
    %1405 = vmatpush1.msra.mxu0 0.0
    %1406 = vmatprep.subr.mxu0 0.0
    %1407 = vmatpush1.msra.mxu0 0.0
    %1408 = vmatprep.subr.mxu0 %v582
    %1409 = vmatpush1.msra.mxu0 %v581
    %1410 = vmatprep.subr.mxu0 0.0
    %1411 = vmatpush2.msra.mxu0 0.0
    %1412 = vmatprep.subr.mxu0 0.0
    %1413 = vmatpush2.msra.mxu0 0.0
    %1414 = vmatprep.subr.mxu0 0.0
    %1415 = vmatpush2.msra.mxu0 0.0
    %1416 = vmatprep.subr.mxu0 0.0
    %1417 = vmatpush2.msra.mxu0 0.0
    %1418 = vmatprep.subr.mxu0 0.0
    %1419 = vmatpush2.msra.mxu0 0.0
    %1420 = vmatprep.subr.mxu0 0.0
    %1421 = vmatpush2.msra.mxu0 0.0
    %1422 = vmatprep.subr.mxu0 0.0
    %1423 = vmatpush2.msra.mxu0 0.0
    %1424 = vmatprep.subr.mxu0 0.0
    %1425 = vmatpush2.msra.mxu0 0.0
    %1426 = vmatprep.subr.mxu0 0.0
    %1427 = vmatpush2.msra.mxu0 0.0
    %1428 = vmatprep.subr.mxu0 0.0
    %1429 = vmatpush2.msra.mxu0 0.0
    %1430 = vmatprep.subr.mxu0 0.0
    %1431 = vmatpush2.msra.mxu0 0.0
    %1432 = vmatprep.subr.mxu0 0.0
    %1433 = vmatpush2.msra.mxu0 0.0
    %1434 = vmatprep.subr.mxu0 0.0
    %1435 = vmatpush2.msra.mxu0 0.0
    %1436 = vmatprep.subr.mxu0 0.0
    %1437 = vmatpush2.msra.mxu0 0.0
    %1438 = vmatprep.subr.mxu0 0.0
    %1439 = vmatpush2.msra.mxu0 0.0
    %1440 = vmatprep.subr.mxu0 0.0
    %1441 = vmatpush2.msra.mxu0 0.0
    %1442 = vmatprep.mubr.f32.mxu0 0.0
    %1443 = vmatmul.mubr.f32.gmra.mxu0 %v1296
    %v1444 = vpop.f32.mrf.mxu0
    %v1445 = vadd.f32 1e-05, %v1444
    %v1446 = vpop.f32.mrf.mxu0
    %v1447 = vadd.f32 1e-05, %v1446
    %1448 = vmatprep.mubr.f32.mxu0 0.0
    %1449 = vmatmul.mubr.f32.gmra.mxu0 %v1299
    %v1450 = vpop.f32.mrf.mxu0
    %v1451 = vadd.f32 1e-05, %v1450
    %v1452 = vpop.f32.mrf.mxu0
    %v1453 = vadd.f32 1e-05, %v1452
    %1454 = vdwg.mxu0
    %v1455 = vrsqrt.pop %v1368
    %v1456 = vrsqrt.pop %v1370
    %v1457 = vrsqrt.pop %v1445
    %v1458 = vrsqrt.pop %v1447
    %v1459 = vrsqrt.pop %v1374
    %v1460 = vrsqrt.pop %v1376
    %v1461 = vrsqrt.pop %v1451
    %v1462 = vrsqrt.pop %v1453
    %v1463 = vmul.f32 %v1129, %v1455
    %v1464 = vmul.f32 %v1130, %v1456
    %v1465 = vmul.f32 %v1131, %v1457
    %v1466 = vmul.f32 %v1132, %v1458
    %v1467 = vmul.f32 %v1133, %v1459
    %v1468 = vmul.f32 %v1134, %v1460
    %v1469 = vmul.f32 %v1135, %v1461
    %v1470 = vmul.f32 %v1136, %v1462
    %v1472 = vlaneseq
    %v1473 = vshrl.u32 %v1472, 7
    %v1474 = vsub.s32 0, %v1473
    %v1475 = vrot.slane %v816, %v1474
    %v1476 = vlaneseq
    %v1477 = vshrl.u32 %v1476, 7
    %v1478 = vsub.s32 1, %v1477
    %v1479 = vrot.slane %v816, %v1478
    %v1480 = vlaneseq
    %v1481 = vshrl.u32 %v1480, 7
    %v1482 = vsub.s32 2, %v1481
    %v1483 = vrot.slane %v816, %v1482
    %v1484 = vlaneseq
    %v1485 = vshrl.u32 %v1484, 7
    %v1486 = vsub.s32 3, %v1485
    %v1487 = vrot.slane %v816, %v1486
    %v1492 = vmul.f32 %v1463, %v1475
    %v1493 = vmul.f32 %v1464, %v1479
    %v1494 = vmul.f32 %v1465, %v1483
    %v1495 = vmul.f32 %v1466, %v1487
    %v1496 = vmul.f32 %v1467, %v1475
    %v1497 = vmul.f32 %v1468, %v1479
    %v1498 = vmul.f32 %v1469, %v1483
    %v1499 = vmul.f32 %v1470, %v1487
    %v1501 = vlaneseq
    %v1502 = vshrl.u32 %v1501, 7
    %v1503 = vsub.s32 0, %v1502
    %v1504 = vrot.slane %v817, %v1503
    %v1505 = vlaneseq
    %v1506 = vshrl.u32 %v1505, 7
    %v1507 = vsub.s32 1, %v1506
    %v1508 = vrot.slane %v817, %v1507
    %v1509 = vlaneseq
    %v1510 = vshrl.u32 %v1509, 7
    %v1511 = vsub.s32 2, %v1510
    %v1512 = vrot.slane %v817, %v1511
    %v1513 = vlaneseq
    %v1514 = vshrl.u32 %v1513, 7
    %v1515 = vsub.s32 3, %v1514
    %v1516 = vrot.slane %v817, %v1515
    %v1521 = vadd.f32 %v1492, %v1504
    %v1522 = vadd.f32 %v1493, %v1508
    %v1523 = vadd.f32 %v1494, %v1512
    %v1524 = vadd.f32 %v1495, %v1516
    %v1525 = vadd.f32 %v1496, %v1504
    %v1526 = vadd.f32 %v1497, %v1508
    %v1527 = vadd.f32 %v1498, %v1512
    %v1528 = vadd.f32 %v1499, %v1516
    %v1529 = vmul.f32 %v1521, 0.5
    %v1530 = vmul.f32 %v1522, 0.5
    %v1531 = vmul.f32 %v1523, 0.5
    %v1532 = vmul.f32 %v1524, 0.5
    %v1533 = vmul.f32 %v1525, 0.5
    %v1534 = vmul.f32 %v1526, 0.5
    %v1535 = vmul.f32 %v1527, 0.5
    %v1536 = vmul.f32 %v1528, 0.5
    %v1537 = vmul.f32 %v1521, 0.70710677
    %v1538 = vmul.f32 %v1522, 0.70710677
    %v1539 = vmul.f32 %v1523, 0.70710677
    %v1540 = vmul.f32 %v1524, 0.70710677
    %v1541 = vmul.f32 %v1525, 0.70710677
    %v1542 = vmul.f32 %v1526, 0.70710677
    %v1543 = vmul.f32 %v1527, 0.70710677
    %v1544 = vmul.f32 %v1528, 0.70710677
    %v1545 = verf.f32.pop %v1537
    %v1546 = verf.f32.pop %v1538
    %v1547 = verf.f32.pop %v1539
    %v1548 = verf.f32.pop %v1540
    %v1549 = verf.f32.pop %v1541
    %v1550 = verf.f32.pop %v1542
    %v1551 = verf.f32.pop %v1543
    %v1552 = verf.f32.pop %v1544
    %v1553 = vadd.f32 %v1545, 1.0
    %v1554 = vadd.f32 %v1546, 1.0
    %v1555 = vadd.f32 %v1547, 1.0
    %v1556 = vadd.f32 %v1548, 1.0
    %v1557 = vadd.f32 %v1549, 1.0
    %v1558 = vadd.f32 %v1550, 1.0
    %v1559 = vadd.f32 %v1551, 1.0
    %v1560 = vadd.f32 %v1552, 1.0
    %v1561 = vmul.f32 %v1529, %v1553
    %v1562 = vmul.f32 %v1530, %v1554
    %v1563 = vmul.f32 %v1531, %v1555
    %v1564 = vmul.f32 %v1532, %v1556
    %v1565 = vmul.f32 %v1533, %v1557
    %v1566 = vmul.f32 %v1534, %v1558
    %v1567 = vmul.f32 %v1535, %v1559
    %v1568 = vmul.f32 %v1536, %v1560
    %v1569 = vld [vmem:[%s19] sm:$0xff]
    %v1570 = vld [vmem:[%s19 + $0x8] sm:$0xff]
    %v1571 = vld [vmem:[%s19 + $0x10] sm:$0xff]
    %v1572 = vld [vmem:[%s19 + $0x18] sm:$0xff]
    %v1573 = vld [vmem:[%s19 + $0x20] sm:$0xff]
    %v1574 = vld [vmem:[%s19 + $0x28] sm:$0xff]
    %v1575 = vld [vmem:[%s19 + $0x30] sm:$0xff]
    %v1576 = vld [vmem:[%s19 + $0x38] sm:$0xff]
    %v1577 = vld [vmem:[%s19 + $0x40] sm:$0xff]
    %v1578 = vld [vmem:[%s19 + $0x48] sm:$0xff]
    %v1579 = vld [vmem:[%s19 + $0x50] sm:$0xff]
    %v1580 = vld [vmem:[%s19 + $0x58] sm:$0xff]
    %v1581 = vld [vmem:[%s19 + $0x60] sm:$0xff]
    %v1582 = vld [vmem:[%s19 + $0x68] sm:$0xff]
    %v1583 = vld [vmem:[%s19 + $0x70] sm:$0xff]
    %v1584 = vld [vmem:[%s19 + $0x78] sm:$0xff]
    %v1585 = vld [vmem:[%s19 + $0x80] sm:$0xff]
    %v1586 = vld [vmem:[%s19 + $0x88] sm:$0xff]
    %v1587 = vld [vmem:[%s19 + $0x90] sm:$0xff]
    %v1588 = vld [vmem:[%s19 + $0x98] sm:$0xff]
    %v1589 = vld [vmem:[%s19 + $0xa0] sm:$0xff]
    %v1590 = vld [vmem:[%s19 + $0xa8] sm:$0xff]
    %v1591 = vld [vmem:[%s19 + $0xb0] sm:$0xff]
    %v1592 = vld [vmem:[%s19 + $0xb8] sm:$0xff]
    %v1593 = vld [vmem:[%s19 + $0xc0] sm:$0xff]
    %v1594 = vld [vmem:[%s19 + $0xc8] sm:$0xff]
    %v1595 = vld [vmem:[%s19 + $0xd0] sm:$0xff]
    %v1596 = vld [vmem:[%s19 + $0xd8] sm:$0xff]
    %v1597 = vld [vmem:[%s19 + $0xe0] sm:$0xff]
    %v1598 = vld [vmem:[%s19 + $0xe8] sm:$0xff]
    %v1599 = vld [vmem:[%s19 + $0xf0] sm:$0xff]
    %v1600 = vld [vmem:[%s19 + $0xf8] sm:$0xff]
    %v1601 = vld [vmem:[%s19 + $0x100] sm:$0xff]
    %v1602 = vld [vmem:[%s19 + $0x108] sm:$0xff]
    %v1603 = vld [vmem:[%s19 + $0x110] sm:$0xff]
    %v1604 = vld [vmem:[%s19 + $0x118] sm:$0xff]
    %v1605 = vld [vmem:[%s19 + $0x120] sm:$0xff]
    %v1606 = vld [vmem:[%s19 + $0x128] sm:$0xff]
    %v1607 = vld [vmem:[%s19 + $0x130] sm:$0xff]
    %v1608 = vld [vmem:[%s19 + $0x138] sm:$0xff]
    %v1609 = vld [vmem:[%s19 + $0x140] sm:$0xff]
    %v1610 = vld [vmem:[%s19 + $0x148] sm:$0xff]
    %v1611 = vld [vmem:[%s19 + $0x150] sm:$0xff]
    %v1612 = vld [vmem:[%s19 + $0x158] sm:$0xff]
    %v1613 = vld [vmem:[%s19 + $0x160] sm:$0xff]
    %v1614 = vld [vmem:[%s19 + $0x168] sm:$0xff]
    %v1615 = vld [vmem:[%s19 + $0x170] sm:$0xff]
    %v1616 = vld [vmem:[%s19 + $0x178] sm:$0xff]
    %v1617 = vld [vmem:[%s19 + $0x180] sm:$0xff]
    %v1618 = vld [vmem:[%s19 + $0x188] sm:$0xff]
    %v1619 = vld [vmem:[%s19 + $0x190] sm:$0xff]
    %v1620 = vld [vmem:[%s19 + $0x198] sm:$0xff]
    %v1621 = vld [vmem:[%s19 + $0x1a0] sm:$0xff]
    %v1622 = vld [vmem:[%s19 + $0x1a8] sm:$0xff]
    %v1623 = vld [vmem:[%s19 + $0x1b0] sm:$0xff]
    %v1624 = vld [vmem:[%s19 + $0x1b8] sm:$0xff]
    %v1625 = vld [vmem:[%s19 + $0x1c0] sm:$0xff]
    %v1626 = vld [vmem:[%s19 + $0x1c8] sm:$0xff]
    %v1627 = vld [vmem:[%s19 + $0x1d0] sm:$0xff]
    %v1628 = vld [vmem:[%s19 + $0x1d8] sm:$0xff]
    %v1629 = vld [vmem:[%s19 + $0x1e0] sm:$0xff]
    %v1630 = vld [vmem:[%s19 + $0x1e8] sm:$0xff]
    %v1631 = vld [vmem:[%s19 + $0x1f0] sm:$0xff]
    %v1632 = vld [vmem:[%s19 + $0x1f8] sm:$0xff]
    %v1633 = vld [vmem:[%s19 + $0x200] sm:$0xff]
    %v1634 = vld [vmem:[%s19 + $0x208] sm:$0xff]
    %v1635 = vld [vmem:[%s19 + $0x210] sm:$0xff]
    %v1636 = vld [vmem:[%s19 + $0x218] sm:$0xff]
    %v1637 = vld [vmem:[%s19 + $0x220] sm:$0xff]
    %v1638 = vld [vmem:[%s19 + $0x228] sm:$0xff]
    %v1639 = vld [vmem:[%s19 + $0x230] sm:$0xff]
    %v1640 = vld [vmem:[%s19 + $0x238] sm:$0xff]
    %v1641 = vld [vmem:[%s19 + $0x240] sm:$0xff]
    %v1642 = vld [vmem:[%s19 + $0x248] sm:$0xff]
    %v1643 = vld [vmem:[%s19 + $0x250] sm:$0xff]
    %v1644 = vld [vmem:[%s19 + $0x258] sm:$0xff]
    %v1645 = vld [vmem:[%s19 + $0x260] sm:$0xff]
    %v1646 = vld [vmem:[%s19 + $0x268] sm:$0xff]
    %v1647 = vld [vmem:[%s19 + $0x270] sm:$0xff]
    %v1648 = vld [vmem:[%s19 + $0x278] sm:$0xff]
    %v1649 = vld [vmem:[%s19 + $0x280] sm:$0xff]
    %v1650 = vld [vmem:[%s19 + $0x288] sm:$0xff]
    %v1651 = vld [vmem:[%s19 + $0x290] sm:$0xff]
    %v1652 = vld [vmem:[%s19 + $0x298] sm:$0xff]
    %v1653 = vld [vmem:[%s19 + $0x2a0] sm:$0xff]
    %v1654 = vld [vmem:[%s19 + $0x2a8] sm:$0xff]
    %v1655 = vld [vmem:[%s19 + $0x2b0] sm:$0xff]
    %v1656 = vld [vmem:[%s19 + $0x2b8] sm:$0xff]
    %v1657 = vld [vmem:[%s19 + $0x2c0] sm:$0xff]
    %v1658 = vld [vmem:[%s19 + $0x2c8] sm:$0xff]
    %v1659 = vld [vmem:[%s19 + $0x2d0] sm:$0xff]
    %v1660 = vld [vmem:[%s19 + $0x2d8] sm:$0xff]
    %v1661 = vld [vmem:[%s19 + $0x2e0] sm:$0xff]
    %v1662 = vld [vmem:[%s19 + $0x2e8] sm:$0xff]
    %v1663 = vld [vmem:[%s19 + $0x2f0] sm:$0xff]
    %v1664 = vld [vmem:[%s19 + $0x2f8] sm:$0xff]
    %v1665 = vld [vmem:[%s19 + $0x300] sm:$0xff]
    %v1666 = vld [vmem:[%s19 + $0x308] sm:$0xff]
    %v1667 = vld [vmem:[%s19 + $0x310] sm:$0xff]
    %v1668 = vld [vmem:[%s19 + $0x318] sm:$0xff]
    %v1669 = vld [vmem:[%s19 + $0x320] sm:$0xff]
    %v1670 = vld [vmem:[%s19 + $0x328] sm:$0xff]
    %v1671 = vld [vmem:[%s19 + $0x330] sm:$0xff]
    %v1672 = vld [vmem:[%s19 + $0x338] sm:$0xff]
    %v1673 = vld [vmem:[%s19 + $0x340] sm:$0xff]
    %v1674 = vld [vmem:[%s19 + $0x348] sm:$0xff]
    %v1675 = vld [vmem:[%s19 + $0x350] sm:$0xff]
    %v1676 = vld [vmem:[%s19 + $0x358] sm:$0xff]
    %v1677 = vld [vmem:[%s19 + $0x360] sm:$0xff]
    %v1678 = vld [vmem:[%s19 + $0x368] sm:$0xff]
    %v1679 = vld [vmem:[%s19 + $0x370] sm:$0xff]
    %v1680 = vld [vmem:[%s19 + $0x378] sm:$0xff]
    %v1681 = vld [vmem:[%s19 + $0x380] sm:$0xff]
    %v1682 = vld [vmem:[%s19 + $0x388] sm:$0xff]
    %v1683 = vld [vmem:[%s19 + $0x390] sm:$0xff]
    %v1684 = vld [vmem:[%s19 + $0x398] sm:$0xff]
    %v1685 = vld [vmem:[%s19 + $0x3a0] sm:$0xff]
    %v1686 = vld [vmem:[%s19 + $0x3a8] sm:$0xff]
    %v1687 = vld [vmem:[%s19 + $0x3b0] sm:$0xff]
    %v1688 = vld [vmem:[%s19 + $0x3b8] sm:$0xff]
    %v1689 = vld [vmem:[%s19 + $0x3c0] sm:$0xff]
    %v1690 = vld [vmem:[%s19 + $0x3c8] sm:$0xff]
    %v1691 = vld [vmem:[%s19 + $0x3d0] sm:$0xff]
    %v1692 = vld [vmem:[%s19 + $0x3d8] sm:$0xff]
    %v1693 = vld [vmem:[%s19 + $0x3e0] sm:$0xff]
    %v1694 = vld [vmem:[%s19 + $0x3e8] sm:$0xff]
    %v1695 = vld [vmem:[%s19 + $0x3f0] sm:$0xff]
    %v1696 = vld [vmem:[%s19 + $0x3f8] sm:$0xff]
    %v1697 = vld [vmem:[%s19 + $0x400] sm:$0xff]
    %v1698 = vld [vmem:[%s19 + $0x408] sm:$0xff]
    %v1699 = vld [vmem:[%s19 + $0x410] sm:$0xff]
    %v1700 = vld [vmem:[%s19 + $0x418] sm:$0xff]
    %v1701 = vld [vmem:[%s19 + $0x420] sm:$0xff]
    %v1702 = vld [vmem:[%s19 + $0x428] sm:$0xff]
    %v1703 = vld [vmem:[%s19 + $0x430] sm:$0xff]
    %v1704 = vld [vmem:[%s19 + $0x438] sm:$0xff]
    %v1705 = vld [vmem:[%s19 + $0x440] sm:$0xff]
    %v1706 = vld [vmem:[%s19 + $0x448] sm:$0xff]
    %v1707 = vld [vmem:[%s19 + $0x450] sm:$0xff]
    %v1708 = vld [vmem:[%s19 + $0x458] sm:$0xff]
    %v1709 = vld [vmem:[%s19 + $0x460] sm:$0xff]
    %v1710 = vld [vmem:[%s19 + $0x468] sm:$0xff]
    %v1711 = vld [vmem:[%s19 + $0x470] sm:$0xff]
    %v1712 = vld [vmem:[%s19 + $0x478] sm:$0xff]
    %v1713 = vld [vmem:[%s19 + $0x480] sm:$0xff]
    %v1714 = vld [vmem:[%s19 + $0x488] sm:$0xff]
    %v1715 = vld [vmem:[%s19 + $0x490] sm:$0xff]
    %v1716 = vld [vmem:[%s19 + $0x498] sm:$0xff]
    %v1717 = vld [vmem:[%s19 + $0x4a0] sm:$0xff]
    %v1718 = vld [vmem:[%s19 + $0x4a8] sm:$0xff]
    %v1719 = vld [vmem:[%s19 + $0x4b0] sm:$0xff]
    %v1720 = vld [vmem:[%s19 + $0x4b8] sm:$0xff]
    %v1721 = vld [vmem:[%s19 + $0x4c0] sm:$0xff]
    %v1722 = vld [vmem:[%s19 + $0x4c8] sm:$0xff]
    %v1723 = vld [vmem:[%s19 + $0x4d0] sm:$0xff]
    %v1724 = vld [vmem:[%s19 + $0x4d8] sm:$0xff]
    %v1725 = vld [vmem:[%s19 + $0x4e0] sm:$0xff]
    %v1726 = vld [vmem:[%s19 + $0x4e8] sm:$0xff]
    %v1727 = vld [vmem:[%s19 + $0x4f0] sm:$0xff]
    %v1728 = vld [vmem:[%s19 + $0x4f8] sm:$0xff]
    %v1729 = vld [vmem:[%s19 + $0x500] sm:$0xff]
    %v1730 = vld [vmem:[%s19 + $0x508] sm:$0xff]
    %v1731 = vld [vmem:[%s19 + $0x510] sm:$0xff]
    %v1732 = vld [vmem:[%s19 + $0x518] sm:$0xff]
    %v1733 = vld [vmem:[%s19 + $0x520] sm:$0xff]
    %v1734 = vld [vmem:[%s19 + $0x528] sm:$0xff]
    %v1735 = vld [vmem:[%s19 + $0x530] sm:$0xff]
    %v1736 = vld [vmem:[%s19 + $0x538] sm:$0xff]
    %v1737 = vld [vmem:[%s19 + $0x540] sm:$0xff]
    %v1738 = vld [vmem:[%s19 + $0x548] sm:$0xff]
    %v1739 = vld [vmem:[%s19 + $0x550] sm:$0xff]
    %v1740 = vld [vmem:[%s19 + $0x558] sm:$0xff]
    %v1741 = vld [vmem:[%s19 + $0x560] sm:$0xff]
    %v1742 = vld [vmem:[%s19 + $0x568] sm:$0xff]
    %v1743 = vld [vmem:[%s19 + $0x570] sm:$0xff]
    %v1744 = vld [vmem:[%s19 + $0x578] sm:$0xff]
    %v1745 = vld [vmem:[%s19 + $0x580] sm:$0xff]
    %v1746 = vld [vmem:[%s19 + $0x588] sm:$0xff]
    %v1747 = vld [vmem:[%s19 + $0x590] sm:$0xff]
    %v1748 = vld [vmem:[%s19 + $0x598] sm:$0xff]
    %v1749 = vld [vmem:[%s19 + $0x5a0] sm:$0xff]
    %v1750 = vld [vmem:[%s19 + $0x5a8] sm:$0xff]
    %v1751 = vld [vmem:[%s19 + $0x5b0] sm:$0xff]
    %v1752 = vld [vmem:[%s19 + $0x5b8] sm:$0xff]
    %v1753 = vld [vmem:[%s19 + $0x5c0] sm:$0xff]
    %v1754 = vld [vmem:[%s19 + $0x5c8] sm:$0xff]
    %v1755 = vld [vmem:[%s19 + $0x5d0] sm:$0xff]
    %v1756 = vld [vmem:[%s19 + $0x5d8] sm:$0xff]
    %v1757 = vld [vmem:[%s19 + $0x5e0] sm:$0xff]
    %v1758 = vld [vmem:[%s19 + $0x5e8] sm:$0xff]
    %v1759 = vld [vmem:[%s19 + $0x5f0] sm:$0xff]
    %v1760 = vld [vmem:[%s19 + $0x5f8] sm:$0xff]
    %v1761 = vld [vmem:[%s19 + $0x600] sm:$0xff]
    %v1762 = vld [vmem:[%s19 + $0x608] sm:$0xff]
    %v1763 = vld [vmem:[%s19 + $0x610] sm:$0xff]
    %v1764 = vld [vmem:[%s19 + $0x618] sm:$0xff]
    %v1765 = vld [vmem:[%s19 + $0x620] sm:$0xff]
    %v1766 = vld [vmem:[%s19 + $0x628] sm:$0xff]
    %v1767 = vld [vmem:[%s19 + $0x630] sm:$0xff]
    %v1768 = vld [vmem:[%s19 + $0x638] sm:$0xff]
    %v1769 = vld [vmem:[%s19 + $0x640] sm:$0xff]
    %v1770 = vld [vmem:[%s19 + $0x648] sm:$0xff]
    %v1771 = vld [vmem:[%s19 + $0x650] sm:$0xff]
    %v1772 = vld [vmem:[%s19 + $0x658] sm:$0xff]
    %v1773 = vld [vmem:[%s19 + $0x660] sm:$0xff]
    %v1774 = vld [vmem:[%s19 + $0x668] sm:$0xff]
    %v1775 = vld [vmem:[%s19 + $0x670] sm:$0xff]
    %v1776 = vld [vmem:[%s19 + $0x678] sm:$0xff]
    %v1777 = vld [vmem:[%s19 + $0x680] sm:$0xff]
    %v1778 = vld [vmem:[%s19 + $0x688] sm:$0xff]
    %v1779 = vld [vmem:[%s19 + $0x690] sm:$0xff]
    %v1780 = vld [vmem:[%s19 + $0x698] sm:$0xff]
    %v1781 = vld [vmem:[%s19 + $0x6a0] sm:$0xff]
    %v1782 = vld [vmem:[%s19 + $0x6a8] sm:$0xff]
    %v1783 = vld [vmem:[%s19 + $0x6b0] sm:$0xff]
    %v1784 = vld [vmem:[%s19 + $0x6b8] sm:$0xff]
    %v1785 = vld [vmem:[%s19 + $0x6c0] sm:$0xff]
    %v1786 = vld [vmem:[%s19 + $0x6c8] sm:$0xff]
    %v1787 = vld [vmem:[%s19 + $0x6d0] sm:$0xff]
    %v1788 = vld [vmem:[%s19 + $0x6d8] sm:$0xff]
    %v1789 = vld [vmem:[%s19 + $0x6e0] sm:$0xff]
    %v1790 = vld [vmem:[%s19 + $0x6e8] sm:$0xff]
    %v1791 = vld [vmem:[%s19 + $0x6f0] sm:$0xff]
    %v1792 = vld [vmem:[%s19 + $0x6f8] sm:$0xff]
    %v1793 = vld [vmem:[%s19 + $0x700] sm:$0xff]
    %v1794 = vld [vmem:[%s19 + $0x708] sm:$0xff]
    %v1795 = vld [vmem:[%s19 + $0x710] sm:$0xff]
    %v1796 = vld [vmem:[%s19 + $0x718] sm:$0xff]
    %v1797 = vld [vmem:[%s19 + $0x720] sm:$0xff]
    %v1798 = vld [vmem:[%s19 + $0x728] sm:$0xff]
    %v1799 = vld [vmem:[%s19 + $0x730] sm:$0xff]
    %v1800 = vld [vmem:[%s19 + $0x738] sm:$0xff]
    %v1801 = vld [vmem:[%s19 + $0x740] sm:$0xff]
    %v1802 = vld [vmem:[%s19 + $0x748] sm:$0xff]
    %v1803 = vld [vmem:[%s19 + $0x750] sm:$0xff]
    %v1804 = vld [vmem:[%s19 + $0x758] sm:$0xff]
    %v1805 = vld [vmem:[%s19 + $0x760] sm:$0xff]
    %v1806 = vld [vmem:[%s19 + $0x768] sm:$0xff]
    %v1807 = vld [vmem:[%s19 + $0x770] sm:$0xff]
    %v1808 = vld [vmem:[%s19 + $0x778] sm:$0xff]
    %v1809 = vld [vmem:[%s19 + $0x780] sm:$0xff]
    %v1810 = vld [vmem:[%s19 + $0x788] sm:$0xff]
    %v1811 = vld [vmem:[%s19 + $0x790] sm:$0xff]
    %v1812 = vld [vmem:[%s19 + $0x798] sm:$0xff]
    %v1813 = vld [vmem:[%s19 + $0x7a0] sm:$0xff]
    %v1814 = vld [vmem:[%s19 + $0x7a8] sm:$0xff]
    %v1815 = vld [vmem:[%s19 + $0x7b0] sm:$0xff]
    %v1816 = vld [vmem:[%s19 + $0x7b8] sm:$0xff]
    %v1817 = vld [vmem:[%s19 + $0x7c0] sm:$0xff]
    %v1818 = vld [vmem:[%s19 + $0x7c8] sm:$0xff]
    %v1819 = vld [vmem:[%s19 + $0x7d0] sm:$0xff]
    %v1820 = vld [vmem:[%s19 + $0x7d8] sm:$0xff]
    %v1821 = vld [vmem:[%s19 + $0x7e0] sm:$0xff]
    %v1822 = vld [vmem:[%s19 + $0x7e8] sm:$0xff]
    %v1823 = vld [vmem:[%s19 + $0x7f0] sm:$0xff]
    %v1824 = vld [vmem:[%s19 + $0x7f8] sm:$0xff]
    %v1825 = vld [vmem:[#allocation14] sm:$0xf]
    %v1827 = vlaneseq
    %v1828 = vshrl.u32 %v1827, 7
    %v1829 = vsub.s32 0, %v1828
    %v1830 = vrot.slane %v1825, %v1829
    %v1831 = vlaneseq
    %v1832 = vshrl.u32 %v1831, 7
    %v1833 = vsub.s32 1, %v1832
    %v1834 = vrot.slane %v1825, %v1833
    %v1835 = vlaneseq
    %v1836 = vshrl.u32 %v1835, 7
    %v1837 = vsub.s32 2, %v1836
    %v1838 = vrot.slane %v1825, %v1837
    %v1839 = vlaneseq
    %v1840 = vshrl.u32 %v1839, 7
    %v1841 = vsub.s32 3, %v1840
    %v1842 = vrot.slane %v1825, %v1841
    %1847 = vmatprep.subr.mxu0 %v1630
    %1848 = vmatpush1.msra.mxu0 %v1629
    %1849 = vmatprep.subr.mxu0 %v1626
    %1850 = vmatpush1.msra.mxu0 %v1625
    %1851 = vmatprep.subr.mxu0 %v1622
    %1852 = vmatpush1.msra.mxu0 %v1621
    %1853 = vmatprep.subr.mxu0 %v1618
    %1854 = vmatpush1.msra.mxu0 %v1617
    %1855 = vmatprep.subr.mxu0 %v1614
    %1856 = vmatpush1.msra.mxu0 %v1613
    %1857 = vmatprep.subr.mxu0 %v1610
    %1858 = vmatpush1.msra.mxu0 %v1609
    %1859 = vmatprep.subr.mxu0 %v1606
    %1860 = vmatpush1.msra.mxu0 %v1605
    %1861 = vmatprep.subr.mxu0 %v1602
    %1862 = vmatpush1.msra.mxu0 %v1601
    %1863 = vmatprep.subr.mxu0 %v1598
    %1864 = vmatpush1.msra.mxu0 %v1597
    %1865 = vmatprep.subr.mxu0 %v1594
    %1866 = vmatpush1.msra.mxu0 %v1593
    %1867 = vmatprep.subr.mxu0 %v1590
    %1868 = vmatpush1.msra.mxu0 %v1589
    %1869 = vmatprep.subr.mxu0 %v1586
    %1870 = vmatpush1.msra.mxu0 %v1585
    %1871 = vmatprep.subr.mxu0 %v1582
    %1872 = vmatpush1.msra.mxu0 %v1581
    %1873 = vmatprep.subr.mxu0 %v1578
    %1874 = vmatpush1.msra.mxu0 %v1577
    %1875 = vmatprep.subr.mxu0 %v1574
    %1876 = vmatpush1.msra.mxu0 %v1573
    %1877 = vmatprep.subr.mxu0 %v1570
    %1878 = vmatpush1.msra.mxu0 %v1569
    %1879 = vmatprep.subr.mxu0 %v1694
    %1880 = vmatpush2.msra.mxu0 %v1693
    %1881 = vmatprep.subr.mxu0 %v1690
    %1882 = vmatpush2.msra.mxu0 %v1689
    %1883 = vmatprep.subr.mxu0 %v1686
    %1884 = vmatpush2.msra.mxu0 %v1685
    %1885 = vmatprep.subr.mxu0 %v1682
    %1886 = vmatpush2.msra.mxu0 %v1681
    %1887 = vmatprep.subr.mxu0 %v1678
    %1888 = vmatpush2.msra.mxu0 %v1677
    %1889 = vmatprep.subr.mxu0 %v1674
    %1890 = vmatpush2.msra.mxu0 %v1673
    %1891 = vmatprep.subr.mxu0 %v1670
    %1892 = vmatpush2.msra.mxu0 %v1669
    %1893 = vmatprep.subr.mxu0 %v1666
    %1894 = vmatpush2.msra.mxu0 %v1665
    %1895 = vmatprep.subr.mxu0 %v1662
    %1896 = vmatpush2.msra.mxu0 %v1661
    %1897 = vmatprep.subr.mxu0 %v1658
    %1898 = vmatpush2.msra.mxu0 %v1657
    %1899 = vmatprep.subr.mxu0 %v1654
    %1900 = vmatpush2.msra.mxu0 %v1653
    %1901 = vmatprep.subr.mxu0 %v1650
    %1902 = vmatpush2.msra.mxu0 %v1649
    %1903 = vmatprep.subr.mxu0 %v1646
    %1904 = vmatpush2.msra.mxu0 %v1645
    %1905 = vmatprep.subr.mxu0 %v1642
    %1906 = vmatpush2.msra.mxu0 %v1641
    %1907 = vmatprep.subr.mxu0 %v1638
    %1908 = vmatpush2.msra.mxu0 %v1637
    %1909 = vmatprep.subr.mxu0 %v1634
    %1910 = vmatpush2.msra.mxu0 %v1633
    %1911 = vmatprep.mubr.f32.mxu0 %v1562
    %1912 = vmatmul.mubr.f32.gmra.mxu0 %v1561
    %v1913 = vpop.f32.mrf.mxu0
    %v1914 = vadd.f32 %v1830, %v1913
    %v1915 = vpop.f32.mrf.mxu0
    %v1916 = vadd.f32 %v1834, %v1915
    %1917 = vmatprep.mubr.f32.mxu0 %v1566
    %1918 = vmatmul.mubr.f32.gmra.mxu0 %v1565
    %v1919 = vpop.f32.mrf.mxu0
    %v1920 = vadd.f32 %v1830, %v1919
    %v1921 = vpop.f32.mrf.mxu0
    %v1922 = vadd.f32 %v1834, %v1921
    %1923 = vdwg.mxu0
    %1924 = vmatprep.subr.mxu0 %v1758
    %1925 = vmatpush1.msra.mxu0 %v1757
    %1926 = vmatprep.subr.mxu0 %v1754
    %1927 = vmatpush1.msra.mxu0 %v1753
    %1928 = vmatprep.subr.mxu0 %v1750
    %1929 = vmatpush1.msra.mxu0 %v1749
    %1930 = vmatprep.subr.mxu0 %v1746
    %1931 = vmatpush1.msra.mxu0 %v1745
    %1932 = vmatprep.subr.mxu0 %v1742
    %1933 = vmatpush1.msra.mxu0 %v1741
    %1934 = vmatprep.subr.mxu0 %v1738
    %1935 = vmatpush1.msra.mxu0 %v1737
    %1936 = vmatprep.subr.mxu0 %v1734
    %1937 = vmatpush1.msra.mxu0 %v1733
    %1938 = vmatprep.subr.mxu0 %v1730
    %1939 = vmatpush1.msra.mxu0 %v1729
    %1940 = vmatprep.subr.mxu0 %v1726
    %1941 = vmatpush1.msra.mxu0 %v1725
    %1942 = vmatprep.subr.mxu0 %v1722
    %1943 = vmatpush1.msra.mxu0 %v1721
    %1944 = vmatprep.subr.mxu0 %v1718
    %1945 = vmatpush1.msra.mxu0 %v1717
    %1946 = vmatprep.subr.mxu0 %v1714
    %1947 = vmatpush1.msra.mxu0 %v1713
    %1948 = vmatprep.subr.mxu0 %v1710
    %1949 = vmatpush1.msra.mxu0 %v1709
    %1950 = vmatprep.subr.mxu0 %v1706
    %1951 = vmatpush1.msra.mxu0 %v1705
    %1952 = vmatprep.subr.mxu0 %v1702
    %1953 = vmatpush1.msra.mxu0 %v1701
    %1954 = vmatprep.subr.mxu0 %v1698
    %1955 = vmatpush1.msra.mxu0 %v1697
    %1956 = vmatprep.subr.mxu0 %v1822
    %1957 = vmatpush2.msra.mxu0 %v1821
    %1958 = vmatprep.subr.mxu0 %v1818
    %1959 = vmatpush2.msra.mxu0 %v1817
    %1960 = vmatprep.subr.mxu0 %v1814
    %1961 = vmatpush2.msra.mxu0 %v1813
    %1962 = vmatprep.subr.mxu0 %v1810
    %1963 = vmatpush2.msra.mxu0 %v1809
    %1964 = vmatprep.subr.mxu0 %v1806
    %1965 = vmatpush2.msra.mxu0 %v1805
    %1966 = vmatprep.subr.mxu0 %v1802
    %1967 = vmatpush2.msra.mxu0 %v1801
    %1968 = vmatprep.subr.mxu0 %v1798
    %1969 = vmatpush2.msra.mxu0 %v1797
    %1970 = vmatprep.subr.mxu0 %v1794
    %1971 = vmatpush2.msra.mxu0 %v1793
    %1972 = vmatprep.subr.mxu0 %v1790
    %1973 = vmatpush2.msra.mxu0 %v1789
    %1974 = vmatprep.subr.mxu0 %v1786
    %1975 = vmatpush2.msra.mxu0 %v1785
    %1976 = vmatprep.subr.mxu0 %v1782
    %1977 = vmatpush2.msra.mxu0 %v1781
    %1978 = vmatprep.subr.mxu0 %v1778
    %1979 = vmatpush2.msra.mxu0 %v1777
    %1980 = vmatprep.subr.mxu0 %v1774
    %1981 = vmatpush2.msra.mxu0 %v1773
    %1982 = vmatprep.subr.mxu0 %v1770
    %1983 = vmatpush2.msra.mxu0 %v1769
    %1984 = vmatprep.subr.mxu0 %v1766
    %1985 = vmatpush2.msra.mxu0 %v1765
    %1986 = vmatprep.subr.mxu0 %v1762
    %1987 = vmatpush2.msra.mxu0 %v1761
    %1988 = vmatprep.mubr.f32.mxu0 %v1564
    %1989 = vmatmul.mubr.f32.gmra.mxu0 %v1563
    %v1990 = vpop.f32.mrf.mxu0
    %v1991 = vadd.f32 %v1914, %v1990
    %v1992 = vpop.f32.mrf.mxu0
    %v1993 = vadd.f32 %v1916, %v1992
    %1994 = vmatprep.mubr.f32.mxu0 %v1568
    %1995 = vmatmul.mubr.f32.gmra.mxu0 %v1567
    %v1996 = vpop.f32.mrf.mxu0
    %v1997 = vadd.f32 %v1920, %v1996
    %v1998 = vpop.f32.mrf.mxu0
    %v1999 = vadd.f32 %v1922, %v1998
    %2000 = vdwg.mxu0
    %2001 = vmatprep.subr.mxu0 %v1632
    %2002 = vmatpush1.msra.mxu0 %v1631
    %2003 = vmatprep.subr.mxu0 %v1628
    %2004 = vmatpush1.msra.mxu0 %v1627
    %2005 = vmatprep.subr.mxu0 %v1624
    %2006 = vmatpush1.msra.mxu0 %v1623
    %2007 = vmatprep.subr.mxu0 %v1620
    %2008 = vmatpush1.msra.mxu0 %v1619
    %2009 = vmatprep.subr.mxu0 %v1616
    %2010 = vmatpush1.msra.mxu0 %v1615
    %2011 = vmatprep.subr.mxu0 %v1612
    %2012 = vmatpush1.msra.mxu0 %v1611
    %2013 = vmatprep.subr.mxu0 %v1608
    %2014 = vmatpush1.msra.mxu0 %v1607
    %2015 = vmatprep.subr.mxu0 %v1604
    %2016 = vmatpush1.msra.mxu0 %v1603
    %2017 = vmatprep.subr.mxu0 %v1600
    %2018 = vmatpush1.msra.mxu0 %v1599
    %2019 = vmatprep.subr.mxu0 %v1596
    %2020 = vmatpush1.msra.mxu0 %v1595
    %2021 = vmatprep.subr.mxu0 %v1592
    %2022 = vmatpush1.msra.mxu0 %v1591
    %2023 = vmatprep.subr.mxu0 %v1588
    %2024 = vmatpush1.msra.mxu0 %v1587
    %2025 = vmatprep.subr.mxu0 %v1584
    %2026 = vmatpush1.msra.mxu0 %v1583
    %2027 = vmatprep.subr.mxu0 %v1580
    %2028 = vmatpush1.msra.mxu0 %v1579
    %2029 = vmatprep.subr.mxu0 %v1576
    %2030 = vmatpush1.msra.mxu0 %v1575
    %2031 = vmatprep.subr.mxu0 %v1572
    %2032 = vmatpush1.msra.mxu0 %v1571
    %2033 = vmatprep.subr.mxu0 %v1696
    %2034 = vmatpush2.msra.mxu0 %v1695
    %2035 = vmatprep.subr.mxu0 %v1692
    %2036 = vmatpush2.msra.mxu0 %v1691
    %2037 = vmatprep.subr.mxu0 %v1688
    %2038 = vmatpush2.msra.mxu0 %v1687
    %2039 = vmatprep.subr.mxu0 %v1684
    %2040 = vmatpush2.msra.mxu0 %v1683
    %2041 = vmatprep.subr.mxu0 %v1680
    %2042 = vmatpush2.msra.mxu0 %v1679
    %2043 = vmatprep.subr.mxu0 %v1676
    %2044 = vmatpush2.msra.mxu0 %v1675
    %2045 = vmatprep.subr.mxu0 %v1672
    %2046 = vmatpush2.msra.mxu0 %v1671
    %2047 = vmatprep.subr.mxu0 %v1668
    %2048 = vmatpush2.msra.mxu0 %v1667
    %2049 = vmatprep.subr.mxu0 %v1664
    %2050 = vmatpush2.msra.mxu0 %v1663
    %2051 = vmatprep.subr.mxu0 %v1660
    %2052 = vmatpush2.msra.mxu0 %v1659
    %2053 = vmatprep.subr.mxu0 %v1656
    %2054 = vmatpush2.msra.mxu0 %v1655
    %2055 = vmatprep.subr.mxu0 %v1652
    %2056 = vmatpush2.msra.mxu0 %v1651
    %2057 = vmatprep.subr.mxu0 %v1648
    %2058 = vmatpush2.msra.mxu0 %v1647
    %2059 = vmatprep.subr.mxu0 %v1644
    %2060 = vmatpush2.msra.mxu0 %v1643
    %2061 = vmatprep.subr.mxu0 %v1640
    %2062 = vmatpush2.msra.mxu0 %v1639
    %2063 = vmatprep.subr.mxu0 %v1636
    %2064 = vmatpush2.msra.mxu0 %v1635
    %2065 = vmatprep.mubr.f32.mxu0 %v1562
    %2066 = vmatmul.mubr.f32.gmra.mxu0 %v1561
    %v2067 = vpop.f32.mrf.mxu0
    %v2068 = vadd.f32 %v1838, %v2067
    %v2069 = vpop.f32.mrf.mxu0
    %v2070 = vadd.f32 %v1842, %v2069
    %2071 = vmatprep.mubr.f32.mxu0 %v1566
    %2072 = vmatmul.mubr.f32.gmra.mxu0 %v1565
    %v2073 = vpop.f32.mrf.mxu0
    %v2074 = vadd.f32 %v1838, %v2073
    %v2075 = vpop.f32.mrf.mxu0
    %v2076 = vadd.f32 %v1842, %v2075
    %2077 = vdwg.mxu0
    %2078 = vmatprep.subr.mxu0 %v1760
    %2079 = vmatpush1.msra.mxu0 %v1759
    %2080 = vmatprep.subr.mxu0 %v1756
    %2081 = vmatpush1.msra.mxu0 %v1755
    %2082 = vmatprep.subr.mxu0 %v1752
    %2083 = vmatpush1.msra.mxu0 %v1751
    %2084 = vmatprep.subr.mxu0 %v1748
    %2085 = vmatpush1.msra.mxu0 %v1747
    %2086 = vmatprep.subr.mxu0 %v1744
    %2087 = vmatpush1.msra.mxu0 %v1743
    %2088 = vmatprep.subr.mxu0 %v1740
    %2089 = vmatpush1.msra.mxu0 %v1739
    %2090 = vmatprep.subr.mxu0 %v1736
    %2091 = vmatpush1.msra.mxu0 %v1735
    %2092 = vmatprep.subr.mxu0 %v1732
    %2093 = vmatpush1.msra.mxu0 %v1731
    %2094 = vmatprep.subr.mxu0 %v1728
    %2095 = vmatpush1.msra.mxu0 %v1727
    %2096 = vmatprep.subr.mxu0 %v1724
    %2097 = vmatpush1.msra.mxu0 %v1723
    %2098 = vmatprep.subr.mxu0 %v1720
    %2099 = vmatpush1.msra.mxu0 %v1719
    %2100 = vmatprep.subr.mxu0 %v1716
    %2101 = vmatpush1.msra.mxu0 %v1715
    %2102 = vmatprep.subr.mxu0 %v1712
    %2103 = vmatpush1.msra.mxu0 %v1711
    %2104 = vmatprep.subr.mxu0 %v1708
    %2105 = vmatpush1.msra.mxu0 %v1707
    %2106 = vmatprep.subr.mxu0 %v1704
    %2107 = vmatpush1.msra.mxu0 %v1703
    %2108 = vmatprep.subr.mxu0 %v1700
    %2109 = vmatpush1.msra.mxu0 %v1699
    %2110 = vmatprep.subr.mxu0 %v1824
    %2111 = vmatpush2.msra.mxu0 %v1823
    %2112 = vmatprep.subr.mxu0 %v1820
    %2113 = vmatpush2.msra.mxu0 %v1819
    %2114 = vmatprep.subr.mxu0 %v1816
    %2115 = vmatpush2.msra.mxu0 %v1815
    %2116 = vmatprep.subr.mxu0 %v1812
    %2117 = vmatpush2.msra.mxu0 %v1811
    %2118 = vmatprep.subr.mxu0 %v1808
    %2119 = vmatpush2.msra.mxu0 %v1807
    %2120 = vmatprep.subr.mxu0 %v1804
    %2121 = vmatpush2.msra.mxu0 %v1803
    %2122 = vmatprep.subr.mxu0 %v1800
    %2123 = vmatpush2.msra.mxu0 %v1799
    %2124 = vmatprep.subr.mxu0 %v1796
    %2125 = vmatpush2.msra.mxu0 %v1795
    %2126 = vmatprep.subr.mxu0 %v1792
    %2127 = vmatpush2.msra.mxu0 %v1791
    %2128 = vmatprep.subr.mxu0 %v1788
    %2129 = vmatpush2.msra.mxu0 %v1787
    %2130 = vmatprep.subr.mxu0 %v1784
    %2131 = vmatpush2.msra.mxu0 %v1783
    %2132 = vmatprep.subr.mxu0 %v1780
    %2133 = vmatpush2.msra.mxu0 %v1779
    %2134 = vmatprep.subr.mxu0 %v1776
    %2135 = vmatpush2.msra.mxu0 %v1775
    %2136 = vmatprep.subr.mxu0 %v1772
    %2137 = vmatpush2.msra.mxu0 %v1771
    %2138 = vmatprep.subr.mxu0 %v1768
    %2139 = vmatpush2.msra.mxu0 %v1767
    %2140 = vmatprep.subr.mxu0 %v1764
    %2141 = vmatpush2.msra.mxu0 %v1763
    %2142 = vmatprep.mubr.f32.mxu0 %v1564
    %2143 = vmatmul.mubr.f32.gmra.mxu0 %v1563
    %v2144 = vpop.f32.mrf.mxu0
    %v2145 = vadd.f32 %v2068, %v2144
    %v2146 = vpop.f32.mrf.mxu0
    %v2147 = vadd.f32 %v2070, %v2146
    %2148 = vmatprep.mubr.f32.mxu0 %v1568
    %2149 = vmatmul.mubr.f32.gmra.mxu0 %v1567
    %v2150 = vpop.f32.mrf.mxu0
    %v2151 = vadd.f32 %v2074, %v2150
    %v2152 = vpop.f32.mrf.mxu0
    %v2153 = vadd.f32 %v2076, %v2152
    %2154 = vdwg.mxu0
    %v2155 = vld [vmem:[#allocation16] sm:$0xf]
    %v2156 = vld [vmem:[#allocation17] sm:$0xf]
    %2157 = vmatprep.subr.mxu0 0.0
    %2158 = vmatpush1.msra.mxu0 %v530
    %2159 = vmatprep.subr.mxu0 0.0
    %2160 = vmatpush1.msra.mxu0 %v529
    %2161 = vmatprep.subr.mxu0 0.0
    %2162 = vmatpush1.msra.mxu0 %v528
    %2163 = vmatprep.subr.mxu0 0.0
    %2164 = vmatpush1.msra.mxu0 %v527
    %2165 = vmatprep.subr.mxu0 0.0
    %2166 = vmatpush1.msra.mxu0 %v526
    %2167 = vmatprep.subr.mxu0 0.0
    %2168 = vmatpush1.msra.mxu0 %v525
    %2169 = vmatprep.subr.mxu0 0.0
    %2170 = vmatpush1.msra.mxu0 %v524
    %2171 = vmatprep.subr.mxu0 0.0
    %2172 = vmatpush1.msra.mxu0 %v523
    %2173 = vmatprep.subr.mxu0 0.0
    %2174 = vmatpush1.msra.mxu0 %v522
    %2175 = vmatprep.subr.mxu0 0.0
    %2176 = vmatpush1.msra.mxu0 %v521
    %2177 = vmatprep.subr.mxu0 0.0
    %2178 = vmatpush1.msra.mxu0 %v520
    %2179 = vmatprep.subr.mxu0 0.0
    %2180 = vmatpush1.msra.mxu0 %v519
    %2181 = vmatprep.subr.mxu0 0.0
    %2182 = vmatpush1.msra.mxu0 %v518
    %2183 = vmatprep.subr.mxu0 0.0
    %2184 = vmatpush1.msra.mxu0 %v517
    %2185 = vmatprep.subr.mxu0 0.0
    %2186 = vmatpush1.msra.mxu0 %v516
    %2187 = vmatprep.subr.mxu0 0.0
    %2188 = vmatpush1.msra.mxu0 %v515
    %2189 = vmatprep.subr.mxu0 0.0
    %2190 = vmatpush2.msra.mxu0 %v546
    %2191 = vmatprep.subr.mxu0 0.0
    %2192 = vmatpush2.msra.mxu0 %v545
    %2193 = vmatprep.subr.mxu0 0.0
    %2194 = vmatpush2.msra.mxu0 %v544
    %2195 = vmatprep.subr.mxu0 0.0
    %2196 = vmatpush2.msra.mxu0 %v543
    %2197 = vmatprep.subr.mxu0 0.0
    %2198 = vmatpush2.msra.mxu0 %v542
    %2199 = vmatprep.subr.mxu0 0.0
    %2200 = vmatpush2.msra.mxu0 %v541
    %2201 = vmatprep.subr.mxu0 0.0
    %2202 = vmatpush2.msra.mxu0 %v540
    %2203 = vmatprep.subr.mxu0 0.0
    %2204 = vmatpush2.msra.mxu0 %v539
    %2205 = vmatprep.subr.mxu0 0.0
    %2206 = vmatpush2.msra.mxu0 %v538
    %2207 = vmatprep.subr.mxu0 0.0
    %2208 = vmatpush2.msra.mxu0 %v537
    %2209 = vmatprep.subr.mxu0 0.0
    %2210 = vmatpush2.msra.mxu0 %v536
    %2211 = vmatprep.subr.mxu0 0.0
    %2212 = vmatpush2.msra.mxu0 %v535
    %2213 = vmatprep.subr.mxu0 0.0
    %2214 = vmatpush2.msra.mxu0 %v534
    %2215 = vmatprep.subr.mxu0 0.0
    %2216 = vmatpush2.msra.mxu0 %v533
    %2217 = vmatprep.subr.mxu0 0.0
    %2218 = vmatpush2.msra.mxu0 %v532
    %2219 = vmatprep.subr.mxu0 0.0
    %2220 = vmatpush2.msra.mxu0 %v531
    %2221 = vmatprep.mubr.f32.mxu0 %v1993
    %2222 = vmatmul.mubr.f32.gmra.mxu0 %v1991
    %v2223 = vpop.f32.mrf.mxu0
    %v2224 = vadd.f32 0.0, %v2223
    %v2225 = vpop.f32.mrf.mxu0
    %2226 = vmatprep.mubr.f32.mxu0 %v1999
    %2227 = vmatmul.mubr.f32.gmra.mxu0 %v1997
    %v2228 = vpop.f32.mrf.mxu0
    %v2229 = vadd.f32 0.0, %v2228
    %v2230 = vpop.f32.mrf.mxu0
    %2231 = vdwg.mxu0
    %2232 = vmatprep.subr.mxu0 0.0
    %2233 = vmatpush1.msra.mxu0 %v562
    %2234 = vmatprep.subr.mxu0 0.0
    %2235 = vmatpush1.msra.mxu0 %v561
    %2236 = vmatprep.subr.mxu0 0.0
    %2237 = vmatpush1.msra.mxu0 %v560
    %2238 = vmatprep.subr.mxu0 0.0
    %2239 = vmatpush1.msra.mxu0 %v559
    %2240 = vmatprep.subr.mxu0 0.0
    %2241 = vmatpush1.msra.mxu0 %v558
    %2242 = vmatprep.subr.mxu0 0.0
    %2243 = vmatpush1.msra.mxu0 %v557
    %2244 = vmatprep.subr.mxu0 0.0
    %2245 = vmatpush1.msra.mxu0 %v556
    %2246 = vmatprep.subr.mxu0 0.0
    %2247 = vmatpush1.msra.mxu0 %v555
    %2248 = vmatprep.subr.mxu0 0.0
    %2249 = vmatpush1.msra.mxu0 %v554
    %2250 = vmatprep.subr.mxu0 0.0
    %2251 = vmatpush1.msra.mxu0 %v553
    %2252 = vmatprep.subr.mxu0 0.0
    %2253 = vmatpush1.msra.mxu0 %v552
    %2254 = vmatprep.subr.mxu0 0.0
    %2255 = vmatpush1.msra.mxu0 %v551
    %2256 = vmatprep.subr.mxu0 0.0
    %2257 = vmatpush1.msra.mxu0 %v550
    %2258 = vmatprep.subr.mxu0 0.0
    %2259 = vmatpush1.msra.mxu0 %v549
    %2260 = vmatprep.subr.mxu0 0.0
    %2261 = vmatpush1.msra.mxu0 %v548
    %2262 = vmatprep.subr.mxu0 0.0
    %2263 = vmatpush1.msra.mxu0 %v547
    %2264 = vmatprep.subr.mxu0 0.0
    %2265 = vmatpush2.msra.mxu0 %v578
    %2266 = vmatprep.subr.mxu0 0.0
    %2267 = vmatpush2.msra.mxu0 %v577
    %2268 = vmatprep.subr.mxu0 0.0
    %2269 = vmatpush2.msra.mxu0 %v576
    %2270 = vmatprep.subr.mxu0 0.0
    %2271 = vmatpush2.msra.mxu0 %v575
    %2272 = vmatprep.subr.mxu0 0.0
    %2273 = vmatpush2.msra.mxu0 %v574
    %2274 = vmatprep.subr.mxu0 0.0
    %2275 = vmatpush2.msra.mxu0 %v573
    %2276 = vmatprep.subr.mxu0 0.0
    %2277 = vmatpush2.msra.mxu0 %v572
    %2278 = vmatprep.subr.mxu0 0.0
    %2279 = vmatpush2.msra.mxu0 %v571
    %2280 = vmatprep.subr.mxu0 0.0
    %2281 = vmatpush2.msra.mxu0 %v570
    %2282 = vmatprep.subr.mxu0 0.0
    %2283 = vmatpush2.msra.mxu0 %v569
    %2284 = vmatprep.subr.mxu0 0.0
    %2285 = vmatpush2.msra.mxu0 %v568
    %2286 = vmatprep.subr.mxu0 0.0
    %2287 = vmatpush2.msra.mxu0 %v567
    %2288 = vmatprep.subr.mxu0 0.0
    %2289 = vmatpush2.msra.mxu0 %v566
    %2290 = vmatprep.subr.mxu0 0.0
    %2291 = vmatpush2.msra.mxu0 %v565
    %2292 = vmatprep.subr.mxu0 0.0
    %2293 = vmatpush2.msra.mxu0 %v564
    %2294 = vmatprep.subr.mxu0 0.0
    %2295 = vmatpush2.msra.mxu0 %v563
    %2296 = vmatprep.mubr.f32.mxu0 %v2147
    %2297 = vmatmul.mubr.f32.gmra.mxu0 %v2145
    %v2298 = vpop.f32.mrf.mxu0
    %v2299 = vadd.f32 %v2224, %v2298
    %v2300 = vpop.f32.mrf.mxu0
    %2301 = vmatprep.mubr.f32.mxu0 %v2153
    %2302 = vmatmul.mubr.f32.gmra.mxu0 %v2151
    %v2303 = vpop.f32.mrf.mxu0
    %v2304 = vadd.f32 %v2229, %v2303
    %v2305 = vpop.f32.mrf.mxu0
    %2306 = vdwg.mxu0
    %v2308 = vsel %vm968, %v2299, 0
    %v2311 = vsel %vm968, %v2304, 0
    %2313 = vmatprep.subr.mxu0 0.0
    %2314 = vmatpush1.msra.mxu0 0.0
    %2315 = vmatprep.subr.mxu0 0.0
    %2316 = vmatpush1.msra.mxu0 0.0
    %2317 = vmatprep.subr.mxu0 0.0
    %2318 = vmatpush1.msra.mxu0 0.0
    %2319 = vmatprep.subr.mxu0 0.0
    %2320 = vmatpush1.msra.mxu0 0.0
    %2321 = vmatprep.subr.mxu0 0.0
    %2322 = vmatpush1.msra.mxu0 0.0
    %2323 = vmatprep.subr.mxu0 0.0
    %2324 = vmatpush1.msra.mxu0 0.0
    %2325 = vmatprep.subr.mxu0 0.0
    %2326 = vmatpush1.msra.mxu0 0.0
    %2327 = vmatprep.subr.mxu0 0.0
    %2328 = vmatpush1.msra.mxu0 0.0
    %2329 = vmatprep.subr.mxu0 0.0
    %2330 = vmatpush1.msra.mxu0 0.0
    %2331 = vmatprep.subr.mxu0 0.0
    %2332 = vmatpush1.msra.mxu0 0.0
    %2333 = vmatprep.subr.mxu0 0.0
    %2334 = vmatpush1.msra.mxu0 0.0
    %2335 = vmatprep.subr.mxu0 0.0
    %2336 = vmatpush1.msra.mxu0 0.0
    %2337 = vmatprep.subr.mxu0 0.0
    %2338 = vmatpush1.msra.mxu0 0.0
    %2339 = vmatprep.subr.mxu0 0.0
    %2340 = vmatpush1.msra.mxu0 0.0
    %2341 = vmatprep.subr.mxu0 0.0
    %2342 = vmatpush1.msra.mxu0 0.0
    %2343 = vmatprep.subr.mxu0 %v580
    %2344 = vmatpush1.msra.mxu0 %v579
    %2345 = vmatprep.subr.mxu0 0.0
    %2346 = vmatpush2.msra.mxu0 0.0
    %2347 = vmatprep.subr.mxu0 0.0
    %2348 = vmatpush2.msra.mxu0 0.0
    %2349 = vmatprep.subr.mxu0 0.0
    %2350 = vmatpush2.msra.mxu0 0.0
    %2351 = vmatprep.subr.mxu0 0.0
    %2352 = vmatpush2.msra.mxu0 0.0
    %2353 = vmatprep.subr.mxu0 0.0
    %2354 = vmatpush2.msra.mxu0 0.0
    %2355 = vmatprep.subr.mxu0 0.0
    %2356 = vmatpush2.msra.mxu0 0.0
    %2357 = vmatprep.subr.mxu0 0.0
    %2358 = vmatpush2.msra.mxu0 0.0
    %2359 = vmatprep.subr.mxu0 0.0
    %2360 = vmatpush2.msra.mxu0 0.0
    %2361 = vmatprep.subr.mxu0 0.0
    %2362 = vmatpush2.msra.mxu0 0.0
    %2363 = vmatprep.subr.mxu0 0.0
    %2364 = vmatpush2.msra.mxu0 0.0
    %2365 = vmatprep.subr.mxu0 0.0
    %2366 = vmatpush2.msra.mxu0 0.0
    %2367 = vmatprep.subr.mxu0 0.0
    %2368 = vmatpush2.msra.mxu0 0.0
    %2369 = vmatprep.subr.mxu0 0.0
    %2370 = vmatpush2.msra.mxu0 0.0
    %2371 = vmatprep.subr.mxu0 0.0
    %2372 = vmatpush2.msra.mxu0 0.0
    %2373 = vmatprep.subr.mxu0 0.0
    %2374 = vmatpush2.msra.mxu0 0.0
    %2375 = vmatprep.subr.mxu0 0.0
    %2376 = vmatpush2.msra.mxu0 0.0
    %2377 = vmatprep.mubr.f32.mxu0 0.0
    %2378 = vmatmul.mubr.f32.gmra.mxu0 %v2308
    %v2379 = vpop.f32.mrf.mxu0
    %v2380 = vadd.f32 0.0, %v2379
    %v2381 = vpop.f32.mrf.mxu0
    %v2382 = vadd.f32 0.0, %v2381
    %2383 = vmatprep.mubr.f32.mxu0 0.0
    %2384 = vmatmul.mubr.f32.gmra.mxu0 %v2311
    %v2385 = vpop.f32.mrf.mxu0
    %v2386 = vadd.f32 0.0, %v2385
    %v2387 = vpop.f32.mrf.mxu0
    %v2388 = vadd.f32 0.0, %v2387
    %2389 = vdwg.mxu0
    %2390 = vmatprep.subr.mxu0 0.0
    %2391 = vmatpush1.msra.mxu0 0.0
    %2392 = vmatprep.subr.mxu0 0.0
    %2393 = vmatpush1.msra.mxu0 0.0
    %2394 = vmatprep.subr.mxu0 0.0
    %2395 = vmatpush1.msra.mxu0 0.0
    %2396 = vmatprep.subr.mxu0 0.0
    %2397 = vmatpush1.msra.mxu0 0.0
    %2398 = vmatprep.subr.mxu0 0.0
    %2399 = vmatpush1.msra.mxu0 0.0
    %2400 = vmatprep.subr.mxu0 0.0
    %2401 = vmatpush1.msra.mxu0 0.0
    %2402 = vmatprep.subr.mxu0 0.0
    %2403 = vmatpush1.msra.mxu0 0.0
    %2404 = vmatprep.subr.mxu0 0.0
    %2405 = vmatpush1.msra.mxu0 0.0
    %2406 = vmatprep.subr.mxu0 0.0
    %2407 = vmatpush1.msra.mxu0 0.0
    %2408 = vmatprep.subr.mxu0 0.0
    %2409 = vmatpush1.msra.mxu0 0.0
    %2410 = vmatprep.subr.mxu0 0.0
    %2411 = vmatpush1.msra.mxu0 0.0
    %2412 = vmatprep.subr.mxu0 0.0
    %2413 = vmatpush1.msra.mxu0 0.0
    %2414 = vmatprep.subr.mxu0 0.0
    %2415 = vmatpush1.msra.mxu0 0.0
    %2416 = vmatprep.subr.mxu0 0.0
    %2417 = vmatpush1.msra.mxu0 0.0
    %2418 = vmatprep.subr.mxu0 0.0
    %2419 = vmatpush1.msra.mxu0 0.0
    %2420 = vmatprep.subr.mxu0 %v582
    %2421 = vmatpush1.msra.mxu0 %v581
    %2422 = vmatprep.subr.mxu0 0.0
    %2423 = vmatpush2.msra.mxu0 0.0
    %2424 = vmatprep.subr.mxu0 0.0
    %2425 = vmatpush2.msra.mxu0 0.0
    %2426 = vmatprep.subr.mxu0 0.0
    %2427 = vmatpush2.msra.mxu0 0.0
    %2428 = vmatprep.subr.mxu0 0.0
    %2429 = vmatpush2.msra.mxu0 0.0
    %2430 = vmatprep.subr.mxu0 0.0
    %2431 = vmatpush2.msra.mxu0 0.0
    %2432 = vmatprep.subr.mxu0 0.0
    %2433 = vmatpush2.msra.mxu0 0.0
    %2434 = vmatprep.subr.mxu0 0.0
    %2435 = vmatpush2.msra.mxu0 0.0
    %2436 = vmatprep.subr.mxu0 0.0
    %2437 = vmatpush2.msra.mxu0 0.0
    %2438 = vmatprep.subr.mxu0 0.0
    %2439 = vmatpush2.msra.mxu0 0.0
    %2440 = vmatprep.subr.mxu0 0.0
    %2441 = vmatpush2.msra.mxu0 0.0
    %2442 = vmatprep.subr.mxu0 0.0
    %2443 = vmatpush2.msra.mxu0 0.0
    %2444 = vmatprep.subr.mxu0 0.0
    %2445 = vmatpush2.msra.mxu0 0.0
    %2446 = vmatprep.subr.mxu0 0.0
    %2447 = vmatpush2.msra.mxu0 0.0
    %2448 = vmatprep.subr.mxu0 0.0
    %2449 = vmatpush2.msra.mxu0 0.0
    %2450 = vmatprep.subr.mxu0 0.0
    %2451 = vmatpush2.msra.mxu0 0.0
    %2452 = vmatprep.subr.mxu0 0.0
    %2453 = vmatpush2.msra.mxu0 0.0
    %2454 = vmatprep.mubr.f32.mxu0 0.0
    %2455 = vmatmul.mubr.f32.gmra.mxu0 %v2308
    %v2456 = vpop.f32.mrf.mxu0
    %v2457 = vadd.f32 0.0, %v2456
    %v2458 = vpop.f32.mrf.mxu0
    %v2459 = vadd.f32 0.0, %v2458
    %2460 = vmatprep.mubr.f32.mxu0 0.0
    %2461 = vmatmul.mubr.f32.gmra.mxu0 %v2311
    %v2462 = vpop.f32.mrf.mxu0
    %v2463 = vadd.f32 0.0, %v2462
    %v2464 = vpop.f32.mrf.mxu0
    %v2465 = vadd.f32 0.0, %v2464
    %2466 = vdwg.mxu0
    %v2467 = vsub.f32 %v1991, %v2380
    %v2468 = vsub.f32 %v1993, %v2382
    %v2469 = vsub.f32 %v2145, %v2457
    %v2470 = vsub.f32 %v2147, %v2459
    %v2471 = vsub.f32 %v1997, %v2386
    %v2472 = vsub.f32 %v1999, %v2388
    %v2473 = vsub.f32 %v2151, %v2463
    %v2474 = vsub.f32 %v2153, %v2465
    %v2475 = vmul.f32 %v2467, %v2467
    %v2476 = vmul.f32 %v2468, %v2468
    %v2477 = vmul.f32 %v2469, %v2469
    %v2478 = vmul.f32 %v2470, %v2470
    %v2479 = vmul.f32 %v2471, %v2471
    %v2480 = vmul.f32 %v2472, %v2472
    %v2481 = vmul.f32 %v2473, %v2473
    %v2482 = vmul.f32 %v2474, %v2474
    %2483 = vmatprep.subr.mxu0 0.0
    %2484 = vmatpush1.msra.mxu0 %v530
    %2485 = vmatprep.subr.mxu0 0.0
    %2486 = vmatpush1.msra.mxu0 %v529
    %2487 = vmatprep.subr.mxu0 0.0
    %2488 = vmatpush1.msra.mxu0 %v528
    %2489 = vmatprep.subr.mxu0 0.0
    %2490 = vmatpush1.msra.mxu0 %v527
    %2491 = vmatprep.subr.mxu0 0.0
    %2492 = vmatpush1.msra.mxu0 %v526
    %2493 = vmatprep.subr.mxu0 0.0
    %2494 = vmatpush1.msra.mxu0 %v525
    %2495 = vmatprep.subr.mxu0 0.0
    %2496 = vmatpush1.msra.mxu0 %v524
    %2497 = vmatprep.subr.mxu0 0.0
    %2498 = vmatpush1.msra.mxu0 %v523
    %2499 = vmatprep.subr.mxu0 0.0
    %2500 = vmatpush1.msra.mxu0 %v522
    %2501 = vmatprep.subr.mxu0 0.0
    %2502 = vmatpush1.msra.mxu0 %v521
    %2503 = vmatprep.subr.mxu0 0.0
    %2504 = vmatpush1.msra.mxu0 %v520
    %2505 = vmatprep.subr.mxu0 0.0
    %2506 = vmatpush1.msra.mxu0 %v519
    %2507 = vmatprep.subr.mxu0 0.0
    %2508 = vmatpush1.msra.mxu0 %v518
    %2509 = vmatprep.subr.mxu0 0.0
    %2510 = vmatpush1.msra.mxu0 %v517
    %2511 = vmatprep.subr.mxu0 0.0
    %2512 = vmatpush1.msra.mxu0 %v516
    %2513 = vmatprep.subr.mxu0 0.0
    %2514 = vmatpush1.msra.mxu0 %v515
    %2515 = vmatprep.subr.mxu0 0.0
    %2516 = vmatpush2.msra.mxu0 %v546
    %2517 = vmatprep.subr.mxu0 0.0
    %2518 = vmatpush2.msra.mxu0 %v545
    %2519 = vmatprep.subr.mxu0 0.0
    %2520 = vmatpush2.msra.mxu0 %v544
    %2521 = vmatprep.subr.mxu0 0.0
    %2522 = vmatpush2.msra.mxu0 %v543
    %2523 = vmatprep.subr.mxu0 0.0
    %2524 = vmatpush2.msra.mxu0 %v542
    %2525 = vmatprep.subr.mxu0 0.0
    %2526 = vmatpush2.msra.mxu0 %v541
    %2527 = vmatprep.subr.mxu0 0.0
    %2528 = vmatpush2.msra.mxu0 %v540
    %2529 = vmatprep.subr.mxu0 0.0
    %2530 = vmatpush2.msra.mxu0 %v539
    %2531 = vmatprep.subr.mxu0 0.0
    %2532 = vmatpush2.msra.mxu0 %v538
    %2533 = vmatprep.subr.mxu0 0.0
    %2534 = vmatpush2.msra.mxu0 %v537
    %2535 = vmatprep.subr.mxu0 0.0
    %2536 = vmatpush2.msra.mxu0 %v536
    %2537 = vmatprep.subr.mxu0 0.0
    %2538 = vmatpush2.msra.mxu0 %v535
    %2539 = vmatprep.subr.mxu0 0.0
    %2540 = vmatpush2.msra.mxu0 %v534
    %2541 = vmatprep.subr.mxu0 0.0
    %2542 = vmatpush2.msra.mxu0 %v533
    %2543 = vmatprep.subr.mxu0 0.0
    %2544 = vmatpush2.msra.mxu0 %v532
    %2545 = vmatprep.subr.mxu0 0.0
    %2546 = vmatpush2.msra.mxu0 %v531
    %2547 = vmatprep.mubr.f32.mxu0 %v2476
    %2548 = vmatmul.mubr.f32.gmra.mxu0 %v2475
    %v2549 = vpop.f32.mrf.mxu0
    %v2550 = vadd.f32 0.0, %v2549
    %v2551 = vpop.f32.mrf.mxu0
    %2552 = vmatprep.mubr.f32.mxu0 %v2480
    %2553 = vmatmul.mubr.f32.gmra.mxu0 %v2479
    %v2554 = vpop.f32.mrf.mxu0
    %v2555 = vadd.f32 0.0, %v2554
    %v2556 = vpop.f32.mrf.mxu0
    %2557 = vdwg.mxu0
    %2558 = vmatprep.subr.mxu0 0.0
    %2559 = vmatpush1.msra.mxu0 %v562
    %2560 = vmatprep.subr.mxu0 0.0
    %2561 = vmatpush1.msra.mxu0 %v561
    %2562 = vmatprep.subr.mxu0 0.0
    %2563 = vmatpush1.msra.mxu0 %v560
    %2564 = vmatprep.subr.mxu0 0.0
    %2565 = vmatpush1.msra.mxu0 %v559
    %2566 = vmatprep.subr.mxu0 0.0
    %2567 = vmatpush1.msra.mxu0 %v558
    %2568 = vmatprep.subr.mxu0 0.0
    %2569 = vmatpush1.msra.mxu0 %v557
    %2570 = vmatprep.subr.mxu0 0.0
    %2571 = vmatpush1.msra.mxu0 %v556
    %2572 = vmatprep.subr.mxu0 0.0
    %2573 = vmatpush1.msra.mxu0 %v555
    %2574 = vmatprep.subr.mxu0 0.0
    %2575 = vmatpush1.msra.mxu0 %v554
    %2576 = vmatprep.subr.mxu0 0.0
    %2577 = vmatpush1.msra.mxu0 %v553
    %2578 = vmatprep.subr.mxu0 0.0
    %2579 = vmatpush1.msra.mxu0 %v552
    %2580 = vmatprep.subr.mxu0 0.0
    %2581 = vmatpush1.msra.mxu0 %v551
    %2582 = vmatprep.subr.mxu0 0.0
    %2583 = vmatpush1.msra.mxu0 %v550
    %2584 = vmatprep.subr.mxu0 0.0
    %2585 = vmatpush1.msra.mxu0 %v549
    %2586 = vmatprep.subr.mxu0 0.0
    %2587 = vmatpush1.msra.mxu0 %v548
    %2588 = vmatprep.subr.mxu0 0.0
    %2589 = vmatpush1.msra.mxu0 %v547
    %2590 = vmatprep.subr.mxu0 0.0
    %2591 = vmatpush2.msra.mxu0 %v578
    %2592 = vmatprep.subr.mxu0 0.0
    %2593 = vmatpush2.msra.mxu0 %v577
    %2594 = vmatprep.subr.mxu0 0.0
    %2595 = vmatpush2.msra.mxu0 %v576
    %2596 = vmatprep.subr.mxu0 0.0
    %2597 = vmatpush2.msra.mxu0 %v575
    %2598 = vmatprep.subr.mxu0 0.0
    %2599 = vmatpush2.msra.mxu0 %v574
    %2600 = vmatprep.subr.mxu0 0.0
    %2601 = vmatpush2.msra.mxu0 %v573
    %2602 = vmatprep.subr.mxu0 0.0
    %2603 = vmatpush2.msra.mxu0 %v572
    %2604 = vmatprep.subr.mxu0 0.0
    %2605 = vmatpush2.msra.mxu0 %v571
    %2606 = vmatprep.subr.mxu0 0.0
    %2607 = vmatpush2.msra.mxu0 %v570
    %2608 = vmatprep.subr.mxu0 0.0
    %2609 = vmatpush2.msra.mxu0 %v569
    %2610 = vmatprep.subr.mxu0 0.0
    %2611 = vmatpush2.msra.mxu0 %v568
    %2612 = vmatprep.subr.mxu0 0.0
    %2613 = vmatpush2.msra.mxu0 %v567
    %2614 = vmatprep.subr.mxu0 0.0
    %2615 = vmatpush2.msra.mxu0 %v566
    %2616 = vmatprep.subr.mxu0 0.0
    %2617 = vmatpush2.msra.mxu0 %v565
    %2618 = vmatprep.subr.mxu0 0.0
    %2619 = vmatpush2.msra.mxu0 %v564
    %2620 = vmatprep.subr.mxu0 0.0
    %2621 = vmatpush2.msra.mxu0 %v563
    %2622 = vmatprep.mubr.f32.mxu0 %v2478
    %2623 = vmatmul.mubr.f32.gmra.mxu0 %v2477
    %v2624 = vpop.f32.mrf.mxu0
    %v2625 = vadd.f32 %v2550, %v2624
    %v2626 = vpop.f32.mrf.mxu0
    %2627 = vmatprep.mubr.f32.mxu0 %v2482
    %2628 = vmatmul.mubr.f32.gmra.mxu0 %v2481
    %v2629 = vpop.f32.mrf.mxu0
    %v2630 = vadd.f32 %v2555, %v2629
    %v2631 = vpop.f32.mrf.mxu0
    %2632 = vdwg.mxu0
    %v2634 = vsel %vm968, %v2625, 0
    %v2637 = vsel %vm968, %v2630, 0
    %2639 = vmatprep.subr.mxu0 0.0
    %2640 = vmatpush1.msra.mxu0 0.0
    %2641 = vmatprep.subr.mxu0 0.0
    %2642 = vmatpush1.msra.mxu0 0.0
    %2643 = vmatprep.subr.mxu0 0.0
    %2644 = vmatpush1.msra.mxu0 0.0
    %2645 = vmatprep.subr.mxu0 0.0
    %2646 = vmatpush1.msra.mxu0 0.0
    %2647 = vmatprep.subr.mxu0 0.0
    %2648 = vmatpush1.msra.mxu0 0.0
    %2649 = vmatprep.subr.mxu0 0.0
    %2650 = vmatpush1.msra.mxu0 0.0
    %2651 = vmatprep.subr.mxu0 0.0
    %2652 = vmatpush1.msra.mxu0 0.0
    %2653 = vmatprep.subr.mxu0 0.0
    %2654 = vmatpush1.msra.mxu0 0.0
    %2655 = vmatprep.subr.mxu0 0.0
    %2656 = vmatpush1.msra.mxu0 0.0
    %2657 = vmatprep.subr.mxu0 0.0
    %2658 = vmatpush1.msra.mxu0 0.0
    %2659 = vmatprep.subr.mxu0 0.0
    %2660 = vmatpush1.msra.mxu0 0.0
    %2661 = vmatprep.subr.mxu0 0.0
    %2662 = vmatpush1.msra.mxu0 0.0
    %2663 = vmatprep.subr.mxu0 0.0
    %2664 = vmatpush1.msra.mxu0 0.0
    %2665 = vmatprep.subr.mxu0 0.0
    %2666 = vmatpush1.msra.mxu0 0.0
    %2667 = vmatprep.subr.mxu0 0.0
    %2668 = vmatpush1.msra.mxu0 0.0
    %2669 = vmatprep.subr.mxu0 %v580
    %2670 = vmatpush1.msra.mxu0 %v579
    %2671 = vmatprep.subr.mxu0 0.0
    %2672 = vmatpush2.msra.mxu0 0.0
    %2673 = vmatprep.subr.mxu0 0.0
    %2674 = vmatpush2.msra.mxu0 0.0
    %2675 = vmatprep.subr.mxu0 0.0
    %2676 = vmatpush2.msra.mxu0 0.0
    %2677 = vmatprep.subr.mxu0 0.0
    %2678 = vmatpush2.msra.mxu0 0.0
    %2679 = vmatprep.subr.mxu0 0.0
    %2680 = vmatpush2.msra.mxu0 0.0
    %2681 = vmatprep.subr.mxu0 0.0
    %2682 = vmatpush2.msra.mxu0 0.0
    %2683 = vmatprep.subr.mxu0 0.0
    %2684 = vmatpush2.msra.mxu0 0.0
    %2685 = vmatprep.subr.mxu0 0.0
    %2686 = vmatpush2.msra.mxu0 0.0
    %2687 = vmatprep.subr.mxu0 0.0
    %2688 = vmatpush2.msra.mxu0 0.0
    %2689 = vmatprep.subr.mxu0 0.0
    %2690 = vmatpush2.msra.mxu0 0.0
    %2691 = vmatprep.subr.mxu0 0.0
    %2692 = vmatpush2.msra.mxu0 0.0
    %2693 = vmatprep.subr.mxu0 0.0
    %2694 = vmatpush2.msra.mxu0 0.0
    %2695 = vmatprep.subr.mxu0 0.0
    %2696 = vmatpush2.msra.mxu0 0.0
    %2697 = vmatprep.subr.mxu0 0.0
    %2698 = vmatpush2.msra.mxu0 0.0
    %2699 = vmatprep.subr.mxu0 0.0
    %2700 = vmatpush2.msra.mxu0 0.0
    %2701 = vmatprep.subr.mxu0 0.0
    %2702 = vmatpush2.msra.mxu0 0.0
    %2703 = vmatprep.mubr.f32.mxu0 0.0
    %2704 = vmatmul.mubr.f32.gmra.mxu0 %v2634
    %v2705 = vpop.f32.mrf.mxu0
    %v2706 = vadd.f32 1e-05, %v2705
    %v2707 = vpop.f32.mrf.mxu0
    %v2708 = vadd.f32 1e-05, %v2707
    %2709 = vmatprep.mubr.f32.mxu0 0.0
    %2710 = vmatmul.mubr.f32.gmra.mxu0 %v2637
    %v2711 = vpop.f32.mrf.mxu0
    %v2712 = vadd.f32 1e-05, %v2711
    %v2713 = vpop.f32.mrf.mxu0
    %v2714 = vadd.f32 1e-05, %v2713
    %2715 = vdwg.mxu0
    %2716 = vmatprep.subr.mxu0 0.0
    %2717 = vmatpush1.msra.mxu0 0.0
    %2718 = vmatprep.subr.mxu0 0.0
    %2719 = vmatpush1.msra.mxu0 0.0
    %2720 = vmatprep.subr.mxu0 0.0
    %2721 = vmatpush1.msra.mxu0 0.0
    %2722 = vmatprep.subr.mxu0 0.0
    %2723 = vmatpush1.msra.mxu0 0.0
    %2724 = vmatprep.subr.mxu0 0.0
    %2725 = vmatpush1.msra.mxu0 0.0
    %2726 = vmatprep.subr.mxu0 0.0
    %2727 = vmatpush1.msra.mxu0 0.0
    %2728 = vmatprep.subr.mxu0 0.0
    %2729 = vmatpush1.msra.mxu0 0.0
    %2730 = vmatprep.subr.mxu0 0.0
    %2731 = vmatpush1.msra.mxu0 0.0
    %2732 = vmatprep.subr.mxu0 0.0
    %2733 = vmatpush1.msra.mxu0 0.0
    %2734 = vmatprep.subr.mxu0 0.0
    %2735 = vmatpush1.msra.mxu0 0.0
    %2736 = vmatprep.subr.mxu0 0.0
    %2737 = vmatpush1.msra.mxu0 0.0
    %2738 = vmatprep.subr.mxu0 0.0
    %2739 = vmatpush1.msra.mxu0 0.0
    %2740 = vmatprep.subr.mxu0 0.0
    %2741 = vmatpush1.msra.mxu0 0.0
    %2742 = vmatprep.subr.mxu0 0.0
    %2743 = vmatpush1.msra.mxu0 0.0
    %2744 = vmatprep.subr.mxu0 0.0
    %2745 = vmatpush1.msra.mxu0 0.0
    %2746 = vmatprep.subr.mxu0 %v582
    %2747 = vmatpush1.msra.mxu0 %v581
    %2748 = vmatprep.subr.mxu0 0.0
    %2749 = vmatpush2.msra.mxu0 0.0
    %2750 = vmatprep.subr.mxu0 0.0
    %2751 = vmatpush2.msra.mxu0 0.0
    %2752 = vmatprep.subr.mxu0 0.0
    %2753 = vmatpush2.msra.mxu0 0.0
    %2754 = vmatprep.subr.mxu0 0.0
    %2755 = vmatpush2.msra.mxu0 0.0
    %2756 = vmatprep.subr.mxu0 0.0
    %2757 = vmatpush2.msra.mxu0 0.0
    %2758 = vmatprep.subr.mxu0 0.0
    %2759 = vmatpush2.msra.mxu0 0.0
    %2760 = vmatprep.subr.mxu0 0.0
    %2761 = vmatpush2.msra.mxu0 0.0
    %2762 = vmatprep.subr.mxu0 0.0
    %2763 = vmatpush2.msra.mxu0 0.0
    %2764 = vmatprep.subr.mxu0 0.0
    %2765 = vmatpush2.msra.mxu0 0.0
    %2766 = vmatprep.subr.mxu0 0.0
    %2767 = vmatpush2.msra.mxu0 0.0
    %2768 = vmatprep.subr.mxu0 0.0
    %2769 = vmatpush2.msra.mxu0 0.0
    %2770 = vmatprep.subr.mxu0 0.0
    %2771 = vmatpush2.msra.mxu0 0.0
    %2772 = vmatprep.subr.mxu0 0.0
    %2773 = vmatpush2.msra.mxu0 0.0
    %2774 = vmatprep.subr.mxu0 0.0
    %2775 = vmatpush2.msra.mxu0 0.0
    %2776 = vmatprep.subr.mxu0 0.0
    %2777 = vmatpush2.msra.mxu0 0.0
    %2778 = vmatprep.subr.mxu0 0.0
    %2779 = vmatpush2.msra.mxu0 0.0
    %2780 = vmatprep.mubr.f32.mxu0 0.0
    %2781 = vmatmul.mubr.f32.gmra.mxu0 %v2634
    %v2782 = vpop.f32.mrf.mxu0
    %v2783 = vadd.f32 1e-05, %v2782
    %v2784 = vpop.f32.mrf.mxu0
    %v2785 = vadd.f32 1e-05, %v2784
    %2786 = vmatprep.mubr.f32.mxu0 0.0
    %2787 = vmatmul.mubr.f32.gmra.mxu0 %v2637
    %v2788 = vpop.f32.mrf.mxu0
    %v2789 = vadd.f32 1e-05, %v2788
    %v2790 = vpop.f32.mrf.mxu0
    %v2791 = vadd.f32 1e-05, %v2790
    %2792 = vdwg.mxu0
    %v2793 = vrsqrt.pop %v2706
    %v2794 = vrsqrt.pop %v2708
    %v2795 = vrsqrt.pop %v2783
    %v2796 = vrsqrt.pop %v2785
    %v2797 = vrsqrt.pop %v2712
    %v2798 = vrsqrt.pop %v2714
    %v2799 = vrsqrt.pop %v2789
    %v2800 = vrsqrt.pop %v2791
    %v2801 = vmul.f32 %v2467, %v2793
    %v2802 = vmul.f32 %v2468, %v2794
    %v2803 = vmul.f32 %v2469, %v2795
    %v2804 = vmul.f32 %v2470, %v2796
    %v2805 = vmul.f32 %v2471, %v2797
    %v2806 = vmul.f32 %v2472, %v2798
    %v2807 = vmul.f32 %v2473, %v2799
    %v2808 = vmul.f32 %v2474, %v2800
    %v2810 = vlaneseq
    %v2811 = vshrl.u32 %v2810, 7
    %v2812 = vsub.s32 0, %v2811
    %v2813 = vrot.slane %v2155, %v2812
    %v2814 = vlaneseq
    %v2815 = vshrl.u32 %v2814, 7
    %v2816 = vsub.s32 1, %v2815
    %v2817 = vrot.slane %v2155, %v2816
    %v2818 = vlaneseq
    %v2819 = vshrl.u32 %v2818, 7
    %v2820 = vsub.s32 2, %v2819
    %v2821 = vrot.slane %v2155, %v2820
    %v2822 = vlaneseq
    %v2823 = vshrl.u32 %v2822, 7
    %v2824 = vsub.s32 3, %v2823
    %v2825 = vrot.slane %v2155, %v2824
    %v2830 = vmul.f32 %v2801, %v2813
    %v2831 = vmul.f32 %v2802, %v2817
    %v2832 = vmul.f32 %v2803, %v2821
    %v2833 = vmul.f32 %v2804, %v2825
    %v2834 = vmul.f32 %v2805, %v2813
    %v2835 = vmul.f32 %v2806, %v2817
    %v2836 = vmul.f32 %v2807, %v2821
    %v2837 = vmul.f32 %v2808, %v2825
    %v2839 = vlaneseq
    %v2840 = vshrl.u32 %v2839, 7
    %v2841 = vsub.s32 0, %v2840
    %v2842 = vrot.slane %v2156, %v2841
    %v2843 = vlaneseq
    %v2844 = vshrl.u32 %v2843, 7
    %v2845 = vsub.s32 1, %v2844
    %v2846 = vrot.slane %v2156, %v2845
    %v2847 = vlaneseq
    %v2848 = vshrl.u32 %v2847, 7
    %v2849 = vsub.s32 2, %v2848
    %v2850 = vrot.slane %v2156, %v2849
    %v2851 = vlaneseq
    %v2852 = vshrl.u32 %v2851, 7
    %v2853 = vsub.s32 3, %v2852
    %v2854 = vrot.slane %v2156, %v2853
    %v2859 = vadd.f32 %v2830, %v2842
    %v2860 = vadd.f32 %v2831, %v2846
    %v2861 = vadd.f32 %v2832, %v2850
    %v2862 = vadd.f32 %v2833, %v2854
    %v2863 = vadd.f32 %v2834, %v2842
    %v2864 = vadd.f32 %v2835, %v2846
    %v2865 = vadd.f32 %v2836, %v2850
    %v2866 = vadd.f32 %v2837, %v2854
    %v2867 = vtanh.pop %v2859
    %v2868 = vtanh.pop %v2860
    %v2869 = vtanh.pop %v2861
    %v2870 = vtanh.pop %v2862
    %v2871 = vtanh.pop %v2863
    %v2872 = vtanh.pop %v2864
    %v2873 = vtanh.pop %v2865
    %v2874 = vtanh.pop %v2866
    %v2875 = vld [vmem:[%s27] sm:$0xff]
    %v2876 = vld [vmem:[%s27 + $0x8] sm:$0xff]
    %v2877 = vld [vmem:[%s27 + $0x10] sm:$0xff]
    %v2878 = vld [vmem:[%s27 + $0x18] sm:$0xff]
    %v2879 = vld [vmem:[%s27 + $0x20] sm:$0xff]
    %v2880 = vld [vmem:[%s27 + $0x28] sm:$0xff]
    %v2881 = vld [vmem:[%s27 + $0x30] sm:$0xff]
    %v2882 = vld [vmem:[%s27 + $0x38] sm:$0xff]
    %v2883 = vld [vmem:[%s27 + $0x40] sm:$0xff]
    %v2884 = vld [vmem:[%s27 + $0x48] sm:$0xff]
    %v2885 = vld [vmem:[%s27 + $0x50] sm:$0xff]
    %v2886 = vld [vmem:[%s27 + $0x58] sm:$0xff]
    %v2887 = vld [vmem:[%s27 + $0x60] sm:$0xff]
    %v2888 = vld [vmem:[%s27 + $0x68] sm:$0xff]
    %v2889 = vld [vmem:[%s27 + $0x70] sm:$0xff]
    %v2890 = vld [vmem:[%s27 + $0x78] sm:$0xff]
    %v2891 = vld [vmem:[%s27 + $0x80] sm:$0xff]
    %v2892 = vld [vmem:[%s27 + $0x88] sm:$0xff]
    %v2893 = vld [vmem:[%s27 + $0x90] sm:$0xff]
    %v2894 = vld [vmem:[%s27 + $0x98] sm:$0xff]
    %v2895 = vld [vmem:[%s27 + $0xa0] sm:$0xff]
    %v2896 = vld [vmem:[%s27 + $0xa8] sm:$0xff]
    %v2897 = vld [vmem:[%s27 + $0xb0] sm:$0xff]
    %v2898 = vld [vmem:[%s27 + $0xb8] sm:$0xff]
    %v2899 = vld [vmem:[%s27 + $0xc0] sm:$0xff]
    %v2900 = vld [vmem:[%s27 + $0xc8] sm:$0xff]
    %v2901 = vld [vmem:[%s27 + $0xd0] sm:$0xff]
    %v2902 = vld [vmem:[%s27 + $0xd8] sm:$0xff]
    %v2903 = vld [vmem:[%s27 + $0xe0] sm:$0xff]
    %v2904 = vld [vmem:[%s27 + $0xe8] sm:$0xff]
    %v2905 = vld [vmem:[%s27 + $0xf0] sm:$0xff]
    %v2906 = vld [vmem:[%s27 + $0xf8] sm:$0xff]
    %v2907 = vld [vmem:[%s27 + $0x100] sm:$0xff]
    %v2908 = vld [vmem:[%s27 + $0x108] sm:$0xff]
    %v2909 = vld [vmem:[%s27 + $0x110] sm:$0xff]
    %v2910 = vld [vmem:[%s27 + $0x118] sm:$0xff]
    %v2911 = vld [vmem:[%s27 + $0x120] sm:$0xff]
    %v2912 = vld [vmem:[%s27 + $0x128] sm:$0xff]
    %v2913 = vld [vmem:[%s27 + $0x130] sm:$0xff]
    %v2914 = vld [vmem:[%s27 + $0x138] sm:$0xff]
    %v2915 = vld [vmem:[%s27 + $0x140] sm:$0xff]
    %v2916 = vld [vmem:[%s27 + $0x148] sm:$0xff]
    %v2917 = vld [vmem:[%s27 + $0x150] sm:$0xff]
    %v2918 = vld [vmem:[%s27 + $0x158] sm:$0xff]
    %v2919 = vld [vmem:[%s27 + $0x160] sm:$0xff]
    %v2920 = vld [vmem:[%s27 + $0x168] sm:$0xff]
    %v2921 = vld [vmem:[%s27 + $0x170] sm:$0xff]
    %v2922 = vld [vmem:[%s27 + $0x178] sm:$0xff]
    %v2923 = vld [vmem:[%s27 + $0x180] sm:$0xff]
    %v2924 = vld [vmem:[%s27 + $0x188] sm:$0xff]
    %v2925 = vld [vmem:[%s27 + $0x190] sm:$0xff]
    %v2926 = vld [vmem:[%s27 + $0x198] sm:$0xff]
    %v2927 = vld [vmem:[%s27 + $0x1a0] sm:$0xff]
    %v2928 = vld [vmem:[%s27 + $0x1a8] sm:$0xff]
    %v2929 = vld [vmem:[%s27 + $0x1b0] sm:$0xff]
    %v2930 = vld [vmem:[%s27 + $0x1b8] sm:$0xff]
    %v2931 = vld [vmem:[%s27 + $0x1c0] sm:$0xff]
    %v2932 = vld [vmem:[%s27 + $0x1c8] sm:$0xff]
    %v2933 = vld [vmem:[%s27 + $0x1d0] sm:$0xff]
    %v2934 = vld [vmem:[%s27 + $0x1d8] sm:$0xff]
    %v2935 = vld [vmem:[%s27 + $0x1e0] sm:$0xff]
    %v2936 = vld [vmem:[%s27 + $0x1e8] sm:$0xff]
    %v2937 = vld [vmem:[%s27 + $0x1f0] sm:$0xff]
    %v2938 = vld [vmem:[%s27 + $0x1f8] sm:$0xff]
    %v2939 = vld [vmem:[%s29] sm:$0x1]
    %v2941 = vlaneseq
    %v2942 = vshrl.u32 %v2941, 7
    %v2943 = vsub.s32 0, %v2942
    %v2944 = vrot.slane %v2939, %v2943
    %2946 = vmatprep.subr.mxu0 0.0
    %2947 = vmatpush1.msra.mxu0 %v2890
    %2948 = vmatprep.subr.mxu0 0.0
    %2949 = vmatpush1.msra.mxu0 %v2889
    %2950 = vmatprep.subr.mxu0 0.0
    %2951 = vmatpush1.msra.mxu0 %v2888
    %2952 = vmatprep.subr.mxu0 0.0
    %2953 = vmatpush1.msra.mxu0 %v2887
    %2954 = vmatprep.subr.mxu0 0.0
    %2955 = vmatpush1.msra.mxu0 %v2886
    %2956 = vmatprep.subr.mxu0 0.0
    %2957 = vmatpush1.msra.mxu0 %v2885
    %2958 = vmatprep.subr.mxu0 0.0
    %2959 = vmatpush1.msra.mxu0 %v2884
    %2960 = vmatprep.subr.mxu0 0.0
    %2961 = vmatpush1.msra.mxu0 %v2883
    %2962 = vmatprep.subr.mxu0 0.0
    %2963 = vmatpush1.msra.mxu0 %v2882
    %2964 = vmatprep.subr.mxu0 0.0
    %2965 = vmatpush1.msra.mxu0 %v2881
    %2966 = vmatprep.subr.mxu0 0.0
    %2967 = vmatpush1.msra.mxu0 %v2880
    %2968 = vmatprep.subr.mxu0 0.0
    %2969 = vmatpush1.msra.mxu0 %v2879
    %2970 = vmatprep.subr.mxu0 0.0
    %2971 = vmatpush1.msra.mxu0 %v2878
    %2972 = vmatprep.subr.mxu0 0.0
    %2973 = vmatpush1.msra.mxu0 %v2877
    %2974 = vmatprep.subr.mxu0 0.0
    %2975 = vmatpush1.msra.mxu0 %v2876
    %2976 = vmatprep.subr.mxu0 0.0
    %2977 = vmatpush1.msra.mxu0 %v2875
    %2978 = vmatprep.subr.mxu0 0.0
    %2979 = vmatpush2.msra.mxu0 %v2906
    %2980 = vmatprep.subr.mxu0 0.0
    %2981 = vmatpush2.msra.mxu0 %v2905
    %2982 = vmatprep.subr.mxu0 0.0
    %2983 = vmatpush2.msra.mxu0 %v2904
    %2984 = vmatprep.subr.mxu0 0.0
    %2985 = vmatpush2.msra.mxu0 %v2903
    %2986 = vmatprep.subr.mxu0 0.0
    %2987 = vmatpush2.msra.mxu0 %v2902
    %2988 = vmatprep.subr.mxu0 0.0
    %2989 = vmatpush2.msra.mxu0 %v2901
    %2990 = vmatprep.subr.mxu0 0.0
    %2991 = vmatpush2.msra.mxu0 %v2900
    %2992 = vmatprep.subr.mxu0 0.0
    %2993 = vmatpush2.msra.mxu0 %v2899
    %2994 = vmatprep.subr.mxu0 0.0
    %2995 = vmatpush2.msra.mxu0 %v2898
    %2996 = vmatprep.subr.mxu0 0.0
    %2997 = vmatpush2.msra.mxu0 %v2897
    %2998 = vmatprep.subr.mxu0 0.0
    %2999 = vmatpush2.msra.mxu0 %v2896
    %3000 = vmatprep.subr.mxu0 0.0
    %3001 = vmatpush2.msra.mxu0 %v2895
    %3002 = vmatprep.subr.mxu0 0.0
    %3003 = vmatpush2.msra.mxu0 %v2894
    %3004 = vmatprep.subr.mxu0 0.0
    %3005 = vmatpush2.msra.mxu0 %v2893
    %3006 = vmatprep.subr.mxu0 0.0
    %3007 = vmatpush2.msra.mxu0 %v2892
    %3008 = vmatprep.subr.mxu0 0.0
    %3009 = vmatpush2.msra.mxu0 %v2891
    %3010 = vmatprep.mubr.f32.mxu0 %v2868
    %3011 = vmatmul.mubr.f32.gmra.mxu0 %v2867
    %v3012 = vpop.f32.mrf.mxu0
    %v3013 = vadd.f32 %v2944, %v3012
    %v3014 = vpop.f32.mrf.mxu0
    %3015 = vmatprep.mubr.f32.mxu0 %v2872
    %3016 = vmatmul.mubr.f32.gmra.mxu0 %v2871
    %v3017 = vpop.f32.mrf.mxu0
    %v3018 = vadd.f32 %v2944, %v3017
    %v3019 = vpop.f32.mrf.mxu0
    %3020 = vdwg.mxu0
    %3021 = vmatprep.subr.mxu0 0.0
    %3022 = vmatpush1.msra.mxu0 %v2922
    %3023 = vmatprep.subr.mxu0 0.0
    %3024 = vmatpush1.msra.mxu0 %v2921
    %3025 = vmatprep.subr.mxu0 0.0
    %3026 = vmatpush1.msra.mxu0 %v2920
    %3027 = vmatprep.subr.mxu0 0.0
    %3028 = vmatpush1.msra.mxu0 %v2919
    %3029 = vmatprep.subr.mxu0 0.0
    %3030 = vmatpush1.msra.mxu0 %v2918
    %3031 = vmatprep.subr.mxu0 0.0
    %3032 = vmatpush1.msra.mxu0 %v2917
    %3033 = vmatprep.subr.mxu0 0.0
    %3034 = vmatpush1.msra.mxu0 %v2916
    %3035 = vmatprep.subr.mxu0 0.0
    %3036 = vmatpush1.msra.mxu0 %v2915
    %3037 = vmatprep.subr.mxu0 0.0
    %3038 = vmatpush1.msra.mxu0 %v2914
    %3039 = vmatprep.subr.mxu0 0.0
    %3040 = vmatpush1.msra.mxu0 %v2913
    %3041 = vmatprep.subr.mxu0 0.0
    %3042 = vmatpush1.msra.mxu0 %v2912
    %3043 = vmatprep.subr.mxu0 0.0
    %3044 = vmatpush1.msra.mxu0 %v2911
    %3045 = vmatprep.subr.mxu0 0.0
    %3046 = vmatpush1.msra.mxu0 %v2910
    %3047 = vmatprep.subr.mxu0 0.0
    %3048 = vmatpush1.msra.mxu0 %v2909
    %3049 = vmatprep.subr.mxu0 0.0
    %3050 = vmatpush1.msra.mxu0 %v2908
    %3051 = vmatprep.subr.mxu0 0.0
    %3052 = vmatpush1.msra.mxu0 %v2907
    %3053 = vmatprep.subr.mxu0 0.0
    %3054 = vmatpush2.msra.mxu0 %v2938
    %3055 = vmatprep.subr.mxu0 0.0
    %3056 = vmatpush2.msra.mxu0 %v2937
    %3057 = vmatprep.subr.mxu0 0.0
    %3058 = vmatpush2.msra.mxu0 %v2936
    %3059 = vmatprep.subr.mxu0 0.0
    %3060 = vmatpush2.msra.mxu0 %v2935
    %3061 = vmatprep.subr.mxu0 0.0
    %3062 = vmatpush2.msra.mxu0 %v2934
    %3063 = vmatprep.subr.mxu0 0.0
    %3064 = vmatpush2.msra.mxu0 %v2933
    %3065 = vmatprep.subr.mxu0 0.0
    %3066 = vmatpush2.msra.mxu0 %v2932
    %3067 = vmatprep.subr.mxu0 0.0
    %3068 = vmatpush2.msra.mxu0 %v2931
    %3069 = vmatprep.subr.mxu0 0.0
    %3070 = vmatpush2.msra.mxu0 %v2930
    %3071 = vmatprep.subr.mxu0 0.0
    %3072 = vmatpush2.msra.mxu0 %v2929
    %3073 = vmatprep.subr.mxu0 0.0
    %3074 = vmatpush2.msra.mxu0 %v2928
    %3075 = vmatprep.subr.mxu0 0.0
    %3076 = vmatpush2.msra.mxu0 %v2927
    %3077 = vmatprep.subr.mxu0 0.0
    %3078 = vmatpush2.msra.mxu0 %v2926
    %3079 = vmatprep.subr.mxu0 0.0
    %3080 = vmatpush2.msra.mxu0 %v2925
    %3081 = vmatprep.subr.mxu0 0.0
    %3082 = vmatpush2.msra.mxu0 %v2924
    %3083 = vmatprep.subr.mxu0 0.0
    %3084 = vmatpush2.msra.mxu0 %v2923
    %3085 = vmatprep.mubr.f32.mxu0 %v2870
    %3086 = vmatmul.mubr.f32.gmra.mxu0 %v2869
    %v3087 = vpop.f32.mrf.mxu0
    %v3088 = vadd.f32 %v3013, %v3087
    %v3089 = vpop.f32.mrf.mxu0
    %3090 = vmatprep.mubr.f32.mxu0 %v2874
    %3091 = vmatmul.mubr.f32.gmra.mxu0 %v2873
    %v3092 = vpop.f32.mrf.mxu0
    %v3093 = vadd.f32 %v3018, %v3092
    %v3094 = vpop.f32.mrf.mxu0
    %3095 = vdwg.mxu0
    %v3096 = vld [vmem:[#allocation19] sm:$0x1]
    %v3097 = vld [vmem:[#allocation20] sm:$0x1]
    %vm3098 = vcmask 523264
    %v3099 = vsel %vm3098, %v3088, 0.0
    %3100 = vadd.xlane.f32.xlu0 %v3099
    %v3101 = vpop.xlane.xlu0 %3100
    %v3102 = vsel %vm3098, %v3093, 0.0
    %3103 = vadd.xlane.f32.xlu0 %v3102
    %v3104 = vpop.xlane.xlu0 %3103
    %v3105 = vrcp.pop 64.0
    %v3106 = vmul.f32 %v3101, %v3105
    %v3107 = vmul.f32 %v3104, %v3105
    %v3108 = vsub.f32 %v3088, %v3106
    %v3109 = vsub.f32 %v3093, %v3107
    %v3110 = vmul.f32 %v3108, %v3108
    %v3111 = vmul.f32 %v3109, %v3109
    %v3112 = vsel %vm3098, %v3110, 0.0
    %3113 = vadd.xlane.f32.xlu0 %v3112
    %v3114 = vpop.xlane.xlu0 %3113
    %v3115 = vsel %vm3098, %v3111, 0.0
    %3116 = vadd.xlane.f32.xlu0 %v3115
    %v3117 = vpop.xlane.xlu0 %3116
    %v3118 = vmul.f32 %v3114, %v3105
    %v3119 = vmul.f32 %v3117, %v3105
    %v3120 = vadd.f32 %v3118, 1e-05
    %v3121 = vadd.f32 %v3119, 1e-05
    %v3122 = vrsqrt.pop %v3120
    %v3123 = vrsqrt.pop %v3121
    %v3124 = vmul.f32 %v3108, %v3122
    %v3125 = vmul.f32 %v3109, %v3123
    %v3127 = vlaneseq
    %v3128 = vshrl.u32 %v3127, 7
    %v3129 = vsub.s32 0, %v3128
    %v3130 = vrot.slane %v3096, %v3129
    %v3132 = vmul.f32 %v3124, %v3130
    %v3133 = vmul.f32 %v3125, %v3130
    %v3135 = vlaneseq
    %v3136 = vshrl.u32 %v3135, 7
    %v3137 = vsub.s32 0, %v3136
    %v3138 = vrot.slane %v3097, %v3137
    %v3140 = vadd.f32 %v3132, %v3138
    %v3141 = vadd.f32 %v3133, %v3138
    %v3142 = vmul.f32 %v3140, 0.5
    %v3143 = vmul.f32 %v3141, 0.5
    %v3144 = vmul.f32 %v3140, 0.70710677
    %v3145 = vmul.f32 %v3141, 0.70710677
    %v3146 = verf.f32.pop %v3144
    %v3147 = verf.f32.pop %v3145
    %v3148 = vadd.f32 %v3146, 1.0
    %v3149 = vadd.f32 %v3147, 1.0
    %v3150 = vmul.f32 %v3142, %v3148
    %v3151 = vmul.f32 %v3143, %v3149
    %v3152 = vld [vmem:[%s35] sm:$0xff]
    %v3153 = vld [vmem:[%s35 + $0x8] sm:$0xff]
    %v3154 = vld [vmem:[%s35 + $0x10] sm:$0xff]
    %v3155 = vld [vmem:[%s35 + $0x18] sm:$0xff]
    %v3156 = vld [vmem:[%s35 + $0x20] sm:$0xff]
    %v3157 = vld [vmem:[%s35 + $0x28] sm:$0xff]
    %v3158 = vld [vmem:[%s35 + $0x30] sm:$0xff]
    %v3159 = vld [vmem:[%s35 + $0x38] sm:$0xff]
    %v3160 = vld [vmem:[#allocation23] sm:$0x1]
    %v3162 = vlaneseq
    %v3163 = vshrl.u32 %v3162, 7
    %v3164 = vsub.s32 0, %v3163
    %v3165 = vrot.slane %v3160, %v3164
    %v3168 = vsel %vm3098, %v3150, 0
    %v3171 = vsel %vm3098, %v3151, 0
    %3173 = vmatprep.subr.mxu0 0.0
    %3174 = vmatpush1.msra.mxu0 0.0
    %3175 = vmatprep.subr.mxu0 0.0
    %3176 = vmatpush1.msra.mxu0 0.0
    %3177 = vmatprep.subr.mxu0 0.0
    %3178 = vmatpush1.msra.mxu0 0.0
    %3179 = vmatprep.subr.mxu0 0.0
    %3180 = vmatpush1.msra.mxu0 0.0
    %3181 = vmatprep.subr.mxu0 0.0
    %3182 = vmatpush1.msra.mxu0 0.0
    %3183 = vmatprep.subr.mxu0 0.0
    %3184 = vmatpush1.msra.mxu0 0.0
    %3185 = vmatprep.subr.mxu0 0.0
    %3186 = vmatpush1.msra.mxu0 0.0
    %3187 = vmatprep.subr.mxu0 0.0
    %3188 = vmatpush1.msra.mxu0 0.0
    %3189 = vmatprep.subr.mxu0 0.0
    %3190 = vmatpush1.msra.mxu0 %v3159
    %3191 = vmatprep.subr.mxu0 0.0
    %3192 = vmatpush1.msra.mxu0 %v3158
    %3193 = vmatprep.subr.mxu0 0.0
    %3194 = vmatpush1.msra.mxu0 %v3157
    %3195 = vmatprep.subr.mxu0 0.0
    %3196 = vmatpush1.msra.mxu0 %v3156
    %3197 = vmatprep.subr.mxu0 0.0
    %3198 = vmatpush1.msra.mxu0 %v3155
    %3199 = vmatprep.subr.mxu0 0.0
    %3200 = vmatpush1.msra.mxu0 %v3154
    %3201 = vmatprep.subr.mxu0 0.0
    %3202 = vmatpush1.msra.mxu0 %v3153
    %3203 = vmatprep.subr.mxu0 0.0
    %3204 = vmatpush1.msra.mxu0 %v3152
    %3205 = vmatprep.subr.mxu0 0.0
    %3206 = vmatpush2.msra.mxu0 0.0
    %3207 = vmatprep.subr.mxu0 0.0
    %3208 = vmatpush2.msra.mxu0 0.0
    %3209 = vmatprep.subr.mxu0 0.0
    %3210 = vmatpush2.msra.mxu0 0.0
    %3211 = vmatprep.subr.mxu0 0.0
    %3212 = vmatpush2.msra.mxu0 0.0
    %3213 = vmatprep.subr.mxu0 0.0
    %3214 = vmatpush2.msra.mxu0 0.0
    %3215 = vmatprep.subr.mxu0 0.0
    %3216 = vmatpush2.msra.mxu0 0.0
    %3217 = vmatprep.subr.mxu0 0.0
    %3218 = vmatpush2.msra.mxu0 0.0
    %3219 = vmatprep.subr.mxu0 0.0
    %3220 = vmatpush2.msra.mxu0 0.0
    %3221 = vmatprep.subr.mxu0 0.0
    %3222 = vmatpush2.msra.mxu0 0.0
    %3223 = vmatprep.subr.mxu0 0.0
    %3224 = vmatpush2.msra.mxu0 0.0
    %3225 = vmatprep.subr.mxu0 0.0
    %3226 = vmatpush2.msra.mxu0 0.0
    %3227 = vmatprep.subr.mxu0 0.0
    %3228 = vmatpush2.msra.mxu0 0.0
    %3229 = vmatprep.subr.mxu0 0.0
    %3230 = vmatpush2.msra.mxu0 0.0
    %3231 = vmatprep.subr.mxu0 0.0
    %3232 = vmatpush2.msra.mxu0 0.0
    %3233 = vmatprep.subr.mxu0 0.0
    %3234 = vmatpush2.msra.mxu0 0.0
    %3235 = vmatprep.subr.mxu0 0.0
    %3236 = vmatpush2.msra.mxu0 0.0
    %3237 = vmatprep.mubr.f32.mxu0 0.0
    %3238 = vmatmul.mubr.f32.gmra.mxu0 %v3168
    %v3239 = vpop.f32.mrf.mxu0
    %v3240 = vadd.f32 %v3165, %v3239
    %v3241 = vpop.f32.mrf.mxu0
    %3242 = vmatprep.mubr.f32.mxu0 0.0
    %3243 = vmatmul.mubr.f32.gmra.mxu0 %v3171
    %v3244 = vpop.f32.mrf.mxu0
    %v3245 = vadd.f32 %v3165, %v3244
    %v3246 = vpop.f32.mrf.mxu0
    %3247 = vdwg.mxu0
    %v3248 = vld [vmem:[#allocation25] sm:$0x1]
    %v3249 = vld [vmem:[#allocation26] sm:$0x1]
    %v3250 = vsel %vm655, %v3240, 0.0
    %3251 = vadd.xlane.f32.xlu0 %v3250
    %v3252 = vpop.xlane.xlu0 %3251
    %v3253 = vsel %vm655, %v3245, 0.0
    %3254 = vadd.xlane.f32.xlu0 %v3253
    %v3255 = vpop.xlane.xlu0 %3254
    %v3256 = vrcp.pop 32.0
    %v3257 = vmul.f32 %v3252, %v3256
    %v3258 = vmul.f32 %v3255, %v3256
    %v3259 = vsub.f32 %v3240, %v3257
    %v3260 = vsub.f32 %v3245, %v3258
    %v3261 = vmul.f32 %v3259, %v3259
    %v3262 = vmul.f32 %v3260, %v3260
    %v3263 = vsel %vm655, %v3261, 0.0
    %3264 = vadd.xlane.f32.xlu0 %v3263
    %v3265 = vpop.xlane.xlu0 %3264
    %v3266 = vsel %vm655, %v3262, 0.0
    %3267 = vadd.xlane.f32.xlu0 %v3266
    %v3268 = vpop.xlane.xlu0 %3267
    %v3269 = vmul.f32 %v3265, %v3256
    %v3270 = vmul.f32 %v3268, %v3256
    %v3271 = vadd.f32 %v3269, 1e-05
    %v3272 = vadd.f32 %v3270, 1e-05
    %v3273 = vrsqrt.pop %v3271
    %v3274 = vrsqrt.pop %v3272
    %v3275 = vmul.f32 %v3259, %v3273
    %v3276 = vmul.f32 %v3260, %v3274
    %v3278 = vlaneseq
    %v3279 = vshrl.u32 %v3278, 7
    %v3280 = vsub.s32 0, %v3279
    %v3281 = vrot.slane %v3248, %v3280
    %v3283 = vmul.f32 %v3275, %v3281
    %v3284 = vmul.f32 %v3276, %v3281
    %v3286 = vlaneseq
    %v3287 = vshrl.u32 %v3286, 7
    %v3288 = vsub.s32 0, %v3287
    %v3289 = vrot.slane %v3249, %v3288
    %v3291 = vadd.f32 %v3283, %v3289
    %v3292 = vadd.f32 %v3284, %v3289
    %v3293 = vmul.f32 %v3291, 0.5
    %v3294 = vmul.f32 %v3292, 0.5
    %v3295 = vmul.f32 %v3291, 0.70710677
    %v3296 = vmul.f32 %v3292, 0.70710677
    %v3297 = verf.f32.pop %v3295
    %v3298 = verf.f32.pop %v3296
    %v3299 = vadd.f32 %v3297, 1.0
    %v3300 = vadd.f32 %v3298, 1.0
    %v3301 = vmul.f32 %v3293, %v3299
    %v3302 = vmul.f32 %v3294, %v3300
    %v3303 = vld [vmem:[%s45] sm:$0xff]
    %v3304 = vld [vmem:[%s45 + $0x8] sm:$0xff]
    %v3305 = vld [vmem:[%s45 + $0x10] sm:$0xff]
    %v3306 = vld [vmem:[%s45 + $0x18] sm:$0xff]
    %v3307 = vld [vmem:[#allocation28] sm:$0x1]
    %v3309 = vlaneseq
    %v3310 = vshrl.u32 %v3309, 7
    %v3311 = vsub.s32 0, %v3310
    %v3312 = vrot.slane %v3307, %v3311
    %v3315 = vsel %vm655, %v3301, 0
    %v3318 = vsel %vm655, %v3302, 0
    %3320 = vmatprep.subr.mxu0 0.0
    %3321 = vmatpush1.msra.mxu0 0.0
    %3322 = vmatprep.subr.mxu0 0.0
    %3323 = vmatpush1.msra.mxu0 0.0
    %3324 = vmatprep.subr.mxu0 0.0
    %3325 = vmatpush1.msra.mxu0 0.0
    %3326 = vmatprep.subr.mxu0 0.0
    %3327 = vmatpush1.msra.mxu0 0.0
    %3328 = vmatprep.subr.mxu0 0.0
    %3329 = vmatpush1.msra.mxu0 0.0
    %3330 = vmatprep.subr.mxu0 0.0
    %3331 = vmatpush1.msra.mxu0 0.0
    %3332 = vmatprep.subr.mxu0 0.0
    %3333 = vmatpush1.msra.mxu0 0.0
    %3334 = vmatprep.subr.mxu0 0.0
    %3335 = vmatpush1.msra.mxu0 0.0
    %3336 = vmatprep.subr.mxu0 0.0
    %3337 = vmatpush1.msra.mxu0 0.0
    %3338 = vmatprep.subr.mxu0 0.0
    %3339 = vmatpush1.msra.mxu0 0.0
    %3340 = vmatprep.subr.mxu0 0.0
    %3341 = vmatpush1.msra.mxu0 0.0
    %3342 = vmatprep.subr.mxu0 0.0
    %3343 = vmatpush1.msra.mxu0 0.0
    %3344 = vmatprep.subr.mxu0 0.0
    %3345 = vmatpush1.msra.mxu0 %v3306
    %3346 = vmatprep.subr.mxu0 0.0
    %3347 = vmatpush1.msra.mxu0 %v3305
    %3348 = vmatprep.subr.mxu0 0.0
    %3349 = vmatpush1.msra.mxu0 %v3304
    %3350 = vmatprep.subr.mxu0 0.0
    %3351 = vmatpush1.msra.mxu0 %v3303
    %3352 = vmatprep.subr.mxu0 0.0
    %3353 = vmatpush2.msra.mxu0 0.0
    %3354 = vmatprep.subr.mxu0 0.0
    %3355 = vmatpush2.msra.mxu0 0.0
    %3356 = vmatprep.subr.mxu0 0.0
    %3357 = vmatpush2.msra.mxu0 0.0
    %3358 = vmatprep.subr.mxu0 0.0
    %3359 = vmatpush2.msra.mxu0 0.0
    %3360 = vmatprep.subr.mxu0 0.0
    %3361 = vmatpush2.msra.mxu0 0.0
    %3362 = vmatprep.subr.mxu0 0.0
    %3363 = vmatpush2.msra.mxu0 0.0
    %3364 = vmatprep.subr.mxu0 0.0
    %3365 = vmatpush2.msra.mxu0 0.0
    %3366 = vmatprep.subr.mxu0 0.0
    %3367 = vmatpush2.msra.mxu0 0.0
    %3368 = vmatprep.subr.mxu0 0.0
    %3369 = vmatpush2.msra.mxu0 0.0
    %3370 = vmatprep.subr.mxu0 0.0
    %3371 = vmatpush2.msra.mxu0 0.0
    %3372 = vmatprep.subr.mxu0 0.0
    %3373 = vmatpush2.msra.mxu0 0.0
    %3374 = vmatprep.subr.mxu0 0.0
    %3375 = vmatpush2.msra.mxu0 0.0
    %3376 = vmatprep.subr.mxu0 0.0
    %3377 = vmatpush2.msra.mxu0 0.0
    %3378 = vmatprep.subr.mxu0 0.0
    %3379 = vmatpush2.msra.mxu0 0.0
    %3380 = vmatprep.subr.mxu0 0.0
    %3381 = vmatpush2.msra.mxu0 0.0
    %3382 = vmatprep.subr.mxu0 0.0
    %3383 = vmatpush2.msra.mxu0 0.0
    %3384 = vmatprep.mubr.f32.mxu0 0.0
    %3385 = vmatmul.mubr.f32.gmra.mxu0 %v3315
    %v3386 = vpop.f32.mrf.mxu0
    %v3387 = vadd.f32 %v3312, %v3386
    %v3388 = vpop.f32.mrf.mxu0
    %3389 = vmatprep.mubr.f32.mxu0 0.0
    %3390 = vmatmul.mubr.f32.gmra.mxu0 %v3318
    %v3391 = vpop.f32.mrf.mxu0
    %v3392 = vadd.f32 %v3312, %v3391
    %v3393 = vpop.f32.mrf.mxu0
    %3394 = vdwg.mxu0
    %v3395 = vld [vmem:[#allocation29] sm:$0x1]
    %v3396 = vld [vmem:[#allocation31] sm:$0x1]
    %v3397 = vsel %vm655, %v3387, 0.0
    %3398 = vadd.xlane.f32.xlu0 %v3397
    %v3399 = vpop.xlane.xlu0 %3398
    %v3400 = vsel %vm655, %v3392, 0.0
    %3401 = vadd.xlane.f32.xlu0 %v3400
    %v3402 = vpop.xlane.xlu0 %3401
    %v3403 = vmul.f32 %v3399, %v3256
    %v3404 = vmul.f32 %v3402, %v3256
    %v3405 = vsub.f32 %v3387, %v3403
    %v3406 = vsub.f32 %v3392, %v3404
    %v3407 = vmul.f32 %v3405, %v3405
    %v3408 = vmul.f32 %v3406, %v3406
    %v3409 = vsel %vm655, %v3407, 0.0
    %3410 = vadd.xlane.f32.xlu0 %v3409
    %v3411 = vpop.xlane.xlu0 %3410
    %v3412 = vsel %vm655, %v3408, 0.0
    %3413 = vadd.xlane.f32.xlu0 %v3412
    %v3414 = vpop.xlane.xlu0 %3413
    %v3415 = vmul.f32 %v3411, %v3256
    %v3416 = vmul.f32 %v3414, %v3256
    %v3417 = vadd.f32 %v3415, 1e-05
    %v3418 = vadd.f32 %v3416, 1e-05
    %v3419 = vrsqrt.pop %v3417
    %v3420 = vrsqrt.pop %v3418
    %v3421 = vmul.f32 %v3405, %v3419
    %v3422 = vmul.f32 %v3406, %v3420
    %v3424 = vlaneseq
    %v3425 = vshrl.u32 %v3424, 7
    %v3426 = vsub.s32 0, %v3425
    %v3427 = vrot.slane %v3395, %v3426
    %v3429 = vmul.f32 %v3421, %v3427
    %v3430 = vmul.f32 %v3422, %v3427
    %v3432 = vlaneseq
    %v3433 = vshrl.u32 %v3432, 7
    %v3434 = vsub.s32 0, %v3433
    %v3435 = vrot.slane %v3396, %v3434
    %v3437 = vadd.f32 %v3429, %v3435
    %v3438 = vadd.f32 %v3430, %v3435
    %v3439 = vtanh.pop %v3437
    %v3440 = vtanh.pop %v3438
    %v3441 = vmul.f32 %v3439, 3.1615268e-26
    %v3442 = vmul.f32 %v3440, 3.1615268e-26
    %v3443 = vld [vmem:[#allocation22] sm:$0xff]
    %v3444 = vld [vmem:[#allocation22 + $0x8] sm:$0xff]
    %v3445 = vld [vmem:[#allocation22 + $0x10] sm:$0xff]
    %v3446 = vld [vmem:[#allocation22 + $0x18] sm:$0xff]
    %s3447 = scalar_lea.vmem [#allocation23], 1
    %v3448 = vld [vmem:[%s3447] sm:$0x1]
    %v3450 = vlaneseq
    %v3451 = vshrl.u32 %v3450, 7
    %v3452 = vsub.s32 0, %v3451
    %v3453 = vrot.slane %v3448, %v3452
    %v3456 = vsel %vm655, %v3441, 0
    %v3459 = vsel %vm655, %v3442, 0
    %3461 = vmatprep.subr.mxu0 0.0
    %3462 = vmatpush1.msra.mxu0 0.0
    %3463 = vmatprep.subr.mxu0 0.0
    %3464 = vmatpush1.msra.mxu0 0.0
    %3465 = vmatprep.subr.mxu0 0.0
    %3466 = vmatpush1.msra.mxu0 0.0
    %3467 = vmatprep.subr.mxu0 0.0
    %3468 = vmatpush1.msra.mxu0 0.0
    %3469 = vmatprep.subr.mxu0 0.0
    %3470 = vmatpush1.msra.mxu0 0.0
    %3471 = vmatprep.subr.mxu0 0.0
    %3472 = vmatpush1.msra.mxu0 0.0
    %3473 = vmatprep.subr.mxu0 0.0
    %3474 = vmatpush1.msra.mxu0 0.0
    %3475 = vmatprep.subr.mxu0 0.0
    %3476 = vmatpush1.msra.mxu0 0.0
    %3477 = vmatprep.subr.mxu0 0.0
    %3478 = vmatpush1.msra.mxu0 0.0
    %3479 = vmatprep.subr.mxu0 0.0
    %3480 = vmatpush1.msra.mxu0 0.0
    %3481 = vmatprep.subr.mxu0 0.0
    %3482 = vmatpush1.msra.mxu0 0.0
    %3483 = vmatprep.subr.mxu0 0.0
    %3484 = vmatpush1.msra.mxu0 0.0
    %3485 = vmatprep.subr.mxu0 0.0
    %3486 = vmatpush1.msra.mxu0 %v3446
    %3487 = vmatprep.subr.mxu0 0.0
    %3488 = vmatpush1.msra.mxu0 %v3445
    %3489 = vmatprep.subr.mxu0 0.0
    %3490 = vmatpush1.msra.mxu0 %v3444
    %3491 = vmatprep.subr.mxu0 0.0
    %3492 = vmatpush1.msra.mxu0 %v3443
    %3493 = vmatprep.subr.mxu0 0.0
    %3494 = vmatpush2.msra.mxu0 0.0
    %3495 = vmatprep.subr.mxu0 0.0
    %3496 = vmatpush2.msra.mxu0 0.0
    %3497 = vmatprep.subr.mxu0 0.0
    %3498 = vmatpush2.msra.mxu0 0.0
    %3499 = vmatprep.subr.mxu0 0.0
    %3500 = vmatpush2.msra.mxu0 0.0
    %3501 = vmatprep.subr.mxu0 0.0
    %3502 = vmatpush2.msra.mxu0 0.0
    %3503 = vmatprep.subr.mxu0 0.0
    %3504 = vmatpush2.msra.mxu0 0.0
    %3505 = vmatprep.subr.mxu0 0.0
    %3506 = vmatpush2.msra.mxu0 0.0
    %3507 = vmatprep.subr.mxu0 0.0
    %3508 = vmatpush2.msra.mxu0 0.0
    %3509 = vmatprep.subr.mxu0 0.0
    %3510 = vmatpush2.msra.mxu0 0.0
    %3511 = vmatprep.subr.mxu0 0.0
    %3512 = vmatpush2.msra.mxu0 0.0
    %3513 = vmatprep.subr.mxu0 0.0
    %3514 = vmatpush2.msra.mxu0 0.0
    %3515 = vmatprep.subr.mxu0 0.0
    %3516 = vmatpush2.msra.mxu0 0.0
    %3517 = vmatprep.subr.mxu0 0.0
    %3518 = vmatpush2.msra.mxu0 0.0
    %3519 = vmatprep.subr.mxu0 0.0
    %3520 = vmatpush2.msra.mxu0 0.0
    %3521 = vmatprep.subr.mxu0 0.0
    %3522 = vmatpush2.msra.mxu0 0.0
    %3523 = vmatprep.subr.mxu0 0.0
    %3524 = vmatpush2.msra.mxu0 0.0
    %3525 = vmatprep.mubr.f32.mxu0 0.0
    %3526 = vmatmul.mubr.f32.gmra.mxu0 %v3456
    %v3527 = vpop.f32.mrf.mxu0
    %v3528 = vadd.f32 %v3453, %v3527
    %v3529 = vpop.f32.mrf.mxu0
    %3530 = vmatprep.mubr.f32.mxu0 0.0
    %3531 = vmatmul.mubr.f32.gmra.mxu0 %v3459
    %v3532 = vpop.f32.mrf.mxu0
    %v3533 = vadd.f32 %v3453, %v3532
    %v3534 = vpop.f32.mrf.mxu0
    %3535 = vdwg.mxu0
    %s3536 = scalar_lea.vmem [#allocation25], 1
    %v3537 = vld [vmem:[%s3536] sm:$0x1]
    %s3538 = scalar_lea.vmem [#allocation26], 1
    %v3539 = vld [vmem:[%s3538] sm:$0x1]
    %v3540 = vsel %vm655, %v3528, 0.0
    %3541 = vadd.xlane.f32.xlu0 %v3540
    %v3542 = vpop.xlane.xlu0 %3541
    %v3543 = vsel %vm655, %v3533, 0.0
    %3544 = vadd.xlane.f32.xlu0 %v3543
    %v3545 = vpop.xlane.xlu0 %3544
    %v3546 = vmul.f32 %v3542, %v3256
    %v3547 = vmul.f32 %v3545, %v3256
    %v3548 = vsub.f32 %v3528, %v3546
    %v3549 = vsub.f32 %v3533, %v3547
    %v3550 = vmul.f32 %v3548, %v3548
    %v3551 = vmul.f32 %v3549, %v3549
    %v3552 = vsel %vm655, %v3550, 0.0
    %3553 = vadd.xlane.f32.xlu0 %v3552
    %v3554 = vpop.xlane.xlu0 %3553
    %v3555 = vsel %vm655, %v3551, 0.0
    %3556 = vadd.xlane.f32.xlu0 %v3555
    %v3557 = vpop.xlane.xlu0 %3556
    %v3558 = vmul.f32 %v3554, %v3256
    %v3559 = vmul.f32 %v3557, %v3256
    %v3560 = vadd.f32 %v3558, 1e-05
    %v3561 = vadd.f32 %v3559, 1e-05
    %v3562 = vrsqrt.pop %v3560
    %v3563 = vrsqrt.pop %v3561
    %v3564 = vmul.f32 %v3548, %v3562
    %v3565 = vmul.f32 %v3549, %v3563
    %v3567 = vlaneseq
    %v3568 = vshrl.u32 %v3567, 7
    %v3569 = vsub.s32 0, %v3568
    %v3570 = vrot.slane %v3537, %v3569
    %v3572 = vmul.f32 %v3564, %v3570
    %v3573 = vmul.f32 %v3565, %v3570
    %v3575 = vlaneseq
    %v3576 = vshrl.u32 %v3575, 7
    %v3577 = vsub.s32 0, %v3576
    %v3578 = vrot.slane %v3539, %v3577
    %v3580 = vadd.f32 %v3572, %v3578
    %v3581 = vadd.f32 %v3573, %v3578
    %v3582 = vmul.f32 %v3580, 0.5
    %v3583 = vmul.f32 %v3581, 0.5
    %v3584 = vmul.f32 %v3580, 0.70710677
    %v3585 = vmul.f32 %v3581, 0.70710677
    %v3586 = verf.f32.pop %v3584
    %v3587 = verf.f32.pop %v3585
    %v3588 = vadd.f32 %v3586, 1.0
    %v3589 = vadd.f32 %v3587, 1.0
    %v3590 = vmul.f32 %v3582, %v3588
    %v3591 = vmul.f32 %v3583, %v3589
    %s3592 = scalar_lea.vmem %s45, 32
    %v3593 = vld [vmem:[%s3592] sm:$0xff]
    %v3594 = vld [vmem:[%s3592 + $0x8] sm:$0xff]
    %v3595 = vld [vmem:[%s3592 + $0x10] sm:$0xff]
    %v3596 = vld [vmem:[%s3592 + $0x18] sm:$0xff]
    %s3597 = scalar_lea.vmem [#allocation28], 1
    %v3598 = vld [vmem:[%s3597] sm:$0x1]
    %v3600 = vlaneseq
    %v3601 = vshrl.u32 %v3600, 7
    %v3602 = vsub.s32 0, %v3601
    %v3603 = vrot.slane %v3598, %v3602
    %v3606 = vsel %vm655, %v3590, 0
    %v3609 = vsel %vm655, %v3591, 0
    %3611 = vmatprep.subr.mxu0 0.0
    %3612 = vmatpush1.msra.mxu0 0.0
    %3613 = vmatprep.subr.mxu0 0.0
    %3614 = vmatpush1.msra.mxu0 0.0
    %3615 = vmatprep.subr.mxu0 0.0
    %3616 = vmatpush1.msra.mxu0 0.0
    %3617 = vmatprep.subr.mxu0 0.0
    %3618 = vmatpush1.msra.mxu0 0.0
    %3619 = vmatprep.subr.mxu0 0.0
    %3620 = vmatpush1.msra.mxu0 0.0
    %3621 = vmatprep.subr.mxu0 0.0
    %3622 = vmatpush1.msra.mxu0 0.0
    %3623 = vmatprep.subr.mxu0 0.0
    %3624 = vmatpush1.msra.mxu0 0.0
    %3625 = vmatprep.subr.mxu0 0.0
    %3626 = vmatpush1.msra.mxu0 0.0
    %3627 = vmatprep.subr.mxu0 0.0
    %3628 = vmatpush1.msra.mxu0 0.0
    %3629 = vmatprep.subr.mxu0 0.0
    %3630 = vmatpush1.msra.mxu0 0.0
    %3631 = vmatprep.subr.mxu0 0.0
    %3632 = vmatpush1.msra.mxu0 0.0
    %3633 = vmatprep.subr.mxu0 0.0
    %3634 = vmatpush1.msra.mxu0 0.0
    %3635 = vmatprep.subr.mxu0 0.0
    %3636 = vmatpush1.msra.mxu0 %v3596
    %3637 = vmatprep.subr.mxu0 0.0
    %3638 = vmatpush1.msra.mxu0 %v3595
    %3639 = vmatprep.subr.mxu0 0.0
    %3640 = vmatpush1.msra.mxu0 %v3594
    %3641 = vmatprep.subr.mxu0 0.0
    %3642 = vmatpush1.msra.mxu0 %v3593
    %3643 = vmatprep.subr.mxu0 0.0
    %3644 = vmatpush2.msra.mxu0 0.0
    %3645 = vmatprep.subr.mxu0 0.0
    %3646 = vmatpush2.msra.mxu0 0.0
    %3647 = vmatprep.subr.mxu0 0.0
    %3648 = vmatpush2.msra.mxu0 0.0
    %3649 = vmatprep.subr.mxu0 0.0
    %3650 = vmatpush2.msra.mxu0 0.0
    %3651 = vmatprep.subr.mxu0 0.0
    %3652 = vmatpush2.msra.mxu0 0.0
    %3653 = vmatprep.subr.mxu0 0.0
    %3654 = vmatpush2.msra.mxu0 0.0
    %3655 = vmatprep.subr.mxu0 0.0
    %3656 = vmatpush2.msra.mxu0 0.0
    %3657 = vmatprep.subr.mxu0 0.0
    %3658 = vmatpush2.msra.mxu0 0.0
    %3659 = vmatprep.subr.mxu0 0.0
    %3660 = vmatpush2.msra.mxu0 0.0
    %3661 = vmatprep.subr.mxu0 0.0
    %3662 = vmatpush2.msra.mxu0 0.0
    %3663 = vmatprep.subr.mxu0 0.0
    %3664 = vmatpush2.msra.mxu0 0.0
    %3665 = vmatprep.subr.mxu0 0.0
    %3666 = vmatpush2.msra.mxu0 0.0
    %3667 = vmatprep.subr.mxu0 0.0
    %3668 = vmatpush2.msra.mxu0 0.0
    %3669 = vmatprep.subr.mxu0 0.0
    %3670 = vmatpush2.msra.mxu0 0.0
    %3671 = vmatprep.subr.mxu0 0.0
    %3672 = vmatpush2.msra.mxu0 0.0
    %3673 = vmatprep.subr.mxu0 0.0
    %3674 = vmatpush2.msra.mxu0 0.0
    %3675 = vmatprep.mubr.f32.mxu0 0.0
    %3676 = vmatmul.mubr.f32.gmra.mxu0 %v3606
    %v3677 = vpop.f32.mrf.mxu0
    %v3678 = vadd.f32 %v3603, %v3677
    %v3679 = vpop.f32.mrf.mxu0
    %3680 = vmatprep.mubr.f32.mxu0 0.0
    %3681 = vmatmul.mubr.f32.gmra.mxu0 %v3609
    %v3682 = vpop.f32.mrf.mxu0
    %v3683 = vadd.f32 %v3603, %v3682
    %v3684 = vpop.f32.mrf.mxu0
    %3685 = vdwg.mxu0
    %s3686 = scalar_lea.vmem [#allocation29], 1
    %v3687 = vld [vmem:[%s3686] sm:$0x1]
    %s3688 = scalar_lea.vmem [#allocation31], 1
    %v3689 = vld [vmem:[%s3688] sm:$0x1]
    %v3690 = vsel %vm655, %v3678, 0.0
    %3691 = vadd.xlane.f32.xlu0 %v3690
    %v3692 = vpop.xlane.xlu0 %3691
    %v3693 = vsel %vm655, %v3683, 0.0
    %3694 = vadd.xlane.f32.xlu0 %v3693
    %v3695 = vpop.xlane.xlu0 %3694
    %v3696 = vmul.f32 %v3692, %v3256
    %v3697 = vmul.f32 %v3695, %v3256
    %v3698 = vsub.f32 %v3678, %v3696
    %v3699 = vsub.f32 %v3683, %v3697
    %v3700 = vmul.f32 %v3698, %v3698
    %v3701 = vmul.f32 %v3699, %v3699
    %v3702 = vsel %vm655, %v3700, 0.0
    %3703 = vadd.xlane.f32.xlu0 %v3702
    %v3704 = vpop.xlane.xlu0 %3703
    %v3705 = vsel %vm655, %v3701, 0.0
    %3706 = vadd.xlane.f32.xlu0 %v3705
    %v3707 = vpop.xlane.xlu0 %3706
    %v3708 = vmul.f32 %v3704, %v3256
    %v3709 = vmul.f32 %v3707, %v3256
    %v3710 = vadd.f32 %v3708, 1e-05
    %v3711 = vadd.f32 %v3709, 1e-05
    %v3712 = vrsqrt.pop %v3710
    %v3713 = vrsqrt.pop %v3711
    %v3714 = vmul.f32 %v3698, %v3712
    %v3715 = vmul.f32 %v3699, %v3713
    %v3717 = vlaneseq
    %v3718 = vshrl.u32 %v3717, 7
    %v3719 = vsub.s32 0, %v3718
    %v3720 = vrot.slane %v3687, %v3719
    %v3722 = vmul.f32 %v3714, %v3720
    %v3723 = vmul.f32 %v3715, %v3720
    %v3725 = vlaneseq
    %v3726 = vshrl.u32 %v3725, 7
    %v3727 = vsub.s32 0, %v3726
    %v3728 = vrot.slane %v3689, %v3727
    %v3730 = vadd.f32 %v3722, %v3728
    %v3731 = vadd.f32 %v3723, %v3728
    %v3732 = vtanh.pop %v3730
    %v3733 = vtanh.pop %v3731
    %v3734 = vmul.f32 %v3732, 3.1615268e-26
    %v3735 = vmul.f32 %v3733, 3.1615268e-26
    %s3736 = scalar_lea.vmem [#allocation22], 32
    %v3737 = vld [vmem:[%s3736] sm:$0xff]
    %v3738 = vld [vmem:[%s3736 + $0x8] sm:$0xff]
    %v3739 = vld [vmem:[%s3736 + $0x10] sm:$0xff]
    %v3740 = vld [vmem:[%s3736 + $0x18] sm:$0xff]
    %s3741 = scalar_lea.vmem [#allocation23], 2
    %v3742 = vld [vmem:[%s3741] sm:$0x1]
    %v3744 = vlaneseq
    %v3745 = vshrl.u32 %v3744, 7
    %v3746 = vsub.s32 0, %v3745
    %v3747 = vrot.slane %v3742, %v3746
    %v3750 = vsel %vm655, %v3734, 0
    %v3753 = vsel %vm655, %v3735, 0
    %3755 = vmatprep.subr.mxu0 0.0
    %3756 = vmatpush1.msra.mxu0 0.0
    %3757 = vmatprep.subr.mxu0 0.0
    %3758 = vmatpush1.msra.mxu0 0.0
    %3759 = vmatprep.subr.mxu0 0.0
    %3760 = vmatpush1.msra.mxu0 0.0
    %3761 = vmatprep.subr.mxu0 0.0
    %3762 = vmatpush1.msra.mxu0 0.0
    %3763 = vmatprep.subr.mxu0 0.0
    %3764 = vmatpush1.msra.mxu0 0.0
    %3765 = vmatprep.subr.mxu0 0.0
    %3766 = vmatpush1.msra.mxu0 0.0
    %3767 = vmatprep.subr.mxu0 0.0
    %3768 = vmatpush1.msra.mxu0 0.0
    %3769 = vmatprep.subr.mxu0 0.0
    %3770 = vmatpush1.msra.mxu0 0.0
    %3771 = vmatprep.subr.mxu0 0.0
    %3772 = vmatpush1.msra.mxu0 0.0
    %3773 = vmatprep.subr.mxu0 0.0
    %3774 = vmatpush1.msra.mxu0 0.0
    %3775 = vmatprep.subr.mxu0 0.0
    %3776 = vmatpush1.msra.mxu0 0.0
    %3777 = vmatprep.subr.mxu0 0.0
    %3778 = vmatpush1.msra.mxu0 0.0
    %3779 = vmatprep.subr.mxu0 0.0
    %3780 = vmatpush1.msra.mxu0 %v3740
    %3781 = vmatprep.subr.mxu0 0.0
    %3782 = vmatpush1.msra.mxu0 %v3739
    %3783 = vmatprep.subr.mxu0 0.0
    %3784 = vmatpush1.msra.mxu0 %v3738
    %3785 = vmatprep.subr.mxu0 0.0
    %3786 = vmatpush1.msra.mxu0 %v3737
    %3787 = vmatprep.subr.mxu0 0.0
    %3788 = vmatpush2.msra.mxu0 0.0
    %3789 = vmatprep.subr.mxu0 0.0
    %3790 = vmatpush2.msra.mxu0 0.0
    %3791 = vmatprep.subr.mxu0 0.0
    %3792 = vmatpush2.msra.mxu0 0.0
    %3793 = vmatprep.subr.mxu0 0.0
    %3794 = vmatpush2.msra.mxu0 0.0
    %3795 = vmatprep.subr.mxu0 0.0
    %3796 = vmatpush2.msra.mxu0 0.0
    %3797 = vmatprep.subr.mxu0 0.0
    %3798 = vmatpush2.msra.mxu0 0.0
    %3799 = vmatprep.subr.mxu0 0.0
    %3800 = vmatpush2.msra.mxu0 0.0
    %3801 = vmatprep.subr.mxu0 0.0
    %3802 = vmatpush2.msra.mxu0 0.0
    %3803 = vmatprep.subr.mxu0 0.0
    %3804 = vmatpush2.msra.mxu0 0.0
    %3805 = vmatprep.subr.mxu0 0.0
    %3806 = vmatpush2.msra.mxu0 0.0
    %3807 = vmatprep.subr.mxu0 0.0
    %3808 = vmatpush2.msra.mxu0 0.0
    %3809 = vmatprep.subr.mxu0 0.0
    %3810 = vmatpush2.msra.mxu0 0.0
    %3811 = vmatprep.subr.mxu0 0.0
    %3812 = vmatpush2.msra.mxu0 0.0
    %3813 = vmatprep.subr.mxu0 0.0
    %3814 = vmatpush2.msra.mxu0 0.0
    %3815 = vmatprep.subr.mxu0 0.0
    %3816 = vmatpush2.msra.mxu0 0.0
    %3817 = vmatprep.subr.mxu0 0.0
    %3818 = vmatpush2.msra.mxu0 0.0
    %3819 = vmatprep.mubr.f32.mxu0 0.0
    %3820 = vmatmul.mubr.f32.gmra.mxu0 %v3750
    %v3821 = vpop.f32.mrf.mxu0
    %v3822 = vadd.f32 %v3747, %v3821
    %v3823 = vpop.f32.mrf.mxu0
    %3824 = vmatprep.mubr.f32.mxu0 0.0
    %3825 = vmatmul.mubr.f32.gmra.mxu0 %v3753
    %v3826 = vpop.f32.mrf.mxu0
    %v3827 = vadd.f32 %v3747, %v3826
    %v3828 = vpop.f32.mrf.mxu0
    %3829 = vdwg.mxu0
    %s3830 = scalar_lea.vmem [#allocation25], 2
    %v3831 = vld [vmem:[%s3830] sm:$0x1]
    %s3832 = scalar_lea.vmem [#allocation26], 2
    %v3833 = vld [vmem:[%s3832] sm:$0x1]
    %v3834 = vsel %vm655, %v3822, 0.0
    %3835 = vadd.xlane.f32.xlu0 %v3834
    %v3836 = vpop.xlane.xlu0 %3835
    %v3837 = vsel %vm655, %v3827, 0.0
    %3838 = vadd.xlane.f32.xlu0 %v3837
    %v3839 = vpop.xlane.xlu0 %3838
    %v3840 = vmul.f32 %v3836, %v3256
    %v3841 = vmul.f32 %v3839, %v3256
    %v3842 = vsub.f32 %v3822, %v3840
    %v3843 = vsub.f32 %v3827, %v3841
    %v3844 = vmul.f32 %v3842, %v3842
    %v3845 = vmul.f32 %v3843, %v3843
    %v3846 = vsel %vm655, %v3844, 0.0
    %3847 = vadd.xlane.f32.xlu0 %v3846
    %v3848 = vpop.xlane.xlu0 %3847
    %v3849 = vsel %vm655, %v3845, 0.0
    %3850 = vadd.xlane.f32.xlu0 %v3849
    %v3851 = vpop.xlane.xlu0 %3850
    %v3852 = vmul.f32 %v3848, %v3256
    %v3853 = vmul.f32 %v3851, %v3256
    %v3854 = vadd.f32 %v3852, 1e-05
    %v3855 = vadd.f32 %v3853, 1e-05
    %v3856 = vrsqrt.pop %v3854
    %v3857 = vrsqrt.pop %v3855
    %v3858 = vmul.f32 %v3842, %v3856
    %v3859 = vmul.f32 %v3843, %v3857
    %v3861 = vlaneseq
    %v3862 = vshrl.u32 %v3861, 7
    %v3863 = vsub.s32 0, %v3862
    %v3864 = vrot.slane %v3831, %v3863
    %v3866 = vmul.f32 %v3858, %v3864
    %v3867 = vmul.f32 %v3859, %v3864
    %v3869 = vlaneseq
    %v3870 = vshrl.u32 %v3869, 7
    %v3871 = vsub.s32 0, %v3870
    %v3872 = vrot.slane %v3833, %v3871
    %v3874 = vadd.f32 %v3866, %v3872
    %v3875 = vadd.f32 %v3867, %v3872
    %v3876 = vmul.f32 %v3874, 0.5
    %v3877 = vmul.f32 %v3875, 0.5
    %v3878 = vmul.f32 %v3874, 0.70710677
    %v3879 = vmul.f32 %v3875, 0.70710677
    %v3880 = verf.f32.pop %v3878
    %v3881 = verf.f32.pop %v3879
    %v3882 = vadd.f32 %v3880, 1.0
    %v3883 = vadd.f32 %v3881, 1.0
    %v3884 = vmul.f32 %v3876, %v3882
    %v3885 = vmul.f32 %v3877, %v3883
    %s3886 = scalar_lea.vmem %s45, 64
    %v3887 = vld [vmem:[%s3886] sm:$0xff]
    %v3888 = vld [vmem:[%s3886 + $0x8] sm:$0xff]
    %v3889 = vld [vmem:[%s3886 + $0x10] sm:$0xff]
    %v3890 = vld [vmem:[%s3886 + $0x18] sm:$0xff]
    %s3891 = scalar_lea.vmem [#allocation28], 2
    %v3892 = vld [vmem:[%s3891] sm:$0x1]
    %v3894 = vlaneseq
    %v3895 = vshrl.u32 %v3894, 7
    %v3896 = vsub.s32 0, %v3895
    %v3897 = vrot.slane %v3892, %v3896
    %v3900 = vsel %vm655, %v3884, 0
    %v3903 = vsel %vm655, %v3885, 0
    %3905 = vmatprep.subr.mxu0 0.0
    %3906 = vmatpush1.msra.mxu0 0.0
    %3907 = vmatprep.subr.mxu0 0.0
    %3908 = vmatpush1.msra.mxu0 0.0
    %3909 = vmatprep.subr.mxu0 0.0
    %3910 = vmatpush1.msra.mxu0 0.0
    %3911 = vmatprep.subr.mxu0 0.0
    %3912 = vmatpush1.msra.mxu0 0.0
    %3913 = vmatprep.subr.mxu0 0.0
    %3914 = vmatpush1.msra.mxu0 0.0
    %3915 = vmatprep.subr.mxu0 0.0
    %3916 = vmatpush1.msra.mxu0 0.0
    %3917 = vmatprep.subr.mxu0 0.0
    %3918 = vmatpush1.msra.mxu0 0.0
    %3919 = vmatprep.subr.mxu0 0.0
    %3920 = vmatpush1.msra.mxu0 0.0
    %3921 = vmatprep.subr.mxu0 0.0
    %3922 = vmatpush1.msra.mxu0 0.0
    %3923 = vmatprep.subr.mxu0 0.0
    %3924 = vmatpush1.msra.mxu0 0.0
    %3925 = vmatprep.subr.mxu0 0.0
    %3926 = vmatpush1.msra.mxu0 0.0
    %3927 = vmatprep.subr.mxu0 0.0
    %3928 = vmatpush1.msra.mxu0 0.0
    %3929 = vmatprep.subr.mxu0 0.0
    %3930 = vmatpush1.msra.mxu0 %v3890
    %3931 = vmatprep.subr.mxu0 0.0
    %3932 = vmatpush1.msra.mxu0 %v3889
    %3933 = vmatprep.subr.mxu0 0.0
    %3934 = vmatpush1.msra.mxu0 %v3888
    %3935 = vmatprep.subr.mxu0 0.0
    %3936 = vmatpush1.msra.mxu0 %v3887
    %3937 = vmatprep.subr.mxu0 0.0
    %3938 = vmatpush2.msra.mxu0 0.0
    %3939 = vmatprep.subr.mxu0 0.0
    %3940 = vmatpush2.msra.mxu0 0.0
    %3941 = vmatprep.subr.mxu0 0.0
    %3942 = vmatpush2.msra.mxu0 0.0
    %3943 = vmatprep.subr.mxu0 0.0
    %3944 = vmatpush2.msra.mxu0 0.0
    %3945 = vmatprep.subr.mxu0 0.0
    %3946 = vmatpush2.msra.mxu0 0.0
    %3947 = vmatprep.subr.mxu0 0.0
    %3948 = vmatpush2.msra.mxu0 0.0
    %3949 = vmatprep.subr.mxu0 0.0
    %3950 = vmatpush2.msra.mxu0 0.0
    %3951 = vmatprep.subr.mxu0 0.0
    %3952 = vmatpush2.msra.mxu0 0.0
    %3953 = vmatprep.subr.mxu0 0.0
    %3954 = vmatpush2.msra.mxu0 0.0
    %3955 = vmatprep.subr.mxu0 0.0
    %3956 = vmatpush2.msra.mxu0 0.0
    %3957 = vmatprep.subr.mxu0 0.0
    %3958 = vmatpush2.msra.mxu0 0.0
    %3959 = vmatprep.subr.mxu0 0.0
    %3960 = vmatpush2.msra.mxu0 0.0
    %3961 = vmatprep.subr.mxu0 0.0
    %3962 = vmatpush2.msra.mxu0 0.0
    %3963 = vmatprep.subr.mxu0 0.0
    %3964 = vmatpush2.msra.mxu0 0.0
    %3965 = vmatprep.subr.mxu0 0.0
    %3966 = vmatpush2.msra.mxu0 0.0
    %3967 = vmatprep.subr.mxu0 0.0
    %3968 = vmatpush2.msra.mxu0 0.0
    %3969 = vmatprep.mubr.f32.mxu0 0.0
    %3970 = vmatmul.mubr.f32.gmra.mxu0 %v3900
    %v3971 = vpop.f32.mrf.mxu0
    %v3972 = vadd.f32 %v3897, %v3971
    %v3973 = vpop.f32.mrf.mxu0
    %3974 = vmatprep.mubr.f32.mxu0 0.0
    %3975 = vmatmul.mubr.f32.gmra.mxu0 %v3903
    %v3976 = vpop.f32.mrf.mxu0
    %v3977 = vadd.f32 %v3897, %v3976
    %v3978 = vpop.f32.mrf.mxu0
    %3979 = vdwg.mxu0
    %s3980 = scalar_lea.vmem [#allocation29], 2
    %v3981 = vld [vmem:[%s3980] sm:$0x1]
    %s3982 = scalar_lea.vmem [#allocation31], 2
    %v3983 = vld [vmem:[%s3982] sm:$0x1]
    %v3984 = vsel %vm655, %v3972, 0.0
    %3985 = vadd.xlane.f32.xlu0 %v3984
    %v3986 = vpop.xlane.xlu0 %3985
    %v3987 = vsel %vm655, %v3977, 0.0
    %3988 = vadd.xlane.f32.xlu0 %v3987
    %v3989 = vpop.xlane.xlu0 %3988
    %v3990 = vmul.f32 %v3986, %v3256
    %v3991 = vmul.f32 %v3989, %v3256
    %v3992 = vsub.f32 %v3972, %v3990
    %v3993 = vsub.f32 %v3977, %v3991
    %v3994 = vmul.f32 %v3992, %v3992
    %v3995 = vmul.f32 %v3993, %v3993
    %v3996 = vsel %vm655, %v3994, 0.0
    %3997 = vadd.xlane.f32.xlu0 %v3996
    %v3998 = vpop.xlane.xlu0 %3997
    %v3999 = vsel %vm655, %v3995, 0.0
    %4000 = vadd.xlane.f32.xlu0 %v3999
    %v4001 = vpop.xlane.xlu0 %4000
    %v4002 = vmul.f32 %v3998, %v3256
    %v4003 = vmul.f32 %v4001, %v3256
    %v4004 = vadd.f32 %v4002, 1e-05
    %v4005 = vadd.f32 %v4003, 1e-05
    %v4006 = vrsqrt.pop %v4004
    %v4007 = vrsqrt.pop %v4005
    %v4008 = vmul.f32 %v3992, %v4006
    %v4009 = vmul.f32 %v3993, %v4007
    %v4011 = vlaneseq
    %v4012 = vshrl.u32 %v4011, 7
    %v4013 = vsub.s32 0, %v4012
    %v4014 = vrot.slane %v3981, %v4013
    %v4016 = vmul.f32 %v4008, %v4014
    %v4017 = vmul.f32 %v4009, %v4014
    %v4019 = vlaneseq
    %v4020 = vshrl.u32 %v4019, 7
    %v4021 = vsub.s32 0, %v4020
    %v4022 = vrot.slane %v3983, %v4021
    %v4024 = vadd.f32 %v4016, %v4022
    %v4025 = vadd.f32 %v4017, %v4022
    %v4026 = vtanh.pop %v4024
    %v4027 = vtanh.pop %v4025
    %v4028 = vmul.f32 %v4026, 3.1615268e-26
    %v4029 = vmul.f32 %v4027, 3.1615268e-26
    %s4030 = scalar_lea.vmem [#allocation22], 64
    %v4031 = vld [vmem:[%s4030] sm:$0xff]
    %v4032 = vld [vmem:[%s4030 + $0x8] sm:$0xff]
    %v4033 = vld [vmem:[%s4030 + $0x10] sm:$0xff]
    %v4034 = vld [vmem:[%s4030 + $0x18] sm:$0xff]
    %s4035 = scalar_lea.vmem [#allocation23], 3
    %v4036 = vld [vmem:[%s4035] sm:$0x1]
    %v4038 = vlaneseq
    %v4039 = vshrl.u32 %v4038, 7
    %v4040 = vsub.s32 0, %v4039
    %v4041 = vrot.slane %v4036, %v4040
    %v4044 = vsel %vm655, %v4028, 0
    %v4047 = vsel %vm655, %v4029, 0
    %4049 = vmatprep.subr.mxu0 0.0
    %4050 = vmatpush1.msra.mxu0 0.0
    %4051 = vmatprep.subr.mxu0 0.0
    %4052 = vmatpush1.msra.mxu0 0.0
    %4053 = vmatprep.subr.mxu0 0.0
    %4054 = vmatpush1.msra.mxu0 0.0
    %4055 = vmatprep.subr.mxu0 0.0
    %4056 = vmatpush1.msra.mxu0 0.0
    %4057 = vmatprep.subr.mxu0 0.0
    %4058 = vmatpush1.msra.mxu0 0.0
    %4059 = vmatprep.subr.mxu0 0.0
    %4060 = vmatpush1.msra.mxu0 0.0
    %4061 = vmatprep.subr.mxu0 0.0
    %4062 = vmatpush1.msra.mxu0 0.0
    %4063 = vmatprep.subr.mxu0 0.0
    %4064 = vmatpush1.msra.mxu0 0.0
    %4065 = vmatprep.subr.mxu0 0.0
    %4066 = vmatpush1.msra.mxu0 0.0
    %4067 = vmatprep.subr.mxu0 0.0
    %4068 = vmatpush1.msra.mxu0 0.0
    %4069 = vmatprep.subr.mxu0 0.0
    %4070 = vmatpush1.msra.mxu0 0.0
    %4071 = vmatprep.subr.mxu0 0.0
    %4072 = vmatpush1.msra.mxu0 0.0
    %4073 = vmatprep.subr.mxu0 0.0
    %4074 = vmatpush1.msra.mxu0 %v4034
    %4075 = vmatprep.subr.mxu0 0.0
    %4076 = vmatpush1.msra.mxu0 %v4033
    %4077 = vmatprep.subr.mxu0 0.0
    %4078 = vmatpush1.msra.mxu0 %v4032
    %4079 = vmatprep.subr.mxu0 0.0
    %4080 = vmatpush1.msra.mxu0 %v4031
    %4081 = vmatprep.subr.mxu0 0.0
    %4082 = vmatpush2.msra.mxu0 0.0
    %4083 = vmatprep.subr.mxu0 0.0
    %4084 = vmatpush2.msra.mxu0 0.0
    %4085 = vmatprep.subr.mxu0 0.0
    %4086 = vmatpush2.msra.mxu0 0.0
    %4087 = vmatprep.subr.mxu0 0.0
    %4088 = vmatpush2.msra.mxu0 0.0
    %4089 = vmatprep.subr.mxu0 0.0
    %4090 = vmatpush2.msra.mxu0 0.0
    %4091 = vmatprep.subr.mxu0 0.0
    %4092 = vmatpush2.msra.mxu0 0.0
    %4093 = vmatprep.subr.mxu0 0.0
    %4094 = vmatpush2.msra.mxu0 0.0
    %4095 = vmatprep.subr.mxu0 0.0
    %4096 = vmatpush2.msra.mxu0 0.0
    %4097 = vmatprep.subr.mxu0 0.0
    %4098 = vmatpush2.msra.mxu0 0.0
    %4099 = vmatprep.subr.mxu0 0.0
    %4100 = vmatpush2.msra.mxu0 0.0
    %4101 = vmatprep.subr.mxu0 0.0
    %4102 = vmatpush2.msra.mxu0 0.0
    %4103 = vmatprep.subr.mxu0 0.0
    %4104 = vmatpush2.msra.mxu0 0.0
    %4105 = vmatprep.subr.mxu0 0.0
    %4106 = vmatpush2.msra.mxu0 0.0
    %4107 = vmatprep.subr.mxu0 0.0
    %4108 = vmatpush2.msra.mxu0 0.0
    %4109 = vmatprep.subr.mxu0 0.0
    %4110 = vmatpush2.msra.mxu0 0.0
    %4111 = vmatprep.subr.mxu0 0.0
    %4112 = vmatpush2.msra.mxu0 0.0
    %4113 = vmatprep.mubr.f32.mxu0 0.0
    %4114 = vmatmul.mubr.f32.gmra.mxu0 %v4044
    %v4115 = vpop.f32.mrf.mxu0
    %v4116 = vadd.f32 %v4041, %v4115
    %v4117 = vpop.f32.mrf.mxu0
    %4118 = vmatprep.mubr.f32.mxu0 0.0
    %4119 = vmatmul.mubr.f32.gmra.mxu0 %v4047
    %v4120 = vpop.f32.mrf.mxu0
    %v4121 = vadd.f32 %v4041, %v4120
    %v4122 = vpop.f32.mrf.mxu0
    %4123 = vdwg.mxu0
    %s4124 = scalar_lea.vmem [#allocation25], 3
    %v4125 = vld [vmem:[%s4124] sm:$0x1]
    %s4126 = scalar_lea.vmem [#allocation26], 3
    %v4127 = vld [vmem:[%s4126] sm:$0x1]
    %v4128 = vsel %vm655, %v4116, 0.0
    %4129 = vadd.xlane.f32.xlu0 %v4128
    %v4130 = vpop.xlane.xlu0 %4129
    %v4131 = vsel %vm655, %v4121, 0.0
    %4132 = vadd.xlane.f32.xlu0 %v4131
    %v4133 = vpop.xlane.xlu0 %4132
    %v4134 = vmul.f32 %v4130, %v3256
    %v4135 = vmul.f32 %v4133, %v3256
    %v4136 = vsub.f32 %v4116, %v4134
    %v4137 = vsub.f32 %v4121, %v4135
    %v4138 = vmul.f32 %v4136, %v4136
    %v4139 = vmul.f32 %v4137, %v4137
    %v4140 = vsel %vm655, %v4138, 0.0
    %4141 = vadd.xlane.f32.xlu0 %v4140
    %v4142 = vpop.xlane.xlu0 %4141
    %v4143 = vsel %vm655, %v4139, 0.0
    %4144 = vadd.xlane.f32.xlu0 %v4143
    %v4145 = vpop.xlane.xlu0 %4144
    %v4146 = vmul.f32 %v4142, %v3256
    %v4147 = vmul.f32 %v4145, %v3256
    %v4148 = vadd.f32 %v4146, 1e-05
    %v4149 = vadd.f32 %v4147, 1e-05
    %v4150 = vrsqrt.pop %v4148
    %v4151 = vrsqrt.pop %v4149
    %v4152 = vmul.f32 %v4136, %v4150
    %v4153 = vmul.f32 %v4137, %v4151
    %v4155 = vlaneseq
    %v4156 = vshrl.u32 %v4155, 7
    %v4157 = vsub.s32 0, %v4156
    %v4158 = vrot.slane %v4125, %v4157
    %v4160 = vmul.f32 %v4152, %v4158
    %v4161 = vmul.f32 %v4153, %v4158
    %v4163 = vlaneseq
    %v4164 = vshrl.u32 %v4163, 7
    %v4165 = vsub.s32 0, %v4164
    %v4166 = vrot.slane %v4127, %v4165
    %v4168 = vadd.f32 %v4160, %v4166
    %v4169 = vadd.f32 %v4161, %v4166
    %v4170 = vmul.f32 %v4168, 0.5
    %v4171 = vmul.f32 %v4169, 0.5
    %v4172 = vmul.f32 %v4168, 0.70710677
    %v4173 = vmul.f32 %v4169, 0.70710677
    %v4174 = verf.f32.pop %v4172
    %v4175 = verf.f32.pop %v4173
    %v4176 = vadd.f32 %v4174, 1.0
    %v4177 = vadd.f32 %v4175, 1.0
    %v4178 = vmul.f32 %v4170, %v4176
    %v4179 = vmul.f32 %v4171, %v4177
    %s4180 = scalar_lea.vmem %s45, 96
    %v4181 = vld [vmem:[%s4180] sm:$0xff]
    %v4182 = vld [vmem:[%s4180 + $0x8] sm:$0xff]
    %v4183 = vld [vmem:[%s4180 + $0x10] sm:$0xff]
    %v4184 = vld [vmem:[%s4180 + $0x18] sm:$0xff]
    %s4185 = scalar_lea.vmem [#allocation28], 3
    %v4186 = vld [vmem:[%s4185] sm:$0x1]
    %v4188 = vlaneseq
    %v4189 = vshrl.u32 %v4188, 7
    %v4190 = vsub.s32 0, %v4189
    %v4191 = vrot.slane %v4186, %v4190
    %v4194 = vsel %vm655, %v4178, 0
    %v4197 = vsel %vm655, %v4179, 0
    %4199 = vmatprep.subr.mxu0 0.0
    %4200 = vmatpush1.msra.mxu0 0.0
    %4201 = vmatprep.subr.mxu0 0.0
    %4202 = vmatpush1.msra.mxu0 0.0
    %4203 = vmatprep.subr.mxu0 0.0
    %4204 = vmatpush1.msra.mxu0 0.0
    %4205 = vmatprep.subr.mxu0 0.0
    %4206 = vmatpush1.msra.mxu0 0.0
    %4207 = vmatprep.subr.mxu0 0.0
    %4208 = vmatpush1.msra.mxu0 0.0
    %4209 = vmatprep.subr.mxu0 0.0
    %4210 = vmatpush1.msra.mxu0 0.0
    %4211 = vmatprep.subr.mxu0 0.0
    %4212 = vmatpush1.msra.mxu0 0.0
    %4213 = vmatprep.subr.mxu0 0.0
    %4214 = vmatpush1.msra.mxu0 0.0
    %4215 = vmatprep.subr.mxu0 0.0
    %4216 = vmatpush1.msra.mxu0 0.0
    %4217 = vmatprep.subr.mxu0 0.0
    %4218 = vmatpush1.msra.mxu0 0.0
    %4219 = vmatprep.subr.mxu0 0.0
    %4220 = vmatpush1.msra.mxu0 0.0
    %4221 = vmatprep.subr.mxu0 0.0
    %4222 = vmatpush1.msra.mxu0 0.0
    %4223 = vmatprep.subr.mxu0 0.0
    %4224 = vmatpush1.msra.mxu0 %v4184
    %4225 = vmatprep.subr.mxu0 0.0
    %4226 = vmatpush1.msra.mxu0 %v4183
    %4227 = vmatprep.subr.mxu0 0.0
    %4228 = vmatpush1.msra.mxu0 %v4182
    %4229 = vmatprep.subr.mxu0 0.0
    %4230 = vmatpush1.msra.mxu0 %v4181
    %4231 = vmatprep.subr.mxu0 0.0
    %4232 = vmatpush2.msra.mxu0 0.0
    %4233 = vmatprep.subr.mxu0 0.0
    %4234 = vmatpush2.msra.mxu0 0.0
    %4235 = vmatprep.subr.mxu0 0.0
    %4236 = vmatpush2.msra.mxu0 0.0
    %4237 = vmatprep.subr.mxu0 0.0
    %4238 = vmatpush2.msra.mxu0 0.0
    %4239 = vmatprep.subr.mxu0 0.0
    %4240 = vmatpush2.msra.mxu0 0.0
    %4241 = vmatprep.subr.mxu0 0.0
    %4242 = vmatpush2.msra.mxu0 0.0
    %4243 = vmatprep.subr.mxu0 0.0
    %4244 = vmatpush2.msra.mxu0 0.0
    %4245 = vmatprep.subr.mxu0 0.0
    %4246 = vmatpush2.msra.mxu0 0.0
    %4247 = vmatprep.subr.mxu0 0.0
    %4248 = vmatpush2.msra.mxu0 0.0
    %4249 = vmatprep.subr.mxu0 0.0
    %4250 = vmatpush2.msra.mxu0 0.0
    %4251 = vmatprep.subr.mxu0 0.0
    %4252 = vmatpush2.msra.mxu0 0.0
    %4253 = vmatprep.subr.mxu0 0.0
    %4254 = vmatpush2.msra.mxu0 0.0
    %4255 = vmatprep.subr.mxu0 0.0
    %4256 = vmatpush2.msra.mxu0 0.0
    %4257 = vmatprep.subr.mxu0 0.0
    %4258 = vmatpush2.msra.mxu0 0.0
    %4259 = vmatprep.subr.mxu0 0.0
    %4260 = vmatpush2.msra.mxu0 0.0
    %4261 = vmatprep.subr.mxu0 0.0
    %4262 = vmatpush2.msra.mxu0 0.0
    %4263 = vmatprep.mubr.f32.mxu0 0.0
    %4264 = vmatmul.mubr.f32.gmra.mxu0 %v4194
    %v4265 = vpop.f32.mrf.mxu0
    %v4266 = vadd.f32 %v4191, %v4265
    %v4267 = vpop.f32.mrf.mxu0
    %4268 = vmatprep.mubr.f32.mxu0 0.0
    %4269 = vmatmul.mubr.f32.gmra.mxu0 %v4197
    %v4270 = vpop.f32.mrf.mxu0
    %v4271 = vadd.f32 %v4191, %v4270
    %v4272 = vpop.f32.mrf.mxu0
    %4273 = vdwg.mxu0
    %s4274 = scalar_lea.vmem [#allocation29], 3
    %v4275 = vld [vmem:[%s4274] sm:$0x1]
    %s4276 = scalar_lea.vmem [#allocation31], 3
    %v4277 = vld [vmem:[%s4276] sm:$0x1]
    %v4278 = vsel %vm655, %v4266, 0.0
    %4279 = vadd.xlane.f32.xlu0 %v4278
    %v4280 = vpop.xlane.xlu0 %4279
    %v4281 = vsel %vm655, %v4271, 0.0
    %4282 = vadd.xlane.f32.xlu0 %v4281
    %v4283 = vpop.xlane.xlu0 %4282
    %v4284 = vmul.f32 %v4280, %v3256
    %v4285 = vmul.f32 %v4283, %v3256
    %v4286 = vsub.f32 %v4266, %v4284
    %v4287 = vsub.f32 %v4271, %v4285
    %v4288 = vmul.f32 %v4286, %v4286
    %v4289 = vmul.f32 %v4287, %v4287
    %v4290 = vsel %vm655, %v4288, 0.0
    %4291 = vadd.xlane.f32.xlu0 %v4290
    %v4292 = vpop.xlane.xlu0 %4291
    %v4293 = vsel %vm655, %v4289, 0.0
    %4294 = vadd.xlane.f32.xlu0 %v4293
    %v4295 = vpop.xlane.xlu0 %4294
    %v4296 = vmul.f32 %v4292, %v3256
    %v4297 = vmul.f32 %v4295, %v3256
    %v4298 = vadd.f32 %v4296, 1e-05
    %v4299 = vadd.f32 %v4297, 1e-05
    %v4300 = vrsqrt.pop %v4298
    %v4301 = vrsqrt.pop %v4299
    %v4302 = vmul.f32 %v4286, %v4300
    %v4303 = vmul.f32 %v4287, %v4301
    %v4305 = vlaneseq
    %v4306 = vshrl.u32 %v4305, 7
    %v4307 = vsub.s32 0, %v4306
    %v4308 = vrot.slane %v4275, %v4307
    %v4310 = vmul.f32 %v4302, %v4308
    %v4311 = vmul.f32 %v4303, %v4308
    %v4313 = vlaneseq
    %v4314 = vshrl.u32 %v4313, 7
    %v4315 = vsub.s32 0, %v4314
    %v4316 = vrot.slane %v4277, %v4315
    %v4318 = vadd.f32 %v4310, %v4316
    %v4319 = vadd.f32 %v4311, %v4316
    %v4320 = vtanh.pop %v4318
    %v4321 = vtanh.pop %v4319
    %v4322 = vmul.f32 %v4320, 3.1615268e-26
    %v4323 = vmul.f32 %v4321, 3.1615268e-26
    %v4324 = vld [vmem:[#allocation32] sm:$0xff]
    %v4325 = vld [vmem:[#allocation32 + $0x8] sm:$0xff]
    %v4326 = vld [vmem:[#allocation32 + $0x10] sm:$0xff]
    %v4327 = vld [vmem:[#allocation32 + $0x18] sm:$0xff]
    %v4328 = vld [vmem:[#allocation32 + $0x20] sm:$0xff]
    %v4329 = vld [vmem:[#allocation32 + $0x28] sm:$0xff]
    %v4330 = vld [vmem:[#allocation32 + $0x30] sm:$0xff]
    %v4331 = vld [vmem:[#allocation32 + $0x38] sm:$0xff]
    %v4332 = vld [vmem:[#allocation34] sm:$0x3]
    %v4334 = vlaneseq
    %v4335 = vshrl.u32 %v4334, 7
    %v4336 = vsub.s32 0, %v4335
    %v4337 = vrot.slane %v4332, %v4336
    %v4338 = vlaneseq
    %v4339 = vshrl.u32 %v4338, 7
    %v4340 = vsub.s32 1, %v4339
    %v4341 = vrot.slane %v4332, %v4340
    %v4345 = vsel %vm655, %v4322, 0
    %v4348 = vsel %vm655, %v4323, 0
    %4350 = vmatprep.subr.mxu0 0.0
    %4351 = vmatpush1.msra.mxu0 0.0
    %4352 = vmatprep.subr.mxu0 0.0
    %4353 = vmatpush1.msra.mxu0 0.0
    %4354 = vmatprep.subr.mxu0 0.0
    %4355 = vmatpush1.msra.mxu0 0.0
    %4356 = vmatprep.subr.mxu0 0.0
    %4357 = vmatpush1.msra.mxu0 0.0
    %4358 = vmatprep.subr.mxu0 0.0
    %4359 = vmatpush1.msra.mxu0 0.0
    %4360 = vmatprep.subr.mxu0 0.0
    %4361 = vmatpush1.msra.mxu0 0.0
    %4362 = vmatprep.subr.mxu0 0.0
    %4363 = vmatpush1.msra.mxu0 0.0
    %4364 = vmatprep.subr.mxu0 0.0
    %4365 = vmatpush1.msra.mxu0 0.0
    %4366 = vmatprep.subr.mxu0 0.0
    %4367 = vmatpush1.msra.mxu0 0.0
    %4368 = vmatprep.subr.mxu0 0.0
    %4369 = vmatpush1.msra.mxu0 0.0
    %4370 = vmatprep.subr.mxu0 0.0
    %4371 = vmatpush1.msra.mxu0 0.0
    %4372 = vmatprep.subr.mxu0 0.0
    %4373 = vmatpush1.msra.mxu0 0.0
    %4374 = vmatprep.subr.mxu0 %v4331
    %4375 = vmatpush1.msra.mxu0 %v4330
    %4376 = vmatprep.subr.mxu0 %v4329
    %4377 = vmatpush1.msra.mxu0 %v4328
    %4378 = vmatprep.subr.mxu0 %v4327
    %4379 = vmatpush1.msra.mxu0 %v4326
    %4380 = vmatprep.subr.mxu0 %v4325
    %4381 = vmatpush1.msra.mxu0 %v4324
    %4382 = vmatprep.subr.mxu0 0.0
    %4383 = vmatpush2.msra.mxu0 0.0
    %4384 = vmatprep.subr.mxu0 0.0
    %4385 = vmatpush2.msra.mxu0 0.0
    %4386 = vmatprep.subr.mxu0 0.0
    %4387 = vmatpush2.msra.mxu0 0.0
    %4388 = vmatprep.subr.mxu0 0.0
    %4389 = vmatpush2.msra.mxu0 0.0
    %4390 = vmatprep.subr.mxu0 0.0
    %4391 = vmatpush2.msra.mxu0 0.0
    %4392 = vmatprep.subr.mxu0 0.0
    %4393 = vmatpush2.msra.mxu0 0.0
    %4394 = vmatprep.subr.mxu0 0.0
    %4395 = vmatpush2.msra.mxu0 0.0
    %4396 = vmatprep.subr.mxu0 0.0
    %4397 = vmatpush2.msra.mxu0 0.0
    %4398 = vmatprep.subr.mxu0 0.0
    %4399 = vmatpush2.msra.mxu0 0.0
    %4400 = vmatprep.subr.mxu0 0.0
    %4401 = vmatpush2.msra.mxu0 0.0
    %4402 = vmatprep.subr.mxu0 0.0
    %4403 = vmatpush2.msra.mxu0 0.0
    %4404 = vmatprep.subr.mxu0 0.0
    %4405 = vmatpush2.msra.mxu0 0.0
    %4406 = vmatprep.subr.mxu0 0.0
    %4407 = vmatpush2.msra.mxu0 0.0
    %4408 = vmatprep.subr.mxu0 0.0
    %4409 = vmatpush2.msra.mxu0 0.0
    %4410 = vmatprep.subr.mxu0 0.0
    %4411 = vmatpush2.msra.mxu0 0.0
    %4412 = vmatprep.subr.mxu0 0.0
    %4413 = vmatpush2.msra.mxu0 0.0
    %4414 = vmatprep.mubr.f32.mxu0 0.0
    %4415 = vmatmul.mubr.f32.gmra.mxu0 %v4345
    %v4416 = vpop.f32.mrf.mxu0
    %v4417 = vadd.f32 %v4337, %v4416
    %v4418 = vpop.f32.mrf.mxu0
    %v4419 = vadd.f32 %v4341, %v4418
    %4420 = vmatprep.mubr.f32.mxu0 0.0
    %4421 = vmatmul.mubr.f32.gmra.mxu0 %v4348
    %v4422 = vpop.f32.mrf.mxu0
    %v4423 = vadd.f32 %v4337, %v4422
    %v4424 = vpop.f32.mrf.mxu0
    %v4425 = vadd.f32 %v4341, %v4424
    %4426 = vdwg.mxu0
    %v4427 = vld [vmem:[#allocation35] sm:$0x3]
    %v4428 = vld [vmem:[#allocation37] sm:$0x3]
    %4429 = vmatprep.subr.mxu0 0.0
    %4430 = vmatpush1.msra.mxu0 %v598
    %4431 = vmatprep.subr.mxu0 0.0
    %4432 = vmatpush1.msra.mxu0 %v597
    %4433 = vmatprep.subr.mxu0 0.0
    %4434 = vmatpush1.msra.mxu0 %v596
    %4435 = vmatprep.subr.mxu0 0.0
    %4436 = vmatpush1.msra.mxu0 %v595
    %4437 = vmatprep.subr.mxu0 0.0
    %4438 = vmatpush1.msra.mxu0 %v594
    %4439 = vmatprep.subr.mxu0 0.0
    %4440 = vmatpush1.msra.mxu0 %v593
    %4441 = vmatprep.subr.mxu0 0.0
    %4442 = vmatpush1.msra.mxu0 %v592
    %4443 = vmatprep.subr.mxu0 0.0
    %4444 = vmatpush1.msra.mxu0 %v591
    %4445 = vmatprep.subr.mxu0 0.0
    %4446 = vmatpush1.msra.mxu0 %v590
    %4447 = vmatprep.subr.mxu0 0.0
    %4448 = vmatpush1.msra.mxu0 %v589
    %4449 = vmatprep.subr.mxu0 0.0
    %4450 = vmatpush1.msra.mxu0 %v588
    %4451 = vmatprep.subr.mxu0 0.0
    %4452 = vmatpush1.msra.mxu0 %v587
    %4453 = vmatprep.subr.mxu0 0.0
    %4454 = vmatpush1.msra.mxu0 %v586
    %4455 = vmatprep.subr.mxu0 0.0
    %4456 = vmatpush1.msra.mxu0 %v585
    %4457 = vmatprep.subr.mxu0 0.0
    %4458 = vmatpush1.msra.mxu0 %v584
    %4459 = vmatprep.subr.mxu0 0.0
    %4460 = vmatpush1.msra.mxu0 %v583
    %4461 = vmatprep.subr.mxu0 0.0
    %4462 = vmatpush2.msra.mxu0 %v614
    %4463 = vmatprep.subr.mxu0 0.0
    %4464 = vmatpush2.msra.mxu0 %v613
    %4465 = vmatprep.subr.mxu0 0.0
    %4466 = vmatpush2.msra.mxu0 %v612
    %4467 = vmatprep.subr.mxu0 0.0
    %4468 = vmatpush2.msra.mxu0 %v611
    %4469 = vmatprep.subr.mxu0 0.0
    %4470 = vmatpush2.msra.mxu0 %v610
    %4471 = vmatprep.subr.mxu0 0.0
    %4472 = vmatpush2.msra.mxu0 %v609
    %4473 = vmatprep.subr.mxu0 0.0
    %4474 = vmatpush2.msra.mxu0 %v608
    %4475 = vmatprep.subr.mxu0 0.0
    %4476 = vmatpush2.msra.mxu0 %v607
    %4477 = vmatprep.subr.mxu0 0.0
    %4478 = vmatpush2.msra.mxu0 %v606
    %4479 = vmatprep.subr.mxu0 0.0
    %4480 = vmatpush2.msra.mxu0 %v605
    %4481 = vmatprep.subr.mxu0 0.0
    %4482 = vmatpush2.msra.mxu0 %v604
    %4483 = vmatprep.subr.mxu0 0.0
    %4484 = vmatpush2.msra.mxu0 %v603
    %4485 = vmatprep.subr.mxu0 0.0
    %4486 = vmatpush2.msra.mxu0 %v602
    %4487 = vmatprep.subr.mxu0 0.0
    %4488 = vmatpush2.msra.mxu0 %v601
    %4489 = vmatprep.subr.mxu0 0.0
    %4490 = vmatpush2.msra.mxu0 %v600
    %4491 = vmatprep.subr.mxu0 0.0
    %4492 = vmatpush2.msra.mxu0 %v599
    %4493 = vmatprep.mubr.f32.mxu0 %v4419
    %4494 = vmatmul.mubr.f32.gmra.mxu0 %v4417
    %v4495 = vpop.f32.mrf.mxu0
    %v4496 = vadd.f32 0.0, %v4495
    %v4497 = vpop.f32.mrf.mxu0
    %4498 = vmatprep.mubr.f32.mxu0 %v4425
    %4499 = vmatmul.mubr.f32.gmra.mxu0 %v4423
    %v4500 = vpop.f32.mrf.mxu0
    %v4501 = vadd.f32 0.0, %v4500
    %v4502 = vpop.f32.mrf.mxu0
    %4503 = vdwg.mxu0
    %v4505 = vsel %vm968, %v4496, 0
    %v4508 = vsel %vm968, %v4501, 0
    %4510 = vmatprep.subr.mxu0 0.0
    %4511 = vmatpush1.msra.mxu0 0.0
    %4512 = vmatprep.subr.mxu0 0.0
    %4513 = vmatpush1.msra.mxu0 0.0
    %4514 = vmatprep.subr.mxu0 0.0
    %4515 = vmatpush1.msra.mxu0 0.0
    %4516 = vmatprep.subr.mxu0 0.0
    %4517 = vmatpush1.msra.mxu0 0.0
    %4518 = vmatprep.subr.mxu0 0.0
    %4519 = vmatpush1.msra.mxu0 0.0
    %4520 = vmatprep.subr.mxu0 0.0
    %4521 = vmatpush1.msra.mxu0 0.0
    %4522 = vmatprep.subr.mxu0 0.0
    %4523 = vmatpush1.msra.mxu0 0.0
    %4524 = vmatprep.subr.mxu0 0.0
    %4525 = vmatpush1.msra.mxu0 0.0
    %4526 = vmatprep.subr.mxu0 0.0
    %4527 = vmatpush1.msra.mxu0 0.0
    %4528 = vmatprep.subr.mxu0 0.0
    %4529 = vmatpush1.msra.mxu0 0.0
    %4530 = vmatprep.subr.mxu0 0.0
    %4531 = vmatpush1.msra.mxu0 0.0
    %4532 = vmatprep.subr.mxu0 0.0
    %4533 = vmatpush1.msra.mxu0 0.0
    %4534 = vmatprep.subr.mxu0 0.0
    %4535 = vmatpush1.msra.mxu0 0.0
    %4536 = vmatprep.subr.mxu0 0.0
    %4537 = vmatpush1.msra.mxu0 0.0
    %4538 = vmatprep.subr.mxu0 0.0
    %4539 = vmatpush1.msra.mxu0 0.0
    %4540 = vmatprep.subr.mxu0 %v616
    %4541 = vmatpush1.msra.mxu0 %v615
    %4542 = vmatprep.subr.mxu0 0.0
    %4543 = vmatpush2.msra.mxu0 0.0
    %4544 = vmatprep.subr.mxu0 0.0
    %4545 = vmatpush2.msra.mxu0 0.0
    %4546 = vmatprep.subr.mxu0 0.0
    %4547 = vmatpush2.msra.mxu0 0.0
    %4548 = vmatprep.subr.mxu0 0.0
    %4549 = vmatpush2.msra.mxu0 0.0
    %4550 = vmatprep.subr.mxu0 0.0
    %4551 = vmatpush2.msra.mxu0 0.0
    %4552 = vmatprep.subr.mxu0 0.0
    %4553 = vmatpush2.msra.mxu0 0.0
    %4554 = vmatprep.subr.mxu0 0.0
    %4555 = vmatpush2.msra.mxu0 0.0
    %4556 = vmatprep.subr.mxu0 0.0
    %4557 = vmatpush2.msra.mxu0 0.0
    %4558 = vmatprep.subr.mxu0 0.0
    %4559 = vmatpush2.msra.mxu0 0.0
    %4560 = vmatprep.subr.mxu0 0.0
    %4561 = vmatpush2.msra.mxu0 0.0
    %4562 = vmatprep.subr.mxu0 0.0
    %4563 = vmatpush2.msra.mxu0 0.0
    %4564 = vmatprep.subr.mxu0 0.0
    %4565 = vmatpush2.msra.mxu0 0.0
    %4566 = vmatprep.subr.mxu0 0.0
    %4567 = vmatpush2.msra.mxu0 0.0
    %4568 = vmatprep.subr.mxu0 0.0
    %4569 = vmatpush2.msra.mxu0 0.0
    %4570 = vmatprep.subr.mxu0 0.0
    %4571 = vmatpush2.msra.mxu0 0.0
    %4572 = vmatprep.subr.mxu0 0.0
    %4573 = vmatpush2.msra.mxu0 0.0
    %4574 = vmatprep.mubr.f32.mxu0 0.0
    %4575 = vmatmul.mubr.f32.gmra.mxu0 %v4505
    %v4576 = vpop.f32.mrf.mxu0
    %v4577 = vadd.f32 0.0, %v4576
    %v4578 = vpop.f32.mrf.mxu0
    %v4579 = vadd.f32 0.0, %v4578
    %4580 = vmatprep.mubr.f32.mxu0 0.0
    %4581 = vmatmul.mubr.f32.gmra.mxu0 %v4508
    %v4582 = vpop.f32.mrf.mxu0
    %v4583 = vadd.f32 0.0, %v4582
    %v4584 = vpop.f32.mrf.mxu0
    %v4585 = vadd.f32 0.0, %v4584
    %4586 = vdwg.mxu0
    %v4587 = vsub.f32 %v4417, %v4577
    %v4588 = vsub.f32 %v4419, %v4579
    %v4589 = vsub.f32 %v4423, %v4583
    %v4590 = vsub.f32 %v4425, %v4585
    %v4591 = vmul.f32 %v4587, %v4587
    %v4592 = vmul.f32 %v4588, %v4588
    %v4593 = vmul.f32 %v4589, %v4589
    %v4594 = vmul.f32 %v4590, %v4590
    %4595 = vmatprep.subr.mxu0 0.0
    %4596 = vmatpush1.msra.mxu0 %v598
    %4597 = vmatprep.subr.mxu0 0.0
    %4598 = vmatpush1.msra.mxu0 %v597
    %4599 = vmatprep.subr.mxu0 0.0
    %4600 = vmatpush1.msra.mxu0 %v596
    %4601 = vmatprep.subr.mxu0 0.0
    %4602 = vmatpush1.msra.mxu0 %v595
    %4603 = vmatprep.subr.mxu0 0.0
    %4604 = vmatpush1.msra.mxu0 %v594
    %4605 = vmatprep.subr.mxu0 0.0
    %4606 = vmatpush1.msra.mxu0 %v593
    %4607 = vmatprep.subr.mxu0 0.0
    %4608 = vmatpush1.msra.mxu0 %v592
    %4609 = vmatprep.subr.mxu0 0.0
    %4610 = vmatpush1.msra.mxu0 %v591
    %4611 = vmatprep.subr.mxu0 0.0
    %4612 = vmatpush1.msra.mxu0 %v590
    %4613 = vmatprep.subr.mxu0 0.0
    %4614 = vmatpush1.msra.mxu0 %v589
    %4615 = vmatprep.subr.mxu0 0.0
    %4616 = vmatpush1.msra.mxu0 %v588
    %4617 = vmatprep.subr.mxu0 0.0
    %4618 = vmatpush1.msra.mxu0 %v587
    %4619 = vmatprep.subr.mxu0 0.0
    %4620 = vmatpush1.msra.mxu0 %v586
    %4621 = vmatprep.subr.mxu0 0.0
    %4622 = vmatpush1.msra.mxu0 %v585
    %4623 = vmatprep.subr.mxu0 0.0
    %4624 = vmatpush1.msra.mxu0 %v584
    %4625 = vmatprep.subr.mxu0 0.0
    %4626 = vmatpush1.msra.mxu0 %v583
    %4627 = vmatprep.subr.mxu0 0.0
    %4628 = vmatpush2.msra.mxu0 %v614
    %4629 = vmatprep.subr.mxu0 0.0
    %4630 = vmatpush2.msra.mxu0 %v613
    %4631 = vmatprep.subr.mxu0 0.0
    %4632 = vmatpush2.msra.mxu0 %v612
    %4633 = vmatprep.subr.mxu0 0.0
    %4634 = vmatpush2.msra.mxu0 %v611
    %4635 = vmatprep.subr.mxu0 0.0
    %4636 = vmatpush2.msra.mxu0 %v610
    %4637 = vmatprep.subr.mxu0 0.0
    %4638 = vmatpush2.msra.mxu0 %v609
    %4639 = vmatprep.subr.mxu0 0.0
    %4640 = vmatpush2.msra.mxu0 %v608
    %4641 = vmatprep.subr.mxu0 0.0
    %4642 = vmatpush2.msra.mxu0 %v607
    %4643 = vmatprep.subr.mxu0 0.0
    %4644 = vmatpush2.msra.mxu0 %v606
    %4645 = vmatprep.subr.mxu0 0.0
    %4646 = vmatpush2.msra.mxu0 %v605
    %4647 = vmatprep.subr.mxu0 0.0
    %4648 = vmatpush2.msra.mxu0 %v604
    %4649 = vmatprep.subr.mxu0 0.0
    %4650 = vmatpush2.msra.mxu0 %v603
    %4651 = vmatprep.subr.mxu0 0.0
    %4652 = vmatpush2.msra.mxu0 %v602
    %4653 = vmatprep.subr.mxu0 0.0
    %4654 = vmatpush2.msra.mxu0 %v601
    %4655 = vmatprep.subr.mxu0 0.0
    %4656 = vmatpush2.msra.mxu0 %v600
    %4657 = vmatprep.subr.mxu0 0.0
    %4658 = vmatpush2.msra.mxu0 %v599
    %4659 = vmatprep.mubr.f32.mxu0 %v4592
    %4660 = vmatmul.mubr.f32.gmra.mxu0 %v4591
    %v4661 = vpop.f32.mrf.mxu0
    %v4662 = vadd.f32 0.0, %v4661
    %v4663 = vpop.f32.mrf.mxu0
    %4664 = vmatprep.mubr.f32.mxu0 %v4594
    %4665 = vmatmul.mubr.f32.gmra.mxu0 %v4593
    %v4666 = vpop.f32.mrf.mxu0
    %v4667 = vadd.f32 0.0, %v4666
    %v4668 = vpop.f32.mrf.mxu0
    %4669 = vdwg.mxu0
    %v4671 = vsel %vm968, %v4662, 0
    %v4674 = vsel %vm968, %v4667, 0
    %4676 = vmatprep.subr.mxu0 0.0
    %4677 = vmatpush1.msra.mxu0 0.0
    %4678 = vmatprep.subr.mxu0 0.0
    %4679 = vmatpush1.msra.mxu0 0.0
    %4680 = vmatprep.subr.mxu0 0.0
    %4681 = vmatpush1.msra.mxu0 0.0
    %4682 = vmatprep.subr.mxu0 0.0
    %4683 = vmatpush1.msra.mxu0 0.0
    %4684 = vmatprep.subr.mxu0 0.0
    %4685 = vmatpush1.msra.mxu0 0.0
    %4686 = vmatprep.subr.mxu0 0.0
    %4687 = vmatpush1.msra.mxu0 0.0
    %4688 = vmatprep.subr.mxu0 0.0
    %4689 = vmatpush1.msra.mxu0 0.0
    %4690 = vmatprep.subr.mxu0 0.0
    %4691 = vmatpush1.msra.mxu0 0.0
    %4692 = vmatprep.subr.mxu0 0.0
    %4693 = vmatpush1.msra.mxu0 0.0
    %4694 = vmatprep.subr.mxu0 0.0
    %4695 = vmatpush1.msra.mxu0 0.0
    %4696 = vmatprep.subr.mxu0 0.0
    %4697 = vmatpush1.msra.mxu0 0.0
    %4698 = vmatprep.subr.mxu0 0.0
    %4699 = vmatpush1.msra.mxu0 0.0
    %4700 = vmatprep.subr.mxu0 0.0
    %4701 = vmatpush1.msra.mxu0 0.0
    %4702 = vmatprep.subr.mxu0 0.0
    %4703 = vmatpush1.msra.mxu0 0.0
    %4704 = vmatprep.subr.mxu0 0.0
    %4705 = vmatpush1.msra.mxu0 0.0
    %4706 = vmatprep.subr.mxu0 %v616
    %4707 = vmatpush1.msra.mxu0 %v615
    %4708 = vmatprep.subr.mxu0 0.0
    %4709 = vmatpush2.msra.mxu0 0.0
    %4710 = vmatprep.subr.mxu0 0.0
    %4711 = vmatpush2.msra.mxu0 0.0
    %4712 = vmatprep.subr.mxu0 0.0
    %4713 = vmatpush2.msra.mxu0 0.0
    %4714 = vmatprep.subr.mxu0 0.0
    %4715 = vmatpush2.msra.mxu0 0.0
    %4716 = vmatprep.subr.mxu0 0.0
    %4717 = vmatpush2.msra.mxu0 0.0
    %4718 = vmatprep.subr.mxu0 0.0
    %4719 = vmatpush2.msra.mxu0 0.0
    %4720 = vmatprep.subr.mxu0 0.0
    %4721 = vmatpush2.msra.mxu0 0.0
    %4722 = vmatprep.subr.mxu0 0.0
    %4723 = vmatpush2.msra.mxu0 0.0
    %4724 = vmatprep.subr.mxu0 0.0
    %4725 = vmatpush2.msra.mxu0 0.0
    %4726 = vmatprep.subr.mxu0 0.0
    %4727 = vmatpush2.msra.mxu0 0.0
    %4728 = vmatprep.subr.mxu0 0.0
    %4729 = vmatpush2.msra.mxu0 0.0
    %4730 = vmatprep.subr.mxu0 0.0
    %4731 = vmatpush2.msra.mxu0 0.0
    %4732 = vmatprep.subr.mxu0 0.0
    %4733 = vmatpush2.msra.mxu0 0.0
    %4734 = vmatprep.subr.mxu0 0.0
    %4735 = vmatpush2.msra.mxu0 0.0
    %4736 = vmatprep.subr.mxu0 0.0
    %4737 = vmatpush2.msra.mxu0 0.0
    %4738 = vmatprep.subr.mxu0 0.0
    %4739 = vmatpush2.msra.mxu0 0.0
    %4740 = vmatprep.mubr.f32.mxu0 0.0
    %4741 = vmatmul.mubr.f32.gmra.mxu0 %v4671
    %v4742 = vpop.f32.mrf.mxu0
    %v4743 = vadd.f32 1e-05, %v4742
    %v4744 = vpop.f32.mrf.mxu0
    %v4745 = vadd.f32 1e-05, %v4744
    %4746 = vmatprep.mubr.f32.mxu0 0.0
    %4747 = vmatmul.mubr.f32.gmra.mxu0 %v4674
    %v4748 = vpop.f32.mrf.mxu0
    %v4749 = vadd.f32 1e-05, %v4748
    %v4750 = vpop.f32.mrf.mxu0
    %v4751 = vadd.f32 1e-05, %v4750
    %4752 = vdwg.mxu0
    %v4753 = vrsqrt.pop %v4743
    %v4754 = vrsqrt.pop %v4745
    %v4755 = vrsqrt.pop %v4749
    %v4756 = vrsqrt.pop %v4751
    %v4757 = vmul.f32 %v4587, %v4753
    %v4758 = vmul.f32 %v4588, %v4754
    %v4759 = vmul.f32 %v4589, %v4755
    %v4760 = vmul.f32 %v4590, %v4756
    %v4762 = vlaneseq
    %v4763 = vshrl.u32 %v4762, 7
    %v4764 = vsub.s32 0, %v4763
    %v4765 = vrot.slane %v4427, %v4764
    %v4766 = vlaneseq
    %v4767 = vshrl.u32 %v4766, 7
    %v4768 = vsub.s32 1, %v4767
    %v4769 = vrot.slane %v4427, %v4768
    %v4772 = vmul.f32 %v4757, %v4765
    %v4773 = vmul.f32 %v4758, %v4769
    %v4774 = vmul.f32 %v4759, %v4765
    %v4775 = vmul.f32 %v4760, %v4769
    %v4777 = vlaneseq
    %v4778 = vshrl.u32 %v4777, 7
    %v4779 = vsub.s32 0, %v4778
    %v4780 = vrot.slane %v4428, %v4779
    %v4781 = vlaneseq
    %v4782 = vshrl.u32 %v4781, 7
    %v4783 = vsub.s32 1, %v4782
    %v4784 = vrot.slane %v4428, %v4783
    %v4787 = vadd.f32 %v4772, %v4780
    %v4788 = vadd.f32 %v4773, %v4784
    %v4789 = vadd.f32 %v4774, %v4780
    %v4790 = vadd.f32 %v4775, %v4784
    %v4791 = vmul.f32 %v4787, 0.5
    %v4792 = vmul.f32 %v4788, 0.5
    %v4793 = vmul.f32 %v4789, 0.5
    %v4794 = vmul.f32 %v4790, 0.5
    %v4795 = vmul.f32 %v4787, 0.70710677
    %v4796 = vmul.f32 %v4788, 0.70710677
    %v4797 = vmul.f32 %v4789, 0.70710677
    %v4798 = vmul.f32 %v4790, 0.70710677
    %v4799 = verf.f32.pop %v4795
    %v4800 = verf.f32.pop %v4796
    %v4801 = verf.f32.pop %v4797
    %v4802 = verf.f32.pop %v4798
    %v4803 = vadd.f32 %v4799, 1.0
    %v4804 = vadd.f32 %v4800, 1.0
    %v4805 = vadd.f32 %v4801, 1.0
    %v4806 = vadd.f32 %v4802, 1.0
    %v4807 = vmul.f32 %v4791, %v4803
    %v4808 = vmul.f32 %v4792, %v4804
    %v4809 = vmul.f32 %v4793, %v4805
    %v4810 = vmul.f32 %v4794, %v4806
    %v4811 = vmul.f32 %v4807, 8.854188e-12
    %v4812 = vmul.f32 %v4808, 8.854188e-12
    %v4813 = vmul.f32 %v4809, 8.854188e-12
    %v4814 = vmul.f32 %v4810, 8.854188e-12
    %v4815 = vld [vmem:[%s61] sm:$0xff]
    %v4816 = vld [vmem:[%s61 + $0x8] sm:$0xff]
    %v4817 = vld [vmem:[%s61 + $0x10] sm:$0xff]
    %v4818 = vld [vmem:[%s61 + $0x18] sm:$0xff]
    %v4819 = vld [vmem:[%s61 + $0x20] sm:$0xff]
    %v4820 = vld [vmem:[%s61 + $0x28] sm:$0xff]
    %v4821 = vld [vmem:[%s61 + $0x30] sm:$0xff]
    %v4822 = vld [vmem:[%s61 + $0x38] sm:$0xff]
    %v4823 = vld [vmem:[%s61 + $0x40] sm:$0xff]
    %v4824 = vld [vmem:[%s61 + $0x48] sm:$0xff]
    %v4825 = vld [vmem:[%s61 + $0x50] sm:$0xff]
    %v4826 = vld [vmem:[%s61 + $0x58] sm:$0xff]
    %v4827 = vld [vmem:[%s61 + $0x60] sm:$0xff]
    %v4828 = vld [vmem:[%s61 + $0x68] sm:$0xff]
    %v4829 = vld [vmem:[%s61 + $0x70] sm:$0xff]
    %v4830 = vld [vmem:[%s61 + $0x78] sm:$0xff]
    %v4831 = vld [vmem:[%s61 + $0x80] sm:$0xff]
    %v4832 = vld [vmem:[%s61 + $0x88] sm:$0xff]
    %v4833 = vld [vmem:[%s61 + $0x90] sm:$0xff]
    %v4834 = vld [vmem:[%s61 + $0x98] sm:$0xff]
    %v4835 = vld [vmem:[%s61 + $0xa0] sm:$0xff]
    %v4836 = vld [vmem:[%s61 + $0xa8] sm:$0xff]
    %v4837 = vld [vmem:[%s61 + $0xb0] sm:$0xff]
    %v4838 = vld [vmem:[%s61 + $0xb8] sm:$0xff]
    %v4839 = vld [vmem:[%s61 + $0xc0] sm:$0xff]
    %v4840 = vld [vmem:[%s61 + $0xc8] sm:$0xff]
    %v4841 = vld [vmem:[%s61 + $0xd0] sm:$0xff]
    %v4842 = vld [vmem:[%s61 + $0xd8] sm:$0xff]
    %v4843 = vld [vmem:[%s61 + $0xe0] sm:$0xff]
    %v4844 = vld [vmem:[%s61 + $0xe8] sm:$0xff]
    %v4845 = vld [vmem:[%s61 + $0xf0] sm:$0xff]
    %v4846 = vld [vmem:[%s61 + $0xf8] sm:$0xff]
    %v4847 = vld [vmem:[#allocation38] sm:$0x1]
    %v4849 = vlaneseq
    %v4850 = vshrl.u32 %v4849, 7
    %v4851 = vsub.s32 0, %v4850
    %v4852 = vrot.slane %v4847, %v4851
    %4854 = vmatprep.subr.mxu0 0.0
    %4855 = vmatpush1.msra.mxu0 %v4830
    %4856 = vmatprep.subr.mxu0 0.0
    %4857 = vmatpush1.msra.mxu0 %v4829
    %4858 = vmatprep.subr.mxu0 0.0
    %4859 = vmatpush1.msra.mxu0 %v4828
    %4860 = vmatprep.subr.mxu0 0.0
    %4861 = vmatpush1.msra.mxu0 %v4827
    %4862 = vmatprep.subr.mxu0 0.0
    %4863 = vmatpush1.msra.mxu0 %v4826
    %4864 = vmatprep.subr.mxu0 0.0
    %4865 = vmatpush1.msra.mxu0 %v4825
    %4866 = vmatprep.subr.mxu0 0.0
    %4867 = vmatpush1.msra.mxu0 %v4824
    %4868 = vmatprep.subr.mxu0 0.0
    %4869 = vmatpush1.msra.mxu0 %v4823
    %4870 = vmatprep.subr.mxu0 0.0
    %4871 = vmatpush1.msra.mxu0 %v4822
    %4872 = vmatprep.subr.mxu0 0.0
    %4873 = vmatpush1.msra.mxu0 %v4821
    %4874 = vmatprep.subr.mxu0 0.0
    %4875 = vmatpush1.msra.mxu0 %v4820
    %4876 = vmatprep.subr.mxu0 0.0
    %4877 = vmatpush1.msra.mxu0 %v4819
    %4878 = vmatprep.subr.mxu0 0.0
    %4879 = vmatpush1.msra.mxu0 %v4818
    %4880 = vmatprep.subr.mxu0 0.0
    %4881 = vmatpush1.msra.mxu0 %v4817
    %4882 = vmatprep.subr.mxu0 0.0
    %4883 = vmatpush1.msra.mxu0 %v4816
    %4884 = vmatprep.subr.mxu0 0.0
    %4885 = vmatpush1.msra.mxu0 %v4815
    %4886 = vmatprep.subr.mxu0 0.0
    %4887 = vmatpush2.msra.mxu0 %v4846
    %4888 = vmatprep.subr.mxu0 0.0
    %4889 = vmatpush2.msra.mxu0 %v4845
    %4890 = vmatprep.subr.mxu0 0.0
    %4891 = vmatpush2.msra.mxu0 %v4844
    %4892 = vmatprep.subr.mxu0 0.0
    %4893 = vmatpush2.msra.mxu0 %v4843
    %4894 = vmatprep.subr.mxu0 0.0
    %4895 = vmatpush2.msra.mxu0 %v4842
    %4896 = vmatprep.subr.mxu0 0.0
    %4897 = vmatpush2.msra.mxu0 %v4841
    %4898 = vmatprep.subr.mxu0 0.0
    %4899 = vmatpush2.msra.mxu0 %v4840
    %4900 = vmatprep.subr.mxu0 0.0
    %4901 = vmatpush2.msra.mxu0 %v4839
    %4902 = vmatprep.subr.mxu0 0.0
    %4903 = vmatpush2.msra.mxu0 %v4838
    %4904 = vmatprep.subr.mxu0 0.0
    %4905 = vmatpush2.msra.mxu0 %v4837
    %4906 = vmatprep.subr.mxu0 0.0
    %4907 = vmatpush2.msra.mxu0 %v4836
    %4908 = vmatprep.subr.mxu0 0.0
    %4909 = vmatpush2.msra.mxu0 %v4835
    %4910 = vmatprep.subr.mxu0 0.0
    %4911 = vmatpush2.msra.mxu0 %v4834
    %4912 = vmatprep.subr.mxu0 0.0
    %4913 = vmatpush2.msra.mxu0 %v4833
    %4914 = vmatprep.subr.mxu0 0.0
    %4915 = vmatpush2.msra.mxu0 %v4832
    %4916 = vmatprep.subr.mxu0 0.0
    %4917 = vmatpush2.msra.mxu0 %v4831
    %4918 = vmatprep.mubr.f32.mxu0 %v4812
    %4919 = vmatmul.mubr.f32.gmra.mxu0 %v4811
    %v4920 = vpop.f32.mrf.mxu0
    %v4921 = vadd.f32 %v4852, %v4920
    %v4922 = vpop.f32.mrf.mxu0
    %4923 = vmatprep.mubr.f32.mxu0 %v4814
    %4924 = vmatmul.mubr.f32.gmra.mxu0 %v4813
    %v4925 = vpop.f32.mrf.mxu0
    %v4926 = vadd.f32 %v4852, %v4925
    %v4927 = vpop.f32.mrf.mxu0
    %4928 = vdwg.mxu0
    %v4929 = vld [vmem:[#allocation40] sm:$0x1]
    %v4930 = vld [vmem:[#allocation41] sm:$0x1]
    %v4931 = vsel %vm655, %v4921, 0.0
    %4932 = vadd.xlane.f32.xlu0 %v4931
    %v4933 = vpop.xlane.xlu0 %4932
    %v4934 = vsel %vm655, %v4926, 0.0
    %4935 = vadd.xlane.f32.xlu0 %v4934
    %v4936 = vpop.xlane.xlu0 %4935
    %v4937 = vmul.f32 %v4933, %v3256
    %v4938 = vmul.f32 %v4936, %v3256
    %v4939 = vsub.f32 %v4921, %v4937
    %v4940 = vsub.f32 %v4926, %v4938
    %v4941 = vmul.f32 %v4939, %v4939
    %v4942 = vmul.f32 %v4940, %v4940
    %v4943 = vsel %vm655, %v4941, 0.0
    %4944 = vadd.xlane.f32.xlu0 %v4943
    %v4945 = vpop.xlane.xlu0 %4944
    %v4946 = vsel %vm655, %v4942, 0.0
    %4947 = vadd.xlane.f32.xlu0 %v4946
    %v4948 = vpop.xlane.xlu0 %4947
    %v4949 = vmul.f32 %v4945, %v3256
    %v4950 = vmul.f32 %v4948, %v3256
    %v4951 = vadd.f32 %v4949, 1e-05
    %v4952 = vadd.f32 %v4950, 1e-05
    %v4953 = vrsqrt.pop %v4951
    %v4954 = vrsqrt.pop %v4952
    %v4955 = vmul.f32 %v4939, %v4953
    %v4956 = vmul.f32 %v4940, %v4954
    %v4958 = vlaneseq
    %v4959 = vshrl.u32 %v4958, 7
    %v4960 = vsub.s32 0, %v4959
    %v4961 = vrot.slane %v4929, %v4960
    %v4963 = vmul.f32 %v4955, %v4961
    %v4964 = vmul.f32 %v4956, %v4961
    %v4966 = vlaneseq
    %v4967 = vshrl.u32 %v4966, 7
    %v4968 = vsub.s32 0, %v4967
    %v4969 = vrot.slane %v4930, %v4968
    %v4971 = vadd.f32 %v4963, %v4969
    %v4972 = vadd.f32 %v4964, %v4969
    %v4973 = vmul.f32 %v4971, 0.5
    %v4974 = vmul.f32 %v4972, 0.5
    %v4975 = vmul.f32 %v4971, 0.70710677
    %v4976 = vmul.f32 %v4972, 0.70710677
    %v4977 = verf.f32.pop %v4975
    %v4978 = verf.f32.pop %v4976
    %v4979 = vadd.f32 %v4977, 1.0
    %v4980 = vadd.f32 %v4978, 1.0
    %v4981 = vmul.f32 %v4973, %v4979
    %v4982 = vmul.f32 %v4974, %v4980
    %v4983 = vld [vmem:[%s69] sm:$0xff]
    %v4984 = vld [vmem:[%s69 + $0x8] sm:$0xff]
    %v4985 = vld [vmem:[%s69 + $0x10] sm:$0xff]
    %v4986 = vld [vmem:[%s69 + $0x18] sm:$0xff]
    %v4987 = vld [vmem:[%s69 + $0x20] sm:$0xff]
    %v4988 = vld [vmem:[%s69 + $0x28] sm:$0xff]
    %v4989 = vld [vmem:[%s69 + $0x30] sm:$0xff]
    %v4990 = vld [vmem:[%s69 + $0x38] sm:$0xff]
    %v4991 = vld [vmem:[%s69 + $0x40] sm:$0xff]
    %v4992 = vld [vmem:[%s69 + $0x48] sm:$0xff]
    %v4993 = vld [vmem:[%s69 + $0x50] sm:$0xff]
    %v4994 = vld [vmem:[%s69 + $0x58] sm:$0xff]
    %v4995 = vld [vmem:[%s69 + $0x60] sm:$0xff]
    %v4996 = vld [vmem:[%s69 + $0x68] sm:$0xff]
    %v4997 = vld [vmem:[%s69 + $0x70] sm:$0xff]
    %v4998 = vld [vmem:[%s69 + $0x78] sm:$0xff]
    %4999 = vmatprep.subr.mxu0 0.0
    %5000 = vmatpush1.msra.mxu0 0.0
    %5001 = vmatprep.subr.mxu0 0.0
    %5002 = vmatpush1.msra.mxu0 0.0
    %5003 = vmatprep.subr.mxu0 0.0
    %5004 = vmatpush1.msra.mxu0 0.0
    %5005 = vmatprep.subr.mxu0 0.0
    %5006 = vmatpush1.msra.mxu0 0.0
    %5007 = vmatprep.subr.mxu0 0.0
    %5008 = vmatpush1.msra.mxu0 0.0
    %5009 = vmatprep.subr.mxu0 0.0
    %5010 = vmatpush1.msra.mxu0 0.0
    %5011 = vmatprep.subr.mxu0 0.0
    %5012 = vmatpush1.msra.mxu0 0.0
    %5013 = vmatprep.subr.mxu0 0.0
    %5014 = vmatpush1.msra.mxu0 0.0
    %5015 = vmatprep.subr.mxu0 0.0
    %5016 = vmatpush1.msra.mxu0 0.0
    %5017 = vmatprep.subr.mxu0 0.0
    %5018 = vmatpush1.msra.mxu0 0.0
    %5019 = vmatprep.subr.mxu0 0.0
    %5020 = vmatpush1.msra.mxu0 0.0
    %5021 = vmatprep.subr.mxu0 0.0
    %5022 = vmatpush1.msra.mxu0 0.0
    %5023 = vmatprep.subr.mxu0 0.0
    %5024 = vmatpush1.msra.mxu0 %v4994
    %5025 = vmatprep.subr.mxu0 0.0
    %5026 = vmatpush1.msra.mxu0 %v4993
    %5027 = vmatprep.subr.mxu0 0.0
    %5028 = vmatpush1.msra.mxu0 %v4992
    %5029 = vmatprep.subr.mxu0 0.0
    %5030 = vmatpush1.msra.mxu0 %v4991
    %5031 = vmatprep.subr.mxu0 0.0
    %5032 = vmatpush2.msra.mxu0 0.0
    %5033 = vmatprep.subr.mxu0 0.0
    %5034 = vmatpush2.msra.mxu0 0.0
    %5035 = vmatprep.subr.mxu0 0.0
    %5036 = vmatpush2.msra.mxu0 0.0
    %5037 = vmatprep.subr.mxu0 0.0
    %5038 = vmatpush2.msra.mxu0 0.0
    %5039 = vmatprep.subr.mxu0 0.0
    %5040 = vmatpush2.msra.mxu0 0.0
    %5041 = vmatprep.subr.mxu0 0.0
    %5042 = vmatpush2.msra.mxu0 0.0
    %5043 = vmatprep.subr.mxu0 0.0
    %5044 = vmatpush2.msra.mxu0 0.0
    %5045 = vmatprep.subr.mxu0 0.0
    %5046 = vmatpush2.msra.mxu0 0.0
    %5047 = vmatprep.subr.mxu0 0.0
    %5048 = vmatpush2.msra.mxu0 0.0
    %5049 = vmatprep.subr.mxu0 0.0
    %5050 = vmatpush2.msra.mxu0 0.0
    %5051 = vmatprep.subr.mxu0 0.0
    %5052 = vmatpush2.msra.mxu0 0.0
    %5053 = vmatprep.subr.mxu0 0.0
    %5054 = vmatpush2.msra.mxu0 0.0
    %5055 = vmatprep.subr.mxu0 0.0
    %5056 = vmatpush2.msra.mxu0 0.0
    %5057 = vmatprep.subr.mxu0 0.0
    %5058 = vmatpush2.msra.mxu0 0.0
    %5059 = vmatprep.subr.mxu0 0.0
    %5060 = vmatpush2.msra.mxu0 0.0
    %5061 = vmatprep.subr.mxu0 0.0
    %5062 = vmatpush2.msra.mxu0 0.0
    %5063 = vmatprep.mubr.f32.mxu0 0.0
    %5064 = vmatmul.mubr.f32.gmra.mxu0 %v4345
    %v5065 = vpop.f32.mrf.mxu0
    %v5066 = vadd.f32 0.0, %v5065
    %v5067 = vpop.f32.mrf.mxu0
    %5068 = vmatprep.mubr.f32.mxu0 0.0
    %5069 = vmatmul.mubr.f32.gmra.mxu0 %v4348
    %v5070 = vpop.f32.mrf.mxu0
    %v5071 = vadd.f32 0.0, %v5070
    %v5072 = vpop.f32.mrf.mxu0
    %5073 = vdwg.mxu0
    %5074 = vmatprep.subr.mxu0 0.0
    %5075 = vmatpush1.msra.mxu0 0.0
    %5076 = vmatprep.subr.mxu0 0.0
    %5077 = vmatpush1.msra.mxu0 0.0
    %5078 = vmatprep.subr.mxu0 0.0
    %5079 = vmatpush1.msra.mxu0 0.0
    %5080 = vmatprep.subr.mxu0 0.0
    %5081 = vmatpush1.msra.mxu0 0.0
    %5082 = vmatprep.subr.mxu0 0.0
    %5083 = vmatpush1.msra.mxu0 0.0
    %5084 = vmatprep.subr.mxu0 0.0
    %5085 = vmatpush1.msra.mxu0 0.0
    %5086 = vmatprep.subr.mxu0 0.0
    %5087 = vmatpush1.msra.mxu0 0.0
    %5088 = vmatprep.subr.mxu0 0.0
    %5089 = vmatpush1.msra.mxu0 0.0
    %5090 = vmatprep.subr.mxu0 0.0
    %5091 = vmatpush1.msra.mxu0 %v4990
    %5092 = vmatprep.subr.mxu0 0.0
    %5093 = vmatpush1.msra.mxu0 %v4989
    %5094 = vmatprep.subr.mxu0 0.0
    %5095 = vmatpush1.msra.mxu0 %v4988
    %5096 = vmatprep.subr.mxu0 0.0
    %5097 = vmatpush1.msra.mxu0 %v4987
    %5098 = vmatprep.subr.mxu0 0.0
    %5099 = vmatpush1.msra.mxu0 %v4986
    %5100 = vmatprep.subr.mxu0 0.0
    %5101 = vmatpush1.msra.mxu0 %v4985
    %5102 = vmatprep.subr.mxu0 0.0
    %5103 = vmatpush1.msra.mxu0 %v4984
    %5104 = vmatprep.subr.mxu0 0.0
    %5105 = vmatpush1.msra.mxu0 %v4983
    %5106 = vmatprep.subr.mxu0 0.0
    %5107 = vmatpush2.msra.mxu0 0.0
    %5108 = vmatprep.subr.mxu0 0.0
    %5109 = vmatpush2.msra.mxu0 0.0
    %5110 = vmatprep.subr.mxu0 0.0
    %5111 = vmatpush2.msra.mxu0 0.0
    %5112 = vmatprep.subr.mxu0 0.0
    %5113 = vmatpush2.msra.mxu0 0.0
    %5114 = vmatprep.subr.mxu0 0.0
    %5115 = vmatpush2.msra.mxu0 0.0
    %5116 = vmatprep.subr.mxu0 0.0
    %5117 = vmatpush2.msra.mxu0 0.0
    %5118 = vmatprep.subr.mxu0 0.0
    %5119 = vmatpush2.msra.mxu0 0.0
    %5120 = vmatprep.subr.mxu0 0.0
    %5121 = vmatpush2.msra.mxu0 0.0
    %5122 = vmatprep.subr.mxu0 0.0
    %5123 = vmatpush2.msra.mxu0 0.0
    %5124 = vmatprep.subr.mxu0 0.0
    %5125 = vmatpush2.msra.mxu0 0.0
    %5126 = vmatprep.subr.mxu0 0.0
    %5127 = vmatpush2.msra.mxu0 0.0
    %5128 = vmatprep.subr.mxu0 0.0
    %5129 = vmatpush2.msra.mxu0 0.0
    %5130 = vmatprep.subr.mxu0 0.0
    %5131 = vmatpush2.msra.mxu0 0.0
    %5132 = vmatprep.subr.mxu0 0.0
    %5133 = vmatpush2.msra.mxu0 0.0
    %5134 = vmatprep.subr.mxu0 0.0
    %5135 = vmatpush2.msra.mxu0 0.0
    %5136 = vmatprep.subr.mxu0 0.0
    %5137 = vmatpush2.msra.mxu0 0.0
    %5138 = vmatprep.mubr.f32.mxu0 0.0
    %5139 = vmatmul.mubr.f32.gmra.mxu0 %v3168
    %v5140 = vpop.f32.mrf.mxu0
    %v5141 = vadd.f32 %v5066, %v5140
    %v5142 = vpop.f32.mrf.mxu0
    %5143 = vmatprep.mubr.f32.mxu0 0.0
    %5144 = vmatmul.mubr.f32.gmra.mxu0 %v3171
    %v5145 = vpop.f32.mrf.mxu0
    %v5146 = vadd.f32 %v5071, %v5145
    %v5147 = vpop.f32.mrf.mxu0
    %5148 = vdwg.mxu0
    %v5150 = vsel %vm655, %v4981, 0
    %v5153 = vsel %vm655, %v4982, 0
    %5155 = vmatprep.subr.mxu0 0.0
    %5156 = vmatpush1.msra.mxu0 0.0
    %5157 = vmatprep.subr.mxu0 0.0
    %5158 = vmatpush1.msra.mxu0 0.0
    %5159 = vmatprep.subr.mxu0 0.0
    %5160 = vmatpush1.msra.mxu0 0.0
    %5161 = vmatprep.subr.mxu0 0.0
    %5162 = vmatpush1.msra.mxu0 0.0
    %5163 = vmatprep.subr.mxu0 0.0
    %5164 = vmatpush1.msra.mxu0 0.0
    %5165 = vmatprep.subr.mxu0 0.0
    %5166 = vmatpush1.msra.mxu0 0.0
    %5167 = vmatprep.subr.mxu0 0.0
    %5168 = vmatpush1.msra.mxu0 0.0
    %5169 = vmatprep.subr.mxu0 0.0
    %5170 = vmatpush1.msra.mxu0 0.0
    %5171 = vmatprep.subr.mxu0 0.0
    %5172 = vmatpush1.msra.mxu0 0.0
    %5173 = vmatprep.subr.mxu0 0.0
    %5174 = vmatpush1.msra.mxu0 0.0
    %5175 = vmatprep.subr.mxu0 0.0
    %5176 = vmatpush1.msra.mxu0 0.0
    %5177 = vmatprep.subr.mxu0 0.0
    %5178 = vmatpush1.msra.mxu0 0.0
    %5179 = vmatprep.subr.mxu0 0.0
    %5180 = vmatpush1.msra.mxu0 %v4998
    %5181 = vmatprep.subr.mxu0 0.0
    %5182 = vmatpush1.msra.mxu0 %v4997
    %5183 = vmatprep.subr.mxu0 0.0
    %5184 = vmatpush1.msra.mxu0 %v4996
    %5185 = vmatprep.subr.mxu0 0.0
    %5186 = vmatpush1.msra.mxu0 %v4995
    %5187 = vmatprep.subr.mxu0 0.0
    %5188 = vmatpush2.msra.mxu0 0.0
    %5189 = vmatprep.subr.mxu0 0.0
    %5190 = vmatpush2.msra.mxu0 0.0
    %5191 = vmatprep.subr.mxu0 0.0
    %5192 = vmatpush2.msra.mxu0 0.0
    %5193 = vmatprep.subr.mxu0 0.0
    %5194 = vmatpush2.msra.mxu0 0.0
    %5195 = vmatprep.subr.mxu0 0.0
    %5196 = vmatpush2.msra.mxu0 0.0
    %5197 = vmatprep.subr.mxu0 0.0
    %5198 = vmatpush2.msra.mxu0 0.0
    %5199 = vmatprep.subr.mxu0 0.0
    %5200 = vmatpush2.msra.mxu0 0.0
    %5201 = vmatprep.subr.mxu0 0.0
    %5202 = vmatpush2.msra.mxu0 0.0
    %5203 = vmatprep.subr.mxu0 0.0
    %5204 = vmatpush2.msra.mxu0 0.0
    %5205 = vmatprep.subr.mxu0 0.0
    %5206 = vmatpush2.msra.mxu0 0.0
    %5207 = vmatprep.subr.mxu0 0.0
    %5208 = vmatpush2.msra.mxu0 0.0
    %5209 = vmatprep.subr.mxu0 0.0
    %5210 = vmatpush2.msra.mxu0 0.0
    %5211 = vmatprep.subr.mxu0 0.0
    %5212 = vmatpush2.msra.mxu0 0.0
    %5213 = vmatprep.subr.mxu0 0.0
    %5214 = vmatpush2.msra.mxu0 0.0
    %5215 = vmatprep.subr.mxu0 0.0
    %5216 = vmatpush2.msra.mxu0 0.0
    %5217 = vmatprep.subr.mxu0 0.0
    %5218 = vmatpush2.msra.mxu0 0.0
    %5219 = vmatprep.mubr.f32.mxu0 0.0
    %5220 = vmatmul.mubr.f32.gmra.mxu0 %v5150
    %v5221 = vpop.f32.mrf.mxu0
    %v5222 = vadd.f32 0.0, %v5221
    %v5223 = vpop.f32.mrf.mxu0
    %5224 = vmatprep.mubr.f32.mxu0 0.0
    %5225 = vmatmul.mubr.f32.gmra.mxu0 %v5153
    %v5226 = vpop.f32.mrf.mxu0
    %v5227 = vadd.f32 0.0, %v5226
    %v5228 = vpop.f32.mrf.mxu0
    %5229 = vdwg.mxu0
    %v5230 = vadd.f32 %v5141, %v5222
    %v5231 = vadd.f32 %v5146, %v5227
    %v5232 = vld [vmem:[#allocation43] sm:$0x1]
    %v5234 = vlaneseq
    %v5235 = vshrl.u32 %v5234, 7
    %v5236 = vsub.s32 0, %v5235
    %v5237 = vrot.slane %v5232, %v5236
    %v5239 = vadd.f32 %v5230, %v5237
    %v5240 = vadd.f32 %v5231, %v5237
    %v5241 = vld [vmem:[#allocation44] sm:$0x1]
    %v5242 = vld [vmem:[#allocation46] sm:$0x1]
    %v5243 = vsel %vm655, %v5239, 0.0
    %5244 = vadd.xlane.f32.xlu0 %v5243
    %v5245 = vpop.xlane.xlu0 %5244
    %v5246 = vsel %vm655, %v5240, 0.0
    %5247 = vadd.xlane.f32.xlu0 %v5246
    %v5248 = vpop.xlane.xlu0 %5247
    %v5249 = vmul.f32 %v5245, %v3256
    %v5250 = vmul.f32 %v5248, %v3256
    %v5251 = vsub.f32 %v5239, %v5249
    %v5252 = vsub.f32 %v5240, %v5250
    %v5253 = vmul.f32 %v5251, %v5251
    %v5254 = vmul.f32 %v5252, %v5252
    %v5255 = vsel %vm655, %v5253, 0.0
    %5256 = vadd.xlane.f32.xlu0 %v5255
    %v5257 = vpop.xlane.xlu0 %5256
    %v5258 = vsel %vm655, %v5254, 0.0
    %5259 = vadd.xlane.f32.xlu0 %v5258
    %v5260 = vpop.xlane.xlu0 %5259
    %v5261 = vmul.f32 %v5257, %v3256
    %v5262 = vmul.f32 %v5260, %v3256
    %v5263 = vadd.f32 %v5261, 1e-05
    %v5264 = vadd.f32 %v5262, 1e-05
    %v5265 = vrsqrt.pop %v5263
    %v5266 = vrsqrt.pop %v5264
    %v5267 = vmul.f32 %v5251, %v5265
    %v5268 = vmul.f32 %v5252, %v5266
    %v5270 = vlaneseq
    %v5271 = vshrl.u32 %v5270, 7
    %v5272 = vsub.s32 0, %v5271
    %v5273 = vrot.slane %v5241, %v5272
    %v5275 = vmul.f32 %v5267, %v5273
    %v5276 = vmul.f32 %v5268, %v5273
    %v5278 = vlaneseq
    %v5279 = vshrl.u32 %v5278, 7
    %v5280 = vsub.s32 0, %v5279
    %v5281 = vrot.slane %v5242, %v5280
    %v5283 = vadd.f32 %v5275, %v5281
    %v5284 = vadd.f32 %v5276, %v5281
    %v5285 = vmul.f32 %v5283, 0.5
    %v5286 = vmul.f32 %v5284, 0.5
    %v5287 = vmul.f32 %v5283, 0.70710677
    %v5288 = vmul.f32 %v5284, 0.70710677
    %v5289 = verf.f32.pop %v5287
    %v5290 = verf.f32.pop %v5288
    %v5291 = vadd.f32 %v5289, 1.0
    %v5292 = vadd.f32 %v5290, 1.0
    %v5293 = vmul.f32 %v5285, %v5291
    %v5294 = vmul.f32 %v5286, %v5292
    %5295 = vst.msk [vmem:[#allocation47] sm:$0xff] %vm655, %v5293
    %5296 = vst.msk [vmem:[#allocation47 + $0x8] sm:$0xff] %vm655, %v5294
    // Predicated region
    $region270: #{unified_resonance_forward.1} parent=1 // pred_check
      _
    $region271: #{unified_resonance_forward.1} parent=1 // pred_check_branch
      %5298 = sbr.rel (0) target = $region273
    $region272: #{unified_resonance_forward.1} parent=1 // pred_region
      %s5300 = ssub.s32 256, 256
      %5301 = vsyncadd [#allocation4], %s5300
      %s5302 = sshll.u32 [#allocation47], 4
      %s5303 = int_to_ptr.vmem [resolvable:$true] %s5302
      %5308 = dma.vmem_to_hbm [thread:$0]  %s5303, 256, %s77, [#allocation4], 128, 128, 8
    $region273: #{unified_resonance_forward.1} parent=1 // pred_fallthru
      _
    // Predicated region
    $region274: #{unified_resonance_forward.1} parent=1 // pred_check
      _
    $region275: #{unified_resonance_forward.1} parent=1 // pred_check_branch
      %5310 = sbr.rel (0) target = $region277
    $region276: #{unified_resonance_forward.1} parent=1 // pred_region
      %5311 = dma.done [#allocation4], 256
    $region277: #{unified_resonance_forward.1} parent=1 // pred_fallthru
      _
    %5312 = vsyncpa [#allocation3], 1
    %5313 = vsyncpa [#allocation6], 1
    %5314 = vsyncpa [#allocation9], 1
    %5315 = vsyncpa [#allocation12], 1
    %5316 = vsyncpa [#allocation15], 1
    %5317 = vsyncpa [#allocation18], 1
    %5318 = vsyncpa [#allocation21], 1
    %5319 = vsyncpa [#allocation24], 1
    %5320 = vsyncpa [#allocation27], 1
    %5321 = vsyncpa [#allocation30], 1
    %5322 = vsyncpa [#allocation33], 1
    %5323 = vsyncpa [#allocation36], 1
    %5324 = vsyncpa [#allocation39], 1
    %5325 = vsyncpa [#allocation42], 1
    %5326 = vsyncpa [#allocation45], 1
    %5327 = vsyncpa [#allocation4], 1

</llo_original>
